<compile_context>
chip_gen: v6e
topology: v6e:2x2x1
jax: 0.10.0
libtpu: 0.0.40
codegen_flags: <defaults>
</compile_context>

<pallas_src>
import functools

import jax
import jax.numpy as jnp
from jax import lax
from jax.experimental import pallas as pl
from jax.experimental.pallas import tpu as pltpu

# module constants (from the PyTorch source)
BLK_SIZE = 32                     # blk_size
N_EMBED = 384                     # n_embed
N_HEADS = 6
HEAD_SIZE = N_EMBED // N_HEADS    # 64
D_CAT = N_HEADS * HEAD_SIZE       # 384
NEG_BIG = -1e30                   # finite causal-mask sentinel


def _mha_kernel(x_ref, wqkv_ref, wp_ref, bp_ref, o_ref, qkv_ref, *, batch, seq):
    # x_ref   : (B*T, C)    bf16  folded-batch activations
    # wqkv_ref: (C, 3*D)    bf16  packed [Q*sqrt(hs) | K | V] projection
    # wp_ref  : (D, E)      bf16  output projection weight (already transposed)
    # bp_ref  : (1, E)      f32   output projection bias
    # o_ref   : (B*T, E)    f32   output, accumulated per head (lane-dense)
    # qkv_ref : (B*T, 3*D)  bf16  VMEM scratch for the staged projection
    f32 = jnp.float32
    bf16 = jnp.bfloat16

    # 1) One wide QKV projection over the whole folded-batch slab.
    #    bf16 MXU operands, f32 accumulation; result staged in VMEM as bf16.
    qkv_ref[...] = jnp.dot(x_ref[...], wqkv_ref[...],
                           preferred_element_type=f32).astype(bf16)

    # 2) Output accumulator starts at the bias (broadcast over rows).
    o_ref[...] = jnp.broadcast_to(bp_ref[...], o_ref.shape)

    # Causal mask, hoisted out of the (batch, head) loops.
    row = lax.broadcasted_iota(jnp.int32, (seq, seq), 0)
    col = lax.broadcasted_iota(jnp.int32, (seq, seq), 1)
    causal = col <= row

    for b in range(batch):                       # static, unrolled
        r0 = b * seq
        for h in range(N_HEADS):                 # static, unrolled (6 heads)
            c0 = h * HEAD_SIZE
            # Static ref slices = plain offset loads (no in-register relayout).
            q = qkv_ref[r0:r0 + seq, c0:c0 + HEAD_SIZE]                           # (T, hs)
            k = qkv_ref[r0:r0 + seq, D_CAT + c0:D_CAT + c0 + HEAD_SIZE]           # (T, hs)
            v = qkv_ref[r0:r0 + seq, 2 * D_CAT + c0:2 * D_CAT + c0 + HEAD_SIZE]   # (T, hs)

            # scores = q @ k^T  (the *sqrt(head_size) scale is pre-folded into Q)
            s = lax.dot_general(q, k, (((1,), (1,)), ((), ())),
                                preferred_element_type=f32)                       # (T, T) f32
            s = jnp.where(causal, s, NEG_BIG)

            # numerically-stable softmax, all f32, exact normalisation
            m = jnp.max(s, axis=-1, keepdims=True)
            e = jnp.exp(s - m)
            p = e / jnp.sum(e, axis=-1, keepdims=True)

            head = jnp.dot(p.astype(bf16), v, preferred_element_type=f32)         # (T, hs) f32

            # Fold this head straight through its slice of the output projection:
            # row-slice of wp is sublane-aligned, the += store is lane-dense.
            o_ref[r0:r0 + seq, :] += jnp.dot(
                head.astype(bf16), wp_ref[c0:c0 + HEAD_SIZE, :],
                preferred_element_type=f32)


def multi_head_attention(x, wq, wk, wv, wp_t, bp):
    """x: (B, T, C) f32.  wq/wk/wv: (H, C, hs).  wp_t: (H*hs, E).  bp: (1, E)."""
    B, T, C = x.shape
    H, hs = wq.shape[0], wq.shape[2]
    assert C == N_EMBED and H == N_HEADS and hs == HEAD_SIZE and T <= BLK_SIZE
    assert T % 8 == 0  # keep row slices sublane-aligned

    # Pack per-head weights into one wide QKV projection matrix and fold the
    # module's *sqrt(head_size) score scaling into the Q columns (trace-time,
    # zero in-kernel cost).  Columns [h*hs:(h+1)*hs] of each block == w?[h].
    def _stack(w):                                    # (H, C, hs) -> (C, H*hs)
        return jnp.transpose(w, (1, 0, 2)).reshape(C, H * hs)

    scale = float(hs) ** 0.5
    wqkv = jnp.concatenate([_stack(wq) * scale, _stack(wk), _stack(wv)], axis=1)

    # bf16 MXU operands (casts done once in the wrapper; f32 accumulation in-kernel)
    x2d = x.reshape(B * T, C).astype(jnp.bfloat16)
    wqkv = wqkv.astype(jnp.bfloat16)
    wp = wp_t.astype(jnp.bfloat16)
    bias = bp.reshape(1, -1).astype(jnp.float32)

    kernel = functools.partial(_mha_kernel, batch=B, seq=T)

    out2d = pl.pallas_call(
        kernel,
        out_shape=jax.ShapeDtypeStruct((B * T, N_EMBED), jnp.float32),
        grid_spec=pltpu.PrefetchScalarGridSpec(
            num_scalar_prefetch=0,
            grid=(1,),   # batch folded into M; whole working set ~2.7 MB of VMEM
            in_specs=[
                pl.BlockSpec((B * T, C), lambda i: (0, 0)),            # x (folded)
                pl.BlockSpec((C, 3 * H * hs), lambda i: (0, 0)),       # packed W_qkv
                pl.BlockSpec((H * hs, N_EMBED), lambda i: (0, 0)),     # Wproj^T
                pl.BlockSpec((1, N_EMBED), lambda i: (0, 0)),          # bias
            ],
            out_specs=pl.BlockSpec((B * T, N_EMBED), lambda i: (0, 0)),
            scratch_shapes=[pltpu.VMEM((B * T, 3 * H * hs), jnp.bfloat16)],
        ),
        compiler_params=pltpu.CompilerParams(
            dimension_semantics=("arbitrary",)),
    )(x2d, wqkv, wp, bias)

    return out2d.reshape(B, T, N_EMBED)


def _reference_f32(x, wq, wk, wv, wp_t, bp):
    """Pure-JAX f32 mirror of the PyTorch forward (eval mode)."""
    T = x.shape[1]
    tril = jnp.tril(jnp.ones((T, T)))
    outs = []
    for h in range(N_HEADS):
        q = x @ wq[h]
        k = x @ wk[h]
        v = x @ wv[h]
        s = q @ jnp.swapaxes(k, -1, -2) * (k.shape[-1] ** 0.5)   # module MULTIPLIES
        s = jnp.where(tril == 0, -jnp.inf, s)
        p = jax.nn.softmax(s, axis=-1)
        outs.append(p @ v)
    cat = jnp.concatenate(outs, axis=-1)
    return cat @ wp_t + bp


def _reference_matched(x, wq, wk, wv, wp_t, bp):
    """Same math with the kernel's precision choices (bf16 MXU operands, f32
    accumulation, f32 softmax) — used to check the kernel structure tightly."""
    bf, f32 = jnp.bfloat16, jnp.float32
    B, T, _ = x.shape
    hs = wq.shape[2]
    scale = float(hs) ** 0.5
    mask = jnp.tril(jnp.ones((T, T))) == 1
    xb = x.astype(bf)
    out = jnp.broadcast_to(bp.astype(f32), (B, T, wp_t.shape[1]))
    for h in range(N_HEADS):
        q = jnp.dot(xb, (wq[h] * scale).astype(bf), preferred_element_type=f32).astype(bf)
        k = jnp.dot(xb, wk[h].astype(bf), preferred_element_type=f32).astype(bf)
        v = jnp.dot(xb, wv[h].astype(bf), preferred_element_type=f32).astype(bf)
        s = jnp.einsum("btd,bsd->bts", q, k, preferred_element_type=f32)
        s = jnp.where(mask, s, NEG_BIG)
        e = jnp.exp(s - jnp.max(s, axis=-1, keepdims=True))
        p = e / jnp.sum(e, axis=-1, keepdims=True)
        head = jnp.einsum("bts,bsd->btd", p.astype(bf), v, preferred_element_type=f32)
        out = out + jnp.dot(head.astype(bf), wp_t[h * hs:(h + 1) * hs].astype(bf),
                            preferred_element_type=f32)
    return out


if __name__ == "__main__":
    key = jax.random.PRNGKey(0)
    kx, kq, kk, kv, kp, kb = jax.random.split(key, 6)

    B, T = 2, BLK_SIZE   # small batch, full block-size sequence

    x = jax.random.normal(kx, (B, T, N_EMBED), dtype=jnp.float32)

    # deterministic parameter init (PyTorch-Linear-style uniform scaling)
    lim = 1.0 / (N_EMBED ** 0.5)
    wq = jax.random.uniform(kq, (N_HEADS, N_EMBED, HEAD_SIZE), jnp.float32, -lim, lim)
    wk = jax.random.uniform(kk, (N_HEADS, N_EMBED, HEAD_SIZE), jnp.float32, -lim, lim)
    wv = jax.random.uniform(kv, (N_HEADS, N_EMBED, HEAD_SIZE), jnp.float32, -lim, lim)
    limp = 1.0 / (D_CAT ** 0.5)
    wp_t = jax.random.uniform(kp, (D_CAT, N_EMBED), jnp.float32, -limp, limp)
    bp = jax.random.uniform(kb, (1, N_EMBED), jnp.float32, -limp, limp)

    out = multi_head_attention(x, wq, wk, wv, wp_t, bp)
    out = jax.block_until_ready(out)
    assert out.shape == (B, T, N_EMBED)

    # 1) Tight element-wise check against a reference using the SAME precision
    #    choices: validates packing, masking, softmax and head fusion exactly.
    ref_matched = _reference_matched(x, wq, wk, wv, wp_t, bp)
    assert jnp.allclose(out, ref_matched, atol=5e-3, rtol=5e-3), \
        "kernel disagrees with matched-precision reference"

    # 2) Aggregate check against the pure-f32 module semantics.  bf16 operands
    #    plus the module's *sqrt(head_size) logit scaling (~|logit| ≈ 20) make
    #    isolated elements on near-tied softmax rows the dominant error, so the
    #    f32 comparison is judged by relative Frobenius error (a structural bug
    #    would put this at O(0.3-1), not O(0.01)).
    ref_f32 = _reference_f32(x, wq, wk, wv, wp_t, bp)
    rel_err = jnp.sqrt(jnp.sum((out - ref_f32) ** 2) / jnp.sum(ref_f32 ** 2))
    assert rel_err < 3e-2, f"relative error vs f32 reference too large: {rel_err}"

    print("KERNEL_OK")
</pallas_src>

<mosaic_0001>
module attributes {stable_mosaic.version = 11 : i64} {
  func.func @_mha_kernel(%arg0: i32, %arg1: memref<64x384xbf16, #tpu.memory_space<vmem>>, %arg2: memref<384x1152xbf16, #tpu.memory_space<vmem>>, %arg3: memref<384x384xbf16, #tpu.memory_space<vmem>>, %arg4: memref<1x384xf32, #tpu.memory_space<vmem>>, %arg5: memref<64x384xf32, #tpu.memory_space<vmem>>, %arg6: memref<64x1152xbf16, #tpu.memory_space<vmem>>) attributes {dimension_semantics = [#tpu.dimension_semantics<arbitrary>], iteration_bounds = array<i64: 1>, scalar_prefetch = 0 : i64, scratch_operands = 1 : i64, tpu.core_type = #tpu.core_type<tc>, window_params = [{pipeline_mode = #tpu.pipeline_mode<synchronous>, transform_indices = @transform_0, window_bounds = array<i64: 64, 384>}, {pipeline_mode = #tpu.pipeline_mode<synchronous>, transform_indices = @transform_1, window_bounds = array<i64: 384, 1152>}, {pipeline_mode = #tpu.pipeline_mode<synchronous>, transform_indices = @transform_2, window_bounds = array<i64: 384, 384>}, {pipeline_mode = #tpu.pipeline_mode<synchronous>, transform_indices = @transform_3, window_bounds = array<i64: 1, 384>}, {pipeline_mode = #tpu.pipeline_mode<synchronous>, transform_indices = @transform_4, window_bounds = array<i64: 64, 384>}]} {
    %c0 = arith.constant 0 : index
    %c0_0 = arith.constant 0 : index
    %0 = vector.load %arg1[%c0, %c0_0] : memref<64x384xbf16, #tpu.memory_space<vmem>>, vector<64x384xbf16>
    %c0_1 = arith.constant 0 : index
    %c0_2 = arith.constant 0 : index
    %1 = vector.load %arg2[%c0_1, %c0_2] : memref<384x1152xbf16, #tpu.memory_space<vmem>>, vector<384x1152xbf16>
    %cst = arith.constant dense<0.000000e+00> : vector<64x1152xf32>
    %2 = tpu.matmul %0, %1, %cst {dimension_numbers = #tpu.dot_dimension_numbers<[1], [0], [0], [1], [0, 0, 1, 1], [], []>} : vector<64x384xbf16>, vector<384x1152xbf16>, vector<64x1152xf32> -> vector<64x1152xf32>
    %3 = arith.truncf %2 : vector<64x1152xf32> to vector<64x1152xbf16>
    %c0_3 = arith.constant 0 : index
    %c0_4 = arith.constant 0 : index
    %4 = vector.load %arg6[%c0_3, %c0_4] : memref<64x1152xbf16, #tpu.memory_space<vmem>>, vector<64x1152xbf16>
    tpu.vector_store %arg6[%c0_3, %c0_4], %3 {strides = array<i32>} : memref<64x1152xbf16, #tpu.memory_space<vmem>>, vector<64x1152xbf16>,
    %c0_5 = arith.constant 0 : index
    %c0_6 = arith.constant 0 : index
    %5 = vector.load %arg4[%c0_5, %c0_6] : memref<1x384xf32, #tpu.memory_space<vmem>>, vector<1x384xf32>
    %6 = vector.shape_cast %5 : vector<1x384xf32> to vector<1x384xf32>
    %7 = vector.broadcast %6 : vector<1x384xf32> to vector<64x384xf32>
    %c0_7 = arith.constant 0 : index
    %c0_8 = arith.constant 0 : index
    %8 = vector.load %arg5[%c0_7, %c0_8] : memref<64x384xf32, #tpu.memory_space<vmem>>, vector<64x384xf32>
    tpu.vector_store %arg5[%c0_7, %c0_8], %7 {strides = array<i32>} : memref<64x384xf32, #tpu.memory_space<vmem>>, vector<64x384xf32>,
    %9 = tpu.iota {dimensions = array<i32: 0>} : vector<32x32xi32>
    %10 = tpu.iota {dimensions = array<i32: 1>} : vector<32x32xi32>
    %11 = arith.cmpi sle, %10, %9 : vector<32x32xi32>
    %c0_9 = arith.constant 0 : index
    %c0_10 = arith.constant 0 : index
    %12 = vector.load %arg6[%c0_9, %c0_10] : memref<64x1152xbf16, #tpu.memory_space<vmem>>, vector<32x64xbf16>
    %c0_11 = arith.constant 0 : index
    %c384 = arith.constant 384 : index
    %13 = vector.load %arg6[%c0_11, %c384] : memref<64x1152xbf16, #tpu.memory_space<vmem>>, vector<32x64xbf16>
    %c0_12 = arith.constant 0 : index
    %c768 = arith.constant 768 : index
    %14 = vector.load %arg6[%c0_12, %c768] : memref<64x1152xbf16, #tpu.memory_space<vmem>>, vector<32x64xbf16>
    %cst_13 = arith.constant dense<0.000000e+00> : vector<32x32xf32>
    %15 = tpu.matmul %12, %13, %cst_13 {dimension_numbers = #tpu.dot_dimension_numbers<[1], [1], [0], [0], [0, 0, 1, 0], [], []>} : vector<32x64xbf16>, vector<32x64xbf16>, vector<32x32xf32> -> vector<32x32xf32>
    %cst_14 = arith.constant -1.000000e+30 : f32
    %16 = vector.broadcast %cst_14 : f32 to vector<32x32xf32>
    %17 = arith.select %11, %15, %16 : vector<32x32xi1>, vector<32x32xf32>
    %cst_15 = arith.constant dense<0xFF800000> : vector<32xf32>
    %18 = vector.multi_reduction <maximumf>, %17, %cst_15 [1] : vector<32x32xf32> to vector<32xf32>
    %19 = vector.shape_cast %18 : vector<32xf32> to vector<32x1xf32>
    %20 = vector.broadcast %19 : vector<32x1xf32> to vector<32x32xf32>
    %21 = arith.subf %17, %20 : vector<32x32xf32>
    %22 = math.exp %21 : vector<32x32xf32>
    %cst_16 = arith.constant dense<0.000000e+00> : vector<32xf32>
    %23 = vector.multi_reduction <add>, %22, %cst_16 [1] : vector<32x32xf32> to vector<32xf32>
    %24 = vector.shape_cast %23 : vector<32xf32> to vector<32x1xf32>
    %25 = vector.broadcast %24 : vector<32x1xf32> to vector<32x32xf32>
    %26 = arith.divf %22, %25 : vector<32x32xf32>
    %27 = arith.truncf %26 : vector<32x32xf32> to vector<32x32xbf16>
    %cst_17 = arith.constant dense<0.000000e+00> : vector<32x64xf32>
    %28 = tpu.matmul %27, %14, %cst_17 {dimension_numbers = #tpu.dot_dimension_numbers<[1], [0], [0], [1], [0, 0, 1, 1], [], []>} : vector<32x32xbf16>, vector<32x64xbf16>, vector<32x64xf32> -> vector<32x64xf32>
    %c0_18 = arith.constant 0 : index
    %c0_19 = arith.constant 0 : index
    %29 = vector.load %arg5[%c0_18, %c0_19] : memref<64x384xf32, #tpu.memory_space<vmem>>, vector<32x384xf32>
    %30 = arith.truncf %28 : vector<32x64xf32> to vector<32x64xbf16>
    %c0_20 = arith.constant 0 : index
    %c0_21 = arith.constant 0 : index
    %31 = vector.load %arg3[%c0_20, %c0_21] : memref<384x384xbf16, #tpu.memory_space<vmem>>, vector<64x384xbf16>
    %cst_22 = arith.constant dense<0.000000e+00> : vector<32x384xf32>
    %32 = tpu.matmul %30, %31, %cst_22 {dimension_numbers = #tpu.dot_dimension_numbers<[1], [0], [0], [1], [0, 0, 1, 1], [], []>} : vector<32x64xbf16>, vector<64x384xbf16>, vector<32x384xf32> -> vector<32x384xf32>
    %33 = arith.addf %29, %32 : vector<32x384xf32>
    %c0_23 = arith.constant 0 : index
    %c0_24 = arith.constant 0 : index
    %34 = vector.load %arg5[%c0_23, %c0_24] : memref<64x384xf32, #tpu.memory_space<vmem>>, vector<32x384xf32>
    tpu.vector_store %arg5[%c0_23, %c0_24], %33 {strides = array<i32>} : memref<64x384xf32, #tpu.memory_space<vmem>>, vector<32x384xf32>,
    %c0_25 = arith.constant 0 : index
    %c64 = arith.constant 64 : index
    %35 = vector.load %arg6[%c0_25, %c64] : memref<64x1152xbf16, #tpu.memory_space<vmem>>, vector<32x64xbf16>
    %c0_26 = arith.constant 0 : index
    %c448 = arith.constant 448 : index
    %36 = vector.load %arg6[%c0_26, %c448] : memref<64x1152xbf16, #tpu.memory_space<vmem>>, vector<32x64xbf16>
    %c0_27 = arith.constant 0 : index
    %c832 = arith.constant 832 : index
    %37 = vector.load %arg6[%c0_27, %c832] : memref<64x1152xbf16, #tpu.memory_space<vmem>>, vector<32x64xbf16>
    %cst_28 = arith.constant dense<0.000000e+00> : vector<32x32xf32>
    %38 = tpu.matmul %35, %36, %cst_28 {dimension_numbers = #tpu.dot_dimension_numbers<[1], [1], [0], [0], [0, 0, 1, 0], [], []>} : vector<32x64xbf16>, vector<32x64xbf16>, vector<32x32xf32> -> vector<32x32xf32>
    %cst_29 = arith.constant -1.000000e+30 : f32
    %39 = vector.broadcast %cst_29 : f32 to vector<32x32xf32>
    %40 = arith.select %11, %38, %39 : vector<32x32xi1>, vector<32x32xf32>
    %cst_30 = arith.constant dense<0xFF800000> : vector<32xf32>
    %41 = vector.multi_reduction <maximumf>, %40, %cst_30 [1] : vector<32x32xf32> to vector<32xf32>
    %42 = vector.shape_cast %41 : vector<32xf32> to vector<32x1xf32>
    %43 = vector.broadcast %42 : vector<32x1xf32> to vector<32x32xf32>
    %44 = arith.subf %40, %43 : vector<32x32xf32>
    %45 = math.exp %44 : vector<32x32xf32>
    %cst_31 = arith.constant dense<0.000000e+00> : vector<32xf32>
    %46 = vector.multi_reduction <add>, %45, %cst_31 [1] : vector<32x32xf32> to vector<32xf32>
    %47 = vector.shape_cast %46 : vector<32xf32> to vector<32x1xf32>
    %48 = vector.broadcast %47 : vector<32x1xf32> to vector<32x32xf32>
    %49 = arith.divf %45, %48 : vector<32x32xf32>
    %50 = arith.truncf %49 : vector<32x32xf32> to vector<32x32xbf16>
    %cst_32 = arith.constant dense<0.000000e+00> : vector<32x64xf32>
    %51 = tpu.matmul %50, %37, %cst_32 {dimension_numbers = #tpu.dot_dimension_numbers<[1], [0], [0], [1], [0, 0, 1, 1], [], []>} : vector<32x32xbf16>, vector<32x64xbf16>, vector<32x64xf32> -> vector<32x64xf32>
    %c0_33 = arith.constant 0 : index
    %c0_34 = arith.constant 0 : index
    %52 = vector.load %arg5[%c0_33, %c0_34] : memref<64x384xf32, #tpu.memory_space<vmem>>, vector<32x384xf32>
    %53 = arith.truncf %51 : vector<32x64xf32> to vector<32x64xbf16>
    %c64_35 = arith.constant 64 : index
    %c0_36 = arith.constant 0 : index
    %54 = vector.load %arg3[%c64_35, %c0_36] : memref<384x384xbf16, #tpu.memory_space<vmem>>, vector<64x384xbf16>
    %cst_37 = arith.constant dense<0.000000e+00> : vector<32x384xf32>
    %55 = tpu.matmul %53, %54, %cst_37 {dimension_numbers = #tpu.dot_dimension_numbers<[1], [0], [0], [1], [0, 0, 1, 1], [], []>} : vector<32x64xbf16>, vector<64x384xbf16>, vector<32x384xf32> -> vector<32x384xf32>
    %56 = arith.addf %52, %55 : vector<32x384xf32>
    %c0_38 = arith.constant 0 : index
    %c0_39 = arith.constant 0 : index
    %57 = vector.load %arg5[%c0_38, %c0_39] : memref<64x384xf32, #tpu.memory_space<vmem>>, vector<32x384xf32>
    tpu.vector_store %arg5[%c0_38, %c0_39], %56 {strides = array<i32>} : memref<64x384xf32, #tpu.memory_space<vmem>>, vector<32x384xf32>,
    %c0_40 = arith.constant 0 : index
    %c128 = arith.constant 128 : index
    %58 = vector.load %arg6[%c0_40, %c128] : memref<64x1152xbf16, #tpu.memory_space<vmem>>, vector<32x64xbf16>
    %c0_41 = arith.constant 0 : index
    %c512 = arith.constant 512 : index
    %59 = vector.load %arg6[%c0_41, %c512] : memref<64x1152xbf16, #tpu.memory_space<vmem>>, vector<32x64xbf16>
    %c0_42 = arith.constant 0 : index
    %c896 = arith.constant 896 : index
    %60 = vector.load %arg6[%c0_42, %c896] : memref<64x1152xbf16, #tpu.memory_space<vmem>>, vector<32x64xbf16>
    %cst_43 = arith.constant dense<0.000000e+00> : vector<32x32xf32>
    %61 = tpu.matmul %58, %59, %cst_43 {dimension_numbers = #tpu.dot_dimension_numbers<[1], [1], [0], [0], [0, 0, 1, 0], [], []>} : vector<32x64xbf16>, vector<32x64xbf16>, vector<32x32xf32> -> vector<32x32xf32>
    %cst_44 = arith.constant -1.000000e+30 : f32
    %62 = vector.broadcast %cst_44 : f32 to vector<32x32xf32>
    %63 = arith.select %11, %61, %62 : vector<32x32xi1>, vector<32x32xf32>
    %cst_45 = arith.constant dense<0xFF800000> : vector<32xf32>
    %64 = vector.multi_reduction <maximumf>, %63, %cst_45 [1] : vector<32x32xf32> to vector<32xf32>
    %65 = vector.shape_cast %64 : vector<32xf32> to vector<32x1xf32>
    %66 = vector.broadcast %65 : vector<32x1xf32> to vector<32x32xf32>
    %67 = arith.subf %63, %66 : vector<32x32xf32>
    %68 = math.exp %67 : vector<32x32xf32>
    %cst_46 = arith.constant dense<0.000000e+00> : vector<32xf32>
    %69 = vector.multi_reduction <add>, %68, %cst_46 [1] : vector<32x32xf32> to vector<32xf32>
    %70 = vector.shape_cast %69 : vector<32xf32> to vector<32x1xf32>
    %71 = vector.broadcast %70 : vector<32x1xf32> to vector<32x32xf32>
    %72 = arith.divf %68, %71 : vector<32x32xf32>
    %73 = arith.truncf %72 : vector<32x32xf32> to vector<32x32xbf16>
    %cst_47 = arith.constant dense<0.000000e+00> : vector<32x64xf32>
    %74 = tpu.matmul %73, %60, %cst_47 {dimension_numbers = #tpu.dot_dimension_numbers<[1], [0], [0], [1], [0, 0, 1, 1], [], []>} : vector<32x32xbf16>, vector<32x64xbf16>, vector<32x64xf32> -> vector<32x64xf32>
    %c0_48 = arith.constant 0 : index
    %c0_49 = arith.constant 0 : index
    %75 = vector.load %arg5[%c0_48, %c0_49] : memref<64x384xf32, #tpu.memory_space<vmem>>, vector<32x384xf32>
    %76 = arith.truncf %74 : vector<32x64xf32> to vector<32x64xbf16>
    %c128_50 = arith.constant 128 : index
    %c0_51 = arith.constant 0 : index
    %77 = vector.load %arg3[%c128_50, %c0_51] : memref<384x384xbf16, #tpu.memory_space<vmem>>, vector<64x384xbf16>
    %cst_52 = arith.constant dense<0.000000e+00> : vector<32x384xf32>
    %78 = tpu.matmul %76, %77, %cst_52 {dimension_numbers = #tpu.dot_dimension_numbers<[1], [0], [0], [1], [0, 0, 1, 1], [], []>} : vector<32x64xbf16>, vector<64x384xbf16>, vector<32x384xf32> -> vector<32x384xf32>
    %79 = arith.addf %75, %78 : vector<32x384xf32>
    %c0_53 = arith.constant 0 : index
    %c0_54 = arith.constant 0 : index
    %80 = vector.load %arg5[%c0_53, %c0_54] : memref<64x384xf32, #tpu.memory_space<vmem>>, vector<32x384xf32>
    tpu.vector_store %arg5[%c0_53, %c0_54], %79 {strides = array<i32>} : memref<64x384xf32, #tpu.memory_space<vmem>>, vector<32x384xf32>,
    %c0_55 = arith.constant 0 : index
    %c192 = arith.constant 192 : index
    %81 = vector.load %arg6[%c0_55, %c192] : memref<64x1152xbf16, #tpu.memory_space<vmem>>, vector<32x64xbf16>
    %c0_56 = arith.constant 0 : index
    %c576 = arith.constant 576 : index
    %82 = vector.load %arg6[%c0_56, %c576] : memref<64x1152xbf16, #tpu.memory_space<vmem>>, vector<32x64xbf16>
    %c0_57 = arith.constant 0 : index
    %c960 = arith.constant 960 : index
    %83 = vector.load %arg6[%c0_57, %c960] : memref<64x1152xbf16, #tpu.memory_space<vmem>>, vector<32x64xbf16>
    %cst_58 = arith.constant dense<0.000000e+00> : vector<32x32xf32>
    %84 = tpu.matmul %81, %82, %cst_58 {dimension_numbers = #tpu.dot_dimension_numbers<[1], [1], [0], [0], [0, 0, 1, 0], [], []>} : vector<32x64xbf16>, vector<32x64xbf16>, vector<32x32xf32> -> vector<32x32xf32>
    %cst_59 = arith.constant -1.000000e+30 : f32
    %85 = vector.broadcast %cst_59 : f32 to vector<32x32xf32>
    %86 = arith.select %11, %84, %85 : vector<32x32xi1>, vector<32x32xf32>
    %cst_60 = arith.constant dense<0xFF800000> : vector<32xf32>
    %87 = vector.multi_reduction <maximumf>, %86, %cst_60 [1] : vector<32x32xf32> to vector<32xf32>
    %88 = vector.shape_cast %87 : vector<32xf32> to vector<32x1xf32>
    %89 = vector.broadcast %88 : vector<32x1xf32> to vector<32x32xf32>
    %90 = arith.subf %86, %89 : vector<32x32xf32>
    %91 = math.exp %90 : vector<32x32xf32>
    %cst_61 = arith.constant dense<0.000000e+00> : vector<32xf32>
    %92 = vector.multi_reduction <add>, %91, %cst_61 [1] : vector<32x32xf32> to vector<32xf32>
    %93 = vector.shape_cast %92 : vector<32xf32> to vector<32x1xf32>
    %94 = vector.broadcast %93 : vector<32x1xf32> to vector<32x32xf32>
    %95 = arith.divf %91, %94 : vector<32x32xf32>
    %96 = arith.truncf %95 : vector<32x32xf32> to vector<32x32xbf16>
    %cst_62 = arith.constant dense<0.000000e+00> : vector<32x64xf32>
    %97 = tpu.matmul %96, %83, %cst_62 {dimension_numbers = #tpu.dot_dimension_numbers<[1], [0], [0], [1], [0, 0, 1, 1], [], []>} : vector<32x32xbf16>, vector<32x64xbf16>, vector<32x64xf32> -> vector<32x64xf32>
    %c0_63 = arith.constant 0 : index
    %c0_64 = arith.constant 0 : index
    %98 = vector.load %arg5[%c0_63, %c0_64] : memref<64x384xf32, #tpu.memory_space<vmem>>, vector<32x384xf32>
    %99 = arith.truncf %97 : vector<32x64xf32> to vector<32x64xbf16>
    %c192_65 = arith.constant 192 : index
    %c0_66 = arith.constant 0 : index
    %100 = vector.load %arg3[%c192_65, %c0_66] : memref<384x384xbf16, #tpu.memory_space<vmem>>, vector<64x384xbf16>
    %cst_67 = arith.constant dense<0.000000e+00> : vector<32x384xf32>
    %101 = tpu.matmul %99, %100, %cst_67 {dimension_numbers = #tpu.dot_dimension_numbers<[1], [0], [0], [1], [0, 0, 1, 1], [], []>} : vector<32x64xbf16>, vector<64x384xbf16>, vector<32x384xf32> -> vector<32x384xf32>
    %102 = arith.addf %98, %101 : vector<32x384xf32>
    %c0_68 = arith.constant 0 : index
    %c0_69 = arith.constant 0 : index
    %103 = vector.load %arg5[%c0_68, %c0_69] : memref<64x384xf32, #tpu.memory_space<vmem>>, vector<32x384xf32>
    tpu.vector_store %arg5[%c0_68, %c0_69], %102 {strides = array<i32>} : memref<64x384xf32, #tpu.memory_space<vmem>>, vector<32x384xf32>,
    %c0_70 = arith.constant 0 : index
    %c256 = arith.constant 256 : index
    %104 = vector.load %arg6[%c0_70, %c256] : memref<64x1152xbf16, #tpu.memory_space<vmem>>, vector<32x64xbf16>
    %c0_71 = arith.constant 0 : index
    %c640 = arith.constant 640 : index
    %105 = vector.load %arg6[%c0_71, %c640] : memref<64x1152xbf16, #tpu.memory_space<vmem>>, vector<32x64xbf16>
    %c0_72 = arith.constant 0 : index
    %c1024 = arith.constant 1024 : index
    %106 = vector.load %arg6[%c0_72, %c1024] : memref<64x1152xbf16, #tpu.memory_space<vmem>>, vector<32x64xbf16>
    %cst_73 = arith.constant dense<0.000000e+00> : vector<32x32xf32>
    %107 = tpu.matmul %104, %105, %cst_73 {dimension_numbers = #tpu.dot_dimension_numbers<[1], [1], [0], [0], [0, 0, 1, 0], [], []>} : vector<32x64xbf16>, vector<32x64xbf16>, vector<32x32xf32> -> vector<32x32xf32>
    %cst_74 = arith.constant -1.000000e+30 : f32
    %108 = vector.broadcast %cst_74 : f32 to vector<32x32xf32>
    %109 = arith.select %11, %107, %108 : vector<32x32xi1>, vector<32x32xf32>
    %cst_75 = arith.constant dense<0xFF800000> : vector<32xf32>
    %110 = vector.multi_reduction <maximumf>, %109, %cst_75 [1] : vector<32x32xf32> to vector<32xf32>
    %111 = vector.shape_cast %110 : vector<32xf32> to vector<32x1xf32>
    %112 = vector.broadcast %111 : vector<32x1xf32> to vector<32x32xf32>
    %113 = arith.subf %109, %112 : vector<32x32xf32>
    %114 = math.exp %113 : vector<32x32xf32>
    %cst_76 = arith.constant dense<0.000000e+00> : vector<32xf32>
    %115 = vector.multi_reduction <add>, %114, %cst_76 [1] : vector<32x32xf32> to vector<32xf32>
    %116 = vector.shape_cast %115 : vector<32xf32> to vector<32x1xf32>
    %117 = vector.broadcast %116 : vector<32x1xf32> to vector<32x32xf32>
    %118 = arith.divf %114, %117 : vector<32x32xf32>
    %119 = arith.truncf %118 : vector<32x32xf32> to vector<32x32xbf16>
    %cst_77 = arith.constant dense<0.000000e+00> : vector<32x64xf32>
    %120 = tpu.matmul %119, %106, %cst_77 {dimension_numbers = #tpu.dot_dimension_numbers<[1], [0], [0], [1], [0, 0, 1, 1], [], []>} : vector<32x32xbf16>, vector<32x64xbf16>, vector<32x64xf32> -> vector<32x64xf32>
    %c0_78 = arith.constant 0 : index
    %c0_79 = arith.constant 0 : index
    %121 = vector.load %arg5[%c0_78, %c0_79] : memref<64x384xf32, #tpu.memory_space<vmem>>, vector<32x384xf32>
    %122 = arith.truncf %120 : vector<32x64xf32> to vector<32x64xbf16>
    %c256_80 = arith.constant 256 : index
    %c0_81 = arith.constant 0 : index
    %123 = vector.load %arg3[%c256_80, %c0_81] : memref<384x384xbf16, #tpu.memory_space<vmem>>, vector<64x384xbf16>
    %cst_82 = arith.constant dense<0.000000e+00> : vector<32x384xf32>
    %124 = tpu.matmul %122, %123, %cst_82 {dimension_numbers = #tpu.dot_dimension_numbers<[1], [0], [0], [1], [0, 0, 1, 1], [], []>} : vector<32x64xbf16>, vector<64x384xbf16>, vector<32x384xf32> -> vector<32x384xf32>
    %125 = arith.addf %121, %124 : vector<32x384xf32>
    %c0_83 = arith.constant 0 : index
    %c0_84 = arith.constant 0 : index
    %126 = vector.load %arg5[%c0_83, %c0_84] : memref<64x384xf32, #tpu.memory_space<vmem>>, vector<32x384xf32>
    tpu.vector_store %arg5[%c0_83, %c0_84], %125 {strides = array<i32>} : memref<64x384xf32, #tpu.memory_space<vmem>>, vector<32x384xf32>,
    %c0_85 = arith.constant 0 : index
    %c320 = arith.constant 320 : index
    %127 = vector.load %arg6[%c0_85, %c320] : memref<64x1152xbf16, #tpu.memory_space<vmem>>, vector<32x64xbf16>
    %c0_86 = arith.constant 0 : index
    %c704 = arith.constant 704 : index
    %128 = vector.load %arg6[%c0_86, %c704] : memref<64x1152xbf16, #tpu.memory_space<vmem>>, vector<32x64xbf16>
    %c0_87 = arith.constant 0 : index
    %c1088 = arith.constant 1088 : index
    %129 = vector.load %arg6[%c0_87, %c1088] : memref<64x1152xbf16, #tpu.memory_space<vmem>>, vector<32x64xbf16>
    %cst_88 = arith.constant dense<0.000000e+00> : vector<32x32xf32>
    %130 = tpu.matmul %127, %128, %cst_88 {dimension_numbers = #tpu.dot_dimension_numbers<[1], [1], [0], [0], [0, 0, 1, 0], [], []>} : vector<32x64xbf16>, vector<32x64xbf16>, vector<32x32xf32> -> vector<32x32xf32>
    %cst_89 = arith.constant -1.000000e+30 : f32
    %131 = vector.broadcast %cst_89 : f32 to vector<32x32xf32>
    %132 = arith.select %11, %130, %131 : vector<32x32xi1>, vector<32x32xf32>
    %cst_90 = arith.constant dense<0xFF800000> : vector<32xf32>
    %133 = vector.multi_reduction <maximumf>, %132, %cst_90 [1] : vector<32x32xf32> to vector<32xf32>
    %134 = vector.shape_cast %133 : vector<32xf32> to vector<32x1xf32>
    %135 = vector.broadcast %134 : vector<32x1xf32> to vector<32x32xf32>
    %136 = arith.subf %132, %135 : vector<32x32xf32>
    %137 = math.exp %136 : vector<32x32xf32>
    %cst_91 = arith.constant dense<0.000000e+00> : vector<32xf32>
    %138 = vector.multi_reduction <add>, %137, %cst_91 [1] : vector<32x32xf32> to vector<32xf32>
    %139 = vector.shape_cast %138 : vector<32xf32> to vector<32x1xf32>
    %140 = vector.broadcast %139 : vector<32x1xf32> to vector<32x32xf32>
    %141 = arith.divf %137, %140 : vector<32x32xf32>
    %142 = arith.truncf %141 : vector<32x32xf32> to vector<32x32xbf16>
    %cst_92 = arith.constant dense<0.000000e+00> : vector<32x64xf32>
    %143 = tpu.matmul %142, %129, %cst_92 {dimension_numbers = #tpu.dot_dimension_numbers<[1], [0], [0], [1], [0, 0, 1, 1], [], []>} : vector<32x32xbf16>, vector<32x64xbf16>, vector<32x64xf32> -> vector<32x64xf32>
    %c0_93 = arith.constant 0 : index
    %c0_94 = arith.constant 0 : index
    %144 = vector.load %arg5[%c0_93, %c0_94] : memref<64x384xf32, #tpu.memory_space<vmem>>, vector<32x384xf32>
    %145 = arith.truncf %143 : vector<32x64xf32> to vector<32x64xbf16>
    %c320_95 = arith.constant 320 : index
    %c0_96 = arith.constant 0 : index
    %146 = vector.load %arg3[%c320_95, %c0_96] : memref<384x384xbf16, #tpu.memory_space<vmem>>, vector<64x384xbf16>
    %cst_97 = arith.constant dense<0.000000e+00> : vector<32x384xf32>
    %147 = tpu.matmul %145, %146, %cst_97 {dimension_numbers = #tpu.dot_dimension_numbers<[1], [0], [0], [1], [0, 0, 1, 1], [], []>} : vector<32x64xbf16>, vector<64x384xbf16>, vector<32x384xf32> -> vector<32x384xf32>
    %148 = arith.addf %144, %147 : vector<32x384xf32>
    %c0_98 = arith.constant 0 : index
    %c0_99 = arith.constant 0 : index
    %149 = vector.load %arg5[%c0_98, %c0_99] : memref<64x384xf32, #tpu.memory_space<vmem>>, vector<32x384xf32>
    tpu.vector_store %arg5[%c0_98, %c0_99], %148 {strides = array<i32>} : memref<64x384xf32, #tpu.memory_space<vmem>>, vector<32x384xf32>,
    %c32 = arith.constant 32 : index
    %c0_100 = arith.constant 0 : index
    %150 = vector.load %arg6[%c32, %c0_100] : memref<64x1152xbf16, #tpu.memory_space<vmem>>, vector<32x64xbf16>
    %c32_101 = arith.constant 32 : index
    %c384_102 = arith.constant 384 : index
    %151 = vector.load %arg6[%c32_101, %c384_102] : memref<64x1152xbf16, #tpu.memory_space<vmem>>, vector<32x64xbf16>
    %c32_103 = arith.constant 32 : index
    %c768_104 = arith.constant 768 : index
    %152 = vector.load %arg6[%c32_103, %c768_104] : memref<64x1152xbf16, #tpu.memory_space<vmem>>, vector<32x64xbf16>
    %cst_105 = arith.constant dense<0.000000e+00> : vector<32x32xf32>
    %153 = tpu.matmul %150, %151, %cst_105 {dimension_numbers = #tpu.dot_dimension_numbers<[1], [1], [0], [0], [0, 0, 1, 0], [], []>} : vector<32x64xbf16>, vector<32x64xbf16>, vector<32x32xf32> -> vector<32x32xf32>
    %cst_106 = arith.constant -1.000000e+30 : f32
    %154 = vector.broadcast %cst_106 : f32 to vector<32x32xf32>
    %155 = arith.select %11, %153, %154 : vector<32x32xi1>, vector<32x32xf32>
    %cst_107 = arith.constant dense<0xFF800000> : vector<32xf32>
    %156 = vector.multi_reduction <maximumf>, %155, %cst_107 [1] : vector<32x32xf32> to vector<32xf32>
    %157 = vector.shape_cast %156 : vector<32xf32> to vector<32x1xf32>
    %158 = vector.broadcast %157 : vector<32x1xf32> to vector<32x32xf32>
    %159 = arith.subf %155, %158 : vector<32x32xf32>
    %160 = math.exp %159 : vector<32x32xf32>
    %cst_108 = arith.constant dense<0.000000e+00> : vector<32xf32>
    %161 = vector.multi_reduction <add>, %160, %cst_108 [1] : vector<32x32xf32> to vector<32xf32>
    %162 = vector.shape_cast %161 : vector<32xf32> to vector<32x1xf32>
    %163 = vector.broadcast %162 : vector<32x1xf32> to vector<32x32xf32>
    %164 = arith.divf %160, %163 : vector<32x32xf32>
    %165 = arith.truncf %164 : vector<32x32xf32> to vector<32x32xbf16>
    %cst_109 = arith.constant dense<0.000000e+00> : vector<32x64xf32>
    %166 = tpu.matmul %165, %152, %cst_109 {dimension_numbers = #tpu.dot_dimension_numbers<[1], [0], [0], [1], [0, 0, 1, 1], [], []>} : vector<32x32xbf16>, vector<32x64xbf16>, vector<32x64xf32> -> vector<32x64xf32>
    %c32_110 = arith.constant 32 : index
    %c0_111 = arith.constant 0 : index
    %167 = vector.load %arg5[%c32_110, %c0_111] : memref<64x384xf32, #tpu.memory_space<vmem>>, vector<32x384xf32>
    %168 = arith.truncf %166 : vector<32x64xf32> to vector<32x64xbf16>
    %c0_112 = arith.constant 0 : index
    %c0_113 = arith.constant 0 : index
    %169 = vector.load %arg3[%c0_112, %c0_113] : memref<384x384xbf16, #tpu.memory_space<vmem>>, vector<64x384xbf16>
    %cst_114 = arith.constant dense<0.000000e+00> : vector<32x384xf32>
    %170 = tpu.matmul %168, %169, %cst_114 {dimension_numbers = #tpu.dot_dimension_numbers<[1], [0], [0], [1], [0, 0, 1, 1], [], []>} : vector<32x64xbf16>, vector<64x384xbf16>, vector<32x384xf32> -> vector<32x384xf32>
    %171 = arith.addf %167, %170 : vector<32x384xf32>
    %c32_115 = arith.constant 32 : index
    %c0_116 = arith.constant 0 : index
    %172 = vector.load %arg5[%c32_115, %c0_116] : memref<64x384xf32, #tpu.memory_space<vmem>>, vector<32x384xf32>
    tpu.vector_store %arg5[%c32_115, %c0_116], %171 {strides = array<i32>} : memref<64x384xf32, #tpu.memory_space<vmem>>, vector<32x384xf32>,
    %c32_117 = arith.constant 32 : index
    %c64_118 = arith.constant 64 : index
    %173 = vector.load %arg6[%c32_117, %c64_118] : memref<64x1152xbf16, #tpu.memory_space<vmem>>, vector<32x64xbf16>
    %c32_119 = arith.constant 32 : index
    %c448_120 = arith.constant 448 : index
    %174 = vector.load %arg6[%c32_119, %c448_120] : memref<64x1152xbf16, #tpu.memory_space<vmem>>, vector<32x64xbf16>
    %c32_121 = arith.constant 32 : index
    %c832_122 = arith.constant 832 : index
    %175 = vector.load %arg6[%c32_121, %c832_122] : memref<64x1152xbf16, #tpu.memory_space<vmem>>, vector<32x64xbf16>
    %cst_123 = arith.constant dense<0.000000e+00> : vector<32x32xf32>
    %176 = tpu.matmul %173, %174, %cst_123 {dimension_numbers = #tpu.dot_dimension_numbers<[1], [1], [0], [0], [0, 0, 1, 0], [], []>} : vector<32x64xbf16>, vector<32x64xbf16>, vector<32x32xf32> -> vector<32x32xf32>
    %cst_124 = arith.constant -1.000000e+30 : f32
    %177 = vector.broadcast %cst_124 : f32 to vector<32x32xf32>
    %178 = arith.select %11, %176, %177 : vector<32x32xi1>, vector<32x32xf32>
    %cst_125 = arith.constant dense<0xFF800000> : vector<32xf32>
    %179 = vector.multi_reduction <maximumf>, %178, %cst_125 [1] : vector<32x32xf32> to vector<32xf32>
    %180 = vector.shape_cast %179 : vector<32xf32> to vector<32x1xf32>
    %181 = vector.broadcast %180 : vector<32x1xf32> to vector<32x32xf32>
    %182 = arith.subf %178, %181 : vector<32x32xf32>
    %183 = math.exp %182 : vector<32x32xf32>
    %cst_126 = arith.constant dense<0.000000e+00> : vector<32xf32>
    %184 = vector.multi_reduction <add>, %183, %cst_126 [1] : vector<32x32xf32> to vector<32xf32>
    %185 = vector.shape_cast %184 : vector<32xf32> to vector<32x1xf32>
    %186 = vector.broadcast %185 : vector<32x1xf32> to vector<32x32xf32>
    %187 = arith.divf %183, %186 : vector<32x32xf32>
    %188 = arith.truncf %187 : vector<32x32xf32> to vector<32x32xbf16>
    %cst_127 = arith.constant dense<0.000000e+00> : vector<32x64xf32>
    %189 = tpu.matmul %188, %175, %cst_127 {dimension_numbers = #tpu.dot_dimension_numbers<[1], [0], [0], [1], [0, 0, 1, 1], [], []>} : vector<32x32xbf16>, vector<32x64xbf16>, vector<32x64xf32> -> vector<32x64xf32>
    %c32_128 = arith.constant 32 : index
    %c0_129 = arith.constant 0 : index
    %190 = vector.load %arg5[%c32_128, %c0_129] : memref<64x384xf32, #tpu.memory_space<vmem>>, vector<32x384xf32>
    %191 = arith.truncf %189 : vector<32x64xf32> to vector<32x64xbf16>
    %c64_130 = arith.constant 64 : index
    %c0_131 = arith.constant 0 : index
    %192 = vector.load %arg3[%c64_130, %c0_131] : memref<384x384xbf16, #tpu.memory_space<vmem>>, vector<64x384xbf16>
    %cst_132 = arith.constant dense<0.000000e+00> : vector<32x384xf32>
    %193 = tpu.matmul %191, %192, %cst_132 {dimension_numbers = #tpu.dot_dimension_numbers<[1], [0], [0], [1], [0, 0, 1, 1], [], []>} : vector<32x64xbf16>, vector<64x384xbf16>, vector<32x384xf32> -> vector<32x384xf32>
    %194 = arith.addf %190, %193 : vector<32x384xf32>
    %c32_133 = arith.constant 32 : index
    %c0_134 = arith.constant 0 : index
    %195 = vector.load %arg5[%c32_133, %c0_134] : memref<64x384xf32, #tpu.memory_space<vmem>>, vector<32x384xf32>
    tpu.vector_store %arg5[%c32_133, %c0_134], %194 {strides = array<i32>} : memref<64x384xf32, #tpu.memory_space<vmem>>, vector<32x384xf32>,
    %c32_135 = arith.constant 32 : index
    %c128_136 = arith.constant 128 : index
    %196 = vector.load %arg6[%c32_135, %c128_136] : memref<64x1152xbf16, #tpu.memory_space<vmem>>, vector<32x64xbf16>
    %c32_137 = arith.constant 32 : index
    %c512_138 = arith.constant 512 : index
    %197 = vector.load %arg6[%c32_137, %c512_138] : memref<64x1152xbf16, #tpu.memory_space<vmem>>, vector<32x64xbf16>
    %c32_139 = arith.constant 32 : index
    %c896_140 = arith.constant 896 : index
    %198 = vector.load %arg6[%c32_139, %c896_140] : memref<64x1152xbf16, #tpu.memory_space<vmem>>, vector<32x64xbf16>
    %cst_141 = arith.constant dense<0.000000e+00> : vector<32x32xf32>
    %199 = tpu.matmul %196, %197, %cst_141 {dimension_numbers = #tpu.dot_dimension_numbers<[1], [1], [0], [0], [0, 0, 1, 0], [], []>} : vector<32x64xbf16>, vector<32x64xbf16>, vector<32x32xf32> -> vector<32x32xf32>
    %cst_142 = arith.constant -1.000000e+30 : f32
    %200 = vector.broadcast %cst_142 : f32 to vector<32x32xf32>
    %201 = arith.select %11, %199, %200 : vector<32x32xi1>, vector<32x32xf32>
    %cst_143 = arith.constant dense<0xFF800000> : vector<32xf32>
    %202 = vector.multi_reduction <maximumf>, %201, %cst_143 [1] : vector<32x32xf32> to vector<32xf32>
    %203 = vector.shape_cast %202 : vector<32xf32> to vector<32x1xf32>
    %204 = vector.broadcast %203 : vector<32x1xf32> to vector<32x32xf32>
    %205 = arith.subf %201, %204 : vector<32x32xf32>
    %206 = math.exp %205 : vector<32x32xf32>
    %cst_144 = arith.constant dense<0.000000e+00> : vector<32xf32>
    %207 = vector.multi_reduction <add>, %206, %cst_144 [1] : vector<32x32xf32> to vector<32xf32>
    %208 = vector.shape_cast %207 : vector<32xf32> to vector<32x1xf32>
    %209 = vector.broadcast %208 : vector<32x1xf32> to vector<32x32xf32>
    %210 = arith.divf %206, %209 : vector<32x32xf32>
    %211 = arith.truncf %210 : vector<32x32xf32> to vector<32x32xbf16>
    %cst_145 = arith.constant dense<0.000000e+00> : vector<32x64xf32>
    %212 = tpu.matmul %211, %198, %cst_145 {dimension_numbers = #tpu.dot_dimension_numbers<[1], [0], [0], [1], [0, 0, 1, 1], [], []>} : vector<32x32xbf16>, vector<32x64xbf16>, vector<32x64xf32> -> vector<32x64xf32>
    %c32_146 = arith.constant 32 : index
    %c0_147 = arith.constant 0 : index
    %213 = vector.load %arg5[%c32_146, %c0_147] : memref<64x384xf32, #tpu.memory_space<vmem>>, vector<32x384xf32>
    %214 = arith.truncf %212 : vector<32x64xf32> to vector<32x64xbf16>
    %c128_148 = arith.constant 128 : index
    %c0_149 = arith.constant 0 : index
    %215 = vector.load %arg3[%c128_148, %c0_149] : memref<384x384xbf16, #tpu.memory_space<vmem>>, vector<64x384xbf16>
    %cst_150 = arith.constant dense<0.000000e+00> : vector<32x384xf32>
    %216 = tpu.matmul %214, %215, %cst_150 {dimension_numbers = #tpu.dot_dimension_numbers<[1], [0], [0], [1], [0, 0, 1, 1], [], []>} : vector<32x64xbf16>, vector<64x384xbf16>, vector<32x384xf32> -> vector<32x384xf32>
    %217 = arith.addf %213, %216 : vector<32x384xf32>
    %c32_151 = arith.constant 32 : index
    %c0_152 = arith.constant 0 : index
    %218 = vector.load %arg5[%c32_151, %c0_152] : memref<64x384xf32, #tpu.memory_space<vmem>>, vector<32x384xf32>
    tpu.vector_store %arg5[%c32_151, %c0_152], %217 {strides = array<i32>} : memref<64x384xf32, #tpu.memory_space<vmem>>, vector<32x384xf32>,
    %c32_153 = arith.constant 32 : index
    %c192_154 = arith.constant 192 : index
    %219 = vector.load %arg6[%c32_153, %c192_154] : memref<64x1152xbf16, #tpu.memory_space<vmem>>, vector<32x64xbf16>
    %c32_155 = arith.constant 32 : index
    %c576_156 = arith.constant 576 : index
    %220 = vector.load %arg6[%c32_155, %c576_156] : memref<64x1152xbf16, #tpu.memory_space<vmem>>, vector<32x64xbf16>
    %c32_157 = arith.constant 32 : index
    %c960_158 = arith.constant 960 : index
    %221 = vector.load %arg6[%c32_157, %c960_158] : memref<64x1152xbf16, #tpu.memory_space<vmem>>, vector<32x64xbf16>
    %cst_159 = arith.constant dense<0.000000e+00> : vector<32x32xf32>
    %222 = tpu.matmul %219, %220, %cst_159 {dimension_numbers = #tpu.dot_dimension_numbers<[1], [1], [0], [0], [0, 0, 1, 0], [], []>} : vector<32x64xbf16>, vector<32x64xbf16>, vector<32x32xf32> -> vector<32x32xf32>
    %cst_160 = arith.constant -1.000000e+30 : f32
    %223 = vector.broadcast %cst_160 : f32 to vector<32x32xf32>
    %224 = arith.select %11, %222, %223 : vector<32x32xi1>, vector<32x32xf32>
    %cst_161 = arith.constant dense<0xFF800000> : vector<32xf32>
    %225 = vector.multi_reduction <maximumf>, %224, %cst_161 [1] : vector<32x32xf32> to vector<32xf32>
    %226 = vector.shape_cast %225 : vector<32xf32> to vector<32x1xf32>
    %227 = vector.broadcast %226 : vector<32x1xf32> to vector<32x32xf32>
    %228 = arith.subf %224, %227 : vector<32x32xf32>
    %229 = math.exp %228 : vector<32x32xf32>
    %cst_162 = arith.constant dense<0.000000e+00> : vector<32xf32>
    %230 = vector.multi_reduction <add>, %229, %cst_162 [1] : vector<32x32xf32> to vector<32xf32>
    %231 = vector.shape_cast %230 : vector<32xf32> to vector<32x1xf32>
    %232 = vector.broadcast %231 : vector<32x1xf32> to vector<32x32xf32>
    %233 = arith.divf %229, %232 : vector<32x32xf32>
    %234 = arith.truncf %233 : vector<32x32xf32> to vector<32x32xbf16>
    %cst_163 = arith.constant dense<0.000000e+00> : vector<32x64xf32>
    %235 = tpu.matmul %234, %221, %cst_163 {dimension_numbers = #tpu.dot_dimension_numbers<[1], [0], [0], [1], [0, 0, 1, 1], [], []>} : vector<32x32xbf16>, vector<32x64xbf16>, vector<32x64xf32> -> vector<32x64xf32>
    %c32_164 = arith.constant 32 : index
    %c0_165 = arith.constant 0 : index
    %236 = vector.load %arg5[%c32_164, %c0_165] : memref<64x384xf32, #tpu.memory_space<vmem>>, vector<32x384xf32>
    %237 = arith.truncf %235 : vector<32x64xf32> to vector<32x64xbf16>
    %c192_166 = arith.constant 192 : index
    %c0_167 = arith.constant 0 : index
    %238 = vector.load %arg3[%c192_166, %c0_167] : memref<384x384xbf16, #tpu.memory_space<vmem>>, vector<64x384xbf16>
    %cst_168 = arith.constant dense<0.000000e+00> : vector<32x384xf32>
    %239 = tpu.matmul %237, %238, %cst_168 {dimension_numbers = #tpu.dot_dimension_numbers<[1], [0], [0], [1], [0, 0, 1, 1], [], []>} : vector<32x64xbf16>, vector<64x384xbf16>, vector<32x384xf32> -> vector<32x384xf32>
    %240 = arith.addf %236, %239 : vector<32x384xf32>
    %c32_169 = arith.constant 32 : index
    %c0_170 = arith.constant 0 : index
    %241 = vector.load %arg5[%c32_169, %c0_170] : memref<64x384xf32, #tpu.memory_space<vmem>>, vector<32x384xf32>
    tpu.vector_store %arg5[%c32_169, %c0_170], %240 {strides = array<i32>} : memref<64x384xf32, #tpu.memory_space<vmem>>, vector<32x384xf32>,
    %c32_171 = arith.constant 32 : index
    %c256_172 = arith.constant 256 : index
    %242 = vector.load %arg6[%c32_171, %c256_172] : memref<64x1152xbf16, #tpu.memory_space<vmem>>, vector<32x64xbf16>
    %c32_173 = arith.constant 32 : index
    %c640_174 = arith.constant 640 : index
    %243 = vector.load %arg6[%c32_173, %c640_174] : memref<64x1152xbf16, #tpu.memory_space<vmem>>, vector<32x64xbf16>
    %c32_175 = arith.constant 32 : index
    %c1024_176 = arith.constant 1024 : index
    %244 = vector.load %arg6[%c32_175, %c1024_176] : memref<64x1152xbf16, #tpu.memory_space<vmem>>, vector<32x64xbf16>
    %cst_177 = arith.constant dense<0.000000e+00> : vector<32x32xf32>
    %245 = tpu.matmul %242, %243, %cst_177 {dimension_numbers = #tpu.dot_dimension_numbers<[1], [1], [0], [0], [0, 0, 1, 0], [], []>} : vector<32x64xbf16>, vector<32x64xbf16>, vector<32x32xf32> -> vector<32x32xf32>
    %cst_178 = arith.constant -1.000000e+30 : f32
    %246 = vector.broadcast %cst_178 : f32 to vector<32x32xf32>
    %247 = arith.select %11, %245, %246 : vector<32x32xi1>, vector<32x32xf32>
    %cst_179 = arith.constant dense<0xFF800000> : vector<32xf32>
    %248 = vector.multi_reduction <maximumf>, %247, %cst_179 [1] : vector<32x32xf32> to vector<32xf32>
    %249 = vector.shape_cast %248 : vector<32xf32> to vector<32x1xf32>
    %250 = vector.broadcast %249 : vector<32x1xf32> to vector<32x32xf32>
    %251 = arith.subf %247, %250 : vector<32x32xf32>
    %252 = math.exp %251 : vector<32x32xf32>
    %cst_180 = arith.constant dense<0.000000e+00> : vector<32xf32>
    %253 = vector.multi_reduction <add>, %252, %cst_180 [1] : vector<32x32xf32> to vector<32xf32>
    %254 = vector.shape_cast %253 : vector<32xf32> to vector<32x1xf32>
    %255 = vector.broadcast %254 : vector<32x1xf32> to vector<32x32xf32>
    %256 = arith.divf %252, %255 : vector<32x32xf32>
    %257 = arith.truncf %256 : vector<32x32xf32> to vector<32x32xbf16>
    %cst_181 = arith.constant dense<0.000000e+00> : vector<32x64xf32>
    %258 = tpu.matmul %257, %244, %cst_181 {dimension_numbers = #tpu.dot_dimension_numbers<[1], [0], [0], [1], [0, 0, 1, 1], [], []>} : vector<32x32xbf16>, vector<32x64xbf16>, vector<32x64xf32> -> vector<32x64xf32>
    %c32_182 = arith.constant 32 : index
    %c0_183 = arith.constant 0 : index
    %259 = vector.load %arg5[%c32_182, %c0_183] : memref<64x384xf32, #tpu.memory_space<vmem>>, vector<32x384xf32>
    %260 = arith.truncf %258 : vector<32x64xf32> to vector<32x64xbf16>
    %c256_184 = arith.constant 256 : index
    %c0_185 = arith.constant 0 : index
    %261 = vector.load %arg3[%c256_184, %c0_185] : memref<384x384xbf16, #tpu.memory_space<vmem>>, vector<64x384xbf16>
    %cst_186 = arith.constant dense<0.000000e+00> : vector<32x384xf32>
    %262 = tpu.matmul %260, %261, %cst_186 {dimension_numbers = #tpu.dot_dimension_numbers<[1], [0], [0], [1], [0, 0, 1, 1], [], []>} : vector<32x64xbf16>, vector<64x384xbf16>, vector<32x384xf32> -> vector<32x384xf32>
    %263 = arith.addf %259, %262 : vector<32x384xf32>
    %c32_187 = arith.constant 32 : index
    %c0_188 = arith.constant 0 : index
    %264 = vector.load %arg5[%c32_187, %c0_188] : memref<64x384xf32, #tpu.memory_space<vmem>>, vector<32x384xf32>
    tpu.vector_store %arg5[%c32_187, %c0_188], %263 {strides = array<i32>} : memref<64x384xf32, #tpu.memory_space<vmem>>, vector<32x384xf32>,
    %c32_189 = arith.constant 32 : index
    %c320_190 = arith.constant 320 : index
    %265 = vector.load %arg6[%c32_189, %c320_190] : memref<64x1152xbf16, #tpu.memory_space<vmem>>, vector<32x64xbf16>
    %c32_191 = arith.constant 32 : index
    %c704_192 = arith.constant 704 : index
    %266 = vector.load %arg6[%c32_191, %c704_192] : memref<64x1152xbf16, #tpu.memory_space<vmem>>, vector<32x64xbf16>
    %c32_193 = arith.constant 32 : index
    %c1088_194 = arith.constant 1088 : index
    %267 = vector.load %arg6[%c32_193, %c1088_194] : memref<64x1152xbf16, #tpu.memory_space<vmem>>, vector<32x64xbf16>
    %cst_195 = arith.constant dense<0.000000e+00> : vector<32x32xf32>
    %268 = tpu.matmul %265, %266, %cst_195 {dimension_numbers = #tpu.dot_dimension_numbers<[1], [1], [0], [0], [0, 0, 1, 0], [], []>} : vector<32x64xbf16>, vector<32x64xbf16>, vector<32x32xf32> -> vector<32x32xf32>
    %cst_196 = arith.constant -1.000000e+30 : f32
    %269 = vector.broadcast %cst_196 : f32 to vector<32x32xf32>
    %270 = arith.select %11, %268, %269 : vector<32x32xi1>, vector<32x32xf32>
    %cst_197 = arith.constant dense<0xFF800000> : vector<32xf32>
    %271 = vector.multi_reduction <maximumf>, %270, %cst_197 [1] : vector<32x32xf32> to vector<32xf32>
    %272 = vector.shape_cast %271 : vector<32xf32> to vector<32x1xf32>
    %273 = vector.broadcast %272 : vector<32x1xf32> to vector<32x32xf32>
    %274 = arith.subf %270, %273 : vector<32x32xf32>
    %275 = math.exp %274 : vector<32x32xf32>
    %cst_198 = arith.constant dense<0.000000e+00> : vector<32xf32>
    %276 = vector.multi_reduction <add>, %275, %cst_198 [1] : vector<32x32xf32> to vector<32xf32>
    %277 = vector.shape_cast %276 : vector<32xf32> to vector<32x1xf32>
    %278 = vector.broadcast %277 : vector<32x1xf32> to vector<32x32xf32>
    %279 = arith.divf %275, %278 : vector<32x32xf32>
    %280 = arith.truncf %279 : vector<32x32xf32> to vector<32x32xbf16>
    %cst_199 = arith.constant dense<0.000000e+00> : vector<32x64xf32>
    %281 = tpu.matmul %280, %267, %cst_199 {dimension_numbers = #tpu.dot_dimension_numbers<[1], [0], [0], [1], [0, 0, 1, 1], [], []>} : vector<32x32xbf16>, vector<32x64xbf16>, vector<32x64xf32> -> vector<32x64xf32>
    %c32_200 = arith.constant 32 : index
    %c0_201 = arith.constant 0 : index
    %282 = vector.load %arg5[%c32_200, %c0_201] : memref<64x384xf32, #tpu.memory_space<vmem>>, vector<32x384xf32>
    %283 = arith.truncf %281 : vector<32x64xf32> to vector<32x64xbf16>
    %c320_202 = arith.constant 320 : index
    %c0_203 = arith.constant 0 : index
    %284 = vector.load %arg3[%c320_202, %c0_203] : memref<384x384xbf16, #tpu.memory_space<vmem>>, vector<64x384xbf16>
    %cst_204 = arith.constant dense<0.000000e+00> : vector<32x384xf32>
    %285 = tpu.matmul %283, %284, %cst_204 {dimension_numbers = #tpu.dot_dimension_numbers<[1], [0], [0], [1], [0, 0, 1, 1], [], []>} : vector<32x64xbf16>, vector<64x384xbf16>, vector<32x384xf32> -> vector<32x384xf32>
    %286 = arith.addf %282, %285 : vector<32x384xf32>
    %c32_205 = arith.constant 32 : index
    %c0_206 = arith.constant 0 : index
    %287 = vector.load %arg5[%c32_205, %c0_206] : memref<64x384xf32, #tpu.memory_space<vmem>>, vector<32x384xf32>
    tpu.vector_store %arg5[%c32_205, %c0_206], %286 {strides = array<i32>} : memref<64x384xf32, #tpu.memory_space<vmem>>, vector<32x384xf32>,
    return
  }
  func.func @transform_0(%arg0: i32) -> (i32, i32) {
    %c0_i32 = arith.constant 0 : i32
    %c0_i32_0 = arith.constant 0 : i32
    %c0_i32_1 = arith.constant 0 : i32
    return %c0_i32, %c0_i32_0 : i32, i32
  }
  func.func @transform_1(%arg0: i32) -> (i32, i32) {
    %c0_i32 = arith.constant 0 : i32
    %c0_i32_0 = arith.constant 0 : i32
    %c0_i32_1 = arith.constant 0 : i32
    return %c0_i32, %c0_i32_0 : i32, i32
  }
  func.func @transform_2(%arg0: i32) -> (i32, i32) {
    %c0_i32 = arith.constant 0 : i32
    %c0_i32_0 = arith.constant 0 : i32
    %c0_i32_1 = arith.constant 0 : i32
    return %c0_i32, %c0_i32_0 : i32, i32
  }
  func.func @transform_3(%arg0: i32) -> (i32, i32) {
    %c0_i32 = arith.constant 0 : i32
    %c0_i32_0 = arith.constant 0 : i32
    %c0_i32_1 = arith.constant 0 : i32
    return %c0_i32, %c0_i32_0 : i32, i32
  }
  func.func @transform_4(%arg0: i32) -> (i32, i32) {
    %c0_i32 = arith.constant 0 : i32
    %c0_i32_0 = arith.constant 0 : i32
    %c0_i32_1 = arith.constant 0 : i32
    return %c0_i32, %c0_i32_0 : i32, i32
  }
}

</mosaic_0001>

<llo_original>
// kernel: tpu_custom_call.1
$region0: #{tpu_custom_call.1}
  #allocation0 [shape = 'u32[]', space=smem, size = 0x4, offset = 0x4, fixed_abs, tag = 'smem constant byte address 0x4 - core index']
  #allocation1 [shape = 'u32[144,128]{1,0:T(1,128)}', space=vmem, size = 0x12000, scoped, tag = 'internal scratch']
  #allocation2 [shape = 'bf16[64,1152]{1,0:T(8,128)(2,1)}', space=vmem, size = 0x24000, scoped, tag = 'scratch operand']
  %s0 = inlined_call_operand.hbm [shape: bf16[64,384], index: 0, kind: input, shape index: {}]
  %s1 = inlined_call_operand.hbm [shape: bf16[384,1152], index: 1, kind: input, shape index: {}]
  %s2 = inlined_call_operand.hbm [shape: bf16[384,384], index: 2, kind: input, shape index: {}]
  %s3 = inlined_call_operand.vmem [shape: f32[1,384], index: 3, kind: input, shape index: {}]
  %s4 = inlined_call_operand.hbm [shape: f32[64,384], index: 4, kind: output, shape index: {}]
  %s5 = sld [smem:[#allocation0]]
  $region38: #{tpu_custom_call.1} parent=0
    _
  %s7 = ssub.s32 1, %s5
  %s8 = scalar_select 0, %s7, %s5
  $region1: #{tpu_custom_call.1} parent=0
    #allocation3 [shape = 'u8[49152]{0}', space=vmem, size = 0xc000, scoped, tag = 'input window, operand 0, single buffered']
    #allocation4 [shape = 's32[1]{0}', space=sflag, size = 0x4, scoped, tag = 'scoped memory for tpu_custom_call.1']
    #allocation5 [shape = 's32[1]{0}', space=sflag, size = 0x4, scoped, tag = 'scoped memory for tpu_custom_call.1']
    #allocation6 [shape = 'u8[884736]{0}', space=vmem, size = 0xd8000, scoped, tag = 'input window, operand 1, single buffered']
    #allocation7 [shape = 's32[1]{0}', space=sflag, size = 0x4, scoped, tag = 'scoped memory for tpu_custom_call.1']
    #allocation8 [shape = 'u8[294912]{0}', space=vmem, size = 0x48000, scoped, tag = 'input window, operand 2, single buffered']
    #allocation9 [shape = 'u8[98304]{0}', space=vmem, size = 0x18000, scoped, tag = 'output window, operand 0, single buffered']
    %9 = vsyncpa [#allocation4], 0
    %10 = vsyncpa [#allocation7], 0
    %11 = vsyncpa [#allocation5], 0
    // Predicated region
    $region2: #{tpu_custom_call.1} parent=1 // pred_check
      _
    $region3: #{tpu_custom_call.1} parent=1 // pred_check_branch
      %13 = sbr.rel (0) target = $region5
    $region4: #{tpu_custom_call.1} parent=1 // pred_region
      %s15 = ssub.s32 1536, 1536
      %16 = vsyncadd [#allocation4], %s15
      %s17 = sshll.u32 [#allocation3], 4
      %s18 = int_to_ptr.vmem [resolvable:$true] %s17
      %23 = dma.hbm_to_vmem [thread:$0]  %s0, 1536, %s18, [#allocation4], 192, 192, 12
    $region5: #{tpu_custom_call.1} parent=1 // pred_fallthru
      _
    // Predicated region
    $region6: #{tpu_custom_call.1} parent=1 // pred_check
      _
    $region7: #{tpu_custom_call.1} parent=1 // pred_check_branch
      %25 = sbr.rel (0) target = $region9
    $region8: #{tpu_custom_call.1} parent=1 // pred_region
      %s27 = ssub.s32 27648, 27648
      %28 = vsyncadd [#allocation7], %s27
      %s29 = sshll.u32 [#allocation6], 4
      %s30 = int_to_ptr.vmem [resolvable:$true] %s29
      %35 = dma.hbm_to_vmem [thread:$0]  %s1, 27648, %s30, [#allocation7], 576, 576, 36
    $region9: #{tpu_custom_call.1} parent=1 // pred_fallthru
      _
    // Predicated region
    $region10: #{tpu_custom_call.1} parent=1 // pred_check
      _
    $region11: #{tpu_custom_call.1} parent=1 // pred_check_branch
      %37 = sbr.rel (0) target = $region13
    $region12: #{tpu_custom_call.1} parent=1 // pred_region
      %s39 = ssub.s32 9216, 9216
      %40 = vsyncadd [#allocation7], %s39
      %s41 = sshll.u32 [#allocation8], 4
      %s42 = int_to_ptr.vmem [resolvable:$true] %s41
      %47 = dma.hbm_to_vmem [thread:$0]  %s2, 9216, %s42, [#allocation7], 192, 192, 12
    $region13: #{tpu_custom_call.1} parent=1 // pred_fallthru
      _
    // Predicated region
    $region14: #{tpu_custom_call.1} parent=1 // pred_check
      _
    $region15: #{tpu_custom_call.1} parent=1 // pred_check_branch
      %49 = sbr.rel (0) target = $region17
    $region16: #{tpu_custom_call.1} parent=1 // pred_region
      _
    $region17: #{tpu_custom_call.1} parent=1 // pred_fallthru
      _
    // Predicated region
    $region18: #{tpu_custom_call.1} parent=1 // pred_check
      _
    $region19: #{tpu_custom_call.1} parent=1 // pred_check_branch
      %51 = sbr.rel (0) target = $region21
    $region20: #{tpu_custom_call.1} parent=1 // pred_region
      %52 = dma.done [#allocation4], 1536
    $region21: #{tpu_custom_call.1} parent=1 // pred_fallthru
      _
    // Predicated region
    $region22: #{tpu_custom_call.1} parent=1 // pred_check
      _
    $region23: #{tpu_custom_call.1} parent=1 // pred_check_branch
      %54 = sbr.rel (0) target = $region25
    $region24: #{tpu_custom_call.1} parent=1 // pred_region
      %55 = dma.done [#allocation7], 27648
    $region25: #{tpu_custom_call.1} parent=1 // pred_fallthru
      _
    // Predicated region
    $region26: #{tpu_custom_call.1} parent=1 // pred_check
      _
    $region27: #{tpu_custom_call.1} parent=1 // pred_check_branch
      %57 = sbr.rel (0) target = $region29
    $region28: #{tpu_custom_call.1} parent=1 // pred_region
      %58 = dma.done [#allocation7], 9216
    $region29: #{tpu_custom_call.1} parent=1 // pred_fallthru
      _
    %v60 = vld [vmem:[#allocation3] sm:$0xff]
    %v61 = vld [vmem:[#allocation3 + $0x8] sm:$0xf]
    %v62 = vld [vmem:[#allocation3 + $0xc] sm:$0xff]
    %v63 = vld [vmem:[#allocation3 + $0x14] sm:$0xf]
    %v64 = vld [vmem:[#allocation3 + $0x18] sm:$0xff]
    %v65 = vld [vmem:[#allocation3 + $0x20] sm:$0xf]
    %v66 = vld [vmem:[#allocation3 + $0x24] sm:$0xff]
    %v67 = vld [vmem:[#allocation3 + $0x2c] sm:$0xf]
    %v68 = vld [vmem:[#allocation3 + $0x30] sm:$0xff]
    %v69 = vld [vmem:[#allocation3 + $0x38] sm:$0xf]
    %v70 = vld [vmem:[#allocation3 + $0x3c] sm:$0xff]
    %v71 = vld [vmem:[#allocation3 + $0x44] sm:$0xf]
    %v72 = vld [vmem:[#allocation3 + $0x48] sm:$0xff]
    %v73 = vld [vmem:[#allocation3 + $0x50] sm:$0xf]
    %v74 = vld [vmem:[#allocation3 + $0x54] sm:$0xff]
    %v75 = vld [vmem:[#allocation3 + $0x5c] sm:$0xf]
    %v76 = vld [vmem:[#allocation6] sm:$0xff]
    %v77 = vld [vmem:[#allocation6 + $0x8] sm:$0xff]
    %v78 = vld [vmem:[#allocation6 + $0x10] sm:$0xff]
    %v79 = vld [vmem:[#allocation6 + $0x18] sm:$0xff]
    %v80 = vld [vmem:[#allocation6 + $0x20] sm:$0xf]
    %v81 = vld [vmem:[#allocation6 + $0x24] sm:$0xff]
    %v82 = vld [vmem:[#allocation6 + $0x2c] sm:$0xff]
    %v83 = vld [vmem:[#allocation6 + $0x34] sm:$0xff]
    %v84 = vld [vmem:[#allocation6 + $0x3c] sm:$0xff]
    %v85 = vld [vmem:[#allocation6 + $0x44] sm:$0xf]
    %v86 = vld [vmem:[#allocation6 + $0x48] sm:$0xff]
    %v87 = vld [vmem:[#allocation6 + $0x50] sm:$0xff]
    %v88 = vld [vmem:[#allocation6 + $0x58] sm:$0xff]
    %v89 = vld [vmem:[#allocation6 + $0x60] sm:$0xff]
    %v90 = vld [vmem:[#allocation6 + $0x68] sm:$0xf]
    %v91 = vld [vmem:[#allocation6 + $0x6c] sm:$0xff]
    %v92 = vld [vmem:[#allocation6 + $0x74] sm:$0xff]
    %v93 = vld [vmem:[#allocation6 + $0x7c] sm:$0xff]
    %v94 = vld [vmem:[#allocation6 + $0x84] sm:$0xff]
    %v95 = vld [vmem:[#allocation6 + $0x8c] sm:$0xf]
    %v96 = vld [vmem:[#allocation6 + $0x90] sm:$0xff]
    %v97 = vld [vmem:[#allocation6 + $0x98] sm:$0xff]
    %v98 = vld [vmem:[#allocation6 + $0xa0] sm:$0xff]
    %v99 = vld [vmem:[#allocation6 + $0xa8] sm:$0xff]
    %v100 = vld [vmem:[#allocation6 + $0xb0] sm:$0xf]
    %v101 = vld [vmem:[#allocation6 + $0xb4] sm:$0xff]
    %v102 = vld [vmem:[#allocation6 + $0xbc] sm:$0xff]
    %v103 = vld [vmem:[#allocation6 + $0xc4] sm:$0xff]
    %v104 = vld [vmem:[#allocation6 + $0xcc] sm:$0xff]
    %v105 = vld [vmem:[#allocation6 + $0xd4] sm:$0xf]
    %v106 = vld [vmem:[#allocation6 + $0xd8] sm:$0xff]
    %v107 = vld [vmem:[#allocation6 + $0xe0] sm:$0xff]
    %v108 = vld [vmem:[#allocation6 + $0xe8] sm:$0xff]
    %v109 = vld [vmem:[#allocation6 + $0xf0] sm:$0xff]
    %v110 = vld [vmem:[#allocation6 + $0xf8] sm:$0xf]
    %v111 = vld [vmem:[#allocation6 + $0xfc] sm:$0xff]
    %v112 = vld [vmem:[#allocation6 + $0x104] sm:$0xff]
    %v113 = vld [vmem:[#allocation6 + $0x10c] sm:$0xff]
    %v114 = vld [vmem:[#allocation6 + $0x114] sm:$0xff]
    %v115 = vld [vmem:[#allocation6 + $0x11c] sm:$0xf]
    %v116 = vld [vmem:[#allocation6 + $0x120] sm:$0xff]
    %v117 = vld [vmem:[#allocation6 + $0x128] sm:$0xff]
    %v118 = vld [vmem:[#allocation6 + $0x130] sm:$0xff]
    %v119 = vld [vmem:[#allocation6 + $0x138] sm:$0xff]
    %v120 = vld [vmem:[#allocation6 + $0x140] sm:$0xf]
    %v121 = vld [vmem:[#allocation6 + $0x144] sm:$0xff]
    %v122 = vld [vmem:[#allocation6 + $0x14c] sm:$0xff]
    %v123 = vld [vmem:[#allocation6 + $0x154] sm:$0xff]
    %v124 = vld [vmem:[#allocation6 + $0x15c] sm:$0xff]
    %v125 = vld [vmem:[#allocation6 + $0x164] sm:$0xf]
    %v126 = vld [vmem:[#allocation6 + $0x168] sm:$0xff]
    %v127 = vld [vmem:[#allocation6 + $0x170] sm:$0xff]
    %v128 = vld [vmem:[#allocation6 + $0x178] sm:$0xff]
    %v129 = vld [vmem:[#allocation6 + $0x180] sm:$0xff]
    %v130 = vld [vmem:[#allocation6 + $0x188] sm:$0xf]
    %v131 = vld [vmem:[#allocation6 + $0x18c] sm:$0xff]
    %v132 = vld [vmem:[#allocation6 + $0x194] sm:$0xff]
    %v133 = vld [vmem:[#allocation6 + $0x19c] sm:$0xff]
    %v134 = vld [vmem:[#allocation6 + $0x1a4] sm:$0xff]
    %v135 = vld [vmem:[#allocation6 + $0x1ac] sm:$0xf]
    %v136 = vld [vmem:[#allocation6 + $0x1b0] sm:$0xff]
    %v137 = vld [vmem:[#allocation6 + $0x1b8] sm:$0xff]
    %v138 = vld [vmem:[#allocation6 + $0x1c0] sm:$0xff]
    %v139 = vld [vmem:[#allocation6 + $0x1c8] sm:$0xff]
    %v140 = vld [vmem:[#allocation6 + $0x1d0] sm:$0xf]
    %v141 = vld [vmem:[#allocation6 + $0x1d4] sm:$0xff]
    %v142 = vld [vmem:[#allocation6 + $0x1dc] sm:$0xff]
    %v143 = vld [vmem:[#allocation6 + $0x1e4] sm:$0xff]
    %v144 = vld [vmem:[#allocation6 + $0x1ec] sm:$0xff]
    %v145 = vld [vmem:[#allocation6 + $0x1f4] sm:$0xf]
    %v146 = vld [vmem:[#allocation6 + $0x1f8] sm:$0xff]
    %v147 = vld [vmem:[#allocation6 + $0x200] sm:$0xff]
    %v148 = vld [vmem:[#allocation6 + $0x208] sm:$0xff]
    %v149 = vld [vmem:[#allocation6 + $0x210] sm:$0xff]
    %v150 = vld [vmem:[#allocation6 + $0x218] sm:$0xf]
    %v151 = vld [vmem:[#allocation6 + $0x21c] sm:$0xff]
    %v152 = vld [vmem:[#allocation6 + $0x224] sm:$0xff]
    %v153 = vld [vmem:[#allocation6 + $0x22c] sm:$0xff]
    %v154 = vld [vmem:[#allocation6 + $0x234] sm:$0xff]
    %v155 = vld [vmem:[#allocation6 + $0x23c] sm:$0xf]
    %v156 = vld [vmem:[#allocation6 + $0x240] sm:$0xff]
    %v157 = vld [vmem:[#allocation6 + $0x248] sm:$0xff]
    %v158 = vld [vmem:[#allocation6 + $0x250] sm:$0xff]
    %v159 = vld [vmem:[#allocation6 + $0x258] sm:$0xff]
    %v160 = vld [vmem:[#allocation6 + $0x260] sm:$0xf]
    %v161 = vld [vmem:[#allocation6 + $0x264] sm:$0xff]
    %v162 = vld [vmem:[#allocation6 + $0x26c] sm:$0xff]
    %v163 = vld [vmem:[#allocation6 + $0x274] sm:$0xff]
    %v164 = vld [vmem:[#allocation6 + $0x27c] sm:$0xff]
    %v165 = vld [vmem:[#allocation6 + $0x284] sm:$0xf]
    %v166 = vld [vmem:[#allocation6 + $0x288] sm:$0xff]
    %v167 = vld [vmem:[#allocation6 + $0x290] sm:$0xff]
    %v168 = vld [vmem:[#allocation6 + $0x298] sm:$0xff]
    %v169 = vld [vmem:[#allocation6 + $0x2a0] sm:$0xff]
    %v170 = vld [vmem:[#allocation6 + $0x2a8] sm:$0xf]
    %v171 = vld [vmem:[#allocation6 + $0x2ac] sm:$0xff]
    %v172 = vld [vmem:[#allocation6 + $0x2b4] sm:$0xff]
    %v173 = vld [vmem:[#allocation6 + $0x2bc] sm:$0xff]
    %v174 = vld [vmem:[#allocation6 + $0x2c4] sm:$0xff]
    %v175 = vld [vmem:[#allocation6 + $0x2cc] sm:$0xf]
    %v176 = vld [vmem:[#allocation6 + $0x2d0] sm:$0xff]
    %v177 = vld [vmem:[#allocation6 + $0x2d8] sm:$0xff]
    %v178 = vld [vmem:[#allocation6 + $0x2e0] sm:$0xff]
    %v179 = vld [vmem:[#allocation6 + $0x2e8] sm:$0xff]
    %v180 = vld [vmem:[#allocation6 + $0x2f0] sm:$0xf]
    %v181 = vld [vmem:[#allocation6 + $0x2f4] sm:$0xff]
    %v182 = vld [vmem:[#allocation6 + $0x2fc] sm:$0xff]
    %v183 = vld [vmem:[#allocation6 + $0x304] sm:$0xff]
    %v184 = vld [vmem:[#allocation6 + $0x30c] sm:$0xff]
    %v185 = vld [vmem:[#allocation6 + $0x314] sm:$0xf]
    %v186 = vld [vmem:[#allocation6 + $0x318] sm:$0xff]
    %v187 = vld [vmem:[#allocation6 + $0x320] sm:$0xff]
    %v188 = vld [vmem:[#allocation6 + $0x328] sm:$0xff]
    %v189 = vld [vmem:[#allocation6 + $0x330] sm:$0xff]
    %v190 = vld [vmem:[#allocation6 + $0x338] sm:$0xf]
    %v191 = vld [vmem:[#allocation6 + $0x33c] sm:$0xff]
    %v192 = vld [vmem:[#allocation6 + $0x344] sm:$0xff]
    %v193 = vld [vmem:[#allocation6 + $0x34c] sm:$0xff]
    %v194 = vld [vmem:[#allocation6 + $0x354] sm:$0xff]
    %v195 = vld [vmem:[#allocation6 + $0x35c] sm:$0xf]
    %v196 = vld [vmem:[#allocation6 + $0x360] sm:$0xff]
    %v197 = vld [vmem:[#allocation6 + $0x368] sm:$0xff]
    %v198 = vld [vmem:[#allocation6 + $0x370] sm:$0xff]
    %v199 = vld [vmem:[#allocation6 + $0x378] sm:$0xff]
    %v200 = vld [vmem:[#allocation6 + $0x380] sm:$0xf]
    %v201 = vld [vmem:[#allocation6 + $0x384] sm:$0xff]
    %v202 = vld [vmem:[#allocation6 + $0x38c] sm:$0xff]
    %v203 = vld [vmem:[#allocation6 + $0x394] sm:$0xff]
    %v204 = vld [vmem:[#allocation6 + $0x39c] sm:$0xff]
    %v205 = vld [vmem:[#allocation6 + $0x3a4] sm:$0xf]
    %v206 = vld [vmem:[#allocation6 + $0x3a8] sm:$0xff]
    %v207 = vld [vmem:[#allocation6 + $0x3b0] sm:$0xff]
    %v208 = vld [vmem:[#allocation6 + $0x3b8] sm:$0xff]
    %v209 = vld [vmem:[#allocation6 + $0x3c0] sm:$0xff]
    %v210 = vld [vmem:[#allocation6 + $0x3c8] sm:$0xf]
    %v211 = vld [vmem:[#allocation6 + $0x3cc] sm:$0xff]
    %v212 = vld [vmem:[#allocation6 + $0x3d4] sm:$0xff]
    %v213 = vld [vmem:[#allocation6 + $0x3dc] sm:$0xff]
    %v214 = vld [vmem:[#allocation6 + $0x3e4] sm:$0xff]
    %v215 = vld [vmem:[#allocation6 + $0x3ec] sm:$0xf]
    %v216 = vld [vmem:[#allocation6 + $0x3f0] sm:$0xff]
    %v217 = vld [vmem:[#allocation6 + $0x3f8] sm:$0xff]
    %v218 = vld [vmem:[#allocation6 + $0x400] sm:$0xff]
    %v219 = vld [vmem:[#allocation6 + $0x408] sm:$0xff]
    %v220 = vld [vmem:[#allocation6 + $0x410] sm:$0xf]
    %v221 = vld [vmem:[#allocation6 + $0x414] sm:$0xff]
    %v222 = vld [vmem:[#allocation6 + $0x41c] sm:$0xff]
    %v223 = vld [vmem:[#allocation6 + $0x424] sm:$0xff]
    %v224 = vld [vmem:[#allocation6 + $0x42c] sm:$0xff]
    %v225 = vld [vmem:[#allocation6 + $0x434] sm:$0xf]
    %v226 = vld [vmem:[#allocation6 + $0x438] sm:$0xff]
    %v227 = vld [vmem:[#allocation6 + $0x440] sm:$0xff]
    %v228 = vld [vmem:[#allocation6 + $0x448] sm:$0xff]
    %v229 = vld [vmem:[#allocation6 + $0x450] sm:$0xff]
    %v230 = vld [vmem:[#allocation6 + $0x458] sm:$0xf]
    %v231 = vld [vmem:[#allocation6 + $0x45c] sm:$0xff]
    %v232 = vld [vmem:[#allocation6 + $0x464] sm:$0xff]
    %v233 = vld [vmem:[#allocation6 + $0x46c] sm:$0xff]
    %v234 = vld [vmem:[#allocation6 + $0x474] sm:$0xff]
    %v235 = vld [vmem:[#allocation6 + $0x47c] sm:$0xf]
    %v236 = vld [vmem:[#allocation6 + $0x480] sm:$0xff]
    %v237 = vld [vmem:[#allocation6 + $0x488] sm:$0xff]
    %v238 = vld [vmem:[#allocation6 + $0x490] sm:$0xff]
    %v239 = vld [vmem:[#allocation6 + $0x498] sm:$0xff]
    %v240 = vld [vmem:[#allocation6 + $0x4a0] sm:$0xf]
    %v241 = vld [vmem:[#allocation6 + $0x4a4] sm:$0xff]
    %v242 = vld [vmem:[#allocation6 + $0x4ac] sm:$0xff]
    %v243 = vld [vmem:[#allocation6 + $0x4b4] sm:$0xff]
    %v244 = vld [vmem:[#allocation6 + $0x4bc] sm:$0xff]
    %v245 = vld [vmem:[#allocation6 + $0x4c4] sm:$0xf]
    %v246 = vld [vmem:[#allocation6 + $0x4c8] sm:$0xff]
    %v247 = vld [vmem:[#allocation6 + $0x4d0] sm:$0xff]
    %v248 = vld [vmem:[#allocation6 + $0x4d8] sm:$0xff]
    %v249 = vld [vmem:[#allocation6 + $0x4e0] sm:$0xff]
    %v250 = vld [vmem:[#allocation6 + $0x4e8] sm:$0xf]
    %v251 = vld [vmem:[#allocation6 + $0x4ec] sm:$0xff]
    %v252 = vld [vmem:[#allocation6 + $0x4f4] sm:$0xff]
    %v253 = vld [vmem:[#allocation6 + $0x4fc] sm:$0xff]
    %v254 = vld [vmem:[#allocation6 + $0x504] sm:$0xff]
    %v255 = vld [vmem:[#allocation6 + $0x50c] sm:$0xf]
    %v256 = vld [vmem:[#allocation6 + $0x510] sm:$0xff]
    %v257 = vld [vmem:[#allocation6 + $0x518] sm:$0xff]
    %v258 = vld [vmem:[#allocation6 + $0x520] sm:$0xff]
    %v259 = vld [vmem:[#allocation6 + $0x528] sm:$0xff]
    %v260 = vld [vmem:[#allocation6 + $0x530] sm:$0xf]
    %v261 = vld [vmem:[#allocation6 + $0x534] sm:$0xff]
    %v262 = vld [vmem:[#allocation6 + $0x53c] sm:$0xff]
    %v263 = vld [vmem:[#allocation6 + $0x544] sm:$0xff]
    %v264 = vld [vmem:[#allocation6 + $0x54c] sm:$0xff]
    %v265 = vld [vmem:[#allocation6 + $0x554] sm:$0xf]
    %v266 = vld [vmem:[#allocation6 + $0x558] sm:$0xff]
    %v267 = vld [vmem:[#allocation6 + $0x560] sm:$0xff]
    %v268 = vld [vmem:[#allocation6 + $0x568] sm:$0xff]
    %v269 = vld [vmem:[#allocation6 + $0x570] sm:$0xff]
    %v270 = vld [vmem:[#allocation6 + $0x578] sm:$0xf]
    %v271 = vld [vmem:[#allocation6 + $0x57c] sm:$0xff]
    %v272 = vld [vmem:[#allocation6 + $0x584] sm:$0xff]
    %v273 = vld [vmem:[#allocation6 + $0x58c] sm:$0xff]
    %v274 = vld [vmem:[#allocation6 + $0x594] sm:$0xff]
    %v275 = vld [vmem:[#allocation6 + $0x59c] sm:$0xf]
    %v276 = vld [vmem:[#allocation6 + $0x5a0] sm:$0xff]
    %v277 = vld [vmem:[#allocation6 + $0x5a8] sm:$0xff]
    %v278 = vld [vmem:[#allocation6 + $0x5b0] sm:$0xff]
    %v279 = vld [vmem:[#allocation6 + $0x5b8] sm:$0xff]
    %v280 = vld [vmem:[#allocation6 + $0x5c0] sm:$0xf]
    %v281 = vld [vmem:[#allocation6 + $0x5c4] sm:$0xff]
    %v282 = vld [vmem:[#allocation6 + $0x5cc] sm:$0xff]
    %v283 = vld [vmem:[#allocation6 + $0x5d4] sm:$0xff]
    %v284 = vld [vmem:[#allocation6 + $0x5dc] sm:$0xff]
    %v285 = vld [vmem:[#allocation6 + $0x5e4] sm:$0xf]
    %v286 = vld [vmem:[#allocation6 + $0x5e8] sm:$0xff]
    %v287 = vld [vmem:[#allocation6 + $0x5f0] sm:$0xff]
    %v288 = vld [vmem:[#allocation6 + $0x5f8] sm:$0xff]
    %v289 = vld [vmem:[#allocation6 + $0x600] sm:$0xff]
    %v290 = vld [vmem:[#allocation6 + $0x608] sm:$0xf]
    %v291 = vld [vmem:[#allocation6 + $0x60c] sm:$0xff]
    %v292 = vld [vmem:[#allocation6 + $0x614] sm:$0xff]
    %v293 = vld [vmem:[#allocation6 + $0x61c] sm:$0xff]
    %v294 = vld [vmem:[#allocation6 + $0x624] sm:$0xff]
    %v295 = vld [vmem:[#allocation6 + $0x62c] sm:$0xf]
    %v296 = vld [vmem:[#allocation6 + $0x630] sm:$0xff]
    %v297 = vld [vmem:[#allocation6 + $0x638] sm:$0xff]
    %v298 = vld [vmem:[#allocation6 + $0x640] sm:$0xff]
    %v299 = vld [vmem:[#allocation6 + $0x648] sm:$0xff]
    %v300 = vld [vmem:[#allocation6 + $0x650] sm:$0xf]
    %v301 = vld [vmem:[#allocation6 + $0x654] sm:$0xff]
    %v302 = vld [vmem:[#allocation6 + $0x65c] sm:$0xff]
    %v303 = vld [vmem:[#allocation6 + $0x664] sm:$0xff]
    %v304 = vld [vmem:[#allocation6 + $0x66c] sm:$0xff]
    %v305 = vld [vmem:[#allocation6 + $0x674] sm:$0xf]
    %v306 = vld [vmem:[#allocation6 + $0x678] sm:$0xff]
    %v307 = vld [vmem:[#allocation6 + $0x680] sm:$0xff]
    %v308 = vld [vmem:[#allocation6 + $0x688] sm:$0xff]
    %v309 = vld [vmem:[#allocation6 + $0x690] sm:$0xff]
    %v310 = vld [vmem:[#allocation6 + $0x698] sm:$0xf]
    %v311 = vld [vmem:[#allocation6 + $0x69c] sm:$0xff]
    %v312 = vld [vmem:[#allocation6 + $0x6a4] sm:$0xff]
    %v313 = vld [vmem:[#allocation6 + $0x6ac] sm:$0xff]
    %v314 = vld [vmem:[#allocation6 + $0x6b4] sm:$0xff]
    %v315 = vld [vmem:[#allocation6 + $0x6bc] sm:$0xf]
    %v332 = vunpack.c.l.b16 %v60
    %v333 = vunpack.c.h.b16 %v60
    %v334 = vunpack.c.l.b16 %v61
    %v335 = vunpack.c.l.b16 %v62
    %v336 = vunpack.c.h.b16 %v62
    %v337 = vunpack.c.l.b16 %v63
    %v338 = vunpack.c.l.b16 %v64
    %v339 = vunpack.c.h.b16 %v64
    %v340 = vunpack.c.l.b16 %v65
    %v341 = vunpack.c.l.b16 %v66
    %v342 = vunpack.c.h.b16 %v66
    %v343 = vunpack.c.l.b16 %v67
    %v344 = vunpack.c.l.b16 %v68
    %v345 = vunpack.c.h.b16 %v68
    %v346 = vunpack.c.l.b16 %v69
    %v347 = vunpack.c.l.b16 %v70
    %v348 = vunpack.c.h.b16 %v70
    %v349 = vunpack.c.l.b16 %v71
    %v350 = vunpack.c.l.b16 %v72
    %v351 = vunpack.c.h.b16 %v72
    %v352 = vunpack.c.l.b16 %v73
    %v353 = vunpack.c.l.b16 %v74
    %v354 = vunpack.c.h.b16 %v74
    %v355 = vunpack.c.l.b16 %v75
    %v356 = vpack.c.b16 %v335, %v332
    %v357 = vpack.c.b16 %v336, %v333
    %v358 = vpack.c.b16 %v337, %v334
    %v359 = vpack.c.b16 %v341, %v338
    %v360 = vpack.c.b16 %v342, %v339
    %v361 = vpack.c.b16 %v343, %v340
    %v362 = vpack.c.b16 %v347, %v344
    %v363 = vpack.c.b16 %v348, %v345
    %v364 = vpack.c.b16 %v349, %v346
    %v365 = vpack.c.b16 %v353, %v350
    %v366 = vpack.c.b16 %v354, %v351
    %v367 = vpack.c.b16 %v355, %v352
    %v620 = vunpack.c.l.b16 %v76
    %v621 = vunpack.c.h.b16 %v76
    %v622 = vunpack.c.l.b16 %v77
    %v623 = vunpack.c.h.b16 %v77
    %v624 = vunpack.c.l.b16 %v78
    %v625 = vunpack.c.h.b16 %v78
    %v626 = vunpack.c.l.b16 %v79
    %v627 = vunpack.c.h.b16 %v79
    %v628 = vunpack.c.l.b16 %v80
    %v629 = vunpack.c.l.b16 %v81
    %v630 = vunpack.c.h.b16 %v81
    %v631 = vunpack.c.l.b16 %v82
    %v632 = vunpack.c.h.b16 %v82
    %v633 = vunpack.c.l.b16 %v83
    %v634 = vunpack.c.h.b16 %v83
    %v635 = vunpack.c.l.b16 %v84
    %v636 = vunpack.c.h.b16 %v84
    %v637 = vunpack.c.l.b16 %v85
    %v638 = vunpack.c.l.b16 %v86
    %v639 = vunpack.c.h.b16 %v86
    %v640 = vunpack.c.l.b16 %v87
    %v641 = vunpack.c.h.b16 %v87
    %v642 = vunpack.c.l.b16 %v88
    %v643 = vunpack.c.h.b16 %v88
    %v644 = vunpack.c.l.b16 %v89
    %v645 = vunpack.c.h.b16 %v89
    %v646 = vunpack.c.l.b16 %v90
    %v647 = vunpack.c.l.b16 %v91
    %v648 = vunpack.c.h.b16 %v91
    %v649 = vunpack.c.l.b16 %v92
    %v650 = vunpack.c.h.b16 %v92
    %v651 = vunpack.c.l.b16 %v93
    %v652 = vunpack.c.h.b16 %v93
    %v653 = vunpack.c.l.b16 %v94
    %v654 = vunpack.c.h.b16 %v94
    %v655 = vunpack.c.l.b16 %v95
    %v656 = vunpack.c.l.b16 %v96
    %v657 = vunpack.c.h.b16 %v96
    %v658 = vunpack.c.l.b16 %v97
    %v659 = vunpack.c.h.b16 %v97
    %v660 = vunpack.c.l.b16 %v98
    %v661 = vunpack.c.h.b16 %v98
    %v662 = vunpack.c.l.b16 %v99
    %v663 = vunpack.c.h.b16 %v99
    %v664 = vunpack.c.l.b16 %v100
    %v665 = vunpack.c.l.b16 %v101
    %v666 = vunpack.c.h.b16 %v101
    %v667 = vunpack.c.l.b16 %v102
    %v668 = vunpack.c.h.b16 %v102
    %v669 = vunpack.c.l.b16 %v103
    %v670 = vunpack.c.h.b16 %v103
    %v671 = vunpack.c.l.b16 %v104
    %v672 = vunpack.c.h.b16 %v104
    %v673 = vunpack.c.l.b16 %v105
    %v674 = vunpack.c.l.b16 %v106
    %v675 = vunpack.c.h.b16 %v106
    %v676 = vunpack.c.l.b16 %v107
    %v677 = vunpack.c.h.b16 %v107
    %v678 = vunpack.c.l.b16 %v108
    %v679 = vunpack.c.h.b16 %v108
    %v680 = vunpack.c.l.b16 %v109
    %v681 = vunpack.c.h.b16 %v109
    %v682 = vunpack.c.l.b16 %v110
    %v683 = vunpack.c.l.b16 %v111
    %v684 = vunpack.c.h.b16 %v111
    %v685 = vunpack.c.l.b16 %v112
    %v686 = vunpack.c.h.b16 %v112
    %v687 = vunpack.c.l.b16 %v113
    %v688 = vunpack.c.h.b16 %v113
    %v689 = vunpack.c.l.b16 %v114
    %v690 = vunpack.c.h.b16 %v114
    %v691 = vunpack.c.l.b16 %v115
    %v692 = vunpack.c.l.b16 %v116
    %v693 = vunpack.c.h.b16 %v116
    %v694 = vunpack.c.l.b16 %v117
    %v695 = vunpack.c.h.b16 %v117
    %v696 = vunpack.c.l.b16 %v118
    %v697 = vunpack.c.h.b16 %v118
    %v698 = vunpack.c.l.b16 %v119
    %v699 = vunpack.c.h.b16 %v119
    %v700 = vunpack.c.l.b16 %v120
    %v701 = vunpack.c.l.b16 %v121
    %v702 = vunpack.c.h.b16 %v121
    %v703 = vunpack.c.l.b16 %v122
    %v704 = vunpack.c.h.b16 %v122
    %v705 = vunpack.c.l.b16 %v123
    %v706 = vunpack.c.h.b16 %v123
    %v707 = vunpack.c.l.b16 %v124
    %v708 = vunpack.c.h.b16 %v124
    %v709 = vunpack.c.l.b16 %v125
    %v710 = vunpack.c.l.b16 %v126
    %v711 = vunpack.c.h.b16 %v126
    %v712 = vunpack.c.l.b16 %v127
    %v713 = vunpack.c.h.b16 %v127
    %v714 = vunpack.c.l.b16 %v128
    %v715 = vunpack.c.h.b16 %v128
    %v716 = vunpack.c.l.b16 %v129
    %v717 = vunpack.c.h.b16 %v129
    %v718 = vunpack.c.l.b16 %v130
    %v719 = vunpack.c.l.b16 %v131
    %v720 = vunpack.c.h.b16 %v131
    %v721 = vunpack.c.l.b16 %v132
    %v722 = vunpack.c.h.b16 %v132
    %v723 = vunpack.c.l.b16 %v133
    %v724 = vunpack.c.h.b16 %v133
    %v725 = vunpack.c.l.b16 %v134
    %v726 = vunpack.c.h.b16 %v134
    %v727 = vunpack.c.l.b16 %v135
    %v728 = vunpack.c.l.b16 %v136
    %v729 = vunpack.c.h.b16 %v136
    %v730 = vunpack.c.l.b16 %v137
    %v731 = vunpack.c.h.b16 %v137
    %v732 = vunpack.c.l.b16 %v138
    %v733 = vunpack.c.h.b16 %v138
    %v734 = vunpack.c.l.b16 %v139
    %v735 = vunpack.c.h.b16 %v139
    %v736 = vunpack.c.l.b16 %v140
    %v737 = vunpack.c.l.b16 %v141
    %v738 = vunpack.c.h.b16 %v141
    %v739 = vunpack.c.l.b16 %v142
    %v740 = vunpack.c.h.b16 %v142
    %v741 = vunpack.c.l.b16 %v143
    %v742 = vunpack.c.h.b16 %v143
    %v743 = vunpack.c.l.b16 %v144
    %v744 = vunpack.c.h.b16 %v144
    %v745 = vunpack.c.l.b16 %v145
    %v746 = vunpack.c.l.b16 %v146
    %v747 = vunpack.c.h.b16 %v146
    %v748 = vunpack.c.l.b16 %v147
    %v749 = vunpack.c.h.b16 %v147
    %v750 = vunpack.c.l.b16 %v148
    %v751 = vunpack.c.h.b16 %v148
    %v752 = vunpack.c.l.b16 %v149
    %v753 = vunpack.c.h.b16 %v149
    %v754 = vunpack.c.l.b16 %v150
    %v755 = vunpack.c.l.b16 %v151
    %v756 = vunpack.c.h.b16 %v151
    %v757 = vunpack.c.l.b16 %v152
    %v758 = vunpack.c.h.b16 %v152
    %v759 = vunpack.c.l.b16 %v153
    %v760 = vunpack.c.h.b16 %v153
    %v761 = vunpack.c.l.b16 %v154
    %v762 = vunpack.c.h.b16 %v154
    %v763 = vunpack.c.l.b16 %v155
    %v764 = vunpack.c.l.b16 %v156
    %v765 = vunpack.c.h.b16 %v156
    %v766 = vunpack.c.l.b16 %v157
    %v767 = vunpack.c.h.b16 %v157
    %v768 = vunpack.c.l.b16 %v158
    %v769 = vunpack.c.h.b16 %v158
    %v770 = vunpack.c.l.b16 %v159
    %v771 = vunpack.c.h.b16 %v159
    %v772 = vunpack.c.l.b16 %v160
    %v773 = vunpack.c.l.b16 %v161
    %v774 = vunpack.c.h.b16 %v161
    %v775 = vunpack.c.l.b16 %v162
    %v776 = vunpack.c.h.b16 %v162
    %v777 = vunpack.c.l.b16 %v163
    %v778 = vunpack.c.h.b16 %v163
    %v779 = vunpack.c.l.b16 %v164
    %v780 = vunpack.c.h.b16 %v164
    %v781 = vunpack.c.l.b16 %v165
    %v782 = vunpack.c.l.b16 %v166
    %v783 = vunpack.c.h.b16 %v166
    %v784 = vunpack.c.l.b16 %v167
    %v785 = vunpack.c.h.b16 %v167
    %v786 = vunpack.c.l.b16 %v168
    %v787 = vunpack.c.h.b16 %v168
    %v788 = vunpack.c.l.b16 %v169
    %v789 = vunpack.c.h.b16 %v169
    %v790 = vunpack.c.l.b16 %v170
    %v791 = vunpack.c.l.b16 %v171
    %v792 = vunpack.c.h.b16 %v171
    %v793 = vunpack.c.l.b16 %v172
    %v794 = vunpack.c.h.b16 %v172
    %v795 = vunpack.c.l.b16 %v173
    %v796 = vunpack.c.h.b16 %v173
    %v797 = vunpack.c.l.b16 %v174
    %v798 = vunpack.c.h.b16 %v174
    %v799 = vunpack.c.l.b16 %v175
    %v800 = vunpack.c.l.b16 %v176
    %v801 = vunpack.c.h.b16 %v176
    %v802 = vunpack.c.l.b16 %v177
    %v803 = vunpack.c.h.b16 %v177
    %v804 = vunpack.c.l.b16 %v178
    %v805 = vunpack.c.h.b16 %v178
    %v806 = vunpack.c.l.b16 %v179
    %v807 = vunpack.c.h.b16 %v179
    %v808 = vunpack.c.l.b16 %v180
    %v809 = vunpack.c.l.b16 %v181
    %v810 = vunpack.c.h.b16 %v181
    %v811 = vunpack.c.l.b16 %v182
    %v812 = vunpack.c.h.b16 %v182
    %v813 = vunpack.c.l.b16 %v183
    %v814 = vunpack.c.h.b16 %v183
    %v815 = vunpack.c.l.b16 %v184
    %v816 = vunpack.c.h.b16 %v184
    %v817 = vunpack.c.l.b16 %v185
    %v818 = vunpack.c.l.b16 %v186
    %v819 = vunpack.c.h.b16 %v186
    %v820 = vunpack.c.l.b16 %v187
    %v821 = vunpack.c.h.b16 %v187
    %v822 = vunpack.c.l.b16 %v188
    %v823 = vunpack.c.h.b16 %v188
    %v824 = vunpack.c.l.b16 %v189
    %v825 = vunpack.c.h.b16 %v189
    %v826 = vunpack.c.l.b16 %v190
    %v827 = vunpack.c.l.b16 %v191
    %v828 = vunpack.c.h.b16 %v191
    %v829 = vunpack.c.l.b16 %v192
    %v830 = vunpack.c.h.b16 %v192
    %v831 = vunpack.c.l.b16 %v193
    %v832 = vunpack.c.h.b16 %v193
    %v833 = vunpack.c.l.b16 %v194
    %v834 = vunpack.c.h.b16 %v194
    %v835 = vunpack.c.l.b16 %v195
    %v836 = vunpack.c.l.b16 %v196
    %v837 = vunpack.c.h.b16 %v196
    %v838 = vunpack.c.l.b16 %v197
    %v839 = vunpack.c.h.b16 %v197
    %v840 = vunpack.c.l.b16 %v198
    %v841 = vunpack.c.h.b16 %v198
    %v842 = vunpack.c.l.b16 %v199
    %v843 = vunpack.c.h.b16 %v199
    %v844 = vunpack.c.l.b16 %v200
    %v845 = vunpack.c.l.b16 %v201
    %v846 = vunpack.c.h.b16 %v201
    %v847 = vunpack.c.l.b16 %v202
    %v848 = vunpack.c.h.b16 %v202
    %v849 = vunpack.c.l.b16 %v203
    %v850 = vunpack.c.h.b16 %v203
    %v851 = vunpack.c.l.b16 %v204
    %v852 = vunpack.c.h.b16 %v204
    %v853 = vunpack.c.l.b16 %v205
    %v854 = vunpack.c.l.b16 %v206
    %v855 = vunpack.c.h.b16 %v206
    %v856 = vunpack.c.l.b16 %v207
    %v857 = vunpack.c.h.b16 %v207
    %v858 = vunpack.c.l.b16 %v208
    %v859 = vunpack.c.h.b16 %v208
    %v860 = vunpack.c.l.b16 %v209
    %v861 = vunpack.c.h.b16 %v209
    %v862 = vunpack.c.l.b16 %v210
    %v863 = vunpack.c.l.b16 %v211
    %v864 = vunpack.c.h.b16 %v211
    %v865 = vunpack.c.l.b16 %v212
    %v866 = vunpack.c.h.b16 %v212
    %v867 = vunpack.c.l.b16 %v213
    %v868 = vunpack.c.h.b16 %v213
    %v869 = vunpack.c.l.b16 %v214
    %v870 = vunpack.c.h.b16 %v214
    %v871 = vunpack.c.l.b16 %v215
    %v872 = vunpack.c.l.b16 %v216
    %v873 = vunpack.c.h.b16 %v216
    %v874 = vunpack.c.l.b16 %v217
    %v875 = vunpack.c.h.b16 %v217
    %v876 = vunpack.c.l.b16 %v218
    %v877 = vunpack.c.h.b16 %v218
    %v878 = vunpack.c.l.b16 %v219
    %v879 = vunpack.c.h.b16 %v219
    %v880 = vunpack.c.l.b16 %v220
    %v881 = vunpack.c.l.b16 %v221
    %v882 = vunpack.c.h.b16 %v221
    %v883 = vunpack.c.l.b16 %v222
    %v884 = vunpack.c.h.b16 %v222
    %v885 = vunpack.c.l.b16 %v223
    %v886 = vunpack.c.h.b16 %v223
    %v887 = vunpack.c.l.b16 %v224
    %v888 = vunpack.c.h.b16 %v224
    %v889 = vunpack.c.l.b16 %v225
    %v890 = vunpack.c.l.b16 %v226
    %v891 = vunpack.c.h.b16 %v226
    %v892 = vunpack.c.l.b16 %v227
    %v893 = vunpack.c.h.b16 %v227
    %v894 = vunpack.c.l.b16 %v228
    %v895 = vunpack.c.h.b16 %v228
    %v896 = vunpack.c.l.b16 %v229
    %v897 = vunpack.c.h.b16 %v229
    %v898 = vunpack.c.l.b16 %v230
    %v899 = vunpack.c.l.b16 %v231
    %v900 = vunpack.c.h.b16 %v231
    %v901 = vunpack.c.l.b16 %v232
    %v902 = vunpack.c.h.b16 %v232
    %v903 = vunpack.c.l.b16 %v233
    %v904 = vunpack.c.h.b16 %v233
    %v905 = vunpack.c.l.b16 %v234
    %v906 = vunpack.c.h.b16 %v234
    %v907 = vunpack.c.l.b16 %v235
    %v908 = vunpack.c.l.b16 %v236
    %v909 = vunpack.c.h.b16 %v236
    %v910 = vunpack.c.l.b16 %v237
    %v911 = vunpack.c.h.b16 %v237
    %v912 = vunpack.c.l.b16 %v238
    %v913 = vunpack.c.h.b16 %v238
    %v914 = vunpack.c.l.b16 %v239
    %v915 = vunpack.c.h.b16 %v239
    %v916 = vunpack.c.l.b16 %v240
    %v917 = vunpack.c.l.b16 %v241
    %v918 = vunpack.c.h.b16 %v241
    %v919 = vunpack.c.l.b16 %v242
    %v920 = vunpack.c.h.b16 %v242
    %v921 = vunpack.c.l.b16 %v243
    %v922 = vunpack.c.h.b16 %v243
    %v923 = vunpack.c.l.b16 %v244
    %v924 = vunpack.c.h.b16 %v244
    %v925 = vunpack.c.l.b16 %v245
    %v926 = vunpack.c.l.b16 %v246
    %v927 = vunpack.c.h.b16 %v246
    %v928 = vunpack.c.l.b16 %v247
    %v929 = vunpack.c.h.b16 %v247
    %v930 = vunpack.c.l.b16 %v248
    %v931 = vunpack.c.h.b16 %v248
    %v932 = vunpack.c.l.b16 %v249
    %v933 = vunpack.c.h.b16 %v249
    %v934 = vunpack.c.l.b16 %v250
    %v935 = vunpack.c.l.b16 %v251
    %v936 = vunpack.c.h.b16 %v251
    %v937 = vunpack.c.l.b16 %v252
    %v938 = vunpack.c.h.b16 %v252
    %v939 = vunpack.c.l.b16 %v253
    %v940 = vunpack.c.h.b16 %v253
    %v941 = vunpack.c.l.b16 %v254
    %v942 = vunpack.c.h.b16 %v254
    %v943 = vunpack.c.l.b16 %v255
    %v944 = vunpack.c.l.b16 %v256
    %v945 = vunpack.c.h.b16 %v256
    %v946 = vunpack.c.l.b16 %v257
    %v947 = vunpack.c.h.b16 %v257
    %v948 = vunpack.c.l.b16 %v258
    %v949 = vunpack.c.h.b16 %v258
    %v950 = vunpack.c.l.b16 %v259
    %v951 = vunpack.c.h.b16 %v259
    %v952 = vunpack.c.l.b16 %v260
    %v953 = vunpack.c.l.b16 %v261
    %v954 = vunpack.c.h.b16 %v261
    %v955 = vunpack.c.l.b16 %v262
    %v956 = vunpack.c.h.b16 %v262
    %v957 = vunpack.c.l.b16 %v263
    %v958 = vunpack.c.h.b16 %v263
    %v959 = vunpack.c.l.b16 %v264
    %v960 = vunpack.c.h.b16 %v264
    %v961 = vunpack.c.l.b16 %v265
    %v962 = vunpack.c.l.b16 %v266
    %v963 = vunpack.c.h.b16 %v266
    %v964 = vunpack.c.l.b16 %v267
    %v965 = vunpack.c.h.b16 %v267
    %v966 = vunpack.c.l.b16 %v268
    %v967 = vunpack.c.h.b16 %v268
    %v968 = vunpack.c.l.b16 %v269
    %v969 = vunpack.c.h.b16 %v269
    %v970 = vunpack.c.l.b16 %v270
    %v971 = vunpack.c.l.b16 %v271
    %v972 = vunpack.c.h.b16 %v271
    %v973 = vunpack.c.l.b16 %v272
    %v974 = vunpack.c.h.b16 %v272
    %v975 = vunpack.c.l.b16 %v273
    %v976 = vunpack.c.h.b16 %v273
    %v977 = vunpack.c.l.b16 %v274
    %v978 = vunpack.c.h.b16 %v274
    %v979 = vunpack.c.l.b16 %v275
    %v980 = vunpack.c.l.b16 %v276
    %v981 = vunpack.c.h.b16 %v276
    %v982 = vunpack.c.l.b16 %v277
    %v983 = vunpack.c.h.b16 %v277
    %v984 = vunpack.c.l.b16 %v278
    %v985 = vunpack.c.h.b16 %v278
    %v986 = vunpack.c.l.b16 %v279
    %v987 = vunpack.c.h.b16 %v279
    %v988 = vunpack.c.l.b16 %v280
    %v989 = vunpack.c.l.b16 %v281
    %v990 = vunpack.c.h.b16 %v281
    %v991 = vunpack.c.l.b16 %v282
    %v992 = vunpack.c.h.b16 %v282
    %v993 = vunpack.c.l.b16 %v283
    %v994 = vunpack.c.h.b16 %v283
    %v995 = vunpack.c.l.b16 %v284
    %v996 = vunpack.c.h.b16 %v284
    %v997 = vunpack.c.l.b16 %v285
    %v998 = vunpack.c.l.b16 %v286
    %v999 = vunpack.c.h.b16 %v286
    %v1000 = vunpack.c.l.b16 %v287
    %v1001 = vunpack.c.h.b16 %v287
    %v1002 = vunpack.c.l.b16 %v288
    %v1003 = vunpack.c.h.b16 %v288
    %v1004 = vunpack.c.l.b16 %v289
    %v1005 = vunpack.c.h.b16 %v289
    %v1006 = vunpack.c.l.b16 %v290
    %v1007 = vunpack.c.l.b16 %v291
    %v1008 = vunpack.c.h.b16 %v291
    %v1009 = vunpack.c.l.b16 %v292
    %v1010 = vunpack.c.h.b16 %v292
    %v1011 = vunpack.c.l.b16 %v293
    %v1012 = vunpack.c.h.b16 %v293
    %v1013 = vunpack.c.l.b16 %v294
    %v1014 = vunpack.c.h.b16 %v294
    %v1015 = vunpack.c.l.b16 %v295
    %v1016 = vunpack.c.l.b16 %v296
    %v1017 = vunpack.c.h.b16 %v296
    %v1018 = vunpack.c.l.b16 %v297
    %v1019 = vunpack.c.h.b16 %v297
    %v1020 = vunpack.c.l.b16 %v298
    %v1021 = vunpack.c.h.b16 %v298
    %v1022 = vunpack.c.l.b16 %v299
    %v1023 = vunpack.c.h.b16 %v299
    %v1024 = vunpack.c.l.b16 %v300
    %v1025 = vunpack.c.l.b16 %v301
    %v1026 = vunpack.c.h.b16 %v301
    %v1027 = vunpack.c.l.b16 %v302
    %v1028 = vunpack.c.h.b16 %v302
    %v1029 = vunpack.c.l.b16 %v303
    %v1030 = vunpack.c.h.b16 %v303
    %v1031 = vunpack.c.l.b16 %v304
    %v1032 = vunpack.c.h.b16 %v304
    %v1033 = vunpack.c.l.b16 %v305
    %v1034 = vunpack.c.l.b16 %v306
    %v1035 = vunpack.c.h.b16 %v306
    %v1036 = vunpack.c.l.b16 %v307
    %v1037 = vunpack.c.h.b16 %v307
    %v1038 = vunpack.c.l.b16 %v308
    %v1039 = vunpack.c.h.b16 %v308
    %v1040 = vunpack.c.l.b16 %v309
    %v1041 = vunpack.c.h.b16 %v309
    %v1042 = vunpack.c.l.b16 %v310
    %v1043 = vunpack.c.l.b16 %v311
    %v1044 = vunpack.c.h.b16 %v311
    %v1045 = vunpack.c.l.b16 %v312
    %v1046 = vunpack.c.h.b16 %v312
    %v1047 = vunpack.c.l.b16 %v313
    %v1048 = vunpack.c.h.b16 %v313
    %v1049 = vunpack.c.l.b16 %v314
    %v1050 = vunpack.c.h.b16 %v314
    %v1051 = vunpack.c.l.b16 %v315
    %v1052 = vpack.c.b16 %v629, %v620
    %v1053 = vpack.c.b16 %v630, %v621
    %v1054 = vpack.c.b16 %v631, %v622
    %v1055 = vpack.c.b16 %v632, %v623
    %v1056 = vpack.c.b16 %v633, %v624
    %v1057 = vpack.c.b16 %v634, %v625
    %v1058 = vpack.c.b16 %v635, %v626
    %v1059 = vpack.c.b16 %v636, %v627
    %v1060 = vpack.c.b16 %v637, %v628
    %v1061 = vpack.c.b16 %v647, %v638
    %v1062 = vpack.c.b16 %v648, %v639
    %v1063 = vpack.c.b16 %v649, %v640
    %v1064 = vpack.c.b16 %v650, %v641
    %v1065 = vpack.c.b16 %v651, %v642
    %v1066 = vpack.c.b16 %v652, %v643
    %v1067 = vpack.c.b16 %v653, %v644
    %v1068 = vpack.c.b16 %v654, %v645
    %v1069 = vpack.c.b16 %v655, %v646
    %v1070 = vpack.c.b16 %v665, %v656
    %v1071 = vpack.c.b16 %v666, %v657
    %v1072 = vpack.c.b16 %v667, %v658
    %v1073 = vpack.c.b16 %v668, %v659
    %v1074 = vpack.c.b16 %v669, %v660
    %v1075 = vpack.c.b16 %v670, %v661
    %v1076 = vpack.c.b16 %v671, %v662
    %v1077 = vpack.c.b16 %v672, %v663
    %v1078 = vpack.c.b16 %v673, %v664
    %v1079 = vpack.c.b16 %v683, %v674
    %v1080 = vpack.c.b16 %v684, %v675
    %v1081 = vpack.c.b16 %v685, %v676
    %v1082 = vpack.c.b16 %v686, %v677
    %v1083 = vpack.c.b16 %v687, %v678
    %v1084 = vpack.c.b16 %v688, %v679
    %v1085 = vpack.c.b16 %v689, %v680
    %v1086 = vpack.c.b16 %v690, %v681
    %v1087 = vpack.c.b16 %v691, %v682
    %v1088 = vpack.c.b16 %v701, %v692
    %v1089 = vpack.c.b16 %v702, %v693
    %v1090 = vpack.c.b16 %v703, %v694
    %v1091 = vpack.c.b16 %v704, %v695
    %v1092 = vpack.c.b16 %v705, %v696
    %v1093 = vpack.c.b16 %v706, %v697
    %v1094 = vpack.c.b16 %v707, %v698
    %v1095 = vpack.c.b16 %v708, %v699
    %v1096 = vpack.c.b16 %v709, %v700
    %v1097 = vpack.c.b16 %v719, %v710
    %v1098 = vpack.c.b16 %v720, %v711
    %v1099 = vpack.c.b16 %v721, %v712
    %v1100 = vpack.c.b16 %v722, %v713
    %v1101 = vpack.c.b16 %v723, %v714
    %v1102 = vpack.c.b16 %v724, %v715
    %v1103 = vpack.c.b16 %v725, %v716
    %v1104 = vpack.c.b16 %v726, %v717
    %v1105 = vpack.c.b16 %v727, %v718
    %v1106 = vpack.c.b16 %v737, %v728
    %v1107 = vpack.c.b16 %v738, %v729
    %v1108 = vpack.c.b16 %v739, %v730
    %v1109 = vpack.c.b16 %v740, %v731
    %v1110 = vpack.c.b16 %v741, %v732
    %v1111 = vpack.c.b16 %v742, %v733
    %v1112 = vpack.c.b16 %v743, %v734
    %v1113 = vpack.c.b16 %v744, %v735
    %v1114 = vpack.c.b16 %v745, %v736
    %v1115 = vpack.c.b16 %v755, %v746
    %v1116 = vpack.c.b16 %v756, %v747
    %v1117 = vpack.c.b16 %v757, %v748
    %v1118 = vpack.c.b16 %v758, %v749
    %v1119 = vpack.c.b16 %v759, %v750
    %v1120 = vpack.c.b16 %v760, %v751
    %v1121 = vpack.c.b16 %v761, %v752
    %v1122 = vpack.c.b16 %v762, %v753
    %v1123 = vpack.c.b16 %v763, %v754
    %v1124 = vpack.c.b16 %v773, %v764
    %v1125 = vpack.c.b16 %v774, %v765
    %v1126 = vpack.c.b16 %v775, %v766
    %v1127 = vpack.c.b16 %v776, %v767
    %v1128 = vpack.c.b16 %v777, %v768
    %v1129 = vpack.c.b16 %v778, %v769
    %v1130 = vpack.c.b16 %v779, %v770
    %v1131 = vpack.c.b16 %v780, %v771
    %v1132 = vpack.c.b16 %v781, %v772
    %v1133 = vpack.c.b16 %v791, %v782
    %v1134 = vpack.c.b16 %v792, %v783
    %v1135 = vpack.c.b16 %v793, %v784
    %v1136 = vpack.c.b16 %v794, %v785
    %v1137 = vpack.c.b16 %v795, %v786
    %v1138 = vpack.c.b16 %v796, %v787
    %v1139 = vpack.c.b16 %v797, %v788
    %v1140 = vpack.c.b16 %v798, %v789
    %v1141 = vpack.c.b16 %v799, %v790
    %v1142 = vpack.c.b16 %v809, %v800
    %v1143 = vpack.c.b16 %v810, %v801
    %v1144 = vpack.c.b16 %v811, %v802
    %v1145 = vpack.c.b16 %v812, %v803
    %v1146 = vpack.c.b16 %v813, %v804
    %v1147 = vpack.c.b16 %v814, %v805
    %v1148 = vpack.c.b16 %v815, %v806
    %v1149 = vpack.c.b16 %v816, %v807
    %v1150 = vpack.c.b16 %v817, %v808
    %v1151 = vpack.c.b16 %v827, %v818
    %v1152 = vpack.c.b16 %v828, %v819
    %v1153 = vpack.c.b16 %v829, %v820
    %v1154 = vpack.c.b16 %v830, %v821
    %v1155 = vpack.c.b16 %v831, %v822
    %v1156 = vpack.c.b16 %v832, %v823
    %v1157 = vpack.c.b16 %v833, %v824
    %v1158 = vpack.c.b16 %v834, %v825
    %v1159 = vpack.c.b16 %v835, %v826
    %v1160 = vpack.c.b16 %v845, %v836
    %v1161 = vpack.c.b16 %v846, %v837
    %v1162 = vpack.c.b16 %v847, %v838
    %v1163 = vpack.c.b16 %v848, %v839
    %v1164 = vpack.c.b16 %v849, %v840
    %v1165 = vpack.c.b16 %v850, %v841
    %v1166 = vpack.c.b16 %v851, %v842
    %v1167 = vpack.c.b16 %v852, %v843
    %v1168 = vpack.c.b16 %v853, %v844
    %v1169 = vpack.c.b16 %v863, %v854
    %v1170 = vpack.c.b16 %v864, %v855
    %v1171 = vpack.c.b16 %v865, %v856
    %v1172 = vpack.c.b16 %v866, %v857
    %v1173 = vpack.c.b16 %v867, %v858
    %v1174 = vpack.c.b16 %v868, %v859
    %v1175 = vpack.c.b16 %v869, %v860
    %v1176 = vpack.c.b16 %v870, %v861
    %v1177 = vpack.c.b16 %v871, %v862
    %v1178 = vpack.c.b16 %v881, %v872
    %v1179 = vpack.c.b16 %v882, %v873
    %v1180 = vpack.c.b16 %v883, %v874
    %v1181 = vpack.c.b16 %v884, %v875
    %v1182 = vpack.c.b16 %v885, %v876
    %v1183 = vpack.c.b16 %v886, %v877
    %v1184 = vpack.c.b16 %v887, %v878
    %v1185 = vpack.c.b16 %v888, %v879
    %v1186 = vpack.c.b16 %v889, %v880
    %v1187 = vpack.c.b16 %v899, %v890
    %v1188 = vpack.c.b16 %v900, %v891
    %v1189 = vpack.c.b16 %v901, %v892
    %v1190 = vpack.c.b16 %v902, %v893
    %v1191 = vpack.c.b16 %v903, %v894
    %v1192 = vpack.c.b16 %v904, %v895
    %v1193 = vpack.c.b16 %v905, %v896
    %v1194 = vpack.c.b16 %v906, %v897
    %v1195 = vpack.c.b16 %v907, %v898
    %v1196 = vpack.c.b16 %v917, %v908
    %v1197 = vpack.c.b16 %v918, %v909
    %v1198 = vpack.c.b16 %v919, %v910
    %v1199 = vpack.c.b16 %v920, %v911
    %v1200 = vpack.c.b16 %v921, %v912
    %v1201 = vpack.c.b16 %v922, %v913
    %v1202 = vpack.c.b16 %v923, %v914
    %v1203 = vpack.c.b16 %v924, %v915
    %v1204 = vpack.c.b16 %v925, %v916
    %v1205 = vpack.c.b16 %v935, %v926
    %v1206 = vpack.c.b16 %v936, %v927
    %v1207 = vpack.c.b16 %v937, %v928
    %v1208 = vpack.c.b16 %v938, %v929
    %v1209 = vpack.c.b16 %v939, %v930
    %v1210 = vpack.c.b16 %v940, %v931
    %v1211 = vpack.c.b16 %v941, %v932
    %v1212 = vpack.c.b16 %v942, %v933
    %v1213 = vpack.c.b16 %v943, %v934
    %v1214 = vpack.c.b16 %v953, %v944
    %v1215 = vpack.c.b16 %v954, %v945
    %v1216 = vpack.c.b16 %v955, %v946
    %v1217 = vpack.c.b16 %v956, %v947
    %v1218 = vpack.c.b16 %v957, %v948
    %v1219 = vpack.c.b16 %v958, %v949
    %v1220 = vpack.c.b16 %v959, %v950
    %v1221 = vpack.c.b16 %v960, %v951
    %v1222 = vpack.c.b16 %v961, %v952
    %v1223 = vpack.c.b16 %v971, %v962
    %v1224 = vpack.c.b16 %v972, %v963
    %v1225 = vpack.c.b16 %v973, %v964
    %v1226 = vpack.c.b16 %v974, %v965
    %v1227 = vpack.c.b16 %v975, %v966
    %v1228 = vpack.c.b16 %v976, %v967
    %v1229 = vpack.c.b16 %v977, %v968
    %v1230 = vpack.c.b16 %v978, %v969
    %v1231 = vpack.c.b16 %v979, %v970
    %v1232 = vpack.c.b16 %v989, %v980
    %v1233 = vpack.c.b16 %v990, %v981
    %v1234 = vpack.c.b16 %v991, %v982
    %v1235 = vpack.c.b16 %v992, %v983
    %v1236 = vpack.c.b16 %v993, %v984
    %v1237 = vpack.c.b16 %v994, %v985
    %v1238 = vpack.c.b16 %v995, %v986
    %v1239 = vpack.c.b16 %v996, %v987
    %v1240 = vpack.c.b16 %v997, %v988
    %v1241 = vpack.c.b16 %v1007, %v998
    %v1242 = vpack.c.b16 %v1008, %v999
    %v1243 = vpack.c.b16 %v1009, %v1000
    %v1244 = vpack.c.b16 %v1010, %v1001
    %v1245 = vpack.c.b16 %v1011, %v1002
    %v1246 = vpack.c.b16 %v1012, %v1003
    %v1247 = vpack.c.b16 %v1013, %v1004
    %v1248 = vpack.c.b16 %v1014, %v1005
    %v1249 = vpack.c.b16 %v1015, %v1006
    %v1250 = vpack.c.b16 %v1025, %v1016
    %v1251 = vpack.c.b16 %v1026, %v1017
    %v1252 = vpack.c.b16 %v1027, %v1018
    %v1253 = vpack.c.b16 %v1028, %v1019
    %v1254 = vpack.c.b16 %v1029, %v1020
    %v1255 = vpack.c.b16 %v1030, %v1021
    %v1256 = vpack.c.b16 %v1031, %v1022
    %v1257 = vpack.c.b16 %v1032, %v1023
    %v1258 = vpack.c.b16 %v1033, %v1024
    %v1259 = vpack.c.b16 %v1043, %v1034
    %v1260 = vpack.c.b16 %v1044, %v1035
    %v1261 = vpack.c.b16 %v1045, %v1036
    %v1262 = vpack.c.b16 %v1046, %v1037
    %v1263 = vpack.c.b16 %v1047, %v1038
    %v1264 = vpack.c.b16 %v1048, %v1039
    %v1265 = vpack.c.b16 %v1049, %v1040
    %v1266 = vpack.c.b16 %v1050, %v1041
    %v1267 = vpack.c.b16 %v1051, %v1042
    %1484 = vmatprep.subr.bf16.mxu0 %v1116
    %1485 = vmatpush1.bf16.msra.mxu0 %v1115
    %1486 = vmatprep.subr.bf16.mxu0 %v1107
    %1487 = vmatpush1.bf16.msra.mxu0 %v1106
    %1488 = vmatprep.subr.bf16.mxu0 %v1098
    %1489 = vmatpush1.bf16.msra.mxu0 %v1097
    %1490 = vmatprep.subr.bf16.mxu0 %v1089
    %1491 = vmatpush1.bf16.msra.mxu0 %v1088
    %1492 = vmatprep.subr.bf16.mxu0 %v1080
    %1493 = vmatpush1.bf16.msra.mxu0 %v1079
    %1494 = vmatprep.subr.bf16.mxu0 %v1071
    %1495 = vmatpush1.bf16.msra.mxu0 %v1070
    %1496 = vmatprep.subr.bf16.mxu0 %v1062
    %1497 = vmatpush1.bf16.msra.mxu0 %v1061
    %1498 = vmatprep.subr.bf16.mxu0 %v1053
    %1499 = vmatpush1.bf16.msra.mxu0 %v1052
    %1500 = vmatprep.subr.bf16.mxu0 %v1188
    %1501 = vmatpush2.bf16.msra.mxu0 %v1187
    %1502 = vmatprep.subr.bf16.mxu0 %v1179
    %1503 = vmatpush2.bf16.msra.mxu0 %v1178
    %1504 = vmatprep.subr.bf16.mxu0 %v1170
    %1505 = vmatpush2.bf16.msra.mxu0 %v1169
    %1506 = vmatprep.subr.bf16.mxu0 %v1161
    %1507 = vmatpush2.bf16.msra.mxu0 %v1160
    %1508 = vmatprep.subr.bf16.mxu0 %v1152
    %1509 = vmatpush2.bf16.msra.mxu0 %v1151
    %1510 = vmatprep.subr.bf16.mxu0 %v1143
    %1511 = vmatpush2.bf16.msra.mxu0 %v1142
    %1512 = vmatprep.subr.bf16.mxu0 %v1134
    %1513 = vmatpush2.bf16.msra.mxu0 %v1133
    %1514 = vmatprep.subr.bf16.mxu0 %v1125
    %1515 = vmatpush2.bf16.msra.mxu0 %v1124
    %1516 = vmatprep.mubr.bf16.mxu0 %v357
    %1517 = vmatmul.mubr.bf16.gmra.mxu0 %v356
    %v1518 = vpop.f32.mrf.mxu0
    %v1519 = vadd.f32 0.0, %v1518
    %v1520 = vpop.f32.mrf.mxu0
    %v1521 = vadd.f32 0.0, %v1520
    %v1522 = vpop.f32.mrf.mxu0
    %v1523 = vadd.f32 0.0, %v1522
    %v1524 = vpop.f32.mrf.mxu0
    %v1525 = vadd.f32 0.0, %v1524
    %1526 = vmatprep.mubr.bf16.mxu0 %v360
    %1527 = vmatmul.mubr.bf16.gmra.mxu0 %v359
    %v1528 = vpop.f32.mrf.mxu0
    %v1529 = vadd.f32 0.0, %v1528
    %v1530 = vpop.f32.mrf.mxu0
    %v1531 = vadd.f32 0.0, %v1530
    %v1532 = vpop.f32.mrf.mxu0
    %v1533 = vadd.f32 0.0, %v1532
    %v1534 = vpop.f32.mrf.mxu0
    %v1535 = vadd.f32 0.0, %v1534
    %1536 = vmatprep.mubr.bf16.mxu0 %v363
    %1537 = vmatmul.mubr.bf16.gmra.mxu0 %v362
    %v1538 = vpop.f32.mrf.mxu0
    %v1539 = vadd.f32 0.0, %v1538
    %v1540 = vpop.f32.mrf.mxu0
    %v1541 = vadd.f32 0.0, %v1540
    %v1542 = vpop.f32.mrf.mxu0
    %v1543 = vadd.f32 0.0, %v1542
    %v1544 = vpop.f32.mrf.mxu0
    %v1545 = vadd.f32 0.0, %v1544
    %1546 = vmatprep.mubr.bf16.mxu0 %v366
    %1547 = vmatmul.mubr.bf16.gmra.mxu0 %v365
    %v1548 = vpop.f32.mrf.mxu0
    %v1549 = vadd.f32 0.0, %v1548
    %v1550 = vpop.f32.mrf.mxu0
    %v1551 = vadd.f32 0.0, %v1550
    %v1552 = vpop.f32.mrf.mxu0
    %v1553 = vadd.f32 0.0, %v1552
    %v1554 = vpop.f32.mrf.mxu0
    %v1555 = vadd.f32 0.0, %v1554
    %1556 = vdwg.mxu0
    %1557 = vmatprep.subr.bf16.mxu0 %v1260
    %1558 = vmatpush1.bf16.msra.mxu0 %v1259
    %1559 = vmatprep.subr.bf16.mxu0 %v1251
    %1560 = vmatpush1.bf16.msra.mxu0 %v1250
    %1561 = vmatprep.subr.bf16.mxu0 %v1242
    %1562 = vmatpush1.bf16.msra.mxu0 %v1241
    %1563 = vmatprep.subr.bf16.mxu0 %v1233
    %1564 = vmatpush1.bf16.msra.mxu0 %v1232
    %1565 = vmatprep.subr.bf16.mxu0 %v1224
    %1566 = vmatpush1.bf16.msra.mxu0 %v1223
    %1567 = vmatprep.subr.bf16.mxu0 %v1215
    %1568 = vmatpush1.bf16.msra.mxu0 %v1214
    %1569 = vmatprep.subr.bf16.mxu0 %v1206
    %1570 = vmatpush1.bf16.msra.mxu0 %v1205
    %1571 = vmatprep.subr.bf16.mxu0 %v1197
    %1572 = vmatpush1.bf16.msra.mxu0 %v1196
    %1573 = vmatprep.subr.bf16.mxu0 0
    %1574 = vmatpush2.bf16.msra.mxu0 0
    %1575 = vmatprep.subr.bf16.mxu0 0
    %1576 = vmatpush2.bf16.msra.mxu0 0
    %1577 = vmatprep.subr.bf16.mxu0 0
    %1578 = vmatpush2.bf16.msra.mxu0 0
    %1579 = vmatprep.subr.bf16.mxu0 0
    %1580 = vmatpush2.bf16.msra.mxu0 0
    %1581 = vmatprep.subr.bf16.mxu0 0
    %1582 = vmatpush2.bf16.msra.mxu0 0
    %1583 = vmatprep.subr.bf16.mxu0 0
    %1584 = vmatpush2.bf16.msra.mxu0 0
    %1585 = vmatprep.subr.bf16.mxu0 0
    %1586 = vmatpush2.bf16.msra.mxu0 0
    %1587 = vmatprep.subr.bf16.mxu0 0
    %1588 = vmatpush2.bf16.msra.mxu0 0
    %1589 = vmatprep.mubr.bf16.mxu0 0
    %1590 = vmatmul.mubr.bf16.gmra.mxu0 %v358
    %v1591 = vpop.f32.mrf.mxu0
    %v1592 = vadd.f32 %v1519, %v1591
    %v1593 = vpop.f32.mrf.mxu0
    %v1594 = vadd.f32 %v1521, %v1593
    %v1595 = vpop.f32.mrf.mxu0
    %v1596 = vadd.f32 %v1523, %v1595
    %v1597 = vpop.f32.mrf.mxu0
    %v1598 = vadd.f32 %v1525, %v1597
    %1599 = vmatprep.mubr.bf16.mxu0 0
    %1600 = vmatmul.mubr.bf16.gmra.mxu0 %v361
    %v1601 = vpop.f32.mrf.mxu0
    %v1602 = vadd.f32 %v1529, %v1601
    %v1603 = vpop.f32.mrf.mxu0
    %v1604 = vadd.f32 %v1531, %v1603
    %v1605 = vpop.f32.mrf.mxu0
    %v1606 = vadd.f32 %v1533, %v1605
    %v1607 = vpop.f32.mrf.mxu0
    %v1608 = vadd.f32 %v1535, %v1607
    %1609 = vmatprep.mubr.bf16.mxu0 0
    %1610 = vmatmul.mubr.bf16.gmra.mxu0 %v364
    %v1611 = vpop.f32.mrf.mxu0
    %v1612 = vadd.f32 %v1539, %v1611
    %v1613 = vpop.f32.mrf.mxu0
    %v1614 = vadd.f32 %v1541, %v1613
    %v1615 = vpop.f32.mrf.mxu0
    %v1616 = vadd.f32 %v1543, %v1615
    %v1617 = vpop.f32.mrf.mxu0
    %v1618 = vadd.f32 %v1545, %v1617
    %1619 = vmatprep.mubr.bf16.mxu0 0
    %1620 = vmatmul.mubr.bf16.gmra.mxu0 %v367
    %v1621 = vpop.f32.mrf.mxu0
    %v1622 = vadd.f32 %v1549, %v1621
    %v1623 = vpop.f32.mrf.mxu0
    %v1624 = vadd.f32 %v1551, %v1623
    %v1625 = vpop.f32.mrf.mxu0
    %v1626 = vadd.f32 %v1553, %v1625
    %v1627 = vpop.f32.mrf.mxu0
    %v1628 = vadd.f32 %v1555, %v1627
    %1629 = vdwg.mxu0
    %1630 = vmatprep.subr.bf16.mxu0 %v1118
    %1631 = vmatpush1.bf16.msra.mxu0 %v1117
    %1632 = vmatprep.subr.bf16.mxu0 %v1109
    %1633 = vmatpush1.bf16.msra.mxu0 %v1108
    %1634 = vmatprep.subr.bf16.mxu0 %v1100
    %1635 = vmatpush1.bf16.msra.mxu0 %v1099
    %1636 = vmatprep.subr.bf16.mxu0 %v1091
    %1637 = vmatpush1.bf16.msra.mxu0 %v1090
    %1638 = vmatprep.subr.bf16.mxu0 %v1082
    %1639 = vmatpush1.bf16.msra.mxu0 %v1081
    %1640 = vmatprep.subr.bf16.mxu0 %v1073
    %1641 = vmatpush1.bf16.msra.mxu0 %v1072
    %1642 = vmatprep.subr.bf16.mxu0 %v1064
    %1643 = vmatpush1.bf16.msra.mxu0 %v1063
    %1644 = vmatprep.subr.bf16.mxu0 %v1055
    %1645 = vmatpush1.bf16.msra.mxu0 %v1054
    %1646 = vmatprep.subr.bf16.mxu0 %v1190
    %1647 = vmatpush2.bf16.msra.mxu0 %v1189
    %1648 = vmatprep.subr.bf16.mxu0 %v1181
    %1649 = vmatpush2.bf16.msra.mxu0 %v1180
    %1650 = vmatprep.subr.bf16.mxu0 %v1172
    %1651 = vmatpush2.bf16.msra.mxu0 %v1171
    %1652 = vmatprep.subr.bf16.mxu0 %v1163
    %1653 = vmatpush2.bf16.msra.mxu0 %v1162
    %1654 = vmatprep.subr.bf16.mxu0 %v1154
    %1655 = vmatpush2.bf16.msra.mxu0 %v1153
    %1656 = vmatprep.subr.bf16.mxu0 %v1145
    %1657 = vmatpush2.bf16.msra.mxu0 %v1144
    %1658 = vmatprep.subr.bf16.mxu0 %v1136
    %1659 = vmatpush2.bf16.msra.mxu0 %v1135
    %1660 = vmatprep.subr.bf16.mxu0 %v1127
    %1661 = vmatpush2.bf16.msra.mxu0 %v1126
    %1662 = vmatprep.mubr.bf16.mxu0 %v357
    %1663 = vmatmul.mubr.bf16.gmra.mxu0 %v356
    %v1664 = vpop.f32.mrf.mxu0
    %v1665 = vadd.f32 0.0, %v1664
    %v1666 = vpop.f32.mrf.mxu0
    %v1667 = vadd.f32 0.0, %v1666
    %v1668 = vpop.f32.mrf.mxu0
    %v1669 = vadd.f32 0.0, %v1668
    %v1670 = vpop.f32.mrf.mxu0
    %v1671 = vadd.f32 0.0, %v1670
    %1672 = vmatprep.mubr.bf16.mxu0 %v360
    %1673 = vmatmul.mubr.bf16.gmra.mxu0 %v359
    %v1674 = vpop.f32.mrf.mxu0
    %v1675 = vadd.f32 0.0, %v1674
    %v1676 = vpop.f32.mrf.mxu0
    %v1677 = vadd.f32 0.0, %v1676
    %v1678 = vpop.f32.mrf.mxu0
    %v1679 = vadd.f32 0.0, %v1678
    %v1680 = vpop.f32.mrf.mxu0
    %v1681 = vadd.f32 0.0, %v1680
    %1682 = vmatprep.mubr.bf16.mxu0 %v363
    %1683 = vmatmul.mubr.bf16.gmra.mxu0 %v362
    %v1684 = vpop.f32.mrf.mxu0
    %v1685 = vadd.f32 0.0, %v1684
    %v1686 = vpop.f32.mrf.mxu0
    %v1687 = vadd.f32 0.0, %v1686
    %v1688 = vpop.f32.mrf.mxu0
    %v1689 = vadd.f32 0.0, %v1688
    %v1690 = vpop.f32.mrf.mxu0
    %v1691 = vadd.f32 0.0, %v1690
    %1692 = vmatprep.mubr.bf16.mxu0 %v366
    %1693 = vmatmul.mubr.bf16.gmra.mxu0 %v365
    %v1694 = vpop.f32.mrf.mxu0
    %v1695 = vadd.f32 0.0, %v1694
    %v1696 = vpop.f32.mrf.mxu0
    %v1697 = vadd.f32 0.0, %v1696
    %v1698 = vpop.f32.mrf.mxu0
    %v1699 = vadd.f32 0.0, %v1698
    %v1700 = vpop.f32.mrf.mxu0
    %v1701 = vadd.f32 0.0, %v1700
    %1702 = vdwg.mxu0
    %1703 = vmatprep.subr.bf16.mxu0 %v1262
    %1704 = vmatpush1.bf16.msra.mxu0 %v1261
    %1705 = vmatprep.subr.bf16.mxu0 %v1253
    %1706 = vmatpush1.bf16.msra.mxu0 %v1252
    %1707 = vmatprep.subr.bf16.mxu0 %v1244
    %1708 = vmatpush1.bf16.msra.mxu0 %v1243
    %1709 = vmatprep.subr.bf16.mxu0 %v1235
    %1710 = vmatpush1.bf16.msra.mxu0 %v1234
    %1711 = vmatprep.subr.bf16.mxu0 %v1226
    %1712 = vmatpush1.bf16.msra.mxu0 %v1225
    %1713 = vmatprep.subr.bf16.mxu0 %v1217
    %1714 = vmatpush1.bf16.msra.mxu0 %v1216
    %1715 = vmatprep.subr.bf16.mxu0 %v1208
    %1716 = vmatpush1.bf16.msra.mxu0 %v1207
    %1717 = vmatprep.subr.bf16.mxu0 %v1199
    %1718 = vmatpush1.bf16.msra.mxu0 %v1198
    %1719 = vmatprep.subr.bf16.mxu0 0
    %1720 = vmatpush2.bf16.msra.mxu0 0
    %1721 = vmatprep.subr.bf16.mxu0 0
    %1722 = vmatpush2.bf16.msra.mxu0 0
    %1723 = vmatprep.subr.bf16.mxu0 0
    %1724 = vmatpush2.bf16.msra.mxu0 0
    %1725 = vmatprep.subr.bf16.mxu0 0
    %1726 = vmatpush2.bf16.msra.mxu0 0
    %1727 = vmatprep.subr.bf16.mxu0 0
    %1728 = vmatpush2.bf16.msra.mxu0 0
    %1729 = vmatprep.subr.bf16.mxu0 0
    %1730 = vmatpush2.bf16.msra.mxu0 0
    %1731 = vmatprep.subr.bf16.mxu0 0
    %1732 = vmatpush2.bf16.msra.mxu0 0
    %1733 = vmatprep.subr.bf16.mxu0 0
    %1734 = vmatpush2.bf16.msra.mxu0 0
    %1735 = vmatprep.mubr.bf16.mxu0 0
    %1736 = vmatmul.mubr.bf16.gmra.mxu0 %v358
    %v1737 = vpop.f32.mrf.mxu0
    %v1738 = vadd.f32 %v1665, %v1737
    %v1739 = vpop.f32.mrf.mxu0
    %v1740 = vadd.f32 %v1667, %v1739
    %v1741 = vpop.f32.mrf.mxu0
    %v1742 = vadd.f32 %v1669, %v1741
    %v1743 = vpop.f32.mrf.mxu0
    %v1744 = vadd.f32 %v1671, %v1743
    %1745 = vmatprep.mubr.bf16.mxu0 0
    %1746 = vmatmul.mubr.bf16.gmra.mxu0 %v361
    %v1747 = vpop.f32.mrf.mxu0
    %v1748 = vadd.f32 %v1675, %v1747
    %v1749 = vpop.f32.mrf.mxu0
    %v1750 = vadd.f32 %v1677, %v1749
    %v1751 = vpop.f32.mrf.mxu0
    %v1752 = vadd.f32 %v1679, %v1751
    %v1753 = vpop.f32.mrf.mxu0
    %v1754 = vadd.f32 %v1681, %v1753
    %1755 = vmatprep.mubr.bf16.mxu0 0
    %1756 = vmatmul.mubr.bf16.gmra.mxu0 %v364
    %v1757 = vpop.f32.mrf.mxu0
    %v1758 = vadd.f32 %v1685, %v1757
    %v1759 = vpop.f32.mrf.mxu0
    %v1760 = vadd.f32 %v1687, %v1759
    %v1761 = vpop.f32.mrf.mxu0
    %v1762 = vadd.f32 %v1689, %v1761
    %v1763 = vpop.f32.mrf.mxu0
    %v1764 = vadd.f32 %v1691, %v1763
    %1765 = vmatprep.mubr.bf16.mxu0 0
    %1766 = vmatmul.mubr.bf16.gmra.mxu0 %v367
    %v1767 = vpop.f32.mrf.mxu0
    %v1768 = vadd.f32 %v1695, %v1767
    %v1769 = vpop.f32.mrf.mxu0
    %v1770 = vadd.f32 %v1697, %v1769
    %v1771 = vpop.f32.mrf.mxu0
    %v1772 = vadd.f32 %v1699, %v1771
    %v1773 = vpop.f32.mrf.mxu0
    %v1774 = vadd.f32 %v1701, %v1773
    %1775 = vdwg.mxu0
    %1776 = vmatprep.subr.bf16.mxu0 %v1120
    %1777 = vmatpush1.bf16.msra.mxu0 %v1119
    %1778 = vmatprep.subr.bf16.mxu0 %v1111
    %1779 = vmatpush1.bf16.msra.mxu0 %v1110
    %1780 = vmatprep.subr.bf16.mxu0 %v1102
    %1781 = vmatpush1.bf16.msra.mxu0 %v1101
    %1782 = vmatprep.subr.bf16.mxu0 %v1093
    %1783 = vmatpush1.bf16.msra.mxu0 %v1092
    %1784 = vmatprep.subr.bf16.mxu0 %v1084
    %1785 = vmatpush1.bf16.msra.mxu0 %v1083
    %1786 = vmatprep.subr.bf16.mxu0 %v1075
    %1787 = vmatpush1.bf16.msra.mxu0 %v1074
    %1788 = vmatprep.subr.bf16.mxu0 %v1066
    %1789 = vmatpush1.bf16.msra.mxu0 %v1065
    %1790 = vmatprep.subr.bf16.mxu0 %v1057
    %1791 = vmatpush1.bf16.msra.mxu0 %v1056
    %1792 = vmatprep.subr.bf16.mxu0 %v1192
    %1793 = vmatpush2.bf16.msra.mxu0 %v1191
    %1794 = vmatprep.subr.bf16.mxu0 %v1183
    %1795 = vmatpush2.bf16.msra.mxu0 %v1182
    %1796 = vmatprep.subr.bf16.mxu0 %v1174
    %1797 = vmatpush2.bf16.msra.mxu0 %v1173
    %1798 = vmatprep.subr.bf16.mxu0 %v1165
    %1799 = vmatpush2.bf16.msra.mxu0 %v1164
    %1800 = vmatprep.subr.bf16.mxu0 %v1156
    %1801 = vmatpush2.bf16.msra.mxu0 %v1155
    %1802 = vmatprep.subr.bf16.mxu0 %v1147
    %1803 = vmatpush2.bf16.msra.mxu0 %v1146
    %1804 = vmatprep.subr.bf16.mxu0 %v1138
    %1805 = vmatpush2.bf16.msra.mxu0 %v1137
    %1806 = vmatprep.subr.bf16.mxu0 %v1129
    %1807 = vmatpush2.bf16.msra.mxu0 %v1128
    %1808 = vmatprep.mubr.bf16.mxu0 %v357
    %1809 = vmatmul.mubr.bf16.gmra.mxu0 %v356
    %v1810 = vpop.f32.mrf.mxu0
    %v1811 = vadd.f32 0.0, %v1810
    %v1812 = vpop.f32.mrf.mxu0
    %v1813 = vadd.f32 0.0, %v1812
    %v1814 = vpop.f32.mrf.mxu0
    %v1815 = vadd.f32 0.0, %v1814
    %v1816 = vpop.f32.mrf.mxu0
    %v1817 = vadd.f32 0.0, %v1816
    %1818 = vmatprep.mubr.bf16.mxu0 %v360
    %1819 = vmatmul.mubr.bf16.gmra.mxu0 %v359
    %v1820 = vpop.f32.mrf.mxu0
    %v1821 = vadd.f32 0.0, %v1820
    %v1822 = vpop.f32.mrf.mxu0
    %v1823 = vadd.f32 0.0, %v1822
    %v1824 = vpop.f32.mrf.mxu0
    %v1825 = vadd.f32 0.0, %v1824
    %v1826 = vpop.f32.mrf.mxu0
    %v1827 = vadd.f32 0.0, %v1826
    %1828 = vmatprep.mubr.bf16.mxu0 %v363
    %1829 = vmatmul.mubr.bf16.gmra.mxu0 %v362
    %v1830 = vpop.f32.mrf.mxu0
    %v1831 = vadd.f32 0.0, %v1830
    %v1832 = vpop.f32.mrf.mxu0
    %v1833 = vadd.f32 0.0, %v1832
    %v1834 = vpop.f32.mrf.mxu0
    %v1835 = vadd.f32 0.0, %v1834
    %v1836 = vpop.f32.mrf.mxu0
    %v1837 = vadd.f32 0.0, %v1836
    %1838 = vmatprep.mubr.bf16.mxu0 %v366
    %1839 = vmatmul.mubr.bf16.gmra.mxu0 %v365
    %v1840 = vpop.f32.mrf.mxu0
    %v1841 = vadd.f32 0.0, %v1840
    %v1842 = vpop.f32.mrf.mxu0
    %v1843 = vadd.f32 0.0, %v1842
    %v1844 = vpop.f32.mrf.mxu0
    %v1845 = vadd.f32 0.0, %v1844
    %v1846 = vpop.f32.mrf.mxu0
    %v1847 = vadd.f32 0.0, %v1846
    %1848 = vdwg.mxu0
    %1849 = vmatprep.subr.bf16.mxu0 %v1264
    %1850 = vmatpush1.bf16.msra.mxu0 %v1263
    %1851 = vmatprep.subr.bf16.mxu0 %v1255
    %1852 = vmatpush1.bf16.msra.mxu0 %v1254
    %1853 = vmatprep.subr.bf16.mxu0 %v1246
    %1854 = vmatpush1.bf16.msra.mxu0 %v1245
    %1855 = vmatprep.subr.bf16.mxu0 %v1237
    %1856 = vmatpush1.bf16.msra.mxu0 %v1236
    %1857 = vmatprep.subr.bf16.mxu0 %v1228
    %1858 = vmatpush1.bf16.msra.mxu0 %v1227
    %1859 = vmatprep.subr.bf16.mxu0 %v1219
    %1860 = vmatpush1.bf16.msra.mxu0 %v1218
    %1861 = vmatprep.subr.bf16.mxu0 %v1210
    %1862 = vmatpush1.bf16.msra.mxu0 %v1209
    %1863 = vmatprep.subr.bf16.mxu0 %v1201
    %1864 = vmatpush1.bf16.msra.mxu0 %v1200
    %1865 = vmatprep.subr.bf16.mxu0 0
    %1866 = vmatpush2.bf16.msra.mxu0 0
    %1867 = vmatprep.subr.bf16.mxu0 0
    %1868 = vmatpush2.bf16.msra.mxu0 0
    %1869 = vmatprep.subr.bf16.mxu0 0
    %1870 = vmatpush2.bf16.msra.mxu0 0
    %1871 = vmatprep.subr.bf16.mxu0 0
    %1872 = vmatpush2.bf16.msra.mxu0 0
    %1873 = vmatprep.subr.bf16.mxu0 0
    %1874 = vmatpush2.bf16.msra.mxu0 0
    %1875 = vmatprep.subr.bf16.mxu0 0
    %1876 = vmatpush2.bf16.msra.mxu0 0
    %1877 = vmatprep.subr.bf16.mxu0 0
    %1878 = vmatpush2.bf16.msra.mxu0 0
    %1879 = vmatprep.subr.bf16.mxu0 0
    %1880 = vmatpush2.bf16.msra.mxu0 0
    %1881 = vmatprep.mubr.bf16.mxu0 0
    %1882 = vmatmul.mubr.bf16.gmra.mxu0 %v358
    %v1883 = vpop.f32.mrf.mxu0
    %v1884 = vadd.f32 %v1811, %v1883
    %v1885 = vpop.f32.mrf.mxu0
    %v1886 = vadd.f32 %v1813, %v1885
    %v1887 = vpop.f32.mrf.mxu0
    %v1888 = vadd.f32 %v1815, %v1887
    %v1889 = vpop.f32.mrf.mxu0
    %v1890 = vadd.f32 %v1817, %v1889
    %1891 = vmatprep.mubr.bf16.mxu0 0
    %1892 = vmatmul.mubr.bf16.gmra.mxu0 %v361
    %v1893 = vpop.f32.mrf.mxu0
    %v1894 = vadd.f32 %v1821, %v1893
    %v1895 = vpop.f32.mrf.mxu0
    %v1896 = vadd.f32 %v1823, %v1895
    %v1897 = vpop.f32.mrf.mxu0
    %v1898 = vadd.f32 %v1825, %v1897
    %v1899 = vpop.f32.mrf.mxu0
    %v1900 = vadd.f32 %v1827, %v1899
    %1901 = vmatprep.mubr.bf16.mxu0 0
    %1902 = vmatmul.mubr.bf16.gmra.mxu0 %v364
    %v1903 = vpop.f32.mrf.mxu0
    %v1904 = vadd.f32 %v1831, %v1903
    %v1905 = vpop.f32.mrf.mxu0
    %v1906 = vadd.f32 %v1833, %v1905
    %v1907 = vpop.f32.mrf.mxu0
    %v1908 = vadd.f32 %v1835, %v1907
    %v1909 = vpop.f32.mrf.mxu0
    %v1910 = vadd.f32 %v1837, %v1909
    %1911 = vmatprep.mubr.bf16.mxu0 0
    %1912 = vmatmul.mubr.bf16.gmra.mxu0 %v367
    %v1913 = vpop.f32.mrf.mxu0
    %v1914 = vadd.f32 %v1841, %v1913
    %v1915 = vpop.f32.mrf.mxu0
    %v1916 = vadd.f32 %v1843, %v1915
    %v1917 = vpop.f32.mrf.mxu0
    %v1918 = vadd.f32 %v1845, %v1917
    %v1919 = vpop.f32.mrf.mxu0
    %v1920 = vadd.f32 %v1847, %v1919
    %1921 = vdwg.mxu0
    %1922 = vmatprep.subr.bf16.mxu0 %v1122
    %1923 = vmatpush1.bf16.msra.mxu0 %v1121
    %1924 = vmatprep.subr.bf16.mxu0 %v1113
    %1925 = vmatpush1.bf16.msra.mxu0 %v1112
    %1926 = vmatprep.subr.bf16.mxu0 %v1104
    %1927 = vmatpush1.bf16.msra.mxu0 %v1103
    %1928 = vmatprep.subr.bf16.mxu0 %v1095
    %1929 = vmatpush1.bf16.msra.mxu0 %v1094
    %1930 = vmatprep.subr.bf16.mxu0 %v1086
    %1931 = vmatpush1.bf16.msra.mxu0 %v1085
    %1932 = vmatprep.subr.bf16.mxu0 %v1077
    %1933 = vmatpush1.bf16.msra.mxu0 %v1076
    %1934 = vmatprep.subr.bf16.mxu0 %v1068
    %1935 = vmatpush1.bf16.msra.mxu0 %v1067
    %1936 = vmatprep.subr.bf16.mxu0 %v1059
    %1937 = vmatpush1.bf16.msra.mxu0 %v1058
    %1938 = vmatprep.subr.bf16.mxu0 %v1194
    %1939 = vmatpush2.bf16.msra.mxu0 %v1193
    %1940 = vmatprep.subr.bf16.mxu0 %v1185
    %1941 = vmatpush2.bf16.msra.mxu0 %v1184
    %1942 = vmatprep.subr.bf16.mxu0 %v1176
    %1943 = vmatpush2.bf16.msra.mxu0 %v1175
    %1944 = vmatprep.subr.bf16.mxu0 %v1167
    %1945 = vmatpush2.bf16.msra.mxu0 %v1166
    %1946 = vmatprep.subr.bf16.mxu0 %v1158
    %1947 = vmatpush2.bf16.msra.mxu0 %v1157
    %1948 = vmatprep.subr.bf16.mxu0 %v1149
    %1949 = vmatpush2.bf16.msra.mxu0 %v1148
    %1950 = vmatprep.subr.bf16.mxu0 %v1140
    %1951 = vmatpush2.bf16.msra.mxu0 %v1139
    %1952 = vmatprep.subr.bf16.mxu0 %v1131
    %1953 = vmatpush2.bf16.msra.mxu0 %v1130
    %1954 = vmatprep.mubr.bf16.mxu0 %v357
    %1955 = vmatmul.mubr.bf16.gmra.mxu0 %v356
    %v1956 = vpop.f32.mrf.mxu0
    %v1957 = vadd.f32 0.0, %v1956
    %v1958 = vpop.f32.mrf.mxu0
    %v1959 = vadd.f32 0.0, %v1958
    %v1960 = vpop.f32.mrf.mxu0
    %v1961 = vadd.f32 0.0, %v1960
    %v1962 = vpop.f32.mrf.mxu0
    %v1963 = vadd.f32 0.0, %v1962
    %1964 = vmatprep.mubr.bf16.mxu0 %v360
    %1965 = vmatmul.mubr.bf16.gmra.mxu0 %v359
    %v1966 = vpop.f32.mrf.mxu0
    %v1967 = vadd.f32 0.0, %v1966
    %v1968 = vpop.f32.mrf.mxu0
    %v1969 = vadd.f32 0.0, %v1968
    %v1970 = vpop.f32.mrf.mxu0
    %v1971 = vadd.f32 0.0, %v1970
    %v1972 = vpop.f32.mrf.mxu0
    %v1973 = vadd.f32 0.0, %v1972
    %1974 = vmatprep.mubr.bf16.mxu0 %v363
    %1975 = vmatmul.mubr.bf16.gmra.mxu0 %v362
    %v1976 = vpop.f32.mrf.mxu0
    %v1977 = vadd.f32 0.0, %v1976
    %v1978 = vpop.f32.mrf.mxu0
    %v1979 = vadd.f32 0.0, %v1978
    %v1980 = vpop.f32.mrf.mxu0
    %v1981 = vadd.f32 0.0, %v1980
    %v1982 = vpop.f32.mrf.mxu0
    %v1983 = vadd.f32 0.0, %v1982
    %1984 = vmatprep.mubr.bf16.mxu0 %v366
    %1985 = vmatmul.mubr.bf16.gmra.mxu0 %v365
    %v1986 = vpop.f32.mrf.mxu0
    %v1987 = vadd.f32 0.0, %v1986
    %v1988 = vpop.f32.mrf.mxu0
    %v1989 = vadd.f32 0.0, %v1988
    %v1990 = vpop.f32.mrf.mxu0
    %v1991 = vadd.f32 0.0, %v1990
    %v1992 = vpop.f32.mrf.mxu0
    %v1993 = vadd.f32 0.0, %v1992
    %1994 = vdwg.mxu0
    %1995 = vmatprep.subr.bf16.mxu0 %v1266
    %1996 = vmatpush1.bf16.msra.mxu0 %v1265
    %1997 = vmatprep.subr.bf16.mxu0 %v1257
    %1998 = vmatpush1.bf16.msra.mxu0 %v1256
    %1999 = vmatprep.subr.bf16.mxu0 %v1248
    %2000 = vmatpush1.bf16.msra.mxu0 %v1247
    %2001 = vmatprep.subr.bf16.mxu0 %v1239
    %2002 = vmatpush1.bf16.msra.mxu0 %v1238
    %2003 = vmatprep.subr.bf16.mxu0 %v1230
    %2004 = vmatpush1.bf16.msra.mxu0 %v1229
    %2005 = vmatprep.subr.bf16.mxu0 %v1221
    %2006 = vmatpush1.bf16.msra.mxu0 %v1220
    %2007 = vmatprep.subr.bf16.mxu0 %v1212
    %2008 = vmatpush1.bf16.msra.mxu0 %v1211
    %2009 = vmatprep.subr.bf16.mxu0 %v1203
    %2010 = vmatpush1.bf16.msra.mxu0 %v1202
    %2011 = vmatprep.subr.bf16.mxu0 0
    %2012 = vmatpush2.bf16.msra.mxu0 0
    %2013 = vmatprep.subr.bf16.mxu0 0
    %2014 = vmatpush2.bf16.msra.mxu0 0
    %2015 = vmatprep.subr.bf16.mxu0 0
    %2016 = vmatpush2.bf16.msra.mxu0 0
    %2017 = vmatprep.subr.bf16.mxu0 0
    %2018 = vmatpush2.bf16.msra.mxu0 0
    %2019 = vmatprep.subr.bf16.mxu0 0
    %2020 = vmatpush2.bf16.msra.mxu0 0
    %2021 = vmatprep.subr.bf16.mxu0 0
    %2022 = vmatpush2.bf16.msra.mxu0 0
    %2023 = vmatprep.subr.bf16.mxu0 0
    %2024 = vmatpush2.bf16.msra.mxu0 0
    %2025 = vmatprep.subr.bf16.mxu0 0
    %2026 = vmatpush2.bf16.msra.mxu0 0
    %2027 = vmatprep.mubr.bf16.mxu0 0
    %2028 = vmatmul.mubr.bf16.gmra.mxu0 %v358
    %v2029 = vpop.f32.mrf.mxu0
    %v2030 = vadd.f32 %v1957, %v2029
    %v2031 = vpop.f32.mrf.mxu0
    %v2032 = vadd.f32 %v1959, %v2031
    %v2033 = vpop.f32.mrf.mxu0
    %v2034 = vadd.f32 %v1961, %v2033
    %v2035 = vpop.f32.mrf.mxu0
    %v2036 = vadd.f32 %v1963, %v2035
    %2037 = vmatprep.mubr.bf16.mxu0 0
    %2038 = vmatmul.mubr.bf16.gmra.mxu0 %v361
    %v2039 = vpop.f32.mrf.mxu0
    %v2040 = vadd.f32 %v1967, %v2039
    %v2041 = vpop.f32.mrf.mxu0
    %v2042 = vadd.f32 %v1969, %v2041
    %v2043 = vpop.f32.mrf.mxu0
    %v2044 = vadd.f32 %v1971, %v2043
    %v2045 = vpop.f32.mrf.mxu0
    %v2046 = vadd.f32 %v1973, %v2045
    %2047 = vmatprep.mubr.bf16.mxu0 0
    %2048 = vmatmul.mubr.bf16.gmra.mxu0 %v364
    %v2049 = vpop.f32.mrf.mxu0
    %v2050 = vadd.f32 %v1977, %v2049
    %v2051 = vpop.f32.mrf.mxu0
    %v2052 = vadd.f32 %v1979, %v2051
    %v2053 = vpop.f32.mrf.mxu0
    %v2054 = vadd.f32 %v1981, %v2053
    %v2055 = vpop.f32.mrf.mxu0
    %v2056 = vadd.f32 %v1983, %v2055
    %2057 = vmatprep.mubr.bf16.mxu0 0
    %2058 = vmatmul.mubr.bf16.gmra.mxu0 %v367
    %v2059 = vpop.f32.mrf.mxu0
    %v2060 = vadd.f32 %v1987, %v2059
    %v2061 = vpop.f32.mrf.mxu0
    %v2062 = vadd.f32 %v1989, %v2061
    %v2063 = vpop.f32.mrf.mxu0
    %v2064 = vadd.f32 %v1991, %v2063
    %v2065 = vpop.f32.mrf.mxu0
    %v2066 = vadd.f32 %v1993, %v2065
    %2067 = vdwg.mxu0
    %2068 = vmatprep.subr.bf16.mxu0 0
    %2069 = vmatpush1.bf16.msra.mxu0 %v1123
    %2070 = vmatprep.subr.bf16.mxu0 0
    %2071 = vmatpush1.bf16.msra.mxu0 %v1114
    %2072 = vmatprep.subr.bf16.mxu0 0
    %2073 = vmatpush1.bf16.msra.mxu0 %v1105
    %2074 = vmatprep.subr.bf16.mxu0 0
    %2075 = vmatpush1.bf16.msra.mxu0 %v1096
    %2076 = vmatprep.subr.bf16.mxu0 0
    %2077 = vmatpush1.bf16.msra.mxu0 %v1087
    %2078 = vmatprep.subr.bf16.mxu0 0
    %2079 = vmatpush1.bf16.msra.mxu0 %v1078
    %2080 = vmatprep.subr.bf16.mxu0 0
    %2081 = vmatpush1.bf16.msra.mxu0 %v1069
    %2082 = vmatprep.subr.bf16.mxu0 0
    %2083 = vmatpush1.bf16.msra.mxu0 %v1060
    %2084 = vmatprep.subr.bf16.mxu0 0
    %2085 = vmatpush2.bf16.msra.mxu0 %v1195
    %2086 = vmatprep.subr.bf16.mxu0 0
    %2087 = vmatpush2.bf16.msra.mxu0 %v1186
    %2088 = vmatprep.subr.bf16.mxu0 0
    %2089 = vmatpush2.bf16.msra.mxu0 %v1177
    %2090 = vmatprep.subr.bf16.mxu0 0
    %2091 = vmatpush2.bf16.msra.mxu0 %v1168
    %2092 = vmatprep.subr.bf16.mxu0 0
    %2093 = vmatpush2.bf16.msra.mxu0 %v1159
    %2094 = vmatprep.subr.bf16.mxu0 0
    %2095 = vmatpush2.bf16.msra.mxu0 %v1150
    %2096 = vmatprep.subr.bf16.mxu0 0
    %2097 = vmatpush2.bf16.msra.mxu0 %v1141
    %2098 = vmatprep.subr.bf16.mxu0 0
    %2099 = vmatpush2.bf16.msra.mxu0 %v1132
    %2100 = vmatprep.mubr.bf16.mxu0 %v357
    %2101 = vmatmul.mubr.bf16.gmra.mxu0 %v356
    %v2102 = vpop.f32.mrf.mxu0
    %v2103 = vadd.f32 0.0, %v2102
    %v2104 = vpop.f32.mrf.mxu0
    %v2105 = vpop.f32.mrf.mxu0
    %v2106 = vadd.f32 0.0, %v2105
    %v2107 = vpop.f32.mrf.mxu0
    %2108 = vmatprep.mubr.bf16.mxu0 %v360
    %2109 = vmatmul.mubr.bf16.gmra.mxu0 %v359
    %v2110 = vpop.f32.mrf.mxu0
    %v2111 = vadd.f32 0.0, %v2110
    %v2112 = vpop.f32.mrf.mxu0
    %v2113 = vpop.f32.mrf.mxu0
    %v2114 = vadd.f32 0.0, %v2113
    %v2115 = vpop.f32.mrf.mxu0
    %2116 = vmatprep.mubr.bf16.mxu0 %v363
    %2117 = vmatmul.mubr.bf16.gmra.mxu0 %v362
    %v2118 = vpop.f32.mrf.mxu0
    %v2119 = vadd.f32 0.0, %v2118
    %v2120 = vpop.f32.mrf.mxu0
    %v2121 = vpop.f32.mrf.mxu0
    %v2122 = vadd.f32 0.0, %v2121
    %v2123 = vpop.f32.mrf.mxu0
    %2124 = vmatprep.mubr.bf16.mxu0 %v366
    %2125 = vmatmul.mubr.bf16.gmra.mxu0 %v365
    %v2126 = vpop.f32.mrf.mxu0
    %v2127 = vadd.f32 0.0, %v2126
    %v2128 = vpop.f32.mrf.mxu0
    %v2129 = vpop.f32.mrf.mxu0
    %v2130 = vadd.f32 0.0, %v2129
    %v2131 = vpop.f32.mrf.mxu0
    %2132 = vdwg.mxu0
    %2133 = vmatprep.subr.bf16.mxu0 0
    %2134 = vmatpush1.bf16.msra.mxu0 %v1267
    %2135 = vmatprep.subr.bf16.mxu0 0
    %2136 = vmatpush1.bf16.msra.mxu0 %v1258
    %2137 = vmatprep.subr.bf16.mxu0 0
    %2138 = vmatpush1.bf16.msra.mxu0 %v1249
    %2139 = vmatprep.subr.bf16.mxu0 0
    %2140 = vmatpush1.bf16.msra.mxu0 %v1240
    %2141 = vmatprep.subr.bf16.mxu0 0
    %2142 = vmatpush1.bf16.msra.mxu0 %v1231
    %2143 = vmatprep.subr.bf16.mxu0 0
    %2144 = vmatpush1.bf16.msra.mxu0 %v1222
    %2145 = vmatprep.subr.bf16.mxu0 0
    %2146 = vmatpush1.bf16.msra.mxu0 %v1213
    %2147 = vmatprep.subr.bf16.mxu0 0
    %2148 = vmatpush1.bf16.msra.mxu0 %v1204
    %2149 = vmatprep.subr.bf16.mxu0 0
    %2150 = vmatpush2.bf16.msra.mxu0 0
    %2151 = vmatprep.subr.bf16.mxu0 0
    %2152 = vmatpush2.bf16.msra.mxu0 0
    %2153 = vmatprep.subr.bf16.mxu0 0
    %2154 = vmatpush2.bf16.msra.mxu0 0
    %2155 = vmatprep.subr.bf16.mxu0 0
    %2156 = vmatpush2.bf16.msra.mxu0 0
    %2157 = vmatprep.subr.bf16.mxu0 0
    %2158 = vmatpush2.bf16.msra.mxu0 0
    %2159 = vmatprep.subr.bf16.mxu0 0
    %2160 = vmatpush2.bf16.msra.mxu0 0
    %2161 = vmatprep.subr.bf16.mxu0 0
    %2162 = vmatpush2.bf16.msra.mxu0 0
    %2163 = vmatprep.subr.bf16.mxu0 0
    %2164 = vmatpush2.bf16.msra.mxu0 0
    %2165 = vmatprep.mubr.bf16.mxu0 0
    %2166 = vmatmul.mubr.bf16.gmra.mxu0 %v358
    %v2167 = vpop.f32.mrf.mxu0
    %v2168 = vadd.f32 %v2103, %v2167
    %v2169 = vpop.f32.mrf.mxu0
    %v2170 = vpop.f32.mrf.mxu0
    %v2171 = vadd.f32 %v2106, %v2170
    %v2172 = vpop.f32.mrf.mxu0
    %2173 = vmatprep.mubr.bf16.mxu0 0
    %2174 = vmatmul.mubr.bf16.gmra.mxu0 %v361
    %v2175 = vpop.f32.mrf.mxu0
    %v2176 = vadd.f32 %v2111, %v2175
    %v2177 = vpop.f32.mrf.mxu0
    %v2178 = vpop.f32.mrf.mxu0
    %v2179 = vadd.f32 %v2114, %v2178
    %v2180 = vpop.f32.mrf.mxu0
    %2181 = vmatprep.mubr.bf16.mxu0 0
    %2182 = vmatmul.mubr.bf16.gmra.mxu0 %v364
    %v2183 = vpop.f32.mrf.mxu0
    %v2184 = vadd.f32 %v2119, %v2183
    %v2185 = vpop.f32.mrf.mxu0
    %v2186 = vpop.f32.mrf.mxu0
    %v2187 = vadd.f32 %v2122, %v2186
    %v2188 = vpop.f32.mrf.mxu0
    %2189 = vmatprep.mubr.bf16.mxu0 0
    %2190 = vmatmul.mubr.bf16.gmra.mxu0 %v367
    %v2191 = vpop.f32.mrf.mxu0
    %v2192 = vadd.f32 %v2127, %v2191
    %v2193 = vpop.f32.mrf.mxu0
    %v2194 = vpop.f32.mrf.mxu0
    %v2195 = vadd.f32 %v2130, %v2194
    %v2196 = vpop.f32.mrf.mxu0
    %2197 = vdwg.mxu0
    %v2198 = vpack.c.bf16 %v1596, %v1592
    %v2199 = vpack.c.bf16 %v1598, %v1594
    %v2200 = vpack.c.bf16 %v1742, %v1738
    %v2201 = vpack.c.bf16 %v1744, %v1740
    %v2202 = vpack.c.bf16 %v1888, %v1884
    %v2203 = vpack.c.bf16 %v1890, %v1886
    %v2204 = vpack.c.bf16 %v2034, %v2030
    %v2205 = vpack.c.bf16 %v2036, %v2032
    %v2206 = vpack.c.bf16 %v2171, %v2168
    %v2207 = vpack.c.bf16 %v1606, %v1602
    %v2208 = vpack.c.bf16 %v1608, %v1604
    %v2209 = vpack.c.bf16 %v1752, %v1748
    %v2210 = vpack.c.bf16 %v1754, %v1750
    %v2211 = vpack.c.bf16 %v1898, %v1894
    %v2212 = vpack.c.bf16 %v1900, %v1896
    %v2213 = vpack.c.bf16 %v2044, %v2040
    %v2214 = vpack.c.bf16 %v2046, %v2042
    %v2215 = vpack.c.bf16 %v2179, %v2176
    %v2216 = vpack.c.bf16 %v1616, %v1612
    %v2217 = vpack.c.bf16 %v1618, %v1614
    %v2218 = vpack.c.bf16 %v1762, %v1758
    %v2219 = vpack.c.bf16 %v1764, %v1760
    %v2220 = vpack.c.bf16 %v1908, %v1904
    %v2221 = vpack.c.bf16 %v1910, %v1906
    %v2222 = vpack.c.bf16 %v2054, %v2050
    %v2223 = vpack.c.bf16 %v2056, %v2052
    %v2224 = vpack.c.bf16 %v2187, %v2184
    %v2225 = vpack.c.bf16 %v1626, %v1622
    %v2226 = vpack.c.bf16 %v1628, %v1624
    %v2227 = vpack.c.bf16 %v1772, %v1768
    %v2228 = vpack.c.bf16 %v1774, %v1770
    %v2229 = vpack.c.bf16 %v1918, %v1914
    %v2230 = vpack.c.bf16 %v1920, %v1916
    %v2231 = vpack.c.bf16 %v2064, %v2060
    %v2232 = vpack.c.bf16 %v2066, %v2062
    %v2233 = vpack.c.bf16 %v2195, %v2192
    %v2270 = vunpack.c.l.b16 %v2198
    %v2271 = vunpack.c.l.b16 %v2199
    %v2272 = vunpack.c.l.b16 %v2200
    %v2273 = vunpack.c.l.b16 %v2201
    %v2274 = vunpack.c.l.b16 %v2202
    %v2275 = vunpack.c.l.b16 %v2203
    %v2276 = vunpack.c.l.b16 %v2204
    %v2277 = vunpack.c.l.b16 %v2205
    %v2278 = vunpack.c.l.b16 %v2206
    %v2279 = vunpack.c.h.b16 %v2198
    %v2280 = vunpack.c.h.b16 %v2199
    %v2281 = vunpack.c.h.b16 %v2200
    %v2282 = vunpack.c.h.b16 %v2201
    %v2283 = vunpack.c.h.b16 %v2202
    %v2284 = vunpack.c.h.b16 %v2203
    %v2285 = vunpack.c.h.b16 %v2204
    %v2286 = vunpack.c.h.b16 %v2205
    %v2287 = vunpack.c.h.b16 %v2206
    %v2288 = vunpack.c.l.b16 %v2207
    %v2289 = vunpack.c.l.b16 %v2208
    %v2290 = vunpack.c.l.b16 %v2209
    %v2291 = vunpack.c.l.b16 %v2210
    %v2292 = vunpack.c.l.b16 %v2211
    %v2293 = vunpack.c.l.b16 %v2212
    %v2294 = vunpack.c.l.b16 %v2213
    %v2295 = vunpack.c.l.b16 %v2214
    %v2296 = vunpack.c.l.b16 %v2215
    %v2297 = vunpack.c.h.b16 %v2207
    %v2298 = vunpack.c.h.b16 %v2208
    %v2299 = vunpack.c.h.b16 %v2209
    %v2300 = vunpack.c.h.b16 %v2210
    %v2301 = vunpack.c.h.b16 %v2211
    %v2302 = vunpack.c.h.b16 %v2212
    %v2303 = vunpack.c.h.b16 %v2213
    %v2304 = vunpack.c.h.b16 %v2214
    %v2305 = vunpack.c.h.b16 %v2215
    %v2306 = vunpack.c.l.b16 %v2216
    %v2307 = vunpack.c.l.b16 %v2217
    %v2308 = vunpack.c.l.b16 %v2218
    %v2309 = vunpack.c.l.b16 %v2219
    %v2310 = vunpack.c.l.b16 %v2220
    %v2311 = vunpack.c.l.b16 %v2221
    %v2312 = vunpack.c.l.b16 %v2222
    %v2313 = vunpack.c.l.b16 %v2223
    %v2314 = vunpack.c.l.b16 %v2224
    %v2315 = vunpack.c.h.b16 %v2216
    %v2316 = vunpack.c.h.b16 %v2217
    %v2317 = vunpack.c.h.b16 %v2218
    %v2318 = vunpack.c.h.b16 %v2219
    %v2319 = vunpack.c.h.b16 %v2220
    %v2320 = vunpack.c.h.b16 %v2221
    %v2321 = vunpack.c.h.b16 %v2222
    %v2322 = vunpack.c.h.b16 %v2223
    %v2323 = vunpack.c.h.b16 %v2224
    %v2324 = vunpack.c.l.b16 %v2225
    %v2325 = vunpack.c.l.b16 %v2226
    %v2326 = vunpack.c.l.b16 %v2227
    %v2327 = vunpack.c.l.b16 %v2228
    %v2328 = vunpack.c.l.b16 %v2229
    %v2329 = vunpack.c.l.b16 %v2230
    %v2330 = vunpack.c.l.b16 %v2231
    %v2331 = vunpack.c.l.b16 %v2232
    %v2332 = vunpack.c.l.b16 %v2233
    %v2333 = vunpack.c.h.b16 %v2225
    %v2334 = vunpack.c.h.b16 %v2226
    %v2335 = vunpack.c.h.b16 %v2227
    %v2336 = vunpack.c.h.b16 %v2228
    %v2337 = vunpack.c.h.b16 %v2229
    %v2338 = vunpack.c.h.b16 %v2230
    %v2339 = vunpack.c.h.b16 %v2231
    %v2340 = vunpack.c.h.b16 %v2232
    %v2341 = vunpack.c.h.b16 %v2233
    %v2342 = vpack.c.b16 %v2271, %v2270
    %v2343 = vpack.c.b16 %v2273, %v2272
    %v2344 = vpack.c.b16 %v2275, %v2274
    %v2345 = vpack.c.b16 %v2277, %v2276
    %v2346 = vpack.c.b16 %v2278, %v2278
    %v2347 = vpack.c.b16 %v2280, %v2279
    %v2348 = vpack.c.b16 %v2282, %v2281
    %v2349 = vpack.c.b16 %v2284, %v2283
    %v2350 = vpack.c.b16 %v2286, %v2285
    %v2351 = vpack.c.b16 %v2287, %v2287
    %v2352 = vpack.c.b16 %v2289, %v2288
    %v2353 = vpack.c.b16 %v2291, %v2290
    %v2354 = vpack.c.b16 %v2293, %v2292
    %v2355 = vpack.c.b16 %v2295, %v2294
    %v2356 = vpack.c.b16 %v2296, %v2296
    %v2357 = vpack.c.b16 %v2298, %v2297
    %v2358 = vpack.c.b16 %v2300, %v2299
    %v2359 = vpack.c.b16 %v2302, %v2301
    %v2360 = vpack.c.b16 %v2304, %v2303
    %v2361 = vpack.c.b16 %v2305, %v2305
    %v2362 = vpack.c.b16 %v2307, %v2306
    %v2363 = vpack.c.b16 %v2309, %v2308
    %v2364 = vpack.c.b16 %v2311, %v2310
    %v2365 = vpack.c.b16 %v2313, %v2312
    %v2366 = vpack.c.b16 %v2314, %v2314
    %v2367 = vpack.c.b16 %v2316, %v2315
    %v2368 = vpack.c.b16 %v2318, %v2317
    %v2369 = vpack.c.b16 %v2320, %v2319
    %v2370 = vpack.c.b16 %v2322, %v2321
    %v2371 = vpack.c.b16 %v2323, %v2323
    %v2372 = vpack.c.b16 %v2325, %v2324
    %v2373 = vpack.c.b16 %v2327, %v2326
    %v2374 = vpack.c.b16 %v2329, %v2328
    %v2375 = vpack.c.b16 %v2331, %v2330
    %v2376 = vpack.c.b16 %v2332, %v2332
    %v2377 = vpack.c.b16 %v2334, %v2333
    %v2378 = vpack.c.b16 %v2336, %v2335
    %v2379 = vpack.c.b16 %v2338, %v2337
    %v2380 = vpack.c.b16 %v2340, %v2339
    %v2381 = vpack.c.b16 %v2341, %v2341
    %2422 = vst [vmem:[#allocation2] sm:$0xff] %v2342
    %2423 = vst [vmem:[#allocation2 + $0x8] sm:$0xff] %v2343
    %2424 = vst [vmem:[#allocation2 + $0x10] sm:$0xff] %v2344
    %2425 = vst [vmem:[#allocation2 + $0x18] sm:$0xff] %v2345
    %2426 = vst [vmem:[#allocation2 + $0x20] sm:$0xf] %v2346
    %2427 = vst [vmem:[#allocation2 + $0x24] sm:$0xff] %v2347
    %2428 = vst [vmem:[#allocation2 + $0x2c] sm:$0xff] %v2348
    %2429 = vst [vmem:[#allocation2 + $0x34] sm:$0xff] %v2349
    %2430 = vst [vmem:[#allocation2 + $0x3c] sm:$0xff] %v2350
    %2431 = vst [vmem:[#allocation2 + $0x44] sm:$0xf] %v2351
    %2432 = vst [vmem:[#allocation2 + $0x48] sm:$0xff] %v2352
    %2433 = vst [vmem:[#allocation2 + $0x50] sm:$0xff] %v2353
    %2434 = vst [vmem:[#allocation2 + $0x58] sm:$0xff] %v2354
    %2435 = vst [vmem:[#allocation2 + $0x60] sm:$0xff] %v2355
    %2436 = vst [vmem:[#allocation2 + $0x68] sm:$0xf] %v2356
    %2437 = vst [vmem:[#allocation2 + $0x6c] sm:$0xff] %v2357
    %2438 = vst [vmem:[#allocation2 + $0x74] sm:$0xff] %v2358
    %2439 = vst [vmem:[#allocation2 + $0x7c] sm:$0xff] %v2359
    %2440 = vst [vmem:[#allocation2 + $0x84] sm:$0xff] %v2360
    %2441 = vst [vmem:[#allocation2 + $0x8c] sm:$0xf] %v2361
    %2442 = vst [vmem:[#allocation2 + $0x90] sm:$0xff] %v2362
    %2443 = vst [vmem:[#allocation2 + $0x98] sm:$0xff] %v2363
    %2444 = vst [vmem:[#allocation2 + $0xa0] sm:$0xff] %v2364
    %2445 = vst [vmem:[#allocation2 + $0xa8] sm:$0xff] %v2365
    %2446 = vst [vmem:[#allocation2 + $0xb0] sm:$0xf] %v2366
    %2447 = vst [vmem:[#allocation2 + $0xb4] sm:$0xff] %v2367
    %2448 = vst [vmem:[#allocation2 + $0xbc] sm:$0xff] %v2368
    %2449 = vst [vmem:[#allocation2 + $0xc4] sm:$0xff] %v2369
    %2450 = vst [vmem:[#allocation2 + $0xcc] sm:$0xff] %v2370
    %2451 = vst [vmem:[#allocation2 + $0xd4] sm:$0xf] %v2371
    %2452 = vst [vmem:[#allocation2 + $0xd8] sm:$0xff] %v2372
    %2453 = vst [vmem:[#allocation2 + $0xe0] sm:$0xff] %v2373
    %2454 = vst [vmem:[#allocation2 + $0xe8] sm:$0xff] %v2374
    %2455 = vst [vmem:[#allocation2 + $0xf0] sm:$0xff] %v2375
    %2456 = vst [vmem:[#allocation2 + $0xf8] sm:$0xf] %v2376
    %2457 = vst [vmem:[#allocation2 + $0xfc] sm:$0xff] %v2377
    %2458 = vst [vmem:[#allocation2 + $0x104] sm:$0xff] %v2378
    %2459 = vst [vmem:[#allocation2 + $0x10c] sm:$0xff] %v2379
    %2460 = vst [vmem:[#allocation2 + $0x114] sm:$0xff] %v2380
    %2461 = vst [vmem:[#allocation2 + $0x11c] sm:$0xf] %v2381
    %v2462 = vld [vmem:[%s3] sm:$0x7]
    %v2464 = vlaneseq
    %v2465 = vshrl.u32 %v2464, 7
    %v2466 = vsub.s32 0, %v2465
    %v2467 = vrot.slane %v2462, %v2466
    %v2468 = vlaneseq
    %v2469 = vshrl.u32 %v2468, 7
    %v2470 = vsub.s32 1, %v2469
    %v2471 = vrot.slane %v2462, %v2470
    %v2472 = vlaneseq
    %v2473 = vshrl.u32 %v2472, 7
    %v2474 = vsub.s32 2, %v2473
    %v2475 = vrot.slane %v2462, %v2474
    %2479 = vst [vmem:[#allocation9] sm:$0xff] %v2467
    %2480 = vst [vmem:[#allocation9 + $0x8] sm:$0xff] %v2471
    %2481 = vst [vmem:[#allocation9 + $0x10] sm:$0xff] %v2475
    %2482 = vst [vmem:[#allocation9 + $0x18] sm:$0xff] %v2467
    %2483 = vst [vmem:[#allocation9 + $0x20] sm:$0xff] %v2471
    %2484 = vst [vmem:[#allocation9 + $0x28] sm:$0xff] %v2475
    %2485 = vst [vmem:[#allocation9 + $0x30] sm:$0xff] %v2467
    %2486 = vst [vmem:[#allocation9 + $0x38] sm:$0xff] %v2471
    %2487 = vst [vmem:[#allocation9 + $0x40] sm:$0xff] %v2475
    %2488 = vst [vmem:[#allocation9 + $0x48] sm:$0xff] %v2467
    %2489 = vst [vmem:[#allocation9 + $0x50] sm:$0xff] %v2471
    %2490 = vst [vmem:[#allocation9 + $0x58] sm:$0xff] %v2475
    %2491 = vst [vmem:[#allocation9 + $0x60] sm:$0xff] %v2467
    %2492 = vst [vmem:[#allocation9 + $0x68] sm:$0xff] %v2471
    %2493 = vst [vmem:[#allocation9 + $0x70] sm:$0xff] %v2475
    %2494 = vst [vmem:[#allocation9 + $0x78] sm:$0xff] %v2467
    %2495 = vst [vmem:[#allocation9 + $0x80] sm:$0xff] %v2471
    %2496 = vst [vmem:[#allocation9 + $0x88] sm:$0xff] %v2475
    %2497 = vst [vmem:[#allocation9 + $0x90] sm:$0xff] %v2467
    %2498 = vst [vmem:[#allocation9 + $0x98] sm:$0xff] %v2471
    %2499 = vst [vmem:[#allocation9 + $0xa0] sm:$0xff] %v2475
    %2500 = vst [vmem:[#allocation9 + $0xa8] sm:$0xff] %v2467
    %2501 = vst [vmem:[#allocation9 + $0xb0] sm:$0xff] %v2471
    %2502 = vst [vmem:[#allocation9 + $0xb8] sm:$0xff] %v2475
    %v2503 = vlaneseq
    %v2504 = vshrl.u32 %v2503, 7
    %v2505 = vadd.s32 %v2504, 8
    %v2506 = vadd.s32 %v2504, 16
    %v2507 = vadd.s32 %v2504, 24
    %v2508 = vlaneseq
    %v2509 = vand.u32 %v2508, 127
    %vm2510 = vcmp.le.s32.totalorder %v2509, %v2504
    %vm2511 = vcmp.le.s32.totalorder %v2509, %v2505
    %vm2512 = vcmp.le.s32.totalorder %v2509, %v2506
    %vm2513 = vcmp.le.s32.totalorder %v2509, %v2507
    %v2514 = vld [vmem:[#allocation2] sm:$0xf]
    %v2515 = vld [vmem:[#allocation2 + $0x24] sm:$0xf]
    %v2516 = vld [vmem:[#allocation2 + $0x48] sm:$0xf]
    %v2517 = vld [vmem:[#allocation2 + $0x6c] sm:$0xf]
    %v2518 = vld [vmem:[#allocation2 + $0xc] sm:$0xf]
    %v2519 = vld [vmem:[#allocation2 + $0x30] sm:$0xf]
    %v2520 = vld [vmem:[#allocation2 + $0x54] sm:$0xf]
    %v2521 = vld [vmem:[#allocation2 + $0x78] sm:$0xf]
    %v2522 = vld [vmem:[#allocation2 + $0x18] sm:$0xf]
    %v2523 = vld [vmem:[#allocation2 + $0x3c] sm:$0xf]
    %v2524 = vld [vmem:[#allocation2 + $0x60] sm:$0xf]
    %v2525 = vld [vmem:[#allocation2 + $0x84] sm:$0xf]
    %v2530 = vunpack.c.l.b16 %v2514
    %v2531 = vunpack.c.l.b16 %v2515
    %v2532 = vunpack.c.l.b16 %v2516
    %v2533 = vunpack.c.l.b16 %v2517
    %v2534 = vpack.c.b16 %v2531, %v2530
    %v2535 = vpack.c.b16 %v2533, %v2532
    %v2540 = vunpack.c.l.b16 %v2518
    %v2541 = vunpack.c.l.b16 %v2519
    %v2542 = vunpack.c.l.b16 %v2520
    %v2543 = vunpack.c.l.b16 %v2521
    %v2544 = vpack.c.b16 %v2541, %v2540
    %v2545 = vpack.c.b16 %v2543, %v2542
    %vm2546 = vcmask 523264
    %v2548 = vsel %vm2546, %v2534, 0
    %v2551 = vsel %vm2546, %v2535, 0
    %v2554 = vsel %vm2546, %v2544, 0
    %v2557 = vsel %vm2546, %v2545, 0
    %2559 = vmatprep.subr.bf16.mxu0 0
    %2560 = vmatpush1.bf16.xpose.msra.mxu0 0
    %2561 = vmatprep.subr.bf16.mxu0 0
    %2562 = vmatpush1.bf16.xpose.msra.mxu0 0
    %2563 = vmatprep.subr.bf16.mxu0 0
    %2564 = vmatpush1.bf16.xpose.msra.mxu0 0
    %2565 = vmatprep.subr.bf16.mxu0 0
    %2566 = vmatpush1.bf16.xpose.msra.mxu0 0
    %2567 = vmatprep.subr.bf16.mxu0 0
    %2568 = vmatpush1.bf16.xpose.msra.mxu0 0
    %2569 = vmatprep.subr.bf16.mxu0 0
    %2570 = vmatpush1.bf16.xpose.msra.mxu0 0
    %2571 = vmatprep.subr.bf16.mxu0 0
    %2572 = vmatpush1.bf16.xpose.msra.mxu0 %v2557
    %2573 = vmatprep.subr.bf16.mxu0 0
    %2574 = vmatpush1.bf16.xpose.msra.mxu0 %v2554
    %2575 = vmatprep.subr.bf16.mxu0 0
    %2576 = vmatpush2.bf16.xpose.msra.mxu0 0
    %2577 = vmatprep.subr.bf16.mxu0 0
    %2578 = vmatpush2.bf16.xpose.msra.mxu0 0
    %2579 = vmatprep.subr.bf16.mxu0 0
    %2580 = vmatpush2.bf16.xpose.msra.mxu0 0
    %2581 = vmatprep.subr.bf16.mxu0 0
    %2582 = vmatpush2.bf16.xpose.msra.mxu0 0
    %2583 = vmatprep.subr.bf16.mxu0 0
    %2584 = vmatpush2.bf16.xpose.msra.mxu0 0
    %2585 = vmatprep.subr.bf16.mxu0 0
    %2586 = vmatpush2.bf16.xpose.msra.mxu0 0
    %2587 = vmatprep.subr.bf16.mxu0 0
    %2588 = vmatpush2.bf16.xpose.msra.mxu0 0
    %2589 = vmatprep.subr.bf16.mxu0 0
    %2590 = vmatpush2.bf16.xpose.msra.mxu0 0
    %2591 = vmatprep.mubr.bf16.mxu0 0
    %2592 = vmatmul.mubr.bf16.gmra.mxu0 %v2548
    %v2593 = vpop.f32.mrf.mxu0
    %v2594 = vadd.f32 0.0, %v2593
    %v2595 = vpop.f32.mrf.mxu0
    %v2596 = vpop.f32.mrf.mxu0
    %v2597 = vadd.f32 0.0, %v2596
    %v2598 = vpop.f32.mrf.mxu0
    %2599 = vmatprep.mubr.bf16.mxu0 0
    %2600 = vmatmul.mubr.bf16.gmra.mxu0 %v2551
    %v2601 = vpop.f32.mrf.mxu0
    %v2602 = vadd.f32 0.0, %v2601
    %v2603 = vpop.f32.mrf.mxu0
    %v2604 = vpop.f32.mrf.mxu0
    %v2605 = vadd.f32 0.0, %v2604
    %v2606 = vpop.f32.mrf.mxu0
    %2607 = vdwg.mxu0
    %v2608 = vsel %vm2510, %v2594, -1e+30
    %v2609 = vsel %vm2511, %v2597, -1e+30
    %v2610 = vsel %vm2512, %v2602, -1e+30
    %v2611 = vsel %vm2513, %v2605, -1e+30
    %vm2612 = vcmask 261120
    %v2613 = vsel %vm2612, %v2608, -inf
    %2614 = vmax.xlane.f32.xlu0 %v2613
    %v2615 = vpop.xlane.xlu0 %2614
    %v2616 = vsel %vm2612, %v2609, -inf
    %2617 = vmax.xlane.f32.xlu0 %v2616
    %v2618 = vpop.xlane.xlu0 %2617
    %v2619 = vsel %vm2612, %v2610, -inf
    %2620 = vmax.xlane.f32.xlu0 %v2619
    %v2621 = vpop.xlane.xlu0 %2620
    %v2622 = vsel %vm2612, %v2611, -inf
    %2623 = vmax.xlane.f32.xlu0 %v2622
    %v2624 = vpop.xlane.xlu0 %2623
    %v2625 = vsub.f32 %v2608, %v2615
    %v2626 = vsub.f32 %v2609, %v2618
    %v2627 = vsub.f32 %v2610, %v2621
    %v2628 = vsub.f32 %v2611, %v2624
    %v2629 = vmul.f32 %v2625, 1.442695
    %v2630 = vpow.pop %v2629
    %v2631 = vmul.f32 %v2626, 1.442695
    %v2632 = vpow.pop %v2631
    %v2633 = vmul.f32 %v2627, 1.442695
    %v2634 = vpow.pop %v2633
    %v2635 = vmul.f32 %v2628, 1.442695
    %v2636 = vpow.pop %v2635
    %v2637 = vsel %vm2612, %v2630, 0.0
    %2638 = vadd.xlane.f32.xlu0 %v2637
    %v2639 = vpop.xlane.xlu0 %2638
    %v2640 = vsel %vm2612, %v2632, 0.0
    %2641 = vadd.xlane.f32.xlu0 %v2640
    %v2642 = vpop.xlane.xlu0 %2641
    %v2643 = vsel %vm2612, %v2634, 0.0
    %2644 = vadd.xlane.f32.xlu0 %v2643
    %v2645 = vpop.xlane.xlu0 %2644
    %v2646 = vsel %vm2612, %v2636, 0.0
    %2647 = vadd.xlane.f32.xlu0 %v2646
    %v2648 = vpop.xlane.xlu0 %2647
    %v2649 = vrcp.pop %v2639
    %v2650 = vmul.f32 %v2630, %v2649
    %v2651 = vrcp.pop %v2642
    %v2652 = vmul.f32 %v2632, %v2651
    %v2653 = vrcp.pop %v2645
    %v2654 = vmul.f32 %v2634, %v2653
    %v2655 = vrcp.pop %v2648
    %v2656 = vmul.f32 %v2636, %v2655
    %v2657 = vpack.c.bf16 %v2652, %v2650
    %v2658 = vpack.c.bf16 %v2656, %v2654
    %v2663 = vunpack.c.l.b16 %v2522
    %v2664 = vunpack.c.l.b16 %v2523
    %v2665 = vunpack.c.l.b16 %v2524
    %v2666 = vunpack.c.l.b16 %v2525
    %v2667 = vpack.c.b16 %v2664, %v2663
    %v2668 = vpack.c.b16 %v2666, %v2665
    %v2672 = vsel %vm2612, %v2657, 0
    %v2675 = vsel %vm2612, %v2658, 0
    %2677 = vmatprep.subr.bf16.mxu0 0
    %2678 = vmatpush1.bf16.msra.mxu0 0
    %2679 = vmatprep.subr.bf16.mxu0 0
    %2680 = vmatpush1.bf16.msra.mxu0 0
    %2681 = vmatprep.subr.bf16.mxu0 0
    %2682 = vmatpush1.bf16.msra.mxu0 0
    %2683 = vmatprep.subr.bf16.mxu0 0
    %2684 = vmatpush1.bf16.msra.mxu0 0
    %2685 = vmatprep.subr.bf16.mxu0 0
    %2686 = vmatpush1.bf16.msra.mxu0 0
    %2687 = vmatprep.subr.bf16.mxu0 0
    %2688 = vmatpush1.bf16.msra.mxu0 0
    %2689 = vmatprep.subr.bf16.mxu0 0
    %2690 = vmatpush1.bf16.msra.mxu0 %v2668
    %2691 = vmatprep.subr.bf16.mxu0 0
    %2692 = vmatpush1.bf16.msra.mxu0 %v2667
    %2693 = vmatprep.subr.bf16.mxu0 0
    %2694 = vmatpush2.bf16.msra.mxu0 0
    %2695 = vmatprep.subr.bf16.mxu0 0
    %2696 = vmatpush2.bf16.msra.mxu0 0
    %2697 = vmatprep.subr.bf16.mxu0 0
    %2698 = vmatpush2.bf16.msra.mxu0 0
    %2699 = vmatprep.subr.bf16.mxu0 0
    %2700 = vmatpush2.bf16.msra.mxu0 0
    %2701 = vmatprep.subr.bf16.mxu0 0
    %2702 = vmatpush2.bf16.msra.mxu0 0
    %2703 = vmatprep.subr.bf16.mxu0 0
    %2704 = vmatpush2.bf16.msra.mxu0 0
    %2705 = vmatprep.subr.bf16.mxu0 0
    %2706 = vmatpush2.bf16.msra.mxu0 0
    %2707 = vmatprep.subr.bf16.mxu0 0
    %2708 = vmatpush2.bf16.msra.mxu0 0
    %2709 = vmatprep.mubr.bf16.mxu0 0
    %2710 = vmatmul.mubr.bf16.gmra.mxu0 %v2672
    %v2711 = vpop.f32.mrf.mxu0
    %v2712 = vadd.f32 0.0, %v2711
    %v2713 = vpop.f32.mrf.mxu0
    %v2714 = vpop.f32.mrf.mxu0
    %v2715 = vadd.f32 0.0, %v2714
    %v2716 = vpop.f32.mrf.mxu0
    %2717 = vmatprep.mubr.bf16.mxu0 0
    %2718 = vmatmul.mubr.bf16.gmra.mxu0 %v2675
    %v2719 = vpop.f32.mrf.mxu0
    %v2720 = vadd.f32 0.0, %v2719
    %v2721 = vpop.f32.mrf.mxu0
    %v2722 = vpop.f32.mrf.mxu0
    %v2723 = vadd.f32 0.0, %v2722
    %v2724 = vpop.f32.mrf.mxu0
    %2725 = vdwg.mxu0
    %v2726 = vld [vmem:[#allocation9] sm:$0xff]
    %v2727 = vld [vmem:[#allocation9 + $0x8] sm:$0xff]
    %v2728 = vld [vmem:[#allocation9 + $0x10] sm:$0xff]
    %v2729 = vld [vmem:[#allocation9 + $0x18] sm:$0xff]
    %v2730 = vld [vmem:[#allocation9 + $0x20] sm:$0xff]
    %v2731 = vld [vmem:[#allocation9 + $0x28] sm:$0xff]
    %v2732 = vld [vmem:[#allocation9 + $0x30] sm:$0xff]
    %v2733 = vld [vmem:[#allocation9 + $0x38] sm:$0xff]
    %v2734 = vld [vmem:[#allocation9 + $0x40] sm:$0xff]
    %v2735 = vld [vmem:[#allocation9 + $0x48] sm:$0xff]
    %v2736 = vld [vmem:[#allocation9 + $0x50] sm:$0xff]
    %v2737 = vld [vmem:[#allocation9 + $0x58] sm:$0xff]
    %v2738 = vpack.c.bf16 %v2715, %v2712
    %v2739 = vpack.c.bf16 %v2723, %v2720
    %v2740 = vld [vmem:[#allocation8] sm:$0xff]
    %v2741 = vld [vmem:[#allocation8 + $0x8] sm:$0xf]
    %v2742 = vld [vmem:[#allocation8 + $0xc] sm:$0xff]
    %v2743 = vld [vmem:[#allocation8 + $0x14] sm:$0xf]
    %v2744 = vld [vmem:[#allocation8 + $0x18] sm:$0xff]
    %v2745 = vld [vmem:[#allocation8 + $0x20] sm:$0xf]
    %v2746 = vld [vmem:[#allocation8 + $0x24] sm:$0xff]
    %v2747 = vld [vmem:[#allocation8 + $0x2c] sm:$0xf]
    %v2748 = vld [vmem:[#allocation8 + $0x30] sm:$0xff]
    %v2749 = vld [vmem:[#allocation8 + $0x38] sm:$0xf]
    %v2750 = vld [vmem:[#allocation8 + $0x3c] sm:$0xff]
    %v2751 = vld [vmem:[#allocation8 + $0x44] sm:$0xf]
    %v2752 = vld [vmem:[#allocation8 + $0x48] sm:$0xff]
    %v2753 = vld [vmem:[#allocation8 + $0x50] sm:$0xf]
    %v2754 = vld [vmem:[#allocation8 + $0x54] sm:$0xff]
    %v2755 = vld [vmem:[#allocation8 + $0x5c] sm:$0xf]
    %v2772 = vunpack.c.l.b16 %v2740
    %v2773 = vunpack.c.h.b16 %v2740
    %v2774 = vunpack.c.l.b16 %v2741
    %v2775 = vunpack.c.l.b16 %v2742
    %v2776 = vunpack.c.h.b16 %v2742
    %v2777 = vunpack.c.l.b16 %v2743
    %v2778 = vunpack.c.l.b16 %v2744
    %v2779 = vunpack.c.h.b16 %v2744
    %v2780 = vunpack.c.l.b16 %v2745
    %v2781 = vunpack.c.l.b16 %v2746
    %v2782 = vunpack.c.h.b16 %v2746
    %v2783 = vunpack.c.l.b16 %v2747
    %v2784 = vunpack.c.l.b16 %v2748
    %v2785 = vunpack.c.h.b16 %v2748
    %v2786 = vunpack.c.l.b16 %v2749
    %v2787 = vunpack.c.l.b16 %v2750
    %v2788 = vunpack.c.h.b16 %v2750
    %v2789 = vunpack.c.l.b16 %v2751
    %v2790 = vunpack.c.l.b16 %v2752
    %v2791 = vunpack.c.h.b16 %v2752
    %v2792 = vunpack.c.l.b16 %v2753
    %v2793 = vunpack.c.l.b16 %v2754
    %v2794 = vunpack.c.h.b16 %v2754
    %v2795 = vunpack.c.l.b16 %v2755
    %v2796 = vpack.c.b16 %v2775, %v2772
    %v2797 = vpack.c.b16 %v2776, %v2773
    %v2798 = vpack.c.b16 %v2777, %v2774
    %v2799 = vpack.c.b16 %v2781, %v2778
    %v2800 = vpack.c.b16 %v2782, %v2779
    %v2801 = vpack.c.b16 %v2783, %v2780
    %v2802 = vpack.c.b16 %v2787, %v2784
    %v2803 = vpack.c.b16 %v2788, %v2785
    %v2804 = vpack.c.b16 %v2789, %v2786
    %v2805 = vpack.c.b16 %v2793, %v2790
    %v2806 = vpack.c.b16 %v2794, %v2791
    %v2807 = vpack.c.b16 %v2795, %v2792
    %v2821 = vsel %vm2546, %v2738, 0
    %v2824 = vsel %vm2546, %v2739, 0
    %2826 = vmatprep.subr.bf16.mxu0 0
    %2827 = vmatpush1.bf16.msra.mxu0 0
    %2828 = vmatprep.subr.bf16.mxu0 0
    %2829 = vmatpush1.bf16.msra.mxu0 0
    %2830 = vmatprep.subr.bf16.mxu0 0
    %2831 = vmatpush1.bf16.msra.mxu0 0
    %2832 = vmatprep.subr.bf16.mxu0 0
    %2833 = vmatpush1.bf16.msra.mxu0 0
    %2834 = vmatprep.subr.bf16.mxu0 %v2806
    %2835 = vmatpush1.bf16.msra.mxu0 %v2805
    %2836 = vmatprep.subr.bf16.mxu0 %v2803
    %2837 = vmatpush1.bf16.msra.mxu0 %v2802
    %2838 = vmatprep.subr.bf16.mxu0 %v2800
    %2839 = vmatpush1.bf16.msra.mxu0 %v2799
    %2840 = vmatprep.subr.bf16.mxu0 %v2797
    %2841 = vmatpush1.bf16.msra.mxu0 %v2796
    %2842 = vmatprep.subr.bf16.mxu0 0
    %2843 = vmatpush2.bf16.msra.mxu0 0
    %2844 = vmatprep.subr.bf16.mxu0 0
    %2845 = vmatpush2.bf16.msra.mxu0 0
    %2846 = vmatprep.subr.bf16.mxu0 0
    %2847 = vmatpush2.bf16.msra.mxu0 0
    %2848 = vmatprep.subr.bf16.mxu0 0
    %2849 = vmatpush2.bf16.msra.mxu0 0
    %2850 = vmatprep.subr.bf16.mxu0 0
    %2851 = vmatpush2.bf16.msra.mxu0 0
    %2852 = vmatprep.subr.bf16.mxu0 0
    %2853 = vmatpush2.bf16.msra.mxu0 0
    %2854 = vmatprep.subr.bf16.mxu0 0
    %2855 = vmatpush2.bf16.msra.mxu0 0
    %2856 = vmatprep.subr.bf16.mxu0 0
    %2857 = vmatpush2.bf16.msra.mxu0 0
    %2858 = vmatprep.mubr.bf16.mxu0 0
    %2859 = vmatmul.mubr.bf16.gmra.mxu0 %v2821
    %v2860 = vpop.f32.mrf.mxu0
    %v2861 = vadd.f32 0.0, %v2860
    %v2862 = vpop.f32.mrf.mxu0
    %v2863 = vadd.f32 0.0, %v2862
    %v2864 = vpop.f32.mrf.mxu0
    %v2865 = vadd.f32 0.0, %v2864
    %v2866 = vpop.f32.mrf.mxu0
    %v2867 = vadd.f32 0.0, %v2866
    %2868 = vmatprep.mubr.bf16.mxu0 0
    %2869 = vmatmul.mubr.bf16.gmra.mxu0 %v2824
    %v2870 = vpop.f32.mrf.mxu0
    %v2871 = vadd.f32 0.0, %v2870
    %v2872 = vpop.f32.mrf.mxu0
    %v2873 = vadd.f32 0.0, %v2872
    %v2874 = vpop.f32.mrf.mxu0
    %v2875 = vadd.f32 0.0, %v2874
    %v2876 = vpop.f32.mrf.mxu0
    %v2877 = vadd.f32 0.0, %v2876
    %2878 = vdwg.mxu0
    %2879 = vmatprep.subr.bf16.mxu0 0
    %2880 = vmatpush1.bf16.msra.mxu0 0
    %2881 = vmatprep.subr.bf16.mxu0 0
    %2882 = vmatpush1.bf16.msra.mxu0 0
    %2883 = vmatprep.subr.bf16.mxu0 0
    %2884 = vmatpush1.bf16.msra.mxu0 0
    %2885 = vmatprep.subr.bf16.mxu0 0
    %2886 = vmatpush1.bf16.msra.mxu0 0
    %2887 = vmatprep.subr.bf16.mxu0 0
    %2888 = vmatpush1.bf16.msra.mxu0 %v2807
    %2889 = vmatprep.subr.bf16.mxu0 0
    %2890 = vmatpush1.bf16.msra.mxu0 %v2804
    %2891 = vmatprep.subr.bf16.mxu0 0
    %2892 = vmatpush1.bf16.msra.mxu0 %v2801
    %2893 = vmatprep.subr.bf16.mxu0 0
    %2894 = vmatpush1.bf16.msra.mxu0 %v2798
    %2895 = vmatprep.subr.bf16.mxu0 0
    %2896 = vmatpush2.bf16.msra.mxu0 0
    %2897 = vmatprep.subr.bf16.mxu0 0
    %2898 = vmatpush2.bf16.msra.mxu0 0
    %2899 = vmatprep.subr.bf16.mxu0 0
    %2900 = vmatpush2.bf16.msra.mxu0 0
    %2901 = vmatprep.subr.bf16.mxu0 0
    %2902 = vmatpush2.bf16.msra.mxu0 0
    %2903 = vmatprep.subr.bf16.mxu0 0
    %2904 = vmatpush2.bf16.msra.mxu0 0
    %2905 = vmatprep.subr.bf16.mxu0 0
    %2906 = vmatpush2.bf16.msra.mxu0 0
    %2907 = vmatprep.subr.bf16.mxu0 0
    %2908 = vmatpush2.bf16.msra.mxu0 0
    %2909 = vmatprep.subr.bf16.mxu0 0
    %2910 = vmatpush2.bf16.msra.mxu0 0
    %2911 = vmatprep.mubr.bf16.mxu0 0
    %2912 = vmatmul.mubr.bf16.gmra.mxu0 %v2821
    %v2913 = vpop.f32.mrf.mxu0
    %v2914 = vadd.f32 0.0, %v2913
    %v2915 = vpop.f32.mrf.mxu0
    %v2916 = vpop.f32.mrf.mxu0
    %v2917 = vadd.f32 0.0, %v2916
    %v2918 = vpop.f32.mrf.mxu0
    %2919 = vmatprep.mubr.bf16.mxu0 0
    %2920 = vmatmul.mubr.bf16.gmra.mxu0 %v2824
    %v2921 = vpop.f32.mrf.mxu0
    %v2922 = vadd.f32 0.0, %v2921
    %v2923 = vpop.f32.mrf.mxu0
    %v2924 = vpop.f32.mrf.mxu0
    %v2925 = vadd.f32 0.0, %v2924
    %v2926 = vpop.f32.mrf.mxu0
    %2927 = vdwg.mxu0
    %v2928 = vadd.f32 %v2726, %v2861
    %v2929 = vadd.f32 %v2727, %v2863
    %v2930 = vadd.f32 %v2728, %v2914
    %v2931 = vadd.f32 %v2729, %v2865
    %v2932 = vadd.f32 %v2730, %v2867
    %v2933 = vadd.f32 %v2731, %v2917
    %v2934 = vadd.f32 %v2732, %v2871
    %v2935 = vadd.f32 %v2733, %v2873
    %v2936 = vadd.f32 %v2734, %v2922
    %v2937 = vadd.f32 %v2735, %v2875
    %v2938 = vadd.f32 %v2736, %v2877
    %v2939 = vadd.f32 %v2737, %v2925
    %2940 = vst [vmem:[#allocation9] sm:$0xff] %v2928
    %2941 = vst [vmem:[#allocation9 + $0x8] sm:$0xff] %v2929
    %2942 = vst [vmem:[#allocation9 + $0x10] sm:$0xff] %v2930
    %2943 = vst [vmem:[#allocation9 + $0x18] sm:$0xff] %v2931
    %2944 = vst [vmem:[#allocation9 + $0x20] sm:$0xff] %v2932
    %2945 = vst [vmem:[#allocation9 + $0x28] sm:$0xff] %v2933
    %2946 = vst [vmem:[#allocation9 + $0x30] sm:$0xff] %v2934
    %2947 = vst [vmem:[#allocation9 + $0x38] sm:$0xff] %v2935
    %2948 = vst [vmem:[#allocation9 + $0x40] sm:$0xff] %v2936
    %2949 = vst [vmem:[#allocation9 + $0x48] sm:$0xff] %v2937
    %2950 = vst [vmem:[#allocation9 + $0x50] sm:$0xff] %v2938
    %2951 = vst [vmem:[#allocation9 + $0x58] sm:$0xff] %v2939
    %v2952 = vld [vmem:[#allocation2] sm:$0xf]
    %v2953 = vld [vmem:[#allocation2 + $0x24] sm:$0xf]
    %v2954 = vld [vmem:[#allocation2 + $0x48] sm:$0xf]
    %v2955 = vld [vmem:[#allocation2 + $0x6c] sm:$0xf]
    %v2956 = vld [vmem:[#allocation2 + $0xc] sm:$0xf]
    %v2957 = vld [vmem:[#allocation2 + $0x30] sm:$0xf]
    %v2958 = vld [vmem:[#allocation2 + $0x54] sm:$0xf]
    %v2959 = vld [vmem:[#allocation2 + $0x78] sm:$0xf]
    %v2960 = vld [vmem:[#allocation2 + $0x18] sm:$0xf]
    %v2961 = vld [vmem:[#allocation2 + $0x3c] sm:$0xf]
    %v2962 = vld [vmem:[#allocation2 + $0x60] sm:$0xf]
    %v2963 = vld [vmem:[#allocation2 + $0x84] sm:$0xf]
    %v2968 = vunpack.c.l.b16 %v2952
    %v2969 = vunpack.c.l.b16 %v2953
    %v2970 = vunpack.c.l.b16 %v2954
    %v2971 = vunpack.c.l.b16 %v2955
    %v2972 = vpack.c.b16 %v2969, %v2968
    %v2973 = vpack.c.b16 %v2971, %v2970
    %2974 = vrot.lane.b32.xlu0 %v2972, 64
    %v2975 = vpop.permute.xlu0 %2974
    %2976 = vrot.lane.b32.xlu0 %v2973, 64
    %v2977 = vpop.permute.xlu0 %2976
    %v2982 = vunpack.c.l.b16 %v2956
    %v2983 = vunpack.c.l.b16 %v2957
    %v2984 = vunpack.c.l.b16 %v2958
    %v2985 = vunpack.c.l.b16 %v2959
    %v2986 = vpack.c.b16 %v2983, %v2982
    %v2987 = vpack.c.b16 %v2985, %v2984
    %2988 = vrot.lane.b32.xlu0 %v2986, 64
    %v2989 = vpop.permute.xlu0 %2988
    %2990 = vrot.lane.b32.xlu0 %v2987, 64
    %v2991 = vpop.permute.xlu0 %2990
    %v2993 = vsel %vm2546, %v2975, 0
    %v2996 = vsel %vm2546, %v2977, 0
    %v2999 = vsel %vm2546, %v2989, 0
    %v3002 = vsel %vm2546, %v2991, 0
    %3004 = vmatprep.subr.bf16.mxu0 0
    %3005 = vmatpush1.bf16.xpose.msra.mxu0 0
    %3006 = vmatprep.subr.bf16.mxu0 0
    %3007 = vmatpush1.bf16.xpose.msra.mxu0 0
    %3008 = vmatprep.subr.bf16.mxu0 0
    %3009 = vmatpush1.bf16.xpose.msra.mxu0 0
    %3010 = vmatprep.subr.bf16.mxu0 0
    %3011 = vmatpush1.bf16.xpose.msra.mxu0 0
    %3012 = vmatprep.subr.bf16.mxu0 0
    %3013 = vmatpush1.bf16.xpose.msra.mxu0 0
    %3014 = vmatprep.subr.bf16.mxu0 0
    %3015 = vmatpush1.bf16.xpose.msra.mxu0 0
    %3016 = vmatprep.subr.bf16.mxu0 0
    %3017 = vmatpush1.bf16.xpose.msra.mxu0 %v3002
    %3018 = vmatprep.subr.bf16.mxu0 0
    %3019 = vmatpush1.bf16.xpose.msra.mxu0 %v2999
    %3020 = vmatprep.subr.bf16.mxu0 0
    %3021 = vmatpush2.bf16.xpose.msra.mxu0 0
    %3022 = vmatprep.subr.bf16.mxu0 0
    %3023 = vmatpush2.bf16.xpose.msra.mxu0 0
    %3024 = vmatprep.subr.bf16.mxu0 0
    %3025 = vmatpush2.bf16.xpose.msra.mxu0 0
    %3026 = vmatprep.subr.bf16.mxu0 0
    %3027 = vmatpush2.bf16.xpose.msra.mxu0 0
    %3028 = vmatprep.subr.bf16.mxu0 0
    %3029 = vmatpush2.bf16.xpose.msra.mxu0 0
    %3030 = vmatprep.subr.bf16.mxu0 0
    %3031 = vmatpush2.bf16.xpose.msra.mxu0 0
    %3032 = vmatprep.subr.bf16.mxu0 0
    %3033 = vmatpush2.bf16.xpose.msra.mxu0 0
    %3034 = vmatprep.subr.bf16.mxu0 0
    %3035 = vmatpush2.bf16.xpose.msra.mxu0 0
    %3036 = vmatprep.mubr.bf16.mxu0 0
    %3037 = vmatmul.mubr.bf16.gmra.mxu0 %v2993
    %v3038 = vpop.f32.mrf.mxu0
    %v3039 = vadd.f32 0.0, %v3038
    %v3040 = vpop.f32.mrf.mxu0
    %v3041 = vpop.f32.mrf.mxu0
    %v3042 = vadd.f32 0.0, %v3041
    %v3043 = vpop.f32.mrf.mxu0
    %3044 = vmatprep.mubr.bf16.mxu0 0
    %3045 = vmatmul.mubr.bf16.gmra.mxu0 %v2996
    %v3046 = vpop.f32.mrf.mxu0
    %v3047 = vadd.f32 0.0, %v3046
    %v3048 = vpop.f32.mrf.mxu0
    %v3049 = vpop.f32.mrf.mxu0
    %v3050 = vadd.f32 0.0, %v3049
    %v3051 = vpop.f32.mrf.mxu0
    %3052 = vdwg.mxu0
    %v3053 = vsel %vm2510, %v3039, -1e+30
    %v3054 = vsel %vm2511, %v3042, -1e+30
    %v3055 = vsel %vm2512, %v3047, -1e+30
    %v3056 = vsel %vm2513, %v3050, -1e+30
    %v3057 = vsel %vm2612, %v3053, -inf
    %3058 = vmax.xlane.f32.xlu0 %v3057
    %v3059 = vpop.xlane.xlu0 %3058
    %v3060 = vsel %vm2612, %v3054, -inf
    %3061 = vmax.xlane.f32.xlu0 %v3060
    %v3062 = vpop.xlane.xlu0 %3061
    %v3063 = vsel %vm2612, %v3055, -inf
    %3064 = vmax.xlane.f32.xlu0 %v3063
    %v3065 = vpop.xlane.xlu0 %3064
    %v3066 = vsel %vm2612, %v3056, -inf
    %3067 = vmax.xlane.f32.xlu0 %v3066
    %v3068 = vpop.xlane.xlu0 %3067
    %v3069 = vsub.f32 %v3053, %v3059
    %v3070 = vsub.f32 %v3054, %v3062
    %v3071 = vsub.f32 %v3055, %v3065
    %v3072 = vsub.f32 %v3056, %v3068
    %v3073 = vmul.f32 %v3069, 1.442695
    %v3074 = vpow.pop %v3073
    %v3075 = vmul.f32 %v3070, 1.442695
    %v3076 = vpow.pop %v3075
    %v3077 = vmul.f32 %v3071, 1.442695
    %v3078 = vpow.pop %v3077
    %v3079 = vmul.f32 %v3072, 1.442695
    %v3080 = vpow.pop %v3079
    %v3081 = vsel %vm2612, %v3074, 0.0
    %3082 = vadd.xlane.f32.xlu0 %v3081
    %v3083 = vpop.xlane.xlu0 %3082
    %v3084 = vsel %vm2612, %v3076, 0.0
    %3085 = vadd.xlane.f32.xlu0 %v3084
    %v3086 = vpop.xlane.xlu0 %3085
    %v3087 = vsel %vm2612, %v3078, 0.0
    %3088 = vadd.xlane.f32.xlu0 %v3087
    %v3089 = vpop.xlane.xlu0 %3088
    %v3090 = vsel %vm2612, %v3080, 0.0
    %3091 = vadd.xlane.f32.xlu0 %v3090
    %v3092 = vpop.xlane.xlu0 %3091
    %v3093 = vrcp.pop %v3083
    %v3094 = vmul.f32 %v3074, %v3093
    %v3095 = vrcp.pop %v3086
    %v3096 = vmul.f32 %v3076, %v3095
    %v3097 = vrcp.pop %v3089
    %v3098 = vmul.f32 %v3078, %v3097
    %v3099 = vrcp.pop %v3092
    %v3100 = vmul.f32 %v3080, %v3099
    %v3101 = vpack.c.bf16 %v3096, %v3094
    %v3102 = vpack.c.bf16 %v3100, %v3098
    %v3107 = vunpack.c.l.b16 %v2960
    %v3108 = vunpack.c.l.b16 %v2961
    %v3109 = vunpack.c.l.b16 %v2962
    %v3110 = vunpack.c.l.b16 %v2963
    %v3111 = vpack.c.b16 %v3108, %v3107
    %v3112 = vpack.c.b16 %v3110, %v3109
    %3113 = vrot.lane.b32.xlu0 %v3111, 64
    %v3114 = vpop.permute.xlu0 %3113
    %3115 = vrot.lane.b32.xlu0 %v3112, 64
    %v3116 = vpop.permute.xlu0 %3115
    %v3120 = vsel %vm2612, %v3101, 0
    %v3123 = vsel %vm2612, %v3102, 0
    %3125 = vmatprep.subr.bf16.mxu0 0
    %3126 = vmatpush1.bf16.msra.mxu0 0
    %3127 = vmatprep.subr.bf16.mxu0 0
    %3128 = vmatpush1.bf16.msra.mxu0 0
    %3129 = vmatprep.subr.bf16.mxu0 0
    %3130 = vmatpush1.bf16.msra.mxu0 0
    %3131 = vmatprep.subr.bf16.mxu0 0
    %3132 = vmatpush1.bf16.msra.mxu0 0
    %3133 = vmatprep.subr.bf16.mxu0 0
    %3134 = vmatpush1.bf16.msra.mxu0 0
    %3135 = vmatprep.subr.bf16.mxu0 0
    %3136 = vmatpush1.bf16.msra.mxu0 0
    %3137 = vmatprep.subr.bf16.mxu0 0
    %3138 = vmatpush1.bf16.msra.mxu0 %v3116
    %3139 = vmatprep.subr.bf16.mxu0 0
    %3140 = vmatpush1.bf16.msra.mxu0 %v3114
    %3141 = vmatprep.subr.bf16.mxu0 0
    %3142 = vmatpush2.bf16.msra.mxu0 0
    %3143 = vmatprep.subr.bf16.mxu0 0
    %3144 = vmatpush2.bf16.msra.mxu0 0
    %3145 = vmatprep.subr.bf16.mxu0 0
    %3146 = vmatpush2.bf16.msra.mxu0 0
    %3147 = vmatprep.subr.bf16.mxu0 0
    %3148 = vmatpush2.bf16.msra.mxu0 0
    %3149 = vmatprep.subr.bf16.mxu0 0
    %3150 = vmatpush2.bf16.msra.mxu0 0
    %3151 = vmatprep.subr.bf16.mxu0 0
    %3152 = vmatpush2.bf16.msra.mxu0 0
    %3153 = vmatprep.subr.bf16.mxu0 0
    %3154 = vmatpush2.bf16.msra.mxu0 0
    %3155 = vmatprep.subr.bf16.mxu0 0
    %3156 = vmatpush2.bf16.msra.mxu0 0
    %3157 = vmatprep.mubr.bf16.mxu0 0
    %3158 = vmatmul.mubr.bf16.gmra.mxu0 %v3120
    %v3159 = vpop.f32.mrf.mxu0
    %v3160 = vadd.f32 0.0, %v3159
    %v3161 = vpop.f32.mrf.mxu0
    %v3162 = vpop.f32.mrf.mxu0
    %v3163 = vadd.f32 0.0, %v3162
    %v3164 = vpop.f32.mrf.mxu0
    %3165 = vmatprep.mubr.bf16.mxu0 0
    %3166 = vmatmul.mubr.bf16.gmra.mxu0 %v3123
    %v3167 = vpop.f32.mrf.mxu0
    %v3168 = vadd.f32 0.0, %v3167
    %v3169 = vpop.f32.mrf.mxu0
    %v3170 = vpop.f32.mrf.mxu0
    %v3171 = vadd.f32 0.0, %v3170
    %v3172 = vpop.f32.mrf.mxu0
    %3173 = vdwg.mxu0
    %v3174 = vld [vmem:[#allocation9] sm:$0xff]
    %v3175 = vld [vmem:[#allocation9 + $0x8] sm:$0xff]
    %v3176 = vld [vmem:[#allocation9 + $0x10] sm:$0xff]
    %v3177 = vld [vmem:[#allocation9 + $0x18] sm:$0xff]
    %v3178 = vld [vmem:[#allocation9 + $0x20] sm:$0xff]
    %v3179 = vld [vmem:[#allocation9 + $0x28] sm:$0xff]
    %v3180 = vld [vmem:[#allocation9 + $0x30] sm:$0xff]
    %v3181 = vld [vmem:[#allocation9 + $0x38] sm:$0xff]
    %v3182 = vld [vmem:[#allocation9 + $0x40] sm:$0xff]
    %v3183 = vld [vmem:[#allocation9 + $0x48] sm:$0xff]
    %v3184 = vld [vmem:[#allocation9 + $0x50] sm:$0xff]
    %v3185 = vld [vmem:[#allocation9 + $0x58] sm:$0xff]
    %v3186 = vpack.c.bf16 %v3163, %v3160
    %v3187 = vpack.c.bf16 %v3171, %v3168
    %v3188 = vld [vmem:[#allocation8 + $0x60] sm:$0xff]
    %v3189 = vld [vmem:[#allocation8 + $0x68] sm:$0xf]
    %v3190 = vld [vmem:[#allocation8 + $0x6c] sm:$0xff]
    %v3191 = vld [vmem:[#allocation8 + $0x74] sm:$0xf]
    %v3192 = vld [vmem:[#allocation8 + $0x78] sm:$0xff]
    %v3193 = vld [vmem:[#allocation8 + $0x80] sm:$0xf]
    %v3194 = vld [vmem:[#allocation8 + $0x84] sm:$0xff]
    %v3195 = vld [vmem:[#allocation8 + $0x8c] sm:$0xf]
    %v3196 = vld [vmem:[#allocation8 + $0x90] sm:$0xff]
    %v3197 = vld [vmem:[#allocation8 + $0x98] sm:$0xf]
    %v3198 = vld [vmem:[#allocation8 + $0x9c] sm:$0xff]
    %v3199 = vld [vmem:[#allocation8 + $0xa4] sm:$0xf]
    %v3200 = vld [vmem:[#allocation8 + $0xa8] sm:$0xff]
    %v3201 = vld [vmem:[#allocation8 + $0xb0] sm:$0xf]
    %v3202 = vld [vmem:[#allocation8 + $0xb4] sm:$0xff]
    %v3203 = vld [vmem:[#allocation8 + $0xbc] sm:$0xf]
    %v3220 = vunpack.c.l.b16 %v3188
    %v3221 = vunpack.c.h.b16 %v3188
    %v3222 = vunpack.c.l.b16 %v3189
    %v3223 = vunpack.c.l.b16 %v3190
    %v3224 = vunpack.c.h.b16 %v3190
    %v3225 = vunpack.c.l.b16 %v3191
    %v3226 = vunpack.c.l.b16 %v3192
    %v3227 = vunpack.c.h.b16 %v3192
    %v3228 = vunpack.c.l.b16 %v3193
    %v3229 = vunpack.c.l.b16 %v3194
    %v3230 = vunpack.c.h.b16 %v3194
    %v3231 = vunpack.c.l.b16 %v3195
    %v3232 = vunpack.c.l.b16 %v3196
    %v3233 = vunpack.c.h.b16 %v3196
    %v3234 = vunpack.c.l.b16 %v3197
    %v3235 = vunpack.c.l.b16 %v3198
    %v3236 = vunpack.c.h.b16 %v3198
    %v3237 = vunpack.c.l.b16 %v3199
    %v3238 = vunpack.c.l.b16 %v3200
    %v3239 = vunpack.c.h.b16 %v3200
    %v3240 = vunpack.c.l.b16 %v3201
    %v3241 = vunpack.c.l.b16 %v3202
    %v3242 = vunpack.c.h.b16 %v3202
    %v3243 = vunpack.c.l.b16 %v3203
    %v3244 = vpack.c.b16 %v3223, %v3220
    %v3245 = vpack.c.b16 %v3224, %v3221
    %v3246 = vpack.c.b16 %v3225, %v3222
    %v3247 = vpack.c.b16 %v3229, %v3226
    %v3248 = vpack.c.b16 %v3230, %v3227
    %v3249 = vpack.c.b16 %v3231, %v3228
    %v3250 = vpack.c.b16 %v3235, %v3232
    %v3251 = vpack.c.b16 %v3236, %v3233
    %v3252 = vpack.c.b16 %v3237, %v3234
    %v3253 = vpack.c.b16 %v3241, %v3238
    %v3254 = vpack.c.b16 %v3242, %v3239
    %v3255 = vpack.c.b16 %v3243, %v3240
    %v3269 = vsel %vm2546, %v3186, 0
    %v3272 = vsel %vm2546, %v3187, 0
    %3274 = vmatprep.subr.bf16.mxu0 0
    %3275 = vmatpush1.bf16.msra.mxu0 0
    %3276 = vmatprep.subr.bf16.mxu0 0
    %3277 = vmatpush1.bf16.msra.mxu0 0
    %3278 = vmatprep.subr.bf16.mxu0 0
    %3279 = vmatpush1.bf16.msra.mxu0 0
    %3280 = vmatprep.subr.bf16.mxu0 0
    %3281 = vmatpush1.bf16.msra.mxu0 0
    %3282 = vmatprep.subr.bf16.mxu0 %v3254
    %3283 = vmatpush1.bf16.msra.mxu0 %v3253
    %3284 = vmatprep.subr.bf16.mxu0 %v3251
    %3285 = vmatpush1.bf16.msra.mxu0 %v3250
    %3286 = vmatprep.subr.bf16.mxu0 %v3248
    %3287 = vmatpush1.bf16.msra.mxu0 %v3247
    %3288 = vmatprep.subr.bf16.mxu0 %v3245
    %3289 = vmatpush1.bf16.msra.mxu0 %v3244
    %3290 = vmatprep.subr.bf16.mxu0 0
    %3291 = vmatpush2.bf16.msra.mxu0 0
    %3292 = vmatprep.subr.bf16.mxu0 0
    %3293 = vmatpush2.bf16.msra.mxu0 0
    %3294 = vmatprep.subr.bf16.mxu0 0
    %3295 = vmatpush2.bf16.msra.mxu0 0
    %3296 = vmatprep.subr.bf16.mxu0 0
    %3297 = vmatpush2.bf16.msra.mxu0 0
    %3298 = vmatprep.subr.bf16.mxu0 0
    %3299 = vmatpush2.bf16.msra.mxu0 0
    %3300 = vmatprep.subr.bf16.mxu0 0
    %3301 = vmatpush2.bf16.msra.mxu0 0
    %3302 = vmatprep.subr.bf16.mxu0 0
    %3303 = vmatpush2.bf16.msra.mxu0 0
    %3304 = vmatprep.subr.bf16.mxu0 0
    %3305 = vmatpush2.bf16.msra.mxu0 0
    %3306 = vmatprep.mubr.bf16.mxu0 0
    %3307 = vmatmul.mubr.bf16.gmra.mxu0 %v3269
    %v3308 = vpop.f32.mrf.mxu0
    %v3309 = vadd.f32 0.0, %v3308
    %v3310 = vpop.f32.mrf.mxu0
    %v3311 = vadd.f32 0.0, %v3310
    %v3312 = vpop.f32.mrf.mxu0
    %v3313 = vadd.f32 0.0, %v3312
    %v3314 = vpop.f32.mrf.mxu0
    %v3315 = vadd.f32 0.0, %v3314
    %3316 = vmatprep.mubr.bf16.mxu0 0
    %3317 = vmatmul.mubr.bf16.gmra.mxu0 %v3272
    %v3318 = vpop.f32.mrf.mxu0
    %v3319 = vadd.f32 0.0, %v3318
    %v3320 = vpop.f32.mrf.mxu0
    %v3321 = vadd.f32 0.0, %v3320
    %v3322 = vpop.f32.mrf.mxu0
    %v3323 = vadd.f32 0.0, %v3322
    %v3324 = vpop.f32.mrf.mxu0
    %v3325 = vadd.f32 0.0, %v3324
    %3326 = vdwg.mxu0
    %3327 = vmatprep.subr.bf16.mxu0 0
    %3328 = vmatpush1.bf16.msra.mxu0 0
    %3329 = vmatprep.subr.bf16.mxu0 0
    %3330 = vmatpush1.bf16.msra.mxu0 0
    %3331 = vmatprep.subr.bf16.mxu0 0
    %3332 = vmatpush1.bf16.msra.mxu0 0
    %3333 = vmatprep.subr.bf16.mxu0 0
    %3334 = vmatpush1.bf16.msra.mxu0 0
    %3335 = vmatprep.subr.bf16.mxu0 0
    %3336 = vmatpush1.bf16.msra.mxu0 %v3255
    %3337 = vmatprep.subr.bf16.mxu0 0
    %3338 = vmatpush1.bf16.msra.mxu0 %v3252
    %3339 = vmatprep.subr.bf16.mxu0 0
    %3340 = vmatpush1.bf16.msra.mxu0 %v3249
    %3341 = vmatprep.subr.bf16.mxu0 0
    %3342 = vmatpush1.bf16.msra.mxu0 %v3246
    %3343 = vmatprep.subr.bf16.mxu0 0
    %3344 = vmatpush2.bf16.msra.mxu0 0
    %3345 = vmatprep.subr.bf16.mxu0 0
    %3346 = vmatpush2.bf16.msra.mxu0 0
    %3347 = vmatprep.subr.bf16.mxu0 0
    %3348 = vmatpush2.bf16.msra.mxu0 0
    %3349 = vmatprep.subr.bf16.mxu0 0
    %3350 = vmatpush2.bf16.msra.mxu0 0
    %3351 = vmatprep.subr.bf16.mxu0 0
    %3352 = vmatpush2.bf16.msra.mxu0 0
    %3353 = vmatprep.subr.bf16.mxu0 0
    %3354 = vmatpush2.bf16.msra.mxu0 0
    %3355 = vmatprep.subr.bf16.mxu0 0
    %3356 = vmatpush2.bf16.msra.mxu0 0
    %3357 = vmatprep.subr.bf16.mxu0 0
    %3358 = vmatpush2.bf16.msra.mxu0 0
    %3359 = vmatprep.mubr.bf16.mxu0 0
    %3360 = vmatmul.mubr.bf16.gmra.mxu0 %v3269
    %v3361 = vpop.f32.mrf.mxu0
    %v3362 = vadd.f32 0.0, %v3361
    %v3363 = vpop.f32.mrf.mxu0
    %v3364 = vpop.f32.mrf.mxu0
    %v3365 = vadd.f32 0.0, %v3364
    %v3366 = vpop.f32.mrf.mxu0
    %3367 = vmatprep.mubr.bf16.mxu0 0
    %3368 = vmatmul.mubr.bf16.gmra.mxu0 %v3272
    %v3369 = vpop.f32.mrf.mxu0
    %v3370 = vadd.f32 0.0, %v3369
    %v3371 = vpop.f32.mrf.mxu0
    %v3372 = vpop.f32.mrf.mxu0
    %v3373 = vadd.f32 0.0, %v3372
    %v3374 = vpop.f32.mrf.mxu0
    %3375 = vdwg.mxu0
    %v3376 = vadd.f32 %v3174, %v3309
    %v3377 = vadd.f32 %v3175, %v3311
    %v3378 = vadd.f32 %v3176, %v3362
    %v3379 = vadd.f32 %v3177, %v3313
    %v3380 = vadd.f32 %v3178, %v3315
    %v3381 = vadd.f32 %v3179, %v3365
    %v3382 = vadd.f32 %v3180, %v3319
    %v3383 = vadd.f32 %v3181, %v3321
    %v3384 = vadd.f32 %v3182, %v3370
    %v3385 = vadd.f32 %v3183, %v3323
    %v3386 = vadd.f32 %v3184, %v3325
    %v3387 = vadd.f32 %v3185, %v3373
    %3388 = vst [vmem:[#allocation9] sm:$0xff] %v3376
    %3389 = vst [vmem:[#allocation9 + $0x8] sm:$0xff] %v3377
    %3390 = vst [vmem:[#allocation9 + $0x10] sm:$0xff] %v3378
    %3391 = vst [vmem:[#allocation9 + $0x18] sm:$0xff] %v3379
    %3392 = vst [vmem:[#allocation9 + $0x20] sm:$0xff] %v3380
    %3393 = vst [vmem:[#allocation9 + $0x28] sm:$0xff] %v3381
    %3394 = vst [vmem:[#allocation9 + $0x30] sm:$0xff] %v3382
    %3395 = vst [vmem:[#allocation9 + $0x38] sm:$0xff] %v3383
    %3396 = vst [vmem:[#allocation9 + $0x40] sm:$0xff] %v3384
    %3397 = vst [vmem:[#allocation9 + $0x48] sm:$0xff] %v3385
    %3398 = vst [vmem:[#allocation9 + $0x50] sm:$0xff] %v3386
    %3399 = vst [vmem:[#allocation9 + $0x58] sm:$0xff] %v3387
    %v3400 = vld [vmem:[#allocation2 + $0x4] sm:$0xf]
    %v3401 = vld [vmem:[#allocation2 + $0x28] sm:$0xf]
    %v3402 = vld [vmem:[#allocation2 + $0x4c] sm:$0xf]
    %v3403 = vld [vmem:[#allocation2 + $0x70] sm:$0xf]
    %v3404 = vld [vmem:[#allocation2 + $0x10] sm:$0xf]
    %v3405 = vld [vmem:[#allocation2 + $0x34] sm:$0xf]
    %v3406 = vld [vmem:[#allocation2 + $0x58] sm:$0xf]
    %v3407 = vld [vmem:[#allocation2 + $0x7c] sm:$0xf]
    %v3408 = vld [vmem:[#allocation2 + $0x1c] sm:$0xf]
    %v3409 = vld [vmem:[#allocation2 + $0x40] sm:$0xf]
    %v3410 = vld [vmem:[#allocation2 + $0x64] sm:$0xf]
    %v3411 = vld [vmem:[#allocation2 + $0x88] sm:$0xf]
    %v3416 = vunpack.c.l.b16 %v3400
    %v3417 = vunpack.c.l.b16 %v3401
    %v3418 = vunpack.c.l.b16 %v3402
    %v3419 = vunpack.c.l.b16 %v3403
    %v3420 = vpack.c.b16 %v3417, %v3416
    %v3421 = vpack.c.b16 %v3419, %v3418
    %v3426 = vunpack.c.l.b16 %v3404
    %v3427 = vunpack.c.l.b16 %v3405
    %v3428 = vunpack.c.l.b16 %v3406
    %v3429 = vunpack.c.l.b16 %v3407
    %v3430 = vpack.c.b16 %v3427, %v3426
    %v3431 = vpack.c.b16 %v3429, %v3428
    %v3433 = vsel %vm2546, %v3420, 0
    %v3436 = vsel %vm2546, %v3421, 0
    %v3439 = vsel %vm2546, %v3430, 0
    %v3442 = vsel %vm2546, %v3431, 0
    %3444 = vmatprep.subr.bf16.mxu0 0
    %3445 = vmatpush1.bf16.xpose.msra.mxu0 0
    %3446 = vmatprep.subr.bf16.mxu0 0
    %3447 = vmatpush1.bf16.xpose.msra.mxu0 0
    %3448 = vmatprep.subr.bf16.mxu0 0
    %3449 = vmatpush1.bf16.xpose.msra.mxu0 0
    %3450 = vmatprep.subr.bf16.mxu0 0
    %3451 = vmatpush1.bf16.xpose.msra.mxu0 0
    %3452 = vmatprep.subr.bf16.mxu0 0
    %3453 = vmatpush1.bf16.xpose.msra.mxu0 0
    %3454 = vmatprep.subr.bf16.mxu0 0
    %3455 = vmatpush1.bf16.xpose.msra.mxu0 0
    %3456 = vmatprep.subr.bf16.mxu0 0
    %3457 = vmatpush1.bf16.xpose.msra.mxu0 %v3442
    %3458 = vmatprep.subr.bf16.mxu0 0
    %3459 = vmatpush1.bf16.xpose.msra.mxu0 %v3439
    %3460 = vmatprep.subr.bf16.mxu0 0
    %3461 = vmatpush2.bf16.xpose.msra.mxu0 0
    %3462 = vmatprep.subr.bf16.mxu0 0
    %3463 = vmatpush2.bf16.xpose.msra.mxu0 0
    %3464 = vmatprep.subr.bf16.mxu0 0
    %3465 = vmatpush2.bf16.xpose.msra.mxu0 0
    %3466 = vmatprep.subr.bf16.mxu0 0
    %3467 = vmatpush2.bf16.xpose.msra.mxu0 0
    %3468 = vmatprep.subr.bf16.mxu0 0
    %3469 = vmatpush2.bf16.xpose.msra.mxu0 0
    %3470 = vmatprep.subr.bf16.mxu0 0
    %3471 = vmatpush2.bf16.xpose.msra.mxu0 0
    %3472 = vmatprep.subr.bf16.mxu0 0
    %3473 = vmatpush2.bf16.xpose.msra.mxu0 0
    %3474 = vmatprep.subr.bf16.mxu0 0
    %3475 = vmatpush2.bf16.xpose.msra.mxu0 0
    %3476 = vmatprep.mubr.bf16.mxu0 0
    %3477 = vmatmul.mubr.bf16.gmra.mxu0 %v3433
    %v3478 = vpop.f32.mrf.mxu0
    %v3479 = vadd.f32 0.0, %v3478
    %v3480 = vpop.f32.mrf.mxu0
    %v3481 = vpop.f32.mrf.mxu0
    %v3482 = vadd.f32 0.0, %v3481
    %v3483 = vpop.f32.mrf.mxu0
    %3484 = vmatprep.mubr.bf16.mxu0 0
    %3485 = vmatmul.mubr.bf16.gmra.mxu0 %v3436
    %v3486 = vpop.f32.mrf.mxu0
    %v3487 = vadd.f32 0.0, %v3486
    %v3488 = vpop.f32.mrf.mxu0
    %v3489 = vpop.f32.mrf.mxu0
    %v3490 = vadd.f32 0.0, %v3489
    %v3491 = vpop.f32.mrf.mxu0
    %3492 = vdwg.mxu0
    %v3493 = vsel %vm2510, %v3479, -1e+30
    %v3494 = vsel %vm2511, %v3482, -1e+30
    %v3495 = vsel %vm2512, %v3487, -1e+30
    %v3496 = vsel %vm2513, %v3490, -1e+30
    %v3497 = vsel %vm2612, %v3493, -inf
    %3498 = vmax.xlane.f32.xlu0 %v3497
    %v3499 = vpop.xlane.xlu0 %3498
    %v3500 = vsel %vm2612, %v3494, -inf
    %3501 = vmax.xlane.f32.xlu0 %v3500
    %v3502 = vpop.xlane.xlu0 %3501
    %v3503 = vsel %vm2612, %v3495, -inf
    %3504 = vmax.xlane.f32.xlu0 %v3503
    %v3505 = vpop.xlane.xlu0 %3504
    %v3506 = vsel %vm2612, %v3496, -inf
    %3507 = vmax.xlane.f32.xlu0 %v3506
    %v3508 = vpop.xlane.xlu0 %3507
    %v3509 = vsub.f32 %v3493, %v3499
    %v3510 = vsub.f32 %v3494, %v3502
    %v3511 = vsub.f32 %v3495, %v3505
    %v3512 = vsub.f32 %v3496, %v3508
    %v3513 = vmul.f32 %v3509, 1.442695
    %v3514 = vpow.pop %v3513
    %v3515 = vmul.f32 %v3510, 1.442695
    %v3516 = vpow.pop %v3515
    %v3517 = vmul.f32 %v3511, 1.442695
    %v3518 = vpow.pop %v3517
    %v3519 = vmul.f32 %v3512, 1.442695
    %v3520 = vpow.pop %v3519
    %v3521 = vsel %vm2612, %v3514, 0.0
    %3522 = vadd.xlane.f32.xlu0 %v3521
    %v3523 = vpop.xlane.xlu0 %3522
    %v3524 = vsel %vm2612, %v3516, 0.0
    %3525 = vadd.xlane.f32.xlu0 %v3524
    %v3526 = vpop.xlane.xlu0 %3525
    %v3527 = vsel %vm2612, %v3518, 0.0
    %3528 = vadd.xlane.f32.xlu0 %v3527
    %v3529 = vpop.xlane.xlu0 %3528
    %v3530 = vsel %vm2612, %v3520, 0.0
    %3531 = vadd.xlane.f32.xlu0 %v3530
    %v3532 = vpop.xlane.xlu0 %3531
    %v3533 = vrcp.pop %v3523
    %v3534 = vmul.f32 %v3514, %v3533
    %v3535 = vrcp.pop %v3526
    %v3536 = vmul.f32 %v3516, %v3535
    %v3537 = vrcp.pop %v3529
    %v3538 = vmul.f32 %v3518, %v3537
    %v3539 = vrcp.pop %v3532
    %v3540 = vmul.f32 %v3520, %v3539
    %v3541 = vpack.c.bf16 %v3536, %v3534
    %v3542 = vpack.c.bf16 %v3540, %v3538
    %v3547 = vunpack.c.l.b16 %v3408
    %v3548 = vunpack.c.l.b16 %v3409
    %v3549 = vunpack.c.l.b16 %v3410
    %v3550 = vunpack.c.l.b16 %v3411
    %v3551 = vpack.c.b16 %v3548, %v3547
    %v3552 = vpack.c.b16 %v3550, %v3549
    %v3556 = vsel %vm2612, %v3541, 0
    %v3559 = vsel %vm2612, %v3542, 0
    %3561 = vmatprep.subr.bf16.mxu0 0
    %3562 = vmatpush1.bf16.msra.mxu0 0
    %3563 = vmatprep.subr.bf16.mxu0 0
    %3564 = vmatpush1.bf16.msra.mxu0 0
    %3565 = vmatprep.subr.bf16.mxu0 0
    %3566 = vmatpush1.bf16.msra.mxu0 0
    %3567 = vmatprep.subr.bf16.mxu0 0
    %3568 = vmatpush1.bf16.msra.mxu0 0
    %3569 = vmatprep.subr.bf16.mxu0 0
    %3570 = vmatpush1.bf16.msra.mxu0 0
    %3571 = vmatprep.subr.bf16.mxu0 0
    %3572 = vmatpush1.bf16.msra.mxu0 0
    %3573 = vmatprep.subr.bf16.mxu0 0
    %3574 = vmatpush1.bf16.msra.mxu0 %v3552
    %3575 = vmatprep.subr.bf16.mxu0 0
    %3576 = vmatpush1.bf16.msra.mxu0 %v3551
    %3577 = vmatprep.subr.bf16.mxu0 0
    %3578 = vmatpush2.bf16.msra.mxu0 0
    %3579 = vmatprep.subr.bf16.mxu0 0
    %3580 = vmatpush2.bf16.msra.mxu0 0
    %3581 = vmatprep.subr.bf16.mxu0 0
    %3582 = vmatpush2.bf16.msra.mxu0 0
    %3583 = vmatprep.subr.bf16.mxu0 0
    %3584 = vmatpush2.bf16.msra.mxu0 0
    %3585 = vmatprep.subr.bf16.mxu0 0
    %3586 = vmatpush2.bf16.msra.mxu0 0
    %3587 = vmatprep.subr.bf16.mxu0 0
    %3588 = vmatpush2.bf16.msra.mxu0 0
    %3589 = vmatprep.subr.bf16.mxu0 0
    %3590 = vmatpush2.bf16.msra.mxu0 0
    %3591 = vmatprep.subr.bf16.mxu0 0
    %3592 = vmatpush2.bf16.msra.mxu0 0
    %3593 = vmatprep.mubr.bf16.mxu0 0
    %3594 = vmatmul.mubr.bf16.gmra.mxu0 %v3556
    %v3595 = vpop.f32.mrf.mxu0
    %v3596 = vadd.f32 0.0, %v3595
    %v3597 = vpop.f32.mrf.mxu0
    %v3598 = vpop.f32.mrf.mxu0
    %v3599 = vadd.f32 0.0, %v3598
    %v3600 = vpop.f32.mrf.mxu0
    %3601 = vmatprep.mubr.bf16.mxu0 0
    %3602 = vmatmul.mubr.bf16.gmra.mxu0 %v3559
    %v3603 = vpop.f32.mrf.mxu0
    %v3604 = vadd.f32 0.0, %v3603
    %v3605 = vpop.f32.mrf.mxu0
    %v3606 = vpop.f32.mrf.mxu0
    %v3607 = vadd.f32 0.0, %v3606
    %v3608 = vpop.f32.mrf.mxu0
    %3609 = vdwg.mxu0
    %v3610 = vld [vmem:[#allocation9] sm:$0xff]
    %v3611 = vld [vmem:[#allocation9 + $0x8] sm:$0xff]
    %v3612 = vld [vmem:[#allocation9 + $0x10] sm:$0xff]
    %v3613 = vld [vmem:[#allocation9 + $0x18] sm:$0xff]
    %v3614 = vld [vmem:[#allocation9 + $0x20] sm:$0xff]
    %v3615 = vld [vmem:[#allocation9 + $0x28] sm:$0xff]
    %v3616 = vld [vmem:[#allocation9 + $0x30] sm:$0xff]
    %v3617 = vld [vmem:[#allocation9 + $0x38] sm:$0xff]
    %v3618 = vld [vmem:[#allocation9 + $0x40] sm:$0xff]
    %v3619 = vld [vmem:[#allocation9 + $0x48] sm:$0xff]
    %v3620 = vld [vmem:[#allocation9 + $0x50] sm:$0xff]
    %v3621 = vld [vmem:[#allocation9 + $0x58] sm:$0xff]
    %v3622 = vpack.c.bf16 %v3599, %v3596
    %v3623 = vpack.c.bf16 %v3607, %v3604
    %v3624 = vld [vmem:[#allocation8 + $0xc0] sm:$0xff]
    %v3625 = vld [vmem:[#allocation8 + $0xc8] sm:$0xf]
    %v3626 = vld [vmem:[#allocation8 + $0xcc] sm:$0xff]
    %v3627 = vld [vmem:[#allocation8 + $0xd4] sm:$0xf]
    %v3628 = vld [vmem:[#allocation8 + $0xd8] sm:$0xff]
    %v3629 = vld [vmem:[#allocation8 + $0xe0] sm:$0xf]
    %v3630 = vld [vmem:[#allocation8 + $0xe4] sm:$0xff]
    %v3631 = vld [vmem:[#allocation8 + $0xec] sm:$0xf]
    %v3632 = vld [vmem:[#allocation8 + $0xf0] sm:$0xff]
    %v3633 = vld [vmem:[#allocation8 + $0xf8] sm:$0xf]
    %v3634 = vld [vmem:[#allocation8 + $0xfc] sm:$0xff]
    %v3635 = vld [vmem:[#allocation8 + $0x104] sm:$0xf]
    %v3636 = vld [vmem:[#allocation8 + $0x108] sm:$0xff]
    %v3637 = vld [vmem:[#allocation8 + $0x110] sm:$0xf]
    %v3638 = vld [vmem:[#allocation8 + $0x114] sm:$0xff]
    %v3639 = vld [vmem:[#allocation8 + $0x11c] sm:$0xf]
    %v3656 = vunpack.c.l.b16 %v3624
    %v3657 = vunpack.c.h.b16 %v3624
    %v3658 = vunpack.c.l.b16 %v3625
    %v3659 = vunpack.c.l.b16 %v3626
    %v3660 = vunpack.c.h.b16 %v3626
    %v3661 = vunpack.c.l.b16 %v3627
    %v3662 = vunpack.c.l.b16 %v3628
    %v3663 = vunpack.c.h.b16 %v3628
    %v3664 = vunpack.c.l.b16 %v3629
    %v3665 = vunpack.c.l.b16 %v3630
    %v3666 = vunpack.c.h.b16 %v3630
    %v3667 = vunpack.c.l.b16 %v3631
    %v3668 = vunpack.c.l.b16 %v3632
    %v3669 = vunpack.c.h.b16 %v3632
    %v3670 = vunpack.c.l.b16 %v3633
    %v3671 = vunpack.c.l.b16 %v3634
    %v3672 = vunpack.c.h.b16 %v3634
    %v3673 = vunpack.c.l.b16 %v3635
    %v3674 = vunpack.c.l.b16 %v3636
    %v3675 = vunpack.c.h.b16 %v3636
    %v3676 = vunpack.c.l.b16 %v3637
    %v3677 = vunpack.c.l.b16 %v3638
    %v3678 = vunpack.c.h.b16 %v3638
    %v3679 = vunpack.c.l.b16 %v3639
    %v3680 = vpack.c.b16 %v3659, %v3656
    %v3681 = vpack.c.b16 %v3660, %v3657
    %v3682 = vpack.c.b16 %v3661, %v3658
    %v3683 = vpack.c.b16 %v3665, %v3662
    %v3684 = vpack.c.b16 %v3666, %v3663
    %v3685 = vpack.c.b16 %v3667, %v3664
    %v3686 = vpack.c.b16 %v3671, %v3668
    %v3687 = vpack.c.b16 %v3672, %v3669
    %v3688 = vpack.c.b16 %v3673, %v3670
    %v3689 = vpack.c.b16 %v3677, %v3674
    %v3690 = vpack.c.b16 %v3678, %v3675
    %v3691 = vpack.c.b16 %v3679, %v3676
    %v3705 = vsel %vm2546, %v3622, 0
    %v3708 = vsel %vm2546, %v3623, 0
    %3710 = vmatprep.subr.bf16.mxu0 0
    %3711 = vmatpush1.bf16.msra.mxu0 0
    %3712 = vmatprep.subr.bf16.mxu0 0
    %3713 = vmatpush1.bf16.msra.mxu0 0
    %3714 = vmatprep.subr.bf16.mxu0 0
    %3715 = vmatpush1.bf16.msra.mxu0 0
    %3716 = vmatprep.subr.bf16.mxu0 0
    %3717 = vmatpush1.bf16.msra.mxu0 0
    %3718 = vmatprep.subr.bf16.mxu0 %v3690
    %3719 = vmatpush1.bf16.msra.mxu0 %v3689
    %3720 = vmatprep.subr.bf16.mxu0 %v3687
    %3721 = vmatpush1.bf16.msra.mxu0 %v3686
    %3722 = vmatprep.subr.bf16.mxu0 %v3684
    %3723 = vmatpush1.bf16.msra.mxu0 %v3683
    %3724 = vmatprep.subr.bf16.mxu0 %v3681
    %3725 = vmatpush1.bf16.msra.mxu0 %v3680
    %3726 = vmatprep.subr.bf16.mxu0 0
    %3727 = vmatpush2.bf16.msra.mxu0 0
    %3728 = vmatprep.subr.bf16.mxu0 0
    %3729 = vmatpush2.bf16.msra.mxu0 0
    %3730 = vmatprep.subr.bf16.mxu0 0
    %3731 = vmatpush2.bf16.msra.mxu0 0
    %3732 = vmatprep.subr.bf16.mxu0 0
    %3733 = vmatpush2.bf16.msra.mxu0 0
    %3734 = vmatprep.subr.bf16.mxu0 0
    %3735 = vmatpush2.bf16.msra.mxu0 0
    %3736 = vmatprep.subr.bf16.mxu0 0
    %3737 = vmatpush2.bf16.msra.mxu0 0
    %3738 = vmatprep.subr.bf16.mxu0 0
    %3739 = vmatpush2.bf16.msra.mxu0 0
    %3740 = vmatprep.subr.bf16.mxu0 0
    %3741 = vmatpush2.bf16.msra.mxu0 0
    %3742 = vmatprep.mubr.bf16.mxu0 0
    %3743 = vmatmul.mubr.bf16.gmra.mxu0 %v3705
    %v3744 = vpop.f32.mrf.mxu0
    %v3745 = vadd.f32 0.0, %v3744
    %v3746 = vpop.f32.mrf.mxu0
    %v3747 = vadd.f32 0.0, %v3746
    %v3748 = vpop.f32.mrf.mxu0
    %v3749 = vadd.f32 0.0, %v3748
    %v3750 = vpop.f32.mrf.mxu0
    %v3751 = vadd.f32 0.0, %v3750
    %3752 = vmatprep.mubr.bf16.mxu0 0
    %3753 = vmatmul.mubr.bf16.gmra.mxu0 %v3708
    %v3754 = vpop.f32.mrf.mxu0
    %v3755 = vadd.f32 0.0, %v3754
    %v3756 = vpop.f32.mrf.mxu0
    %v3757 = vadd.f32 0.0, %v3756
    %v3758 = vpop.f32.mrf.mxu0
    %v3759 = vadd.f32 0.0, %v3758
    %v3760 = vpop.f32.mrf.mxu0
    %v3761 = vadd.f32 0.0, %v3760
    %3762 = vdwg.mxu0
    %3763 = vmatprep.subr.bf16.mxu0 0
    %3764 = vmatpush1.bf16.msra.mxu0 0
    %3765 = vmatprep.subr.bf16.mxu0 0
    %3766 = vmatpush1.bf16.msra.mxu0 0
    %3767 = vmatprep.subr.bf16.mxu0 0
    %3768 = vmatpush1.bf16.msra.mxu0 0
    %3769 = vmatprep.subr.bf16.mxu0 0
    %3770 = vmatpush1.bf16.msra.mxu0 0
    %3771 = vmatprep.subr.bf16.mxu0 0
    %3772 = vmatpush1.bf16.msra.mxu0 %v3691
    %3773 = vmatprep.subr.bf16.mxu0 0
    %3774 = vmatpush1.bf16.msra.mxu0 %v3688
    %3775 = vmatprep.subr.bf16.mxu0 0
    %3776 = vmatpush1.bf16.msra.mxu0 %v3685
    %3777 = vmatprep.subr.bf16.mxu0 0
    %3778 = vmatpush1.bf16.msra.mxu0 %v3682
    %3779 = vmatprep.subr.bf16.mxu0 0
    %3780 = vmatpush2.bf16.msra.mxu0 0
    %3781 = vmatprep.subr.bf16.mxu0 0
    %3782 = vmatpush2.bf16.msra.mxu0 0
    %3783 = vmatprep.subr.bf16.mxu0 0
    %3784 = vmatpush2.bf16.msra.mxu0 0
    %3785 = vmatprep.subr.bf16.mxu0 0
    %3786 = vmatpush2.bf16.msra.mxu0 0
    %3787 = vmatprep.subr.bf16.mxu0 0
    %3788 = vmatpush2.bf16.msra.mxu0 0
    %3789 = vmatprep.subr.bf16.mxu0 0
    %3790 = vmatpush2.bf16.msra.mxu0 0
    %3791 = vmatprep.subr.bf16.mxu0 0
    %3792 = vmatpush2.bf16.msra.mxu0 0
    %3793 = vmatprep.subr.bf16.mxu0 0
    %3794 = vmatpush2.bf16.msra.mxu0 0
    %3795 = vmatprep.mubr.bf16.mxu0 0
    %3796 = vmatmul.mubr.bf16.gmra.mxu0 %v3705
    %v3797 = vpop.f32.mrf.mxu0
    %v3798 = vadd.f32 0.0, %v3797
    %v3799 = vpop.f32.mrf.mxu0
    %v3800 = vpop.f32.mrf.mxu0
    %v3801 = vadd.f32 0.0, %v3800
    %v3802 = vpop.f32.mrf.mxu0
    %3803 = vmatprep.mubr.bf16.mxu0 0
    %3804 = vmatmul.mubr.bf16.gmra.mxu0 %v3708
    %v3805 = vpop.f32.mrf.mxu0
    %v3806 = vadd.f32 0.0, %v3805
    %v3807 = vpop.f32.mrf.mxu0
    %v3808 = vpop.f32.mrf.mxu0
    %v3809 = vadd.f32 0.0, %v3808
    %v3810 = vpop.f32.mrf.mxu0
    %3811 = vdwg.mxu0
    %v3812 = vadd.f32 %v3610, %v3745
    %v3813 = vadd.f32 %v3611, %v3747
    %v3814 = vadd.f32 %v3612, %v3798
    %v3815 = vadd.f32 %v3613, %v3749
    %v3816 = vadd.f32 %v3614, %v3751
    %v3817 = vadd.f32 %v3615, %v3801
    %v3818 = vadd.f32 %v3616, %v3755
    %v3819 = vadd.f32 %v3617, %v3757
    %v3820 = vadd.f32 %v3618, %v3806
    %v3821 = vadd.f32 %v3619, %v3759
    %v3822 = vadd.f32 %v3620, %v3761
    %v3823 = vadd.f32 %v3621, %v3809
    %3824 = vst [vmem:[#allocation9] sm:$0xff] %v3812
    %3825 = vst [vmem:[#allocation9 + $0x8] sm:$0xff] %v3813
    %3826 = vst [vmem:[#allocation9 + $0x10] sm:$0xff] %v3814
    %3827 = vst [vmem:[#allocation9 + $0x18] sm:$0xff] %v3815
    %3828 = vst [vmem:[#allocation9 + $0x20] sm:$0xff] %v3816
    %3829 = vst [vmem:[#allocation9 + $0x28] sm:$0xff] %v3817
    %3830 = vst [vmem:[#allocation9 + $0x30] sm:$0xff] %v3818
    %3831 = vst [vmem:[#allocation9 + $0x38] sm:$0xff] %v3819
    %3832 = vst [vmem:[#allocation9 + $0x40] sm:$0xff] %v3820
    %3833 = vst [vmem:[#allocation9 + $0x48] sm:$0xff] %v3821
    %3834 = vst [vmem:[#allocation9 + $0x50] sm:$0xff] %v3822
    %3835 = vst [vmem:[#allocation9 + $0x58] sm:$0xff] %v3823
    %v3836 = vld [vmem:[#allocation2 + $0x4] sm:$0xf]
    %v3837 = vld [vmem:[#allocation2 + $0x28] sm:$0xf]
    %v3838 = vld [vmem:[#allocation2 + $0x4c] sm:$0xf]
    %v3839 = vld [vmem:[#allocation2 + $0x70] sm:$0xf]
    %v3840 = vld [vmem:[#allocation2 + $0x10] sm:$0xf]
    %v3841 = vld [vmem:[#allocation2 + $0x34] sm:$0xf]
    %v3842 = vld [vmem:[#allocation2 + $0x58] sm:$0xf]
    %v3843 = vld [vmem:[#allocation2 + $0x7c] sm:$0xf]
    %v3844 = vld [vmem:[#allocation2 + $0x1c] sm:$0xf]
    %v3845 = vld [vmem:[#allocation2 + $0x40] sm:$0xf]
    %v3846 = vld [vmem:[#allocation2 + $0x64] sm:$0xf]
    %v3847 = vld [vmem:[#allocation2 + $0x88] sm:$0xf]
    %v3852 = vunpack.c.l.b16 %v3836
    %v3853 = vunpack.c.l.b16 %v3837
    %v3854 = vunpack.c.l.b16 %v3838
    %v3855 = vunpack.c.l.b16 %v3839
    %v3856 = vpack.c.b16 %v3853, %v3852
    %v3857 = vpack.c.b16 %v3855, %v3854
    %3858 = vrot.lane.b32.xlu0 %v3856, 64
    %v3859 = vpop.permute.xlu0 %3858
    %3860 = vrot.lane.b32.xlu0 %v3857, 64
    %v3861 = vpop.permute.xlu0 %3860
    %v3866 = vunpack.c.l.b16 %v3840
    %v3867 = vunpack.c.l.b16 %v3841
    %v3868 = vunpack.c.l.b16 %v3842
    %v3869 = vunpack.c.l.b16 %v3843
    %v3870 = vpack.c.b16 %v3867, %v3866
    %v3871 = vpack.c.b16 %v3869, %v3868
    %3872 = vrot.lane.b32.xlu0 %v3870, 64
    %v3873 = vpop.permute.xlu0 %3872
    %3874 = vrot.lane.b32.xlu0 %v3871, 64
    %v3875 = vpop.permute.xlu0 %3874
    %v3877 = vsel %vm2546, %v3859, 0
    %v3880 = vsel %vm2546, %v3861, 0
    %v3883 = vsel %vm2546, %v3873, 0
    %v3886 = vsel %vm2546, %v3875, 0
    %3888 = vmatprep.subr.bf16.mxu0 0
    %3889 = vmatpush1.bf16.xpose.msra.mxu0 0
    %3890 = vmatprep.subr.bf16.mxu0 0
    %3891 = vmatpush1.bf16.xpose.msra.mxu0 0
    %3892 = vmatprep.subr.bf16.mxu0 0
    %3893 = vmatpush1.bf16.xpose.msra.mxu0 0
    %3894 = vmatprep.subr.bf16.mxu0 0
    %3895 = vmatpush1.bf16.xpose.msra.mxu0 0
    %3896 = vmatprep.subr.bf16.mxu0 0
    %3897 = vmatpush1.bf16.xpose.msra.mxu0 0
    %3898 = vmatprep.subr.bf16.mxu0 0
    %3899 = vmatpush1.bf16.xpose.msra.mxu0 0
    %3900 = vmatprep.subr.bf16.mxu0 0
    %3901 = vmatpush1.bf16.xpose.msra.mxu0 %v3886
    %3902 = vmatprep.subr.bf16.mxu0 0
    %3903 = vmatpush1.bf16.xpose.msra.mxu0 %v3883
    %3904 = vmatprep.subr.bf16.mxu0 0
    %3905 = vmatpush2.bf16.xpose.msra.mxu0 0
    %3906 = vmatprep.subr.bf16.mxu0 0
    %3907 = vmatpush2.bf16.xpose.msra.mxu0 0
    %3908 = vmatprep.subr.bf16.mxu0 0
    %3909 = vmatpush2.bf16.xpose.msra.mxu0 0
    %3910 = vmatprep.subr.bf16.mxu0 0
    %3911 = vmatpush2.bf16.xpose.msra.mxu0 0
    %3912 = vmatprep.subr.bf16.mxu0 0
    %3913 = vmatpush2.bf16.xpose.msra.mxu0 0
    %3914 = vmatprep.subr.bf16.mxu0 0
    %3915 = vmatpush2.bf16.xpose.msra.mxu0 0
    %3916 = vmatprep.subr.bf16.mxu0 0
    %3917 = vmatpush2.bf16.xpose.msra.mxu0 0
    %3918 = vmatprep.subr.bf16.mxu0 0
    %3919 = vmatpush2.bf16.xpose.msra.mxu0 0
    %3920 = vmatprep.mubr.bf16.mxu0 0
    %3921 = vmatmul.mubr.bf16.gmra.mxu0 %v3877
    %v3922 = vpop.f32.mrf.mxu0
    %v3923 = vadd.f32 0.0, %v3922
    %v3924 = vpop.f32.mrf.mxu0
    %v3925 = vpop.f32.mrf.mxu0
    %v3926 = vadd.f32 0.0, %v3925
    %v3927 = vpop.f32.mrf.mxu0
    %3928 = vmatprep.mubr.bf16.mxu0 0
    %3929 = vmatmul.mubr.bf16.gmra.mxu0 %v3880
    %v3930 = vpop.f32.mrf.mxu0
    %v3931 = vadd.f32 0.0, %v3930
    %v3932 = vpop.f32.mrf.mxu0
    %v3933 = vpop.f32.mrf.mxu0
    %v3934 = vadd.f32 0.0, %v3933
    %v3935 = vpop.f32.mrf.mxu0
    %3936 = vdwg.mxu0
    %v3937 = vsel %vm2510, %v3923, -1e+30
    %v3938 = vsel %vm2511, %v3926, -1e+30
    %v3939 = vsel %vm2512, %v3931, -1e+30
    %v3940 = vsel %vm2513, %v3934, -1e+30
    %v3941 = vsel %vm2612, %v3937, -inf
    %3942 = vmax.xlane.f32.xlu0 %v3941
    %v3943 = vpop.xlane.xlu0 %3942
    %v3944 = vsel %vm2612, %v3938, -inf
    %3945 = vmax.xlane.f32.xlu0 %v3944
    %v3946 = vpop.xlane.xlu0 %3945
    %v3947 = vsel %vm2612, %v3939, -inf
    %3948 = vmax.xlane.f32.xlu0 %v3947
    %v3949 = vpop.xlane.xlu0 %3948
    %v3950 = vsel %vm2612, %v3940, -inf
    %3951 = vmax.xlane.f32.xlu0 %v3950
    %v3952 = vpop.xlane.xlu0 %3951
    %v3953 = vsub.f32 %v3937, %v3943
    %v3954 = vsub.f32 %v3938, %v3946
    %v3955 = vsub.f32 %v3939, %v3949
    %v3956 = vsub.f32 %v3940, %v3952
    %v3957 = vmul.f32 %v3953, 1.442695
    %v3958 = vpow.pop %v3957
    %v3959 = vmul.f32 %v3954, 1.442695
    %v3960 = vpow.pop %v3959
    %v3961 = vmul.f32 %v3955, 1.442695
    %v3962 = vpow.pop %v3961
    %v3963 = vmul.f32 %v3956, 1.442695
    %v3964 = vpow.pop %v3963
    %v3965 = vsel %vm2612, %v3958, 0.0
    %3966 = vadd.xlane.f32.xlu0 %v3965
    %v3967 = vpop.xlane.xlu0 %3966
    %v3968 = vsel %vm2612, %v3960, 0.0
    %3969 = vadd.xlane.f32.xlu0 %v3968
    %v3970 = vpop.xlane.xlu0 %3969
    %v3971 = vsel %vm2612, %v3962, 0.0
    %3972 = vadd.xlane.f32.xlu0 %v3971
    %v3973 = vpop.xlane.xlu0 %3972
    %v3974 = vsel %vm2612, %v3964, 0.0
    %3975 = vadd.xlane.f32.xlu0 %v3974
    %v3976 = vpop.xlane.xlu0 %3975
    %v3977 = vrcp.pop %v3967
    %v3978 = vmul.f32 %v3958, %v3977
    %v3979 = vrcp.pop %v3970
    %v3980 = vmul.f32 %v3960, %v3979
    %v3981 = vrcp.pop %v3973
    %v3982 = vmul.f32 %v3962, %v3981
    %v3983 = vrcp.pop %v3976
    %v3984 = vmul.f32 %v3964, %v3983
    %v3985 = vpack.c.bf16 %v3980, %v3978
    %v3986 = vpack.c.bf16 %v3984, %v3982
    %v3991 = vunpack.c.l.b16 %v3844
    %v3992 = vunpack.c.l.b16 %v3845
    %v3993 = vunpack.c.l.b16 %v3846
    %v3994 = vunpack.c.l.b16 %v3847
    %v3995 = vpack.c.b16 %v3992, %v3991
    %v3996 = vpack.c.b16 %v3994, %v3993
    %3997 = vrot.lane.b32.xlu0 %v3995, 64
    %v3998 = vpop.permute.xlu0 %3997
    %3999 = vrot.lane.b32.xlu0 %v3996, 64
    %v4000 = vpop.permute.xlu0 %3999
    %v4004 = vsel %vm2612, %v3985, 0
    %v4007 = vsel %vm2612, %v3986, 0
    %4009 = vmatprep.subr.bf16.mxu0 0
    %4010 = vmatpush1.bf16.msra.mxu0 0
    %4011 = vmatprep.subr.bf16.mxu0 0
    %4012 = vmatpush1.bf16.msra.mxu0 0
    %4013 = vmatprep.subr.bf16.mxu0 0
    %4014 = vmatpush1.bf16.msra.mxu0 0
    %4015 = vmatprep.subr.bf16.mxu0 0
    %4016 = vmatpush1.bf16.msra.mxu0 0
    %4017 = vmatprep.subr.bf16.mxu0 0
    %4018 = vmatpush1.bf16.msra.mxu0 0
    %4019 = vmatprep.subr.bf16.mxu0 0
    %4020 = vmatpush1.bf16.msra.mxu0 0
    %4021 = vmatprep.subr.bf16.mxu0 0
    %4022 = vmatpush1.bf16.msra.mxu0 %v4000
    %4023 = vmatprep.subr.bf16.mxu0 0
    %4024 = vmatpush1.bf16.msra.mxu0 %v3998
    %4025 = vmatprep.subr.bf16.mxu0 0
    %4026 = vmatpush2.bf16.msra.mxu0 0
    %4027 = vmatprep.subr.bf16.mxu0 0
    %4028 = vmatpush2.bf16.msra.mxu0 0
    %4029 = vmatprep.subr.bf16.mxu0 0
    %4030 = vmatpush2.bf16.msra.mxu0 0
    %4031 = vmatprep.subr.bf16.mxu0 0
    %4032 = vmatpush2.bf16.msra.mxu0 0
    %4033 = vmatprep.subr.bf16.mxu0 0
    %4034 = vmatpush2.bf16.msra.mxu0 0
    %4035 = vmatprep.subr.bf16.mxu0 0
    %4036 = vmatpush2.bf16.msra.mxu0 0
    %4037 = vmatprep.subr.bf16.mxu0 0
    %4038 = vmatpush2.bf16.msra.mxu0 0
    %4039 = vmatprep.subr.bf16.mxu0 0
    %4040 = vmatpush2.bf16.msra.mxu0 0
    %4041 = vmatprep.mubr.bf16.mxu0 0
    %4042 = vmatmul.mubr.bf16.gmra.mxu0 %v4004
    %v4043 = vpop.f32.mrf.mxu0
    %v4044 = vadd.f32 0.0, %v4043
    %v4045 = vpop.f32.mrf.mxu0
    %v4046 = vpop.f32.mrf.mxu0
    %v4047 = vadd.f32 0.0, %v4046
    %v4048 = vpop.f32.mrf.mxu0
    %4049 = vmatprep.mubr.bf16.mxu0 0
    %4050 = vmatmul.mubr.bf16.gmra.mxu0 %v4007
    %v4051 = vpop.f32.mrf.mxu0
    %v4052 = vadd.f32 0.0, %v4051
    %v4053 = vpop.f32.mrf.mxu0
    %v4054 = vpop.f32.mrf.mxu0
    %v4055 = vadd.f32 0.0, %v4054
    %v4056 = vpop.f32.mrf.mxu0
    %4057 = vdwg.mxu0
    %v4058 = vld [vmem:[#allocation9] sm:$0xff]
    %v4059 = vld [vmem:[#allocation9 + $0x8] sm:$0xff]
    %v4060 = vld [vmem:[#allocation9 + $0x10] sm:$0xff]
    %v4061 = vld [vmem:[#allocation9 + $0x18] sm:$0xff]
    %v4062 = vld [vmem:[#allocation9 + $0x20] sm:$0xff]
    %v4063 = vld [vmem:[#allocation9 + $0x28] sm:$0xff]
    %v4064 = vld [vmem:[#allocation9 + $0x30] sm:$0xff]
    %v4065 = vld [vmem:[#allocation9 + $0x38] sm:$0xff]
    %v4066 = vld [vmem:[#allocation9 + $0x40] sm:$0xff]
    %v4067 = vld [vmem:[#allocation9 + $0x48] sm:$0xff]
    %v4068 = vld [vmem:[#allocation9 + $0x50] sm:$0xff]
    %v4069 = vld [vmem:[#allocation9 + $0x58] sm:$0xff]
    %v4070 = vpack.c.bf16 %v4047, %v4044
    %v4071 = vpack.c.bf16 %v4055, %v4052
    %v4072 = vld [vmem:[#allocation8 + $0x120] sm:$0xff]
    %v4073 = vld [vmem:[#allocation8 + $0x128] sm:$0xf]
    %v4074 = vld [vmem:[#allocation8 + $0x12c] sm:$0xff]
    %v4075 = vld [vmem:[#allocation8 + $0x134] sm:$0xf]
    %v4076 = vld [vmem:[#allocation8 + $0x138] sm:$0xff]
    %v4077 = vld [vmem:[#allocation8 + $0x140] sm:$0xf]
    %v4078 = vld [vmem:[#allocation8 + $0x144] sm:$0xff]
    %v4079 = vld [vmem:[#allocation8 + $0x14c] sm:$0xf]
    %v4080 = vld [vmem:[#allocation8 + $0x150] sm:$0xff]
    %v4081 = vld [vmem:[#allocation8 + $0x158] sm:$0xf]
    %v4082 = vld [vmem:[#allocation8 + $0x15c] sm:$0xff]
    %v4083 = vld [vmem:[#allocation8 + $0x164] sm:$0xf]
    %v4084 = vld [vmem:[#allocation8 + $0x168] sm:$0xff]
    %v4085 = vld [vmem:[#allocation8 + $0x170] sm:$0xf]
    %v4086 = vld [vmem:[#allocation8 + $0x174] sm:$0xff]
    %v4087 = vld [vmem:[#allocation8 + $0x17c] sm:$0xf]
    %v4104 = vunpack.c.l.b16 %v4072
    %v4105 = vunpack.c.h.b16 %v4072
    %v4106 = vunpack.c.l.b16 %v4073
    %v4107 = vunpack.c.l.b16 %v4074
    %v4108 = vunpack.c.h.b16 %v4074
    %v4109 = vunpack.c.l.b16 %v4075
    %v4110 = vunpack.c.l.b16 %v4076
    %v4111 = vunpack.c.h.b16 %v4076
    %v4112 = vunpack.c.l.b16 %v4077
    %v4113 = vunpack.c.l.b16 %v4078
    %v4114 = vunpack.c.h.b16 %v4078
    %v4115 = vunpack.c.l.b16 %v4079
    %v4116 = vunpack.c.l.b16 %v4080
    %v4117 = vunpack.c.h.b16 %v4080
    %v4118 = vunpack.c.l.b16 %v4081
    %v4119 = vunpack.c.l.b16 %v4082
    %v4120 = vunpack.c.h.b16 %v4082
    %v4121 = vunpack.c.l.b16 %v4083
    %v4122 = vunpack.c.l.b16 %v4084
    %v4123 = vunpack.c.h.b16 %v4084
    %v4124 = vunpack.c.l.b16 %v4085
    %v4125 = vunpack.c.l.b16 %v4086
    %v4126 = vunpack.c.h.b16 %v4086
    %v4127 = vunpack.c.l.b16 %v4087
    %v4128 = vpack.c.b16 %v4107, %v4104
    %v4129 = vpack.c.b16 %v4108, %v4105
    %v4130 = vpack.c.b16 %v4109, %v4106
    %v4131 = vpack.c.b16 %v4113, %v4110
    %v4132 = vpack.c.b16 %v4114, %v4111
    %v4133 = vpack.c.b16 %v4115, %v4112
    %v4134 = vpack.c.b16 %v4119, %v4116
    %v4135 = vpack.c.b16 %v4120, %v4117
    %v4136 = vpack.c.b16 %v4121, %v4118
    %v4137 = vpack.c.b16 %v4125, %v4122
    %v4138 = vpack.c.b16 %v4126, %v4123
    %v4139 = vpack.c.b16 %v4127, %v4124
    %v4153 = vsel %vm2546, %v4070, 0
    %v4156 = vsel %vm2546, %v4071, 0
    %4158 = vmatprep.subr.bf16.mxu0 0
    %4159 = vmatpush1.bf16.msra.mxu0 0
    %4160 = vmatprep.subr.bf16.mxu0 0
    %4161 = vmatpush1.bf16.msra.mxu0 0
    %4162 = vmatprep.subr.bf16.mxu0 0
    %4163 = vmatpush1.bf16.msra.mxu0 0
    %4164 = vmatprep.subr.bf16.mxu0 0
    %4165 = vmatpush1.bf16.msra.mxu0 0
    %4166 = vmatprep.subr.bf16.mxu0 %v4138
    %4167 = vmatpush1.bf16.msra.mxu0 %v4137
    %4168 = vmatprep.subr.bf16.mxu0 %v4135
    %4169 = vmatpush1.bf16.msra.mxu0 %v4134
    %4170 = vmatprep.subr.bf16.mxu0 %v4132
    %4171 = vmatpush1.bf16.msra.mxu0 %v4131
    %4172 = vmatprep.subr.bf16.mxu0 %v4129
    %4173 = vmatpush1.bf16.msra.mxu0 %v4128
    %4174 = vmatprep.subr.bf16.mxu0 0
    %4175 = vmatpush2.bf16.msra.mxu0 0
    %4176 = vmatprep.subr.bf16.mxu0 0
    %4177 = vmatpush2.bf16.msra.mxu0 0
    %4178 = vmatprep.subr.bf16.mxu0 0
    %4179 = vmatpush2.bf16.msra.mxu0 0
    %4180 = vmatprep.subr.bf16.mxu0 0
    %4181 = vmatpush2.bf16.msra.mxu0 0
    %4182 = vmatprep.subr.bf16.mxu0 0
    %4183 = vmatpush2.bf16.msra.mxu0 0
    %4184 = vmatprep.subr.bf16.mxu0 0
    %4185 = vmatpush2.bf16.msra.mxu0 0
    %4186 = vmatprep.subr.bf16.mxu0 0
    %4187 = vmatpush2.bf16.msra.mxu0 0
    %4188 = vmatprep.subr.bf16.mxu0 0
    %4189 = vmatpush2.bf16.msra.mxu0 0
    %4190 = vmatprep.mubr.bf16.mxu0 0
    %4191 = vmatmul.mubr.bf16.gmra.mxu0 %v4153
    %v4192 = vpop.f32.mrf.mxu0
    %v4193 = vadd.f32 0.0, %v4192
    %v4194 = vpop.f32.mrf.mxu0
    %v4195 = vadd.f32 0.0, %v4194
    %v4196 = vpop.f32.mrf.mxu0
    %v4197 = vadd.f32 0.0, %v4196
    %v4198 = vpop.f32.mrf.mxu0
    %v4199 = vadd.f32 0.0, %v4198
    %4200 = vmatprep.mubr.bf16.mxu0 0
    %4201 = vmatmul.mubr.bf16.gmra.mxu0 %v4156
    %v4202 = vpop.f32.mrf.mxu0
    %v4203 = vadd.f32 0.0, %v4202
    %v4204 = vpop.f32.mrf.mxu0
    %v4205 = vadd.f32 0.0, %v4204
    %v4206 = vpop.f32.mrf.mxu0
    %v4207 = vadd.f32 0.0, %v4206
    %v4208 = vpop.f32.mrf.mxu0
    %v4209 = vadd.f32 0.0, %v4208
    %4210 = vdwg.mxu0
    %4211 = vmatprep.subr.bf16.mxu0 0
    %4212 = vmatpush1.bf16.msra.mxu0 0
    %4213 = vmatprep.subr.bf16.mxu0 0
    %4214 = vmatpush1.bf16.msra.mxu0 0
    %4215 = vmatprep.subr.bf16.mxu0 0
    %4216 = vmatpush1.bf16.msra.mxu0 0
    %4217 = vmatprep.subr.bf16.mxu0 0
    %4218 = vmatpush1.bf16.msra.mxu0 0
    %4219 = vmatprep.subr.bf16.mxu0 0
    %4220 = vmatpush1.bf16.msra.mxu0 %v4139
    %4221 = vmatprep.subr.bf16.mxu0 0
    %4222 = vmatpush1.bf16.msra.mxu0 %v4136
    %4223 = vmatprep.subr.bf16.mxu0 0
    %4224 = vmatpush1.bf16.msra.mxu0 %v4133
    %4225 = vmatprep.subr.bf16.mxu0 0
    %4226 = vmatpush1.bf16.msra.mxu0 %v4130
    %4227 = vmatprep.subr.bf16.mxu0 0
    %4228 = vmatpush2.bf16.msra.mxu0 0
    %4229 = vmatprep.subr.bf16.mxu0 0
    %4230 = vmatpush2.bf16.msra.mxu0 0
    %4231 = vmatprep.subr.bf16.mxu0 0
    %4232 = vmatpush2.bf16.msra.mxu0 0
    %4233 = vmatprep.subr.bf16.mxu0 0
    %4234 = vmatpush2.bf16.msra.mxu0 0
    %4235 = vmatprep.subr.bf16.mxu0 0
    %4236 = vmatpush2.bf16.msra.mxu0 0
    %4237 = vmatprep.subr.bf16.mxu0 0
    %4238 = vmatpush2.bf16.msra.mxu0 0
    %4239 = vmatprep.subr.bf16.mxu0 0
    %4240 = vmatpush2.bf16.msra.mxu0 0
    %4241 = vmatprep.subr.bf16.mxu0 0
    %4242 = vmatpush2.bf16.msra.mxu0 0
    %4243 = vmatprep.mubr.bf16.mxu0 0
    %4244 = vmatmul.mubr.bf16.gmra.mxu0 %v4153
    %v4245 = vpop.f32.mrf.mxu0
    %v4246 = vadd.f32 0.0, %v4245
    %v4247 = vpop.f32.mrf.mxu0
    %v4248 = vpop.f32.mrf.mxu0
    %v4249 = vadd.f32 0.0, %v4248
    %v4250 = vpop.f32.mrf.mxu0
    %4251 = vmatprep.mubr.bf16.mxu0 0
    %4252 = vmatmul.mubr.bf16.gmra.mxu0 %v4156
    %v4253 = vpop.f32.mrf.mxu0
    %v4254 = vadd.f32 0.0, %v4253
    %v4255 = vpop.f32.mrf.mxu0
    %v4256 = vpop.f32.mrf.mxu0
    %v4257 = vadd.f32 0.0, %v4256
    %v4258 = vpop.f32.mrf.mxu0
    %4259 = vdwg.mxu0
    %v4260 = vadd.f32 %v4058, %v4193
    %v4261 = vadd.f32 %v4059, %v4195
    %v4262 = vadd.f32 %v4060, %v4246
    %v4263 = vadd.f32 %v4061, %v4197
    %v4264 = vadd.f32 %v4062, %v4199
    %v4265 = vadd.f32 %v4063, %v4249
    %v4266 = vadd.f32 %v4064, %v4203
    %v4267 = vadd.f32 %v4065, %v4205
    %v4268 = vadd.f32 %v4066, %v4254
    %v4269 = vadd.f32 %v4067, %v4207
    %v4270 = vadd.f32 %v4068, %v4209
    %v4271 = vadd.f32 %v4069, %v4257
    %4272 = vst [vmem:[#allocation9] sm:$0xff] %v4260
    %4273 = vst [vmem:[#allocation9 + $0x8] sm:$0xff] %v4261
    %4274 = vst [vmem:[#allocation9 + $0x10] sm:$0xff] %v4262
    %4275 = vst [vmem:[#allocation9 + $0x18] sm:$0xff] %v4263
    %4276 = vst [vmem:[#allocation9 + $0x20] sm:$0xff] %v4264
    %4277 = vst [vmem:[#allocation9 + $0x28] sm:$0xff] %v4265
    %4278 = vst [vmem:[#allocation9 + $0x30] sm:$0xff] %v4266
    %4279 = vst [vmem:[#allocation9 + $0x38] sm:$0xff] %v4267
    %4280 = vst [vmem:[#allocation9 + $0x40] sm:$0xff] %v4268
    %4281 = vst [vmem:[#allocation9 + $0x48] sm:$0xff] %v4269
    %4282 = vst [vmem:[#allocation9 + $0x50] sm:$0xff] %v4270
    %4283 = vst [vmem:[#allocation9 + $0x58] sm:$0xff] %v4271
    %v4284 = vld [vmem:[#allocation2 + $0x8] sm:$0xf]
    %v4285 = vld [vmem:[#allocation2 + $0x2c] sm:$0xf]
    %v4286 = vld [vmem:[#allocation2 + $0x50] sm:$0xf]
    %v4287 = vld [vmem:[#allocation2 + $0x74] sm:$0xf]
    %v4288 = vld [vmem:[#allocation2 + $0x14] sm:$0xf]
    %v4289 = vld [vmem:[#allocation2 + $0x38] sm:$0xf]
    %v4290 = vld [vmem:[#allocation2 + $0x5c] sm:$0xf]
    %v4291 = vld [vmem:[#allocation2 + $0x80] sm:$0xf]
    %v4292 = vld [vmem:[#allocation2 + $0x20] sm:$0xf]
    %v4293 = vld [vmem:[#allocation2 + $0x44] sm:$0xf]
    %v4294 = vld [vmem:[#allocation2 + $0x68] sm:$0xf]
    %v4295 = vld [vmem:[#allocation2 + $0x8c] sm:$0xf]
    %v4300 = vunpack.c.l.b16 %v4284
    %v4301 = vunpack.c.l.b16 %v4285
    %v4302 = vunpack.c.l.b16 %v4286
    %v4303 = vunpack.c.l.b16 %v4287
    %v4304 = vpack.c.b16 %v4301, %v4300
    %v4305 = vpack.c.b16 %v4303, %v4302
    %v4310 = vunpack.c.l.b16 %v4288
    %v4311 = vunpack.c.l.b16 %v4289
    %v4312 = vunpack.c.l.b16 %v4290
    %v4313 = vunpack.c.l.b16 %v4291
    %v4314 = vpack.c.b16 %v4311, %v4310
    %v4315 = vpack.c.b16 %v4313, %v4312
    %v4317 = vsel %vm2546, %v4304, 0
    %v4320 = vsel %vm2546, %v4305, 0
    %v4323 = vsel %vm2546, %v4314, 0
    %v4326 = vsel %vm2546, %v4315, 0
    %4328 = vmatprep.subr.bf16.mxu0 0
    %4329 = vmatpush1.bf16.xpose.msra.mxu0 0
    %4330 = vmatprep.subr.bf16.mxu0 0
    %4331 = vmatpush1.bf16.xpose.msra.mxu0 0
    %4332 = vmatprep.subr.bf16.mxu0 0
    %4333 = vmatpush1.bf16.xpose.msra.mxu0 0
    %4334 = vmatprep.subr.bf16.mxu0 0
    %4335 = vmatpush1.bf16.xpose.msra.mxu0 0
    %4336 = vmatprep.subr.bf16.mxu0 0
    %4337 = vmatpush1.bf16.xpose.msra.mxu0 0
    %4338 = vmatprep.subr.bf16.mxu0 0
    %4339 = vmatpush1.bf16.xpose.msra.mxu0 0
    %4340 = vmatprep.subr.bf16.mxu0 0
    %4341 = vmatpush1.bf16.xpose.msra.mxu0 %v4326
    %4342 = vmatprep.subr.bf16.mxu0 0
    %4343 = vmatpush1.bf16.xpose.msra.mxu0 %v4323
    %4344 = vmatprep.subr.bf16.mxu0 0
    %4345 = vmatpush2.bf16.xpose.msra.mxu0 0
    %4346 = vmatprep.subr.bf16.mxu0 0
    %4347 = vmatpush2.bf16.xpose.msra.mxu0 0
    %4348 = vmatprep.subr.bf16.mxu0 0
    %4349 = vmatpush2.bf16.xpose.msra.mxu0 0
    %4350 = vmatprep.subr.bf16.mxu0 0
    %4351 = vmatpush2.bf16.xpose.msra.mxu0 0
    %4352 = vmatprep.subr.bf16.mxu0 0
    %4353 = vmatpush2.bf16.xpose.msra.mxu0 0
    %4354 = vmatprep.subr.bf16.mxu0 0
    %4355 = vmatpush2.bf16.xpose.msra.mxu0 0
    %4356 = vmatprep.subr.bf16.mxu0 0
    %4357 = vmatpush2.bf16.xpose.msra.mxu0 0
    %4358 = vmatprep.subr.bf16.mxu0 0
    %4359 = vmatpush2.bf16.xpose.msra.mxu0 0
    %4360 = vmatprep.mubr.bf16.mxu0 0
    %4361 = vmatmul.mubr.bf16.gmra.mxu0 %v4317
    %v4362 = vpop.f32.mrf.mxu0
    %v4363 = vadd.f32 0.0, %v4362
    %v4364 = vpop.f32.mrf.mxu0
    %v4365 = vpop.f32.mrf.mxu0
    %v4366 = vadd.f32 0.0, %v4365
    %v4367 = vpop.f32.mrf.mxu0
    %4368 = vmatprep.mubr.bf16.mxu0 0
    %4369 = vmatmul.mubr.bf16.gmra.mxu0 %v4320
    %v4370 = vpop.f32.mrf.mxu0
    %v4371 = vadd.f32 0.0, %v4370
    %v4372 = vpop.f32.mrf.mxu0
    %v4373 = vpop.f32.mrf.mxu0
    %v4374 = vadd.f32 0.0, %v4373
    %v4375 = vpop.f32.mrf.mxu0
    %4376 = vdwg.mxu0
    %v4377 = vsel %vm2510, %v4363, -1e+30
    %v4378 = vsel %vm2511, %v4366, -1e+30
    %v4379 = vsel %vm2512, %v4371, -1e+30
    %v4380 = vsel %vm2513, %v4374, -1e+30
    %v4381 = vsel %vm2612, %v4377, -inf
    %4382 = vmax.xlane.f32.xlu0 %v4381
    %v4383 = vpop.xlane.xlu0 %4382
    %v4384 = vsel %vm2612, %v4378, -inf
    %4385 = vmax.xlane.f32.xlu0 %v4384
    %v4386 = vpop.xlane.xlu0 %4385
    %v4387 = vsel %vm2612, %v4379, -inf
    %4388 = vmax.xlane.f32.xlu0 %v4387
    %v4389 = vpop.xlane.xlu0 %4388
    %v4390 = vsel %vm2612, %v4380, -inf
    %4391 = vmax.xlane.f32.xlu0 %v4390
    %v4392 = vpop.xlane.xlu0 %4391
    %v4393 = vsub.f32 %v4377, %v4383
    %v4394 = vsub.f32 %v4378, %v4386
    %v4395 = vsub.f32 %v4379, %v4389
    %v4396 = vsub.f32 %v4380, %v4392
    %v4397 = vmul.f32 %v4393, 1.442695
    %v4398 = vpow.pop %v4397
    %v4399 = vmul.f32 %v4394, 1.442695
    %v4400 = vpow.pop %v4399
    %v4401 = vmul.f32 %v4395, 1.442695
    %v4402 = vpow.pop %v4401
    %v4403 = vmul.f32 %v4396, 1.442695
    %v4404 = vpow.pop %v4403
    %v4405 = vsel %vm2612, %v4398, 0.0
    %4406 = vadd.xlane.f32.xlu0 %v4405
    %v4407 = vpop.xlane.xlu0 %4406
    %v4408 = vsel %vm2612, %v4400, 0.0
    %4409 = vadd.xlane.f32.xlu0 %v4408
    %v4410 = vpop.xlane.xlu0 %4409
    %v4411 = vsel %vm2612, %v4402, 0.0
    %4412 = vadd.xlane.f32.xlu0 %v4411
    %v4413 = vpop.xlane.xlu0 %4412
    %v4414 = vsel %vm2612, %v4404, 0.0
    %4415 = vadd.xlane.f32.xlu0 %v4414
    %v4416 = vpop.xlane.xlu0 %4415
    %v4417 = vrcp.pop %v4407
    %v4418 = vmul.f32 %v4398, %v4417
    %v4419 = vrcp.pop %v4410
    %v4420 = vmul.f32 %v4400, %v4419
    %v4421 = vrcp.pop %v4413
    %v4422 = vmul.f32 %v4402, %v4421
    %v4423 = vrcp.pop %v4416
    %v4424 = vmul.f32 %v4404, %v4423
    %v4425 = vpack.c.bf16 %v4420, %v4418
    %v4426 = vpack.c.bf16 %v4424, %v4422
    %v4431 = vunpack.c.l.b16 %v4292
    %v4432 = vunpack.c.l.b16 %v4293
    %v4433 = vunpack.c.l.b16 %v4294
    %v4434 = vunpack.c.l.b16 %v4295
    %v4435 = vpack.c.b16 %v4432, %v4431
    %v4436 = vpack.c.b16 %v4434, %v4433
    %v4440 = vsel %vm2612, %v4425, 0
    %v4443 = vsel %vm2612, %v4426, 0
    %4445 = vmatprep.subr.bf16.mxu0 0
    %4446 = vmatpush1.bf16.msra.mxu0 0
    %4447 = vmatprep.subr.bf16.mxu0 0
    %4448 = vmatpush1.bf16.msra.mxu0 0
    %4449 = vmatprep.subr.bf16.mxu0 0
    %4450 = vmatpush1.bf16.msra.mxu0 0
    %4451 = vmatprep.subr.bf16.mxu0 0
    %4452 = vmatpush1.bf16.msra.mxu0 0
    %4453 = vmatprep.subr.bf16.mxu0 0
    %4454 = vmatpush1.bf16.msra.mxu0 0
    %4455 = vmatprep.subr.bf16.mxu0 0
    %4456 = vmatpush1.bf16.msra.mxu0 0
    %4457 = vmatprep.subr.bf16.mxu0 0
    %4458 = vmatpush1.bf16.msra.mxu0 %v4436
    %4459 = vmatprep.subr.bf16.mxu0 0
    %4460 = vmatpush1.bf16.msra.mxu0 %v4435
    %4461 = vmatprep.subr.bf16.mxu0 0
    %4462 = vmatpush2.bf16.msra.mxu0 0
    %4463 = vmatprep.subr.bf16.mxu0 0
    %4464 = vmatpush2.bf16.msra.mxu0 0
    %4465 = vmatprep.subr.bf16.mxu0 0
    %4466 = vmatpush2.bf16.msra.mxu0 0
    %4467 = vmatprep.subr.bf16.mxu0 0
    %4468 = vmatpush2.bf16.msra.mxu0 0
    %4469 = vmatprep.subr.bf16.mxu0 0
    %4470 = vmatpush2.bf16.msra.mxu0 0
    %4471 = vmatprep.subr.bf16.mxu0 0
    %4472 = vmatpush2.bf16.msra.mxu0 0
    %4473 = vmatprep.subr.bf16.mxu0 0
    %4474 = vmatpush2.bf16.msra.mxu0 0
    %4475 = vmatprep.subr.bf16.mxu0 0
    %4476 = vmatpush2.bf16.msra.mxu0 0
    %4477 = vmatprep.mubr.bf16.mxu0 0
    %4478 = vmatmul.mubr.bf16.gmra.mxu0 %v4440
    %v4479 = vpop.f32.mrf.mxu0
    %v4480 = vadd.f32 0.0, %v4479
    %v4481 = vpop.f32.mrf.mxu0
    %v4482 = vpop.f32.mrf.mxu0
    %v4483 = vadd.f32 0.0, %v4482
    %v4484 = vpop.f32.mrf.mxu0
    %4485 = vmatprep.mubr.bf16.mxu0 0
    %4486 = vmatmul.mubr.bf16.gmra.mxu0 %v4443
    %v4487 = vpop.f32.mrf.mxu0
    %v4488 = vadd.f32 0.0, %v4487
    %v4489 = vpop.f32.mrf.mxu0
    %v4490 = vpop.f32.mrf.mxu0
    %v4491 = vadd.f32 0.0, %v4490
    %v4492 = vpop.f32.mrf.mxu0
    %4493 = vdwg.mxu0
    %v4494 = vld [vmem:[#allocation9] sm:$0xff]
    %v4495 = vld [vmem:[#allocation9 + $0x8] sm:$0xff]
    %v4496 = vld [vmem:[#allocation9 + $0x10] sm:$0xff]
    %v4497 = vld [vmem:[#allocation9 + $0x18] sm:$0xff]
    %v4498 = vld [vmem:[#allocation9 + $0x20] sm:$0xff]
    %v4499 = vld [vmem:[#allocation9 + $0x28] sm:$0xff]
    %v4500 = vld [vmem:[#allocation9 + $0x30] sm:$0xff]
    %v4501 = vld [vmem:[#allocation9 + $0x38] sm:$0xff]
    %v4502 = vld [vmem:[#allocation9 + $0x40] sm:$0xff]
    %v4503 = vld [vmem:[#allocation9 + $0x48] sm:$0xff]
    %v4504 = vld [vmem:[#allocation9 + $0x50] sm:$0xff]
    %v4505 = vld [vmem:[#allocation9 + $0x58] sm:$0xff]
    %v4506 = vpack.c.bf16 %v4483, %v4480
    %v4507 = vpack.c.bf16 %v4491, %v4488
    %v4508 = vld [vmem:[#allocation8 + $0x180] sm:$0xff]
    %v4509 = vld [vmem:[#allocation8 + $0x188] sm:$0xf]
    %v4510 = vld [vmem:[#allocation8 + $0x18c] sm:$0xff]
    %v4511 = vld [vmem:[#allocation8 + $0x194] sm:$0xf]
    %v4512 = vld [vmem:[#allocation8 + $0x198] sm:$0xff]
    %v4513 = vld [vmem:[#allocation8 + $0x1a0] sm:$0xf]
    %v4514 = vld [vmem:[#allocation8 + $0x1a4] sm:$0xff]
    %v4515 = vld [vmem:[#allocation8 + $0x1ac] sm:$0xf]
    %v4516 = vld [vmem:[#allocation8 + $0x1b0] sm:$0xff]
    %v4517 = vld [vmem:[#allocation8 + $0x1b8] sm:$0xf]
    %v4518 = vld [vmem:[#allocation8 + $0x1bc] sm:$0xff]
    %v4519 = vld [vmem:[#allocation8 + $0x1c4] sm:$0xf]
    %v4520 = vld [vmem:[#allocation8 + $0x1c8] sm:$0xff]
    %v4521 = vld [vmem:[#allocation8 + $0x1d0] sm:$0xf]
    %v4522 = vld [vmem:[#allocation8 + $0x1d4] sm:$0xff]
    %v4523 = vld [vmem:[#allocation8 + $0x1dc] sm:$0xf]
    %v4540 = vunpack.c.l.b16 %v4508
    %v4541 = vunpack.c.h.b16 %v4508
    %v4542 = vunpack.c.l.b16 %v4509
    %v4543 = vunpack.c.l.b16 %v4510
    %v4544 = vunpack.c.h.b16 %v4510
    %v4545 = vunpack.c.l.b16 %v4511
    %v4546 = vunpack.c.l.b16 %v4512
    %v4547 = vunpack.c.h.b16 %v4512
    %v4548 = vunpack.c.l.b16 %v4513
    %v4549 = vunpack.c.l.b16 %v4514
    %v4550 = vunpack.c.h.b16 %v4514
    %v4551 = vunpack.c.l.b16 %v4515
    %v4552 = vunpack.c.l.b16 %v4516
    %v4553 = vunpack.c.h.b16 %v4516
    %v4554 = vunpack.c.l.b16 %v4517
    %v4555 = vunpack.c.l.b16 %v4518
    %v4556 = vunpack.c.h.b16 %v4518
    %v4557 = vunpack.c.l.b16 %v4519
    %v4558 = vunpack.c.l.b16 %v4520
    %v4559 = vunpack.c.h.b16 %v4520
    %v4560 = vunpack.c.l.b16 %v4521
    %v4561 = vunpack.c.l.b16 %v4522
    %v4562 = vunpack.c.h.b16 %v4522
    %v4563 = vunpack.c.l.b16 %v4523
    %v4564 = vpack.c.b16 %v4543, %v4540
    %v4565 = vpack.c.b16 %v4544, %v4541
    %v4566 = vpack.c.b16 %v4545, %v4542
    %v4567 = vpack.c.b16 %v4549, %v4546
    %v4568 = vpack.c.b16 %v4550, %v4547
    %v4569 = vpack.c.b16 %v4551, %v4548
    %v4570 = vpack.c.b16 %v4555, %v4552
    %v4571 = vpack.c.b16 %v4556, %v4553
    %v4572 = vpack.c.b16 %v4557, %v4554
    %v4573 = vpack.c.b16 %v4561, %v4558
    %v4574 = vpack.c.b16 %v4562, %v4559
    %v4575 = vpack.c.b16 %v4563, %v4560
    %v4589 = vsel %vm2546, %v4506, 0
    %v4592 = vsel %vm2546, %v4507, 0
    %4594 = vmatprep.subr.bf16.mxu0 0
    %4595 = vmatpush1.bf16.msra.mxu0 0
    %4596 = vmatprep.subr.bf16.mxu0 0
    %4597 = vmatpush1.bf16.msra.mxu0 0
    %4598 = vmatprep.subr.bf16.mxu0 0
    %4599 = vmatpush1.bf16.msra.mxu0 0
    %4600 = vmatprep.subr.bf16.mxu0 0
    %4601 = vmatpush1.bf16.msra.mxu0 0
    %4602 = vmatprep.subr.bf16.mxu0 %v4574
    %4603 = vmatpush1.bf16.msra.mxu0 %v4573
    %4604 = vmatprep.subr.bf16.mxu0 %v4571
    %4605 = vmatpush1.bf16.msra.mxu0 %v4570
    %4606 = vmatprep.subr.bf16.mxu0 %v4568
    %4607 = vmatpush1.bf16.msra.mxu0 %v4567
    %4608 = vmatprep.subr.bf16.mxu0 %v4565
    %4609 = vmatpush1.bf16.msra.mxu0 %v4564
    %4610 = vmatprep.subr.bf16.mxu0 0
    %4611 = vmatpush2.bf16.msra.mxu0 0
    %4612 = vmatprep.subr.bf16.mxu0 0
    %4613 = vmatpush2.bf16.msra.mxu0 0
    %4614 = vmatprep.subr.bf16.mxu0 0
    %4615 = vmatpush2.bf16.msra.mxu0 0
    %4616 = vmatprep.subr.bf16.mxu0 0
    %4617 = vmatpush2.bf16.msra.mxu0 0
    %4618 = vmatprep.subr.bf16.mxu0 0
    %4619 = vmatpush2.bf16.msra.mxu0 0
    %4620 = vmatprep.subr.bf16.mxu0 0
    %4621 = vmatpush2.bf16.msra.mxu0 0
    %4622 = vmatprep.subr.bf16.mxu0 0
    %4623 = vmatpush2.bf16.msra.mxu0 0
    %4624 = vmatprep.subr.bf16.mxu0 0
    %4625 = vmatpush2.bf16.msra.mxu0 0
    %4626 = vmatprep.mubr.bf16.mxu0 0
    %4627 = vmatmul.mubr.bf16.gmra.mxu0 %v4589
    %v4628 = vpop.f32.mrf.mxu0
    %v4629 = vadd.f32 0.0, %v4628
    %v4630 = vpop.f32.mrf.mxu0
    %v4631 = vadd.f32 0.0, %v4630
    %v4632 = vpop.f32.mrf.mxu0
    %v4633 = vadd.f32 0.0, %v4632
    %v4634 = vpop.f32.mrf.mxu0
    %v4635 = vadd.f32 0.0, %v4634
    %4636 = vmatprep.mubr.bf16.mxu0 0
    %4637 = vmatmul.mubr.bf16.gmra.mxu0 %v4592
    %v4638 = vpop.f32.mrf.mxu0
    %v4639 = vadd.f32 0.0, %v4638
    %v4640 = vpop.f32.mrf.mxu0
    %v4641 = vadd.f32 0.0, %v4640
    %v4642 = vpop.f32.mrf.mxu0
    %v4643 = vadd.f32 0.0, %v4642
    %v4644 = vpop.f32.mrf.mxu0
    %v4645 = vadd.f32 0.0, %v4644
    %4646 = vdwg.mxu0
    %4647 = vmatprep.subr.bf16.mxu0 0
    %4648 = vmatpush1.bf16.msra.mxu0 0
    %4649 = vmatprep.subr.bf16.mxu0 0
    %4650 = vmatpush1.bf16.msra.mxu0 0
    %4651 = vmatprep.subr.bf16.mxu0 0
    %4652 = vmatpush1.bf16.msra.mxu0 0
    %4653 = vmatprep.subr.bf16.mxu0 0
    %4654 = vmatpush1.bf16.msra.mxu0 0
    %4655 = vmatprep.subr.bf16.mxu0 0
    %4656 = vmatpush1.bf16.msra.mxu0 %v4575
    %4657 = vmatprep.subr.bf16.mxu0 0
    %4658 = vmatpush1.bf16.msra.mxu0 %v4572
    %4659 = vmatprep.subr.bf16.mxu0 0
    %4660 = vmatpush1.bf16.msra.mxu0 %v4569
    %4661 = vmatprep.subr.bf16.mxu0 0
    %4662 = vmatpush1.bf16.msra.mxu0 %v4566
    %4663 = vmatprep.subr.bf16.mxu0 0
    %4664 = vmatpush2.bf16.msra.mxu0 0
    %4665 = vmatprep.subr.bf16.mxu0 0
    %4666 = vmatpush2.bf16.msra.mxu0 0
    %4667 = vmatprep.subr.bf16.mxu0 0
    %4668 = vmatpush2.bf16.msra.mxu0 0
    %4669 = vmatprep.subr.bf16.mxu0 0
    %4670 = vmatpush2.bf16.msra.mxu0 0
    %4671 = vmatprep.subr.bf16.mxu0 0
    %4672 = vmatpush2.bf16.msra.mxu0 0
    %4673 = vmatprep.subr.bf16.mxu0 0
    %4674 = vmatpush2.bf16.msra.mxu0 0
    %4675 = vmatprep.subr.bf16.mxu0 0
    %4676 = vmatpush2.bf16.msra.mxu0 0
    %4677 = vmatprep.subr.bf16.mxu0 0
    %4678 = vmatpush2.bf16.msra.mxu0 0
    %4679 = vmatprep.mubr.bf16.mxu0 0
    %4680 = vmatmul.mubr.bf16.gmra.mxu0 %v4589
    %v4681 = vpop.f32.mrf.mxu0
    %v4682 = vadd.f32 0.0, %v4681
    %v4683 = vpop.f32.mrf.mxu0
    %v4684 = vpop.f32.mrf.mxu0
    %v4685 = vadd.f32 0.0, %v4684
    %v4686 = vpop.f32.mrf.mxu0
    %4687 = vmatprep.mubr.bf16.mxu0 0
    %4688 = vmatmul.mubr.bf16.gmra.mxu0 %v4592
    %v4689 = vpop.f32.mrf.mxu0
    %v4690 = vadd.f32 0.0, %v4689
    %v4691 = vpop.f32.mrf.mxu0
    %v4692 = vpop.f32.mrf.mxu0
    %v4693 = vadd.f32 0.0, %v4692
    %v4694 = vpop.f32.mrf.mxu0
    %4695 = vdwg.mxu0
    %v4696 = vadd.f32 %v4494, %v4629
    %v4697 = vadd.f32 %v4495, %v4631
    %v4698 = vadd.f32 %v4496, %v4682
    %v4699 = vadd.f32 %v4497, %v4633
    %v4700 = vadd.f32 %v4498, %v4635
    %v4701 = vadd.f32 %v4499, %v4685
    %v4702 = vadd.f32 %v4500, %v4639
    %v4703 = vadd.f32 %v4501, %v4641
    %v4704 = vadd.f32 %v4502, %v4690
    %v4705 = vadd.f32 %v4503, %v4643
    %v4706 = vadd.f32 %v4504, %v4645
    %v4707 = vadd.f32 %v4505, %v4693
    %4708 = vst [vmem:[#allocation9] sm:$0xff] %v4696
    %4709 = vst [vmem:[#allocation9 + $0x8] sm:$0xff] %v4697
    %4710 = vst [vmem:[#allocation9 + $0x10] sm:$0xff] %v4698
    %4711 = vst [vmem:[#allocation9 + $0x18] sm:$0xff] %v4699
    %4712 = vst [vmem:[#allocation9 + $0x20] sm:$0xff] %v4700
    %4713 = vst [vmem:[#allocation9 + $0x28] sm:$0xff] %v4701
    %4714 = vst [vmem:[#allocation9 + $0x30] sm:$0xff] %v4702
    %4715 = vst [vmem:[#allocation9 + $0x38] sm:$0xff] %v4703
    %4716 = vst [vmem:[#allocation9 + $0x40] sm:$0xff] %v4704
    %4717 = vst [vmem:[#allocation9 + $0x48] sm:$0xff] %v4705
    %4718 = vst [vmem:[#allocation9 + $0x50] sm:$0xff] %v4706
    %4719 = vst [vmem:[#allocation9 + $0x58] sm:$0xff] %v4707
    %v4720 = vld [vmem:[#allocation2 + $0x8] sm:$0xf]
    %v4721 = vld [vmem:[#allocation2 + $0x2c] sm:$0xf]
    %v4722 = vld [vmem:[#allocation2 + $0x50] sm:$0xf]
    %v4723 = vld [vmem:[#allocation2 + $0x74] sm:$0xf]
    %v4724 = vld [vmem:[#allocation2 + $0x14] sm:$0xf]
    %v4725 = vld [vmem:[#allocation2 + $0x38] sm:$0xf]
    %v4726 = vld [vmem:[#allocation2 + $0x5c] sm:$0xf]
    %v4727 = vld [vmem:[#allocation2 + $0x80] sm:$0xf]
    %v4728 = vld [vmem:[#allocation2 + $0x20] sm:$0xf]
    %v4729 = vld [vmem:[#allocation2 + $0x44] sm:$0xf]
    %v4730 = vld [vmem:[#allocation2 + $0x68] sm:$0xf]
    %v4731 = vld [vmem:[#allocation2 + $0x8c] sm:$0xf]
    %v4736 = vunpack.c.l.b16 %v4720
    %v4737 = vunpack.c.l.b16 %v4721
    %v4738 = vunpack.c.l.b16 %v4722
    %v4739 = vunpack.c.l.b16 %v4723
    %v4740 = vpack.c.b16 %v4737, %v4736
    %v4741 = vpack.c.b16 %v4739, %v4738
    %4742 = vrot.lane.b32.xlu0 %v4740, 64
    %v4743 = vpop.permute.xlu0 %4742
    %4744 = vrot.lane.b32.xlu0 %v4741, 64
    %v4745 = vpop.permute.xlu0 %4744
    %v4750 = vunpack.c.l.b16 %v4724
    %v4751 = vunpack.c.l.b16 %v4725
    %v4752 = vunpack.c.l.b16 %v4726
    %v4753 = vunpack.c.l.b16 %v4727
    %v4754 = vpack.c.b16 %v4751, %v4750
    %v4755 = vpack.c.b16 %v4753, %v4752
    %4756 = vrot.lane.b32.xlu0 %v4754, 64
    %v4757 = vpop.permute.xlu0 %4756
    %4758 = vrot.lane.b32.xlu0 %v4755, 64
    %v4759 = vpop.permute.xlu0 %4758
    %v4761 = vsel %vm2546, %v4743, 0
    %v4764 = vsel %vm2546, %v4745, 0
    %v4767 = vsel %vm2546, %v4757, 0
    %v4770 = vsel %vm2546, %v4759, 0
    %4772 = vmatprep.subr.bf16.mxu0 0
    %4773 = vmatpush1.bf16.xpose.msra.mxu0 0
    %4774 = vmatprep.subr.bf16.mxu0 0
    %4775 = vmatpush1.bf16.xpose.msra.mxu0 0
    %4776 = vmatprep.subr.bf16.mxu0 0
    %4777 = vmatpush1.bf16.xpose.msra.mxu0 0
    %4778 = vmatprep.subr.bf16.mxu0 0
    %4779 = vmatpush1.bf16.xpose.msra.mxu0 0
    %4780 = vmatprep.subr.bf16.mxu0 0
    %4781 = vmatpush1.bf16.xpose.msra.mxu0 0
    %4782 = vmatprep.subr.bf16.mxu0 0
    %4783 = vmatpush1.bf16.xpose.msra.mxu0 0
    %4784 = vmatprep.subr.bf16.mxu0 0
    %4785 = vmatpush1.bf16.xpose.msra.mxu0 %v4770
    %4786 = vmatprep.subr.bf16.mxu0 0
    %4787 = vmatpush1.bf16.xpose.msra.mxu0 %v4767
    %4788 = vmatprep.subr.bf16.mxu0 0
    %4789 = vmatpush2.bf16.xpose.msra.mxu0 0
    %4790 = vmatprep.subr.bf16.mxu0 0
    %4791 = vmatpush2.bf16.xpose.msra.mxu0 0
    %4792 = vmatprep.subr.bf16.mxu0 0
    %4793 = vmatpush2.bf16.xpose.msra.mxu0 0
    %4794 = vmatprep.subr.bf16.mxu0 0
    %4795 = vmatpush2.bf16.xpose.msra.mxu0 0
    %4796 = vmatprep.subr.bf16.mxu0 0
    %4797 = vmatpush2.bf16.xpose.msra.mxu0 0
    %4798 = vmatprep.subr.bf16.mxu0 0
    %4799 = vmatpush2.bf16.xpose.msra.mxu0 0
    %4800 = vmatprep.subr.bf16.mxu0 0
    %4801 = vmatpush2.bf16.xpose.msra.mxu0 0
    %4802 = vmatprep.subr.bf16.mxu0 0
    %4803 = vmatpush2.bf16.xpose.msra.mxu0 0
    %4804 = vmatprep.mubr.bf16.mxu0 0
    %4805 = vmatmul.mubr.bf16.gmra.mxu0 %v4761
    %v4806 = vpop.f32.mrf.mxu0
    %v4807 = vadd.f32 0.0, %v4806
    %v4808 = vpop.f32.mrf.mxu0
    %v4809 = vpop.f32.mrf.mxu0
    %v4810 = vadd.f32 0.0, %v4809
    %v4811 = vpop.f32.mrf.mxu0
    %4812 = vmatprep.mubr.bf16.mxu0 0
    %4813 = vmatmul.mubr.bf16.gmra.mxu0 %v4764
    %v4814 = vpop.f32.mrf.mxu0
    %v4815 = vadd.f32 0.0, %v4814
    %v4816 = vpop.f32.mrf.mxu0
    %v4817 = vpop.f32.mrf.mxu0
    %v4818 = vadd.f32 0.0, %v4817
    %v4819 = vpop.f32.mrf.mxu0
    %4820 = vdwg.mxu0
    %v4821 = vsel %vm2510, %v4807, -1e+30
    %v4822 = vsel %vm2511, %v4810, -1e+30
    %v4823 = vsel %vm2512, %v4815, -1e+30
    %v4824 = vsel %vm2513, %v4818, -1e+30
    %v4825 = vsel %vm2612, %v4821, -inf
    %4826 = vmax.xlane.f32.xlu0 %v4825
    %v4827 = vpop.xlane.xlu0 %4826
    %v4828 = vsel %vm2612, %v4822, -inf
    %4829 = vmax.xlane.f32.xlu0 %v4828
    %v4830 = vpop.xlane.xlu0 %4829
    %v4831 = vsel %vm2612, %v4823, -inf
    %4832 = vmax.xlane.f32.xlu0 %v4831
    %v4833 = vpop.xlane.xlu0 %4832
    %v4834 = vsel %vm2612, %v4824, -inf
    %4835 = vmax.xlane.f32.xlu0 %v4834
    %v4836 = vpop.xlane.xlu0 %4835
    %v4837 = vsub.f32 %v4821, %v4827
    %v4838 = vsub.f32 %v4822, %v4830
    %v4839 = vsub.f32 %v4823, %v4833
    %v4840 = vsub.f32 %v4824, %v4836
    %v4841 = vmul.f32 %v4837, 1.442695
    %v4842 = vpow.pop %v4841
    %v4843 = vmul.f32 %v4838, 1.442695
    %v4844 = vpow.pop %v4843
    %v4845 = vmul.f32 %v4839, 1.442695
    %v4846 = vpow.pop %v4845
    %v4847 = vmul.f32 %v4840, 1.442695
    %v4848 = vpow.pop %v4847
    %v4849 = vsel %vm2612, %v4842, 0.0
    %4850 = vadd.xlane.f32.xlu0 %v4849
    %v4851 = vpop.xlane.xlu0 %4850
    %v4852 = vsel %vm2612, %v4844, 0.0
    %4853 = vadd.xlane.f32.xlu0 %v4852
    %v4854 = vpop.xlane.xlu0 %4853
    %v4855 = vsel %vm2612, %v4846, 0.0
    %4856 = vadd.xlane.f32.xlu0 %v4855
    %v4857 = vpop.xlane.xlu0 %4856
    %v4858 = vsel %vm2612, %v4848, 0.0
    %4859 = vadd.xlane.f32.xlu0 %v4858
    %v4860 = vpop.xlane.xlu0 %4859
    %v4861 = vrcp.pop %v4851
    %v4862 = vmul.f32 %v4842, %v4861
    %v4863 = vrcp.pop %v4854
    %v4864 = vmul.f32 %v4844, %v4863
    %v4865 = vrcp.pop %v4857
    %v4866 = vmul.f32 %v4846, %v4865
    %v4867 = vrcp.pop %v4860
    %v4868 = vmul.f32 %v4848, %v4867
    %v4869 = vpack.c.bf16 %v4864, %v4862
    %v4870 = vpack.c.bf16 %v4868, %v4866
    %v4875 = vunpack.c.l.b16 %v4728
    %v4876 = vunpack.c.l.b16 %v4729
    %v4877 = vunpack.c.l.b16 %v4730
    %v4878 = vunpack.c.l.b16 %v4731
    %v4879 = vpack.c.b16 %v4876, %v4875
    %v4880 = vpack.c.b16 %v4878, %v4877
    %4881 = vrot.lane.b32.xlu0 %v4879, 64
    %v4882 = vpop.permute.xlu0 %4881
    %4883 = vrot.lane.b32.xlu0 %v4880, 64
    %v4884 = vpop.permute.xlu0 %4883
    %v4888 = vsel %vm2612, %v4869, 0
    %v4891 = vsel %vm2612, %v4870, 0
    %4893 = vmatprep.subr.bf16.mxu0 0
    %4894 = vmatpush1.bf16.msra.mxu0 0
    %4895 = vmatprep.subr.bf16.mxu0 0
    %4896 = vmatpush1.bf16.msra.mxu0 0
    %4897 = vmatprep.subr.bf16.mxu0 0
    %4898 = vmatpush1.bf16.msra.mxu0 0
    %4899 = vmatprep.subr.bf16.mxu0 0
    %4900 = vmatpush1.bf16.msra.mxu0 0
    %4901 = vmatprep.subr.bf16.mxu0 0
    %4902 = vmatpush1.bf16.msra.mxu0 0
    %4903 = vmatprep.subr.bf16.mxu0 0
    %4904 = vmatpush1.bf16.msra.mxu0 0
    %4905 = vmatprep.subr.bf16.mxu0 0
    %4906 = vmatpush1.bf16.msra.mxu0 %v4884
    %4907 = vmatprep.subr.bf16.mxu0 0
    %4908 = vmatpush1.bf16.msra.mxu0 %v4882
    %4909 = vmatprep.subr.bf16.mxu0 0
    %4910 = vmatpush2.bf16.msra.mxu0 0
    %4911 = vmatprep.subr.bf16.mxu0 0
    %4912 = vmatpush2.bf16.msra.mxu0 0
    %4913 = vmatprep.subr.bf16.mxu0 0
    %4914 = vmatpush2.bf16.msra.mxu0 0
    %4915 = vmatprep.subr.bf16.mxu0 0
    %4916 = vmatpush2.bf16.msra.mxu0 0
    %4917 = vmatprep.subr.bf16.mxu0 0
    %4918 = vmatpush2.bf16.msra.mxu0 0
    %4919 = vmatprep.subr.bf16.mxu0 0
    %4920 = vmatpush2.bf16.msra.mxu0 0
    %4921 = vmatprep.subr.bf16.mxu0 0
    %4922 = vmatpush2.bf16.msra.mxu0 0
    %4923 = vmatprep.subr.bf16.mxu0 0
    %4924 = vmatpush2.bf16.msra.mxu0 0
    %4925 = vmatprep.mubr.bf16.mxu0 0
    %4926 = vmatmul.mubr.bf16.gmra.mxu0 %v4888
    %v4927 = vpop.f32.mrf.mxu0
    %v4928 = vadd.f32 0.0, %v4927
    %v4929 = vpop.f32.mrf.mxu0
    %v4930 = vpop.f32.mrf.mxu0
    %v4931 = vadd.f32 0.0, %v4930
    %v4932 = vpop.f32.mrf.mxu0
    %4933 = vmatprep.mubr.bf16.mxu0 0
    %4934 = vmatmul.mubr.bf16.gmra.mxu0 %v4891
    %v4935 = vpop.f32.mrf.mxu0
    %v4936 = vadd.f32 0.0, %v4935
    %v4937 = vpop.f32.mrf.mxu0
    %v4938 = vpop.f32.mrf.mxu0
    %v4939 = vadd.f32 0.0, %v4938
    %v4940 = vpop.f32.mrf.mxu0
    %4941 = vdwg.mxu0
    %v4942 = vld [vmem:[#allocation9] sm:$0xff]
    %v4943 = vld [vmem:[#allocation9 + $0x8] sm:$0xff]
    %v4944 = vld [vmem:[#allocation9 + $0x10] sm:$0xff]
    %v4945 = vld [vmem:[#allocation9 + $0x18] sm:$0xff]
    %v4946 = vld [vmem:[#allocation9 + $0x20] sm:$0xff]
    %v4947 = vld [vmem:[#allocation9 + $0x28] sm:$0xff]
    %v4948 = vld [vmem:[#allocation9 + $0x30] sm:$0xff]
    %v4949 = vld [vmem:[#allocation9 + $0x38] sm:$0xff]
    %v4950 = vld [vmem:[#allocation9 + $0x40] sm:$0xff]
    %v4951 = vld [vmem:[#allocation9 + $0x48] sm:$0xff]
    %v4952 = vld [vmem:[#allocation9 + $0x50] sm:$0xff]
    %v4953 = vld [vmem:[#allocation9 + $0x58] sm:$0xff]
    %v4954 = vpack.c.bf16 %v4931, %v4928
    %v4955 = vpack.c.bf16 %v4939, %v4936
    %v4956 = vld [vmem:[#allocation8 + $0x1e0] sm:$0xff]
    %v4957 = vld [vmem:[#allocation8 + $0x1e8] sm:$0xf]
    %v4958 = vld [vmem:[#allocation8 + $0x1ec] sm:$0xff]
    %v4959 = vld [vmem:[#allocation8 + $0x1f4] sm:$0xf]
    %v4960 = vld [vmem:[#allocation8 + $0x1f8] sm:$0xff]
    %v4961 = vld [vmem:[#allocation8 + $0x200] sm:$0xf]
    %v4962 = vld [vmem:[#allocation8 + $0x204] sm:$0xff]
    %v4963 = vld [vmem:[#allocation8 + $0x20c] sm:$0xf]
    %v4964 = vld [vmem:[#allocation8 + $0x210] sm:$0xff]
    %v4965 = vld [vmem:[#allocation8 + $0x218] sm:$0xf]
    %v4966 = vld [vmem:[#allocation8 + $0x21c] sm:$0xff]
    %v4967 = vld [vmem:[#allocation8 + $0x224] sm:$0xf]
    %v4968 = vld [vmem:[#allocation8 + $0x228] sm:$0xff]
    %v4969 = vld [vmem:[#allocation8 + $0x230] sm:$0xf]
    %v4970 = vld [vmem:[#allocation8 + $0x234] sm:$0xff]
    %v4971 = vld [vmem:[#allocation8 + $0x23c] sm:$0xf]
    %v4988 = vunpack.c.l.b16 %v4956
    %v4989 = vunpack.c.h.b16 %v4956
    %v4990 = vunpack.c.l.b16 %v4957
    %v4991 = vunpack.c.l.b16 %v4958
    %v4992 = vunpack.c.h.b16 %v4958
    %v4993 = vunpack.c.l.b16 %v4959
    %v4994 = vunpack.c.l.b16 %v4960
    %v4995 = vunpack.c.h.b16 %v4960
    %v4996 = vunpack.c.l.b16 %v4961
    %v4997 = vunpack.c.l.b16 %v4962
    %v4998 = vunpack.c.h.b16 %v4962
    %v4999 = vunpack.c.l.b16 %v4963
    %v5000 = vunpack.c.l.b16 %v4964
    %v5001 = vunpack.c.h.b16 %v4964
    %v5002 = vunpack.c.l.b16 %v4965
    %v5003 = vunpack.c.l.b16 %v4966
    %v5004 = vunpack.c.h.b16 %v4966
    %v5005 = vunpack.c.l.b16 %v4967
    %v5006 = vunpack.c.l.b16 %v4968
    %v5007 = vunpack.c.h.b16 %v4968
    %v5008 = vunpack.c.l.b16 %v4969
    %v5009 = vunpack.c.l.b16 %v4970
    %v5010 = vunpack.c.h.b16 %v4970
    %v5011 = vunpack.c.l.b16 %v4971
    %v5012 = vpack.c.b16 %v4991, %v4988
    %v5013 = vpack.c.b16 %v4992, %v4989
    %v5014 = vpack.c.b16 %v4993, %v4990
    %v5015 = vpack.c.b16 %v4997, %v4994
    %v5016 = vpack.c.b16 %v4998, %v4995
    %v5017 = vpack.c.b16 %v4999, %v4996
    %v5018 = vpack.c.b16 %v5003, %v5000
    %v5019 = vpack.c.b16 %v5004, %v5001
    %v5020 = vpack.c.b16 %v5005, %v5002
    %v5021 = vpack.c.b16 %v5009, %v5006
    %v5022 = vpack.c.b16 %v5010, %v5007
    %v5023 = vpack.c.b16 %v5011, %v5008
    %v5037 = vsel %vm2546, %v4954, 0
    %v5040 = vsel %vm2546, %v4955, 0
    %5042 = vmatprep.subr.bf16.mxu0 0
    %5043 = vmatpush1.bf16.msra.mxu0 0
    %5044 = vmatprep.subr.bf16.mxu0 0
    %5045 = vmatpush1.bf16.msra.mxu0 0
    %5046 = vmatprep.subr.bf16.mxu0 0
    %5047 = vmatpush1.bf16.msra.mxu0 0
    %5048 = vmatprep.subr.bf16.mxu0 0
    %5049 = vmatpush1.bf16.msra.mxu0 0
    %5050 = vmatprep.subr.bf16.mxu0 %v5022
    %5051 = vmatpush1.bf16.msra.mxu0 %v5021
    %5052 = vmatprep.subr.bf16.mxu0 %v5019
    %5053 = vmatpush1.bf16.msra.mxu0 %v5018
    %5054 = vmatprep.subr.bf16.mxu0 %v5016
    %5055 = vmatpush1.bf16.msra.mxu0 %v5015
    %5056 = vmatprep.subr.bf16.mxu0 %v5013
    %5057 = vmatpush1.bf16.msra.mxu0 %v5012
    %5058 = vmatprep.subr.bf16.mxu0 0
    %5059 = vmatpush2.bf16.msra.mxu0 0
    %5060 = vmatprep.subr.bf16.mxu0 0
    %5061 = vmatpush2.bf16.msra.mxu0 0
    %5062 = vmatprep.subr.bf16.mxu0 0
    %5063 = vmatpush2.bf16.msra.mxu0 0
    %5064 = vmatprep.subr.bf16.mxu0 0
    %5065 = vmatpush2.bf16.msra.mxu0 0
    %5066 = vmatprep.subr.bf16.mxu0 0
    %5067 = vmatpush2.bf16.msra.mxu0 0
    %5068 = vmatprep.subr.bf16.mxu0 0
    %5069 = vmatpush2.bf16.msra.mxu0 0
    %5070 = vmatprep.subr.bf16.mxu0 0
    %5071 = vmatpush2.bf16.msra.mxu0 0
    %5072 = vmatprep.subr.bf16.mxu0 0
    %5073 = vmatpush2.bf16.msra.mxu0 0
    %5074 = vmatprep.mubr.bf16.mxu0 0
    %5075 = vmatmul.mubr.bf16.gmra.mxu0 %v5037
    %v5076 = vpop.f32.mrf.mxu0
    %v5077 = vadd.f32 0.0, %v5076
    %v5078 = vpop.f32.mrf.mxu0
    %v5079 = vadd.f32 0.0, %v5078
    %v5080 = vpop.f32.mrf.mxu0
    %v5081 = vadd.f32 0.0, %v5080
    %v5082 = vpop.f32.mrf.mxu0
    %v5083 = vadd.f32 0.0, %v5082
    %5084 = vmatprep.mubr.bf16.mxu0 0
    %5085 = vmatmul.mubr.bf16.gmra.mxu0 %v5040
    %v5086 = vpop.f32.mrf.mxu0
    %v5087 = vadd.f32 0.0, %v5086
    %v5088 = vpop.f32.mrf.mxu0
    %v5089 = vadd.f32 0.0, %v5088
    %v5090 = vpop.f32.mrf.mxu0
    %v5091 = vadd.f32 0.0, %v5090
    %v5092 = vpop.f32.mrf.mxu0
    %v5093 = vadd.f32 0.0, %v5092
    %5094 = vdwg.mxu0
    %5095 = vmatprep.subr.bf16.mxu0 0
    %5096 = vmatpush1.bf16.msra.mxu0 0
    %5097 = vmatprep.subr.bf16.mxu0 0
    %5098 = vmatpush1.bf16.msra.mxu0 0
    %5099 = vmatprep.subr.bf16.mxu0 0
    %5100 = vmatpush1.bf16.msra.mxu0 0
    %5101 = vmatprep.subr.bf16.mxu0 0
    %5102 = vmatpush1.bf16.msra.mxu0 0
    %5103 = vmatprep.subr.bf16.mxu0 0
    %5104 = vmatpush1.bf16.msra.mxu0 %v5023
    %5105 = vmatprep.subr.bf16.mxu0 0
    %5106 = vmatpush1.bf16.msra.mxu0 %v5020
    %5107 = vmatprep.subr.bf16.mxu0 0
    %5108 = vmatpush1.bf16.msra.mxu0 %v5017
    %5109 = vmatprep.subr.bf16.mxu0 0
    %5110 = vmatpush1.bf16.msra.mxu0 %v5014
    %5111 = vmatprep.subr.bf16.mxu0 0
    %5112 = vmatpush2.bf16.msra.mxu0 0
    %5113 = vmatprep.subr.bf16.mxu0 0
    %5114 = vmatpush2.bf16.msra.mxu0 0
    %5115 = vmatprep.subr.bf16.mxu0 0
    %5116 = vmatpush2.bf16.msra.mxu0 0
    %5117 = vmatprep.subr.bf16.mxu0 0
    %5118 = vmatpush2.bf16.msra.mxu0 0
    %5119 = vmatprep.subr.bf16.mxu0 0
    %5120 = vmatpush2.bf16.msra.mxu0 0
    %5121 = vmatprep.subr.bf16.mxu0 0
    %5122 = vmatpush2.bf16.msra.mxu0 0
    %5123 = vmatprep.subr.bf16.mxu0 0
    %5124 = vmatpush2.bf16.msra.mxu0 0
    %5125 = vmatprep.subr.bf16.mxu0 0
    %5126 = vmatpush2.bf16.msra.mxu0 0
    %5127 = vmatprep.mubr.bf16.mxu0 0
    %5128 = vmatmul.mubr.bf16.gmra.mxu0 %v5037
    %v5129 = vpop.f32.mrf.mxu0
    %v5130 = vadd.f32 0.0, %v5129
    %v5131 = vpop.f32.mrf.mxu0
    %v5132 = vpop.f32.mrf.mxu0
    %v5133 = vadd.f32 0.0, %v5132
    %v5134 = vpop.f32.mrf.mxu0
    %5135 = vmatprep.mubr.bf16.mxu0 0
    %5136 = vmatmul.mubr.bf16.gmra.mxu0 %v5040
    %v5137 = vpop.f32.mrf.mxu0
    %v5138 = vadd.f32 0.0, %v5137
    %v5139 = vpop.f32.mrf.mxu0
    %v5140 = vpop.f32.mrf.mxu0
    %v5141 = vadd.f32 0.0, %v5140
    %v5142 = vpop.f32.mrf.mxu0
    %5143 = vdwg.mxu0
    %v5144 = vadd.f32 %v4942, %v5077
    %v5145 = vadd.f32 %v4943, %v5079
    %v5146 = vadd.f32 %v4944, %v5130
    %v5147 = vadd.f32 %v4945, %v5081
    %v5148 = vadd.f32 %v4946, %v5083
    %v5149 = vadd.f32 %v4947, %v5133
    %v5150 = vadd.f32 %v4948, %v5087
    %v5151 = vadd.f32 %v4949, %v5089
    %v5152 = vadd.f32 %v4950, %v5138
    %v5153 = vadd.f32 %v4951, %v5091
    %v5154 = vadd.f32 %v4952, %v5093
    %v5155 = vadd.f32 %v4953, %v5141
    %5156 = vst [vmem:[#allocation9] sm:$0xff] %v5144
    %5157 = vst [vmem:[#allocation9 + $0x8] sm:$0xff] %v5145
    %5158 = vst [vmem:[#allocation9 + $0x10] sm:$0xff] %v5146
    %5159 = vst [vmem:[#allocation9 + $0x18] sm:$0xff] %v5147
    %5160 = vst [vmem:[#allocation9 + $0x20] sm:$0xff] %v5148
    %5161 = vst [vmem:[#allocation9 + $0x28] sm:$0xff] %v5149
    %5162 = vst [vmem:[#allocation9 + $0x30] sm:$0xff] %v5150
    %5163 = vst [vmem:[#allocation9 + $0x38] sm:$0xff] %v5151
    %5164 = vst [vmem:[#allocation9 + $0x40] sm:$0xff] %v5152
    %5165 = vst [vmem:[#allocation9 + $0x48] sm:$0xff] %v5153
    %5166 = vst [vmem:[#allocation9 + $0x50] sm:$0xff] %v5154
    %5167 = vst [vmem:[#allocation9 + $0x58] sm:$0xff] %v5155
    %v5168 = vld [vmem:[#allocation2 + $0x90] sm:$0xf]
    %v5169 = vld [vmem:[#allocation2 + $0xb4] sm:$0xf]
    %v5170 = vld [vmem:[#allocation2 + $0xd8] sm:$0xf]
    %v5171 = vld [vmem:[#allocation2 + $0xfc] sm:$0xf]
    %v5172 = vld [vmem:[#allocation2 + $0x9c] sm:$0xf]
    %v5173 = vld [vmem:[#allocation2 + $0xc0] sm:$0xf]
    %v5174 = vld [vmem:[#allocation2 + $0xe4] sm:$0xf]
    %v5175 = vld [vmem:[#allocation2 + $0x108] sm:$0xf]
    %v5176 = vld [vmem:[#allocation2 + $0xa8] sm:$0xf]
    %v5177 = vld [vmem:[#allocation2 + $0xcc] sm:$0xf]
    %v5178 = vld [vmem:[#allocation2 + $0xf0] sm:$0xf]
    %v5179 = vld [vmem:[#allocation2 + $0x114] sm:$0xf]
    %v5184 = vunpack.c.l.b16 %v5168
    %v5185 = vunpack.c.l.b16 %v5169
    %v5186 = vunpack.c.l.b16 %v5170
    %v5187 = vunpack.c.l.b16 %v5171
    %v5188 = vpack.c.b16 %v5185, %v5184
    %v5189 = vpack.c.b16 %v5187, %v5186
    %v5194 = vunpack.c.l.b16 %v5172
    %v5195 = vunpack.c.l.b16 %v5173
    %v5196 = vunpack.c.l.b16 %v5174
    %v5197 = vunpack.c.l.b16 %v5175
    %v5198 = vpack.c.b16 %v5195, %v5194
    %v5199 = vpack.c.b16 %v5197, %v5196
    %v5201 = vsel %vm2546, %v5188, 0
    %v5204 = vsel %vm2546, %v5189, 0
    %v5207 = vsel %vm2546, %v5198, 0
    %v5210 = vsel %vm2546, %v5199, 0
    %5212 = vmatprep.subr.bf16.mxu0 0
    %5213 = vmatpush1.bf16.xpose.msra.mxu0 0
    %5214 = vmatprep.subr.bf16.mxu0 0
    %5215 = vmatpush1.bf16.xpose.msra.mxu0 0
    %5216 = vmatprep.subr.bf16.mxu0 0
    %5217 = vmatpush1.bf16.xpose.msra.mxu0 0
    %5218 = vmatprep.subr.bf16.mxu0 0
    %5219 = vmatpush1.bf16.xpose.msra.mxu0 0
    %5220 = vmatprep.subr.bf16.mxu0 0
    %5221 = vmatpush1.bf16.xpose.msra.mxu0 0
    %5222 = vmatprep.subr.bf16.mxu0 0
    %5223 = vmatpush1.bf16.xpose.msra.mxu0 0
    %5224 = vmatprep.subr.bf16.mxu0 0
    %5225 = vmatpush1.bf16.xpose.msra.mxu0 %v5210
    %5226 = vmatprep.subr.bf16.mxu0 0
    %5227 = vmatpush1.bf16.xpose.msra.mxu0 %v5207
    %5228 = vmatprep.subr.bf16.mxu0 0
    %5229 = vmatpush2.bf16.xpose.msra.mxu0 0
    %5230 = vmatprep.subr.bf16.mxu0 0
    %5231 = vmatpush2.bf16.xpose.msra.mxu0 0
    %5232 = vmatprep.subr.bf16.mxu0 0
    %5233 = vmatpush2.bf16.xpose.msra.mxu0 0
    %5234 = vmatprep.subr.bf16.mxu0 0
    %5235 = vmatpush2.bf16.xpose.msra.mxu0 0
    %5236 = vmatprep.subr.bf16.mxu0 0
    %5237 = vmatpush2.bf16.xpose.msra.mxu0 0
    %5238 = vmatprep.subr.bf16.mxu0 0
    %5239 = vmatpush2.bf16.xpose.msra.mxu0 0
    %5240 = vmatprep.subr.bf16.mxu0 0
    %5241 = vmatpush2.bf16.xpose.msra.mxu0 0
    %5242 = vmatprep.subr.bf16.mxu0 0
    %5243 = vmatpush2.bf16.xpose.msra.mxu0 0
    %5244 = vmatprep.mubr.bf16.mxu0 0
    %5245 = vmatmul.mubr.bf16.gmra.mxu0 %v5201
    %v5246 = vpop.f32.mrf.mxu0
    %v5247 = vadd.f32 0.0, %v5246
    %v5248 = vpop.f32.mrf.mxu0
    %v5249 = vpop.f32.mrf.mxu0
    %v5250 = vadd.f32 0.0, %v5249
    %v5251 = vpop.f32.mrf.mxu0
    %5252 = vmatprep.mubr.bf16.mxu0 0
    %5253 = vmatmul.mubr.bf16.gmra.mxu0 %v5204
    %v5254 = vpop.f32.mrf.mxu0
    %v5255 = vadd.f32 0.0, %v5254
    %v5256 = vpop.f32.mrf.mxu0
    %v5257 = vpop.f32.mrf.mxu0
    %v5258 = vadd.f32 0.0, %v5257
    %v5259 = vpop.f32.mrf.mxu0
    %5260 = vdwg.mxu0
    %v5261 = vsel %vm2510, %v5247, -1e+30
    %v5262 = vsel %vm2511, %v5250, -1e+30
    %v5263 = vsel %vm2512, %v5255, -1e+30
    %v5264 = vsel %vm2513, %v5258, -1e+30
    %v5265 = vsel %vm2612, %v5261, -inf
    %5266 = vmax.xlane.f32.xlu0 %v5265
    %v5267 = vpop.xlane.xlu0 %5266
    %v5268 = vsel %vm2612, %v5262, -inf
    %5269 = vmax.xlane.f32.xlu0 %v5268
    %v5270 = vpop.xlane.xlu0 %5269
    %v5271 = vsel %vm2612, %v5263, -inf
    %5272 = vmax.xlane.f32.xlu0 %v5271
    %v5273 = vpop.xlane.xlu0 %5272
    %v5274 = vsel %vm2612, %v5264, -inf
    %5275 = vmax.xlane.f32.xlu0 %v5274
    %v5276 = vpop.xlane.xlu0 %5275
    %v5277 = vsub.f32 %v5261, %v5267
    %v5278 = vsub.f32 %v5262, %v5270
    %v5279 = vsub.f32 %v5263, %v5273
    %v5280 = vsub.f32 %v5264, %v5276
    %v5281 = vmul.f32 %v5277, 1.442695
    %v5282 = vpow.pop %v5281
    %v5283 = vmul.f32 %v5278, 1.442695
    %v5284 = vpow.pop %v5283
    %v5285 = vmul.f32 %v5279, 1.442695
    %v5286 = vpow.pop %v5285
    %v5287 = vmul.f32 %v5280, 1.442695
    %v5288 = vpow.pop %v5287
    %v5289 = vsel %vm2612, %v5282, 0.0
    %5290 = vadd.xlane.f32.xlu0 %v5289
    %v5291 = vpop.xlane.xlu0 %5290
    %v5292 = vsel %vm2612, %v5284, 0.0
    %5293 = vadd.xlane.f32.xlu0 %v5292
    %v5294 = vpop.xlane.xlu0 %5293
    %v5295 = vsel %vm2612, %v5286, 0.0
    %5296 = vadd.xlane.f32.xlu0 %v5295
    %v5297 = vpop.xlane.xlu0 %5296
    %v5298 = vsel %vm2612, %v5288, 0.0
    %5299 = vadd.xlane.f32.xlu0 %v5298
    %v5300 = vpop.xlane.xlu0 %5299
    %v5301 = vrcp.pop %v5291
    %v5302 = vmul.f32 %v5282, %v5301
    %v5303 = vrcp.pop %v5294
    %v5304 = vmul.f32 %v5284, %v5303
    %v5305 = vrcp.pop %v5297
    %v5306 = vmul.f32 %v5286, %v5305
    %v5307 = vrcp.pop %v5300
    %v5308 = vmul.f32 %v5288, %v5307
    %v5309 = vpack.c.bf16 %v5304, %v5302
    %v5310 = vpack.c.bf16 %v5308, %v5306
    %v5315 = vunpack.c.l.b16 %v5176
    %v5316 = vunpack.c.l.b16 %v5177
    %v5317 = vunpack.c.l.b16 %v5178
    %v5318 = vunpack.c.l.b16 %v5179
    %v5319 = vpack.c.b16 %v5316, %v5315
    %v5320 = vpack.c.b16 %v5318, %v5317
    %v5324 = vsel %vm2612, %v5309, 0
    %v5327 = vsel %vm2612, %v5310, 0
    %5329 = vmatprep.subr.bf16.mxu0 0
    %5330 = vmatpush1.bf16.msra.mxu0 0
    %5331 = vmatprep.subr.bf16.mxu0 0
    %5332 = vmatpush1.bf16.msra.mxu0 0
    %5333 = vmatprep.subr.bf16.mxu0 0
    %5334 = vmatpush1.bf16.msra.mxu0 0
    %5335 = vmatprep.subr.bf16.mxu0 0
    %5336 = vmatpush1.bf16.msra.mxu0 0
    %5337 = vmatprep.subr.bf16.mxu0 0
    %5338 = vmatpush1.bf16.msra.mxu0 0
    %5339 = vmatprep.subr.bf16.mxu0 0
    %5340 = vmatpush1.bf16.msra.mxu0 0
    %5341 = vmatprep.subr.bf16.mxu0 0
    %5342 = vmatpush1.bf16.msra.mxu0 %v5320
    %5343 = vmatprep.subr.bf16.mxu0 0
    %5344 = vmatpush1.bf16.msra.mxu0 %v5319
    %5345 = vmatprep.subr.bf16.mxu0 0
    %5346 = vmatpush2.bf16.msra.mxu0 0
    %5347 = vmatprep.subr.bf16.mxu0 0
    %5348 = vmatpush2.bf16.msra.mxu0 0
    %5349 = vmatprep.subr.bf16.mxu0 0
    %5350 = vmatpush2.bf16.msra.mxu0 0
    %5351 = vmatprep.subr.bf16.mxu0 0
    %5352 = vmatpush2.bf16.msra.mxu0 0
    %5353 = vmatprep.subr.bf16.mxu0 0
    %5354 = vmatpush2.bf16.msra.mxu0 0
    %5355 = vmatprep.subr.bf16.mxu0 0
    %5356 = vmatpush2.bf16.msra.mxu0 0
    %5357 = vmatprep.subr.bf16.mxu0 0
    %5358 = vmatpush2.bf16.msra.mxu0 0
    %5359 = vmatprep.subr.bf16.mxu0 0
    %5360 = vmatpush2.bf16.msra.mxu0 0
    %5361 = vmatprep.mubr.bf16.mxu0 0
    %5362 = vmatmul.mubr.bf16.gmra.mxu0 %v5324
    %v5363 = vpop.f32.mrf.mxu0
    %v5364 = vadd.f32 0.0, %v5363
    %v5365 = vpop.f32.mrf.mxu0
    %v5366 = vpop.f32.mrf.mxu0
    %v5367 = vadd.f32 0.0, %v5366
    %v5368 = vpop.f32.mrf.mxu0
    %5369 = vmatprep.mubr.bf16.mxu0 0
    %5370 = vmatmul.mubr.bf16.gmra.mxu0 %v5327
    %v5371 = vpop.f32.mrf.mxu0
    %v5372 = vadd.f32 0.0, %v5371
    %v5373 = vpop.f32.mrf.mxu0
    %v5374 = vpop.f32.mrf.mxu0
    %v5375 = vadd.f32 0.0, %v5374
    %v5376 = vpop.f32.mrf.mxu0
    %5377 = vdwg.mxu0
    %v5378 = vld [vmem:[#allocation9 + $0x60] sm:$0xff]
    %v5379 = vld [vmem:[#allocation9 + $0x68] sm:$0xff]
    %v5380 = vld [vmem:[#allocation9 + $0x70] sm:$0xff]
    %v5381 = vld [vmem:[#allocation9 + $0x78] sm:$0xff]
    %v5382 = vld [vmem:[#allocation9 + $0x80] sm:$0xff]
    %v5383 = vld [vmem:[#allocation9 + $0x88] sm:$0xff]
    %v5384 = vld [vmem:[#allocation9 + $0x90] sm:$0xff]
    %v5385 = vld [vmem:[#allocation9 + $0x98] sm:$0xff]
    %v5386 = vld [vmem:[#allocation9 + $0xa0] sm:$0xff]
    %v5387 = vld [vmem:[#allocation9 + $0xa8] sm:$0xff]
    %v5388 = vld [vmem:[#allocation9 + $0xb0] sm:$0xff]
    %v5389 = vld [vmem:[#allocation9 + $0xb8] sm:$0xff]
    %v5390 = vpack.c.bf16 %v5367, %v5364
    %v5391 = vpack.c.bf16 %v5375, %v5372
    %v5392 = vld [vmem:[#allocation8] sm:$0xff]
    %v5393 = vld [vmem:[#allocation8 + $0x8] sm:$0xf]
    %v5394 = vld [vmem:[#allocation8 + $0xc] sm:$0xff]
    %v5395 = vld [vmem:[#allocation8 + $0x14] sm:$0xf]
    %v5396 = vld [vmem:[#allocation8 + $0x18] sm:$0xff]
    %v5397 = vld [vmem:[#allocation8 + $0x20] sm:$0xf]
    %v5398 = vld [vmem:[#allocation8 + $0x24] sm:$0xff]
    %v5399 = vld [vmem:[#allocation8 + $0x2c] sm:$0xf]
    %v5400 = vld [vmem:[#allocation8 + $0x30] sm:$0xff]
    %v5401 = vld [vmem:[#allocation8 + $0x38] sm:$0xf]
    %v5402 = vld [vmem:[#allocation8 + $0x3c] sm:$0xff]
    %v5403 = vld [vmem:[#allocation8 + $0x44] sm:$0xf]
    %v5404 = vld [vmem:[#allocation8 + $0x48] sm:$0xff]
    %v5405 = vld [vmem:[#allocation8 + $0x50] sm:$0xf]
    %v5406 = vld [vmem:[#allocation8 + $0x54] sm:$0xff]
    %v5407 = vld [vmem:[#allocation8 + $0x5c] sm:$0xf]
    %v5424 = vunpack.c.l.b16 %v5392
    %v5425 = vunpack.c.h.b16 %v5392
    %v5426 = vunpack.c.l.b16 %v5393
    %v5427 = vunpack.c.l.b16 %v5394
    %v5428 = vunpack.c.h.b16 %v5394
    %v5429 = vunpack.c.l.b16 %v5395
    %v5430 = vunpack.c.l.b16 %v5396
    %v5431 = vunpack.c.h.b16 %v5396
    %v5432 = vunpack.c.l.b16 %v5397
    %v5433 = vunpack.c.l.b16 %v5398
    %v5434 = vunpack.c.h.b16 %v5398
    %v5435 = vunpack.c.l.b16 %v5399
    %v5436 = vunpack.c.l.b16 %v5400
    %v5437 = vunpack.c.h.b16 %v5400
    %v5438 = vunpack.c.l.b16 %v5401
    %v5439 = vunpack.c.l.b16 %v5402
    %v5440 = vunpack.c.h.b16 %v5402
    %v5441 = vunpack.c.l.b16 %v5403
    %v5442 = vunpack.c.l.b16 %v5404
    %v5443 = vunpack.c.h.b16 %v5404
    %v5444 = vunpack.c.l.b16 %v5405
    %v5445 = vunpack.c.l.b16 %v5406
    %v5446 = vunpack.c.h.b16 %v5406
    %v5447 = vunpack.c.l.b16 %v5407
    %v5448 = vpack.c.b16 %v5427, %v5424
    %v5449 = vpack.c.b16 %v5428, %v5425
    %v5450 = vpack.c.b16 %v5429, %v5426
    %v5451 = vpack.c.b16 %v5433, %v5430
    %v5452 = vpack.c.b16 %v5434, %v5431
    %v5453 = vpack.c.b16 %v5435, %v5432
    %v5454 = vpack.c.b16 %v5439, %v5436
    %v5455 = vpack.c.b16 %v5440, %v5437
    %v5456 = vpack.c.b16 %v5441, %v5438
    %v5457 = vpack.c.b16 %v5445, %v5442
    %v5458 = vpack.c.b16 %v5446, %v5443
    %v5459 = vpack.c.b16 %v5447, %v5444
    %v5473 = vsel %vm2546, %v5390, 0
    %v5476 = vsel %vm2546, %v5391, 0
    %5478 = vmatprep.subr.bf16.mxu0 0
    %5479 = vmatpush1.bf16.msra.mxu0 0
    %5480 = vmatprep.subr.bf16.mxu0 0
    %5481 = vmatpush1.bf16.msra.mxu0 0
    %5482 = vmatprep.subr.bf16.mxu0 0
    %5483 = vmatpush1.bf16.msra.mxu0 0
    %5484 = vmatprep.subr.bf16.mxu0 0
    %5485 = vmatpush1.bf16.msra.mxu0 0
    %5486 = vmatprep.subr.bf16.mxu0 %v5458
    %5487 = vmatpush1.bf16.msra.mxu0 %v5457
    %5488 = vmatprep.subr.bf16.mxu0 %v5455
    %5489 = vmatpush1.bf16.msra.mxu0 %v5454
    %5490 = vmatprep.subr.bf16.mxu0 %v5452
    %5491 = vmatpush1.bf16.msra.mxu0 %v5451
    %5492 = vmatprep.subr.bf16.mxu0 %v5449
    %5493 = vmatpush1.bf16.msra.mxu0 %v5448
    %5494 = vmatprep.subr.bf16.mxu0 0
    %5495 = vmatpush2.bf16.msra.mxu0 0
    %5496 = vmatprep.subr.bf16.mxu0 0
    %5497 = vmatpush2.bf16.msra.mxu0 0
    %5498 = vmatprep.subr.bf16.mxu0 0
    %5499 = vmatpush2.bf16.msra.mxu0 0
    %5500 = vmatprep.subr.bf16.mxu0 0
    %5501 = vmatpush2.bf16.msra.mxu0 0
    %5502 = vmatprep.subr.bf16.mxu0 0
    %5503 = vmatpush2.bf16.msra.mxu0 0
    %5504 = vmatprep.subr.bf16.mxu0 0
    %5505 = vmatpush2.bf16.msra.mxu0 0
    %5506 = vmatprep.subr.bf16.mxu0 0
    %5507 = vmatpush2.bf16.msra.mxu0 0
    %5508 = vmatprep.subr.bf16.mxu0 0
    %5509 = vmatpush2.bf16.msra.mxu0 0
    %5510 = vmatprep.mubr.bf16.mxu0 0
    %5511 = vmatmul.mubr.bf16.gmra.mxu0 %v5473
    %v5512 = vpop.f32.mrf.mxu0
    %v5513 = vadd.f32 0.0, %v5512
    %v5514 = vpop.f32.mrf.mxu0
    %v5515 = vadd.f32 0.0, %v5514
    %v5516 = vpop.f32.mrf.mxu0
    %v5517 = vadd.f32 0.0, %v5516
    %v5518 = vpop.f32.mrf.mxu0
    %v5519 = vadd.f32 0.0, %v5518
    %5520 = vmatprep.mubr.bf16.mxu0 0
    %5521 = vmatmul.mubr.bf16.gmra.mxu0 %v5476
    %v5522 = vpop.f32.mrf.mxu0
    %v5523 = vadd.f32 0.0, %v5522
    %v5524 = vpop.f32.mrf.mxu0
    %v5525 = vadd.f32 0.0, %v5524
    %v5526 = vpop.f32.mrf.mxu0
    %v5527 = vadd.f32 0.0, %v5526
    %v5528 = vpop.f32.mrf.mxu0
    %v5529 = vadd.f32 0.0, %v5528
    %5530 = vdwg.mxu0
    %5531 = vmatprep.subr.bf16.mxu0 0
    %5532 = vmatpush1.bf16.msra.mxu0 0
    %5533 = vmatprep.subr.bf16.mxu0 0
    %5534 = vmatpush1.bf16.msra.mxu0 0
    %5535 = vmatprep.subr.bf16.mxu0 0
    %5536 = vmatpush1.bf16.msra.mxu0 0
    %5537 = vmatprep.subr.bf16.mxu0 0
    %5538 = vmatpush1.bf16.msra.mxu0 0
    %5539 = vmatprep.subr.bf16.mxu0 0
    %5540 = vmatpush1.bf16.msra.mxu0 %v5459
    %5541 = vmatprep.subr.bf16.mxu0 0
    %5542 = vmatpush1.bf16.msra.mxu0 %v5456
    %5543 = vmatprep.subr.bf16.mxu0 0
    %5544 = vmatpush1.bf16.msra.mxu0 %v5453
    %5545 = vmatprep.subr.bf16.mxu0 0
    %5546 = vmatpush1.bf16.msra.mxu0 %v5450
    %5547 = vmatprep.subr.bf16.mxu0 0
    %5548 = vmatpush2.bf16.msra.mxu0 0
    %5549 = vmatprep.subr.bf16.mxu0 0
    %5550 = vmatpush2.bf16.msra.mxu0 0
    %5551 = vmatprep.subr.bf16.mxu0 0
    %5552 = vmatpush2.bf16.msra.mxu0 0
    %5553 = vmatprep.subr.bf16.mxu0 0
    %5554 = vmatpush2.bf16.msra.mxu0 0
    %5555 = vmatprep.subr.bf16.mxu0 0
    %5556 = vmatpush2.bf16.msra.mxu0 0
    %5557 = vmatprep.subr.bf16.mxu0 0
    %5558 = vmatpush2.bf16.msra.mxu0 0
    %5559 = vmatprep.subr.bf16.mxu0 0
    %5560 = vmatpush2.bf16.msra.mxu0 0
    %5561 = vmatprep.subr.bf16.mxu0 0
    %5562 = vmatpush2.bf16.msra.mxu0 0
    %5563 = vmatprep.mubr.bf16.mxu0 0
    %5564 = vmatmul.mubr.bf16.gmra.mxu0 %v5473
    %v5565 = vpop.f32.mrf.mxu0
    %v5566 = vadd.f32 0.0, %v5565
    %v5567 = vpop.f32.mrf.mxu0
    %v5568 = vpop.f32.mrf.mxu0
    %v5569 = vadd.f32 0.0, %v5568
    %v5570 = vpop.f32.mrf.mxu0
    %5571 = vmatprep.mubr.bf16.mxu0 0
    %5572 = vmatmul.mubr.bf16.gmra.mxu0 %v5476
    %v5573 = vpop.f32.mrf.mxu0
    %v5574 = vadd.f32 0.0, %v5573
    %v5575 = vpop.f32.mrf.mxu0
    %v5576 = vpop.f32.mrf.mxu0
    %v5577 = vadd.f32 0.0, %v5576
    %v5578 = vpop.f32.mrf.mxu0
    %5579 = vdwg.mxu0
    %v5580 = vadd.f32 %v5378, %v5513
    %v5581 = vadd.f32 %v5379, %v5515
    %v5582 = vadd.f32 %v5380, %v5566
    %v5583 = vadd.f32 %v5381, %v5517
    %v5584 = vadd.f32 %v5382, %v5519
    %v5585 = vadd.f32 %v5383, %v5569
    %v5586 = vadd.f32 %v5384, %v5523
    %v5587 = vadd.f32 %v5385, %v5525
    %v5588 = vadd.f32 %v5386, %v5574
    %v5589 = vadd.f32 %v5387, %v5527
    %v5590 = vadd.f32 %v5388, %v5529
    %v5591 = vadd.f32 %v5389, %v5577
    %5592 = vst [vmem:[#allocation9 + $0x60] sm:$0xff] %v5580
    %5593 = vst [vmem:[#allocation9 + $0x68] sm:$0xff] %v5581
    %5594 = vst [vmem:[#allocation9 + $0x70] sm:$0xff] %v5582
    %5595 = vst [vmem:[#allocation9 + $0x78] sm:$0xff] %v5583
    %5596 = vst [vmem:[#allocation9 + $0x80] sm:$0xff] %v5584
    %5597 = vst [vmem:[#allocation9 + $0x88] sm:$0xff] %v5585
    %5598 = vst [vmem:[#allocation9 + $0x90] sm:$0xff] %v5586
    %5599 = vst [vmem:[#allocation9 + $0x98] sm:$0xff] %v5587
    %5600 = vst [vmem:[#allocation9 + $0xa0] sm:$0xff] %v5588
    %5601 = vst [vmem:[#allocation9 + $0xa8] sm:$0xff] %v5589
    %5602 = vst [vmem:[#allocation9 + $0xb0] sm:$0xff] %v5590
    %5603 = vst [vmem:[#allocation9 + $0xb8] sm:$0xff] %v5591
    %v5604 = vld [vmem:[#allocation2 + $0x90] sm:$0xf]
    %v5605 = vld [vmem:[#allocation2 + $0xb4] sm:$0xf]
    %v5606 = vld [vmem:[#allocation2 + $0xd8] sm:$0xf]
    %v5607 = vld [vmem:[#allocation2 + $0xfc] sm:$0xf]
    %v5608 = vld [vmem:[#allocation2 + $0x9c] sm:$0xf]
    %v5609 = vld [vmem:[#allocation2 + $0xc0] sm:$0xf]
    %v5610 = vld [vmem:[#allocation2 + $0xe4] sm:$0xf]
    %v5611 = vld [vmem:[#allocation2 + $0x108] sm:$0xf]
    %v5612 = vld [vmem:[#allocation2 + $0xa8] sm:$0xf]
    %v5613 = vld [vmem:[#allocation2 + $0xcc] sm:$0xf]
    %v5614 = vld [vmem:[#allocation2 + $0xf0] sm:$0xf]
    %v5615 = vld [vmem:[#allocation2 + $0x114] sm:$0xf]
    %v5620 = vunpack.c.l.b16 %v5604
    %v5621 = vunpack.c.l.b16 %v5605
    %v5622 = vunpack.c.l.b16 %v5606
    %v5623 = vunpack.c.l.b16 %v5607
    %v5624 = vpack.c.b16 %v5621, %v5620
    %v5625 = vpack.c.b16 %v5623, %v5622
    %5626 = vrot.lane.b32.xlu0 %v5624, 64
    %v5627 = vpop.permute.xlu0 %5626
    %5628 = vrot.lane.b32.xlu0 %v5625, 64
    %v5629 = vpop.permute.xlu0 %5628
    %v5634 = vunpack.c.l.b16 %v5608
    %v5635 = vunpack.c.l.b16 %v5609
    %v5636 = vunpack.c.l.b16 %v5610
    %v5637 = vunpack.c.l.b16 %v5611
    %v5638 = vpack.c.b16 %v5635, %v5634
    %v5639 = vpack.c.b16 %v5637, %v5636
    %5640 = vrot.lane.b32.xlu0 %v5638, 64
    %v5641 = vpop.permute.xlu0 %5640
    %5642 = vrot.lane.b32.xlu0 %v5639, 64
    %v5643 = vpop.permute.xlu0 %5642
    %v5645 = vsel %vm2546, %v5627, 0
    %v5648 = vsel %vm2546, %v5629, 0
    %v5651 = vsel %vm2546, %v5641, 0
    %v5654 = vsel %vm2546, %v5643, 0
    %5656 = vmatprep.subr.bf16.mxu0 0
    %5657 = vmatpush1.bf16.xpose.msra.mxu0 0
    %5658 = vmatprep.subr.bf16.mxu0 0
    %5659 = vmatpush1.bf16.xpose.msra.mxu0 0
    %5660 = vmatprep.subr.bf16.mxu0 0
    %5661 = vmatpush1.bf16.xpose.msra.mxu0 0
    %5662 = vmatprep.subr.bf16.mxu0 0
    %5663 = vmatpush1.bf16.xpose.msra.mxu0 0
    %5664 = vmatprep.subr.bf16.mxu0 0
    %5665 = vmatpush1.bf16.xpose.msra.mxu0 0
    %5666 = vmatprep.subr.bf16.mxu0 0
    %5667 = vmatpush1.bf16.xpose.msra.mxu0 0
    %5668 = vmatprep.subr.bf16.mxu0 0
    %5669 = vmatpush1.bf16.xpose.msra.mxu0 %v5654
    %5670 = vmatprep.subr.bf16.mxu0 0
    %5671 = vmatpush1.bf16.xpose.msra.mxu0 %v5651
    %5672 = vmatprep.subr.bf16.mxu0 0
    %5673 = vmatpush2.bf16.xpose.msra.mxu0 0
    %5674 = vmatprep.subr.bf16.mxu0 0
    %5675 = vmatpush2.bf16.xpose.msra.mxu0 0
    %5676 = vmatprep.subr.bf16.mxu0 0
    %5677 = vmatpush2.bf16.xpose.msra.mxu0 0
    %5678 = vmatprep.subr.bf16.mxu0 0
    %5679 = vmatpush2.bf16.xpose.msra.mxu0 0
    %5680 = vmatprep.subr.bf16.mxu0 0
    %5681 = vmatpush2.bf16.xpose.msra.mxu0 0
    %5682 = vmatprep.subr.bf16.mxu0 0
    %5683 = vmatpush2.bf16.xpose.msra.mxu0 0
    %5684 = vmatprep.subr.bf16.mxu0 0
    %5685 = vmatpush2.bf16.xpose.msra.mxu0 0
    %5686 = vmatprep.subr.bf16.mxu0 0
    %5687 = vmatpush2.bf16.xpose.msra.mxu0 0
    %5688 = vmatprep.mubr.bf16.mxu0 0
    %5689 = vmatmul.mubr.bf16.gmra.mxu0 %v5645
    %v5690 = vpop.f32.mrf.mxu0
    %v5691 = vadd.f32 0.0, %v5690
    %v5692 = vpop.f32.mrf.mxu0
    %v5693 = vpop.f32.mrf.mxu0
    %v5694 = vadd.f32 0.0, %v5693
    %v5695 = vpop.f32.mrf.mxu0
    %5696 = vmatprep.mubr.bf16.mxu0 0
    %5697 = vmatmul.mubr.bf16.gmra.mxu0 %v5648
    %v5698 = vpop.f32.mrf.mxu0
    %v5699 = vadd.f32 0.0, %v5698
    %v5700 = vpop.f32.mrf.mxu0
    %v5701 = vpop.f32.mrf.mxu0
    %v5702 = vadd.f32 0.0, %v5701
    %v5703 = vpop.f32.mrf.mxu0
    %5704 = vdwg.mxu0
    %v5705 = vsel %vm2510, %v5691, -1e+30
    %v5706 = vsel %vm2511, %v5694, -1e+30
    %v5707 = vsel %vm2512, %v5699, -1e+30
    %v5708 = vsel %vm2513, %v5702, -1e+30
    %v5709 = vsel %vm2612, %v5705, -inf
    %5710 = vmax.xlane.f32.xlu0 %v5709
    %v5711 = vpop.xlane.xlu0 %5710
    %v5712 = vsel %vm2612, %v5706, -inf
    %5713 = vmax.xlane.f32.xlu0 %v5712
    %v5714 = vpop.xlane.xlu0 %5713
    %v5715 = vsel %vm2612, %v5707, -inf
    %5716 = vmax.xlane.f32.xlu0 %v5715
    %v5717 = vpop.xlane.xlu0 %5716
    %v5718 = vsel %vm2612, %v5708, -inf
    %5719 = vmax.xlane.f32.xlu0 %v5718
    %v5720 = vpop.xlane.xlu0 %5719
    %v5721 = vsub.f32 %v5705, %v5711
    %v5722 = vsub.f32 %v5706, %v5714
    %v5723 = vsub.f32 %v5707, %v5717
    %v5724 = vsub.f32 %v5708, %v5720
    %v5725 = vmul.f32 %v5721, 1.442695
    %v5726 = vpow.pop %v5725
    %v5727 = vmul.f32 %v5722, 1.442695
    %v5728 = vpow.pop %v5727
    %v5729 = vmul.f32 %v5723, 1.442695
    %v5730 = vpow.pop %v5729
    %v5731 = vmul.f32 %v5724, 1.442695
    %v5732 = vpow.pop %v5731
    %v5733 = vsel %vm2612, %v5726, 0.0
    %5734 = vadd.xlane.f32.xlu0 %v5733
    %v5735 = vpop.xlane.xlu0 %5734
    %v5736 = vsel %vm2612, %v5728, 0.0
    %5737 = vadd.xlane.f32.xlu0 %v5736
    %v5738 = vpop.xlane.xlu0 %5737
    %v5739 = vsel %vm2612, %v5730, 0.0
    %5740 = vadd.xlane.f32.xlu0 %v5739
    %v5741 = vpop.xlane.xlu0 %5740
    %v5742 = vsel %vm2612, %v5732, 0.0
    %5743 = vadd.xlane.f32.xlu0 %v5742
    %v5744 = vpop.xlane.xlu0 %5743
    %v5745 = vrcp.pop %v5735
    %v5746 = vmul.f32 %v5726, %v5745
    %v5747 = vrcp.pop %v5738
    %v5748 = vmul.f32 %v5728, %v5747
    %v5749 = vrcp.pop %v5741
    %v5750 = vmul.f32 %v5730, %v5749
    %v5751 = vrcp.pop %v5744
    %v5752 = vmul.f32 %v5732, %v5751
    %v5753 = vpack.c.bf16 %v5748, %v5746
    %v5754 = vpack.c.bf16 %v5752, %v5750
    %v5759 = vunpack.c.l.b16 %v5612
    %v5760 = vunpack.c.l.b16 %v5613
    %v5761 = vunpack.c.l.b16 %v5614
    %v5762 = vunpack.c.l.b16 %v5615
    %v5763 = vpack.c.b16 %v5760, %v5759
    %v5764 = vpack.c.b16 %v5762, %v5761
    %5765 = vrot.lane.b32.xlu0 %v5763, 64
    %v5766 = vpop.permute.xlu0 %5765
    %5767 = vrot.lane.b32.xlu0 %v5764, 64
    %v5768 = vpop.permute.xlu0 %5767
    %v5772 = vsel %vm2612, %v5753, 0
    %v5775 = vsel %vm2612, %v5754, 0
    %5777 = vmatprep.subr.bf16.mxu0 0
    %5778 = vmatpush1.bf16.msra.mxu0 0
    %5779 = vmatprep.subr.bf16.mxu0 0
    %5780 = vmatpush1.bf16.msra.mxu0 0
    %5781 = vmatprep.subr.bf16.mxu0 0
    %5782 = vmatpush1.bf16.msra.mxu0 0
    %5783 = vmatprep.subr.bf16.mxu0 0
    %5784 = vmatpush1.bf16.msra.mxu0 0
    %5785 = vmatprep.subr.bf16.mxu0 0
    %5786 = vmatpush1.bf16.msra.mxu0 0
    %5787 = vmatprep.subr.bf16.mxu0 0
    %5788 = vmatpush1.bf16.msra.mxu0 0
    %5789 = vmatprep.subr.bf16.mxu0 0
    %5790 = vmatpush1.bf16.msra.mxu0 %v5768
    %5791 = vmatprep.subr.bf16.mxu0 0
    %5792 = vmatpush1.bf16.msra.mxu0 %v5766
    %5793 = vmatprep.subr.bf16.mxu0 0
    %5794 = vmatpush2.bf16.msra.mxu0 0
    %5795 = vmatprep.subr.bf16.mxu0 0
    %5796 = vmatpush2.bf16.msra.mxu0 0
    %5797 = vmatprep.subr.bf16.mxu0 0
    %5798 = vmatpush2.bf16.msra.mxu0 0
    %5799 = vmatprep.subr.bf16.mxu0 0
    %5800 = vmatpush2.bf16.msra.mxu0 0
    %5801 = vmatprep.subr.bf16.mxu0 0
    %5802 = vmatpush2.bf16.msra.mxu0 0
    %5803 = vmatprep.subr.bf16.mxu0 0
    %5804 = vmatpush2.bf16.msra.mxu0 0
    %5805 = vmatprep.subr.bf16.mxu0 0
    %5806 = vmatpush2.bf16.msra.mxu0 0
    %5807 = vmatprep.subr.bf16.mxu0 0
    %5808 = vmatpush2.bf16.msra.mxu0 0
    %5809 = vmatprep.mubr.bf16.mxu0 0
    %5810 = vmatmul.mubr.bf16.gmra.mxu0 %v5772
    %v5811 = vpop.f32.mrf.mxu0
    %v5812 = vadd.f32 0.0, %v5811
    %v5813 = vpop.f32.mrf.mxu0
    %v5814 = vpop.f32.mrf.mxu0
    %v5815 = vadd.f32 0.0, %v5814
    %v5816 = vpop.f32.mrf.mxu0
    %5817 = vmatprep.mubr.bf16.mxu0 0
    %5818 = vmatmul.mubr.bf16.gmra.mxu0 %v5775
    %v5819 = vpop.f32.mrf.mxu0
    %v5820 = vadd.f32 0.0, %v5819
    %v5821 = vpop.f32.mrf.mxu0
    %v5822 = vpop.f32.mrf.mxu0
    %v5823 = vadd.f32 0.0, %v5822
    %v5824 = vpop.f32.mrf.mxu0
    %5825 = vdwg.mxu0
    %v5826 = vld [vmem:[#allocation9 + $0x60] sm:$0xff]
    %v5827 = vld [vmem:[#allocation9 + $0x68] sm:$0xff]
    %v5828 = vld [vmem:[#allocation9 + $0x70] sm:$0xff]
    %v5829 = vld [vmem:[#allocation9 + $0x78] sm:$0xff]
    %v5830 = vld [vmem:[#allocation9 + $0x80] sm:$0xff]
    %v5831 = vld [vmem:[#allocation9 + $0x88] sm:$0xff]
    %v5832 = vld [vmem:[#allocation9 + $0x90] sm:$0xff]
    %v5833 = vld [vmem:[#allocation9 + $0x98] sm:$0xff]
    %v5834 = vld [vmem:[#allocation9 + $0xa0] sm:$0xff]
    %v5835 = vld [vmem:[#allocation9 + $0xa8] sm:$0xff]
    %v5836 = vld [vmem:[#allocation9 + $0xb0] sm:$0xff]
    %v5837 = vld [vmem:[#allocation9 + $0xb8] sm:$0xff]
    %v5838 = vpack.c.bf16 %v5815, %v5812
    %v5839 = vpack.c.bf16 %v5823, %v5820
    %v5840 = vld [vmem:[#allocation8 + $0x60] sm:$0xff]
    %v5841 = vld [vmem:[#allocation8 + $0x68] sm:$0xf]
    %v5842 = vld [vmem:[#allocation8 + $0x6c] sm:$0xff]
    %v5843 = vld [vmem:[#allocation8 + $0x74] sm:$0xf]
    %v5844 = vld [vmem:[#allocation8 + $0x78] sm:$0xff]
    %v5845 = vld [vmem:[#allocation8 + $0x80] sm:$0xf]
    %v5846 = vld [vmem:[#allocation8 + $0x84] sm:$0xff]
    %v5847 = vld [vmem:[#allocation8 + $0x8c] sm:$0xf]
    %v5848 = vld [vmem:[#allocation8 + $0x90] sm:$0xff]
    %v5849 = vld [vmem:[#allocation8 + $0x98] sm:$0xf]
    %v5850 = vld [vmem:[#allocation8 + $0x9c] sm:$0xff]
    %v5851 = vld [vmem:[#allocation8 + $0xa4] sm:$0xf]
    %v5852 = vld [vmem:[#allocation8 + $0xa8] sm:$0xff]
    %v5853 = vld [vmem:[#allocation8 + $0xb0] sm:$0xf]
    %v5854 = vld [vmem:[#allocation8 + $0xb4] sm:$0xff]
    %v5855 = vld [vmem:[#allocation8 + $0xbc] sm:$0xf]
    %v5872 = vunpack.c.l.b16 %v5840
    %v5873 = vunpack.c.h.b16 %v5840
    %v5874 = vunpack.c.l.b16 %v5841
    %v5875 = vunpack.c.l.b16 %v5842
    %v5876 = vunpack.c.h.b16 %v5842
    %v5877 = vunpack.c.l.b16 %v5843
    %v5878 = vunpack.c.l.b16 %v5844
    %v5879 = vunpack.c.h.b16 %v5844
    %v5880 = vunpack.c.l.b16 %v5845
    %v5881 = vunpack.c.l.b16 %v5846
    %v5882 = vunpack.c.h.b16 %v5846
    %v5883 = vunpack.c.l.b16 %v5847
    %v5884 = vunpack.c.l.b16 %v5848
    %v5885 = vunpack.c.h.b16 %v5848
    %v5886 = vunpack.c.l.b16 %v5849
    %v5887 = vunpack.c.l.b16 %v5850
    %v5888 = vunpack.c.h.b16 %v5850
    %v5889 = vunpack.c.l.b16 %v5851
    %v5890 = vunpack.c.l.b16 %v5852
    %v5891 = vunpack.c.h.b16 %v5852
    %v5892 = vunpack.c.l.b16 %v5853
    %v5893 = vunpack.c.l.b16 %v5854
    %v5894 = vunpack.c.h.b16 %v5854
    %v5895 = vunpack.c.l.b16 %v5855
    %v5896 = vpack.c.b16 %v5875, %v5872
    %v5897 = vpack.c.b16 %v5876, %v5873
    %v5898 = vpack.c.b16 %v5877, %v5874
    %v5899 = vpack.c.b16 %v5881, %v5878
    %v5900 = vpack.c.b16 %v5882, %v5879
    %v5901 = vpack.c.b16 %v5883, %v5880
    %v5902 = vpack.c.b16 %v5887, %v5884
    %v5903 = vpack.c.b16 %v5888, %v5885
    %v5904 = vpack.c.b16 %v5889, %v5886
    %v5905 = vpack.c.b16 %v5893, %v5890
    %v5906 = vpack.c.b16 %v5894, %v5891
    %v5907 = vpack.c.b16 %v5895, %v5892
    %v5921 = vsel %vm2546, %v5838, 0
    %v5924 = vsel %vm2546, %v5839, 0
    %5926 = vmatprep.subr.bf16.mxu0 0
    %5927 = vmatpush1.bf16.msra.mxu0 0
    %5928 = vmatprep.subr.bf16.mxu0 0
    %5929 = vmatpush1.bf16.msra.mxu0 0
    %5930 = vmatprep.subr.bf16.mxu0 0
    %5931 = vmatpush1.bf16.msra.mxu0 0
    %5932 = vmatprep.subr.bf16.mxu0 0
    %5933 = vmatpush1.bf16.msra.mxu0 0
    %5934 = vmatprep.subr.bf16.mxu0 %v5906
    %5935 = vmatpush1.bf16.msra.mxu0 %v5905
    %5936 = vmatprep.subr.bf16.mxu0 %v5903
    %5937 = vmatpush1.bf16.msra.mxu0 %v5902
    %5938 = vmatprep.subr.bf16.mxu0 %v5900
    %5939 = vmatpush1.bf16.msra.mxu0 %v5899
    %5940 = vmatprep.subr.bf16.mxu0 %v5897
    %5941 = vmatpush1.bf16.msra.mxu0 %v5896
    %5942 = vmatprep.subr.bf16.mxu0 0
    %5943 = vmatpush2.bf16.msra.mxu0 0
    %5944 = vmatprep.subr.bf16.mxu0 0
    %5945 = vmatpush2.bf16.msra.mxu0 0
    %5946 = vmatprep.subr.bf16.mxu0 0
    %5947 = vmatpush2.bf16.msra.mxu0 0
    %5948 = vmatprep.subr.bf16.mxu0 0
    %5949 = vmatpush2.bf16.msra.mxu0 0
    %5950 = vmatprep.subr.bf16.mxu0 0
    %5951 = vmatpush2.bf16.msra.mxu0 0
    %5952 = vmatprep.subr.bf16.mxu0 0
    %5953 = vmatpush2.bf16.msra.mxu0 0
    %5954 = vmatprep.subr.bf16.mxu0 0
    %5955 = vmatpush2.bf16.msra.mxu0 0
    %5956 = vmatprep.subr.bf16.mxu0 0
    %5957 = vmatpush2.bf16.msra.mxu0 0
    %5958 = vmatprep.mubr.bf16.mxu0 0
    %5959 = vmatmul.mubr.bf16.gmra.mxu0 %v5921
    %v5960 = vpop.f32.mrf.mxu0
    %v5961 = vadd.f32 0.0, %v5960
    %v5962 = vpop.f32.mrf.mxu0
    %v5963 = vadd.f32 0.0, %v5962
    %v5964 = vpop.f32.mrf.mxu0
    %v5965 = vadd.f32 0.0, %v5964
    %v5966 = vpop.f32.mrf.mxu0
    %v5967 = vadd.f32 0.0, %v5966
    %5968 = vmatprep.mubr.bf16.mxu0 0
    %5969 = vmatmul.mubr.bf16.gmra.mxu0 %v5924
    %v5970 = vpop.f32.mrf.mxu0
    %v5971 = vadd.f32 0.0, %v5970
    %v5972 = vpop.f32.mrf.mxu0
    %v5973 = vadd.f32 0.0, %v5972
    %v5974 = vpop.f32.mrf.mxu0
    %v5975 = vadd.f32 0.0, %v5974
    %v5976 = vpop.f32.mrf.mxu0
    %v5977 = vadd.f32 0.0, %v5976
    %5978 = vdwg.mxu0
    %5979 = vmatprep.subr.bf16.mxu0 0
    %5980 = vmatpush1.bf16.msra.mxu0 0
    %5981 = vmatprep.subr.bf16.mxu0 0
    %5982 = vmatpush1.bf16.msra.mxu0 0
    %5983 = vmatprep.subr.bf16.mxu0 0
    %5984 = vmatpush1.bf16.msra.mxu0 0
    %5985 = vmatprep.subr.bf16.mxu0 0
    %5986 = vmatpush1.bf16.msra.mxu0 0
    %5987 = vmatprep.subr.bf16.mxu0 0
    %5988 = vmatpush1.bf16.msra.mxu0 %v5907
    %5989 = vmatprep.subr.bf16.mxu0 0
    %5990 = vmatpush1.bf16.msra.mxu0 %v5904
    %5991 = vmatprep.subr.bf16.mxu0 0
    %5992 = vmatpush1.bf16.msra.mxu0 %v5901
    %5993 = vmatprep.subr.bf16.mxu0 0
    %5994 = vmatpush1.bf16.msra.mxu0 %v5898
    %5995 = vmatprep.subr.bf16.mxu0 0
    %5996 = vmatpush2.bf16.msra.mxu0 0
    %5997 = vmatprep.subr.bf16.mxu0 0
    %5998 = vmatpush2.bf16.msra.mxu0 0
    %5999 = vmatprep.subr.bf16.mxu0 0
    %6000 = vmatpush2.bf16.msra.mxu0 0
    %6001 = vmatprep.subr.bf16.mxu0 0
    %6002 = vmatpush2.bf16.msra.mxu0 0
    %6003 = vmatprep.subr.bf16.mxu0 0
    %6004 = vmatpush2.bf16.msra.mxu0 0
    %6005 = vmatprep.subr.bf16.mxu0 0
    %6006 = vmatpush2.bf16.msra.mxu0 0
    %6007 = vmatprep.subr.bf16.mxu0 0
    %6008 = vmatpush2.bf16.msra.mxu0 0
    %6009 = vmatprep.subr.bf16.mxu0 0
    %6010 = vmatpush2.bf16.msra.mxu0 0
    %6011 = vmatprep.mubr.bf16.mxu0 0
    %6012 = vmatmul.mubr.bf16.gmra.mxu0 %v5921
    %v6013 = vpop.f32.mrf.mxu0
    %v6014 = vadd.f32 0.0, %v6013
    %v6015 = vpop.f32.mrf.mxu0
    %v6016 = vpop.f32.mrf.mxu0
    %v6017 = vadd.f32 0.0, %v6016
    %v6018 = vpop.f32.mrf.mxu0
    %6019 = vmatprep.mubr.bf16.mxu0 0
    %6020 = vmatmul.mubr.bf16.gmra.mxu0 %v5924
    %v6021 = vpop.f32.mrf.mxu0
    %v6022 = vadd.f32 0.0, %v6021
    %v6023 = vpop.f32.mrf.mxu0
    %v6024 = vpop.f32.mrf.mxu0
    %v6025 = vadd.f32 0.0, %v6024
    %v6026 = vpop.f32.mrf.mxu0
    %6027 = vdwg.mxu0
    %v6028 = vadd.f32 %v5826, %v5961
    %v6029 = vadd.f32 %v5827, %v5963
    %v6030 = vadd.f32 %v5828, %v6014
    %v6031 = vadd.f32 %v5829, %v5965
    %v6032 = vadd.f32 %v5830, %v5967
    %v6033 = vadd.f32 %v5831, %v6017
    %v6034 = vadd.f32 %v5832, %v5971
    %v6035 = vadd.f32 %v5833, %v5973
    %v6036 = vadd.f32 %v5834, %v6022
    %v6037 = vadd.f32 %v5835, %v5975
    %v6038 = vadd.f32 %v5836, %v5977
    %v6039 = vadd.f32 %v5837, %v6025
    %6040 = vst [vmem:[#allocation9 + $0x60] sm:$0xff] %v6028
    %6041 = vst [vmem:[#allocation9 + $0x68] sm:$0xff] %v6029
    %6042 = vst [vmem:[#allocation9 + $0x70] sm:$0xff] %v6030
    %6043 = vst [vmem:[#allocation9 + $0x78] sm:$0xff] %v6031
    %6044 = vst [vmem:[#allocation9 + $0x80] sm:$0xff] %v6032
    %6045 = vst [vmem:[#allocation9 + $0x88] sm:$0xff] %v6033
    %6046 = vst [vmem:[#allocation9 + $0x90] sm:$0xff] %v6034
    %6047 = vst [vmem:[#allocation9 + $0x98] sm:$0xff] %v6035
    %6048 = vst [vmem:[#allocation9 + $0xa0] sm:$0xff] %v6036
    %6049 = vst [vmem:[#allocation9 + $0xa8] sm:$0xff] %v6037
    %6050 = vst [vmem:[#allocation9 + $0xb0] sm:$0xff] %v6038
    %6051 = vst [vmem:[#allocation9 + $0xb8] sm:$0xff] %v6039
    %v6052 = vld [vmem:[#allocation2 + $0x94] sm:$0xf]
    %v6053 = vld [vmem:[#allocation2 + $0xb8] sm:$0xf]
    %v6054 = vld [vmem:[#allocation2 + $0xdc] sm:$0xf]
    %v6055 = vld [vmem:[#allocation2 + $0x100] sm:$0xf]
    %v6056 = vld [vmem:[#allocation2 + $0xa0] sm:$0xf]
    %v6057 = vld [vmem:[#allocation2 + $0xc4] sm:$0xf]
    %v6058 = vld [vmem:[#allocation2 + $0xe8] sm:$0xf]
    %v6059 = vld [vmem:[#allocation2 + $0x10c] sm:$0xf]
    %v6060 = vld [vmem:[#allocation2 + $0xac] sm:$0xf]
    %v6061 = vld [vmem:[#allocation2 + $0xd0] sm:$0xf]
    %v6062 = vld [vmem:[#allocation2 + $0xf4] sm:$0xf]
    %v6063 = vld [vmem:[#allocation2 + $0x118] sm:$0xf]
    %v6068 = vunpack.c.l.b16 %v6052
    %v6069 = vunpack.c.l.b16 %v6053
    %v6070 = vunpack.c.l.b16 %v6054
    %v6071 = vunpack.c.l.b16 %v6055
    %v6072 = vpack.c.b16 %v6069, %v6068
    %v6073 = vpack.c.b16 %v6071, %v6070
    %v6078 = vunpack.c.l.b16 %v6056
    %v6079 = vunpack.c.l.b16 %v6057
    %v6080 = vunpack.c.l.b16 %v6058
    %v6081 = vunpack.c.l.b16 %v6059
    %v6082 = vpack.c.b16 %v6079, %v6078
    %v6083 = vpack.c.b16 %v6081, %v6080
    %v6085 = vsel %vm2546, %v6072, 0
    %v6088 = vsel %vm2546, %v6073, 0
    %v6091 = vsel %vm2546, %v6082, 0
    %v6094 = vsel %vm2546, %v6083, 0
    %6096 = vmatprep.subr.bf16.mxu0 0
    %6097 = vmatpush1.bf16.xpose.msra.mxu0 0
    %6098 = vmatprep.subr.bf16.mxu0 0
    %6099 = vmatpush1.bf16.xpose.msra.mxu0 0
    %6100 = vmatprep.subr.bf16.mxu0 0
    %6101 = vmatpush1.bf16.xpose.msra.mxu0 0
    %6102 = vmatprep.subr.bf16.mxu0 0
    %6103 = vmatpush1.bf16.xpose.msra.mxu0 0
    %6104 = vmatprep.subr.bf16.mxu0 0
    %6105 = vmatpush1.bf16.xpose.msra.mxu0 0
    %6106 = vmatprep.subr.bf16.mxu0 0
    %6107 = vmatpush1.bf16.xpose.msra.mxu0 0
    %6108 = vmatprep.subr.bf16.mxu0 0
    %6109 = vmatpush1.bf16.xpose.msra.mxu0 %v6094
    %6110 = vmatprep.subr.bf16.mxu0 0
    %6111 = vmatpush1.bf16.xpose.msra.mxu0 %v6091
    %6112 = vmatprep.subr.bf16.mxu0 0
    %6113 = vmatpush2.bf16.xpose.msra.mxu0 0
    %6114 = vmatprep.subr.bf16.mxu0 0
    %6115 = vmatpush2.bf16.xpose.msra.mxu0 0
    %6116 = vmatprep.subr.bf16.mxu0 0
    %6117 = vmatpush2.bf16.xpose.msra.mxu0 0
    %6118 = vmatprep.subr.bf16.mxu0 0
    %6119 = vmatpush2.bf16.xpose.msra.mxu0 0
    %6120 = vmatprep.subr.bf16.mxu0 0
    %6121 = vmatpush2.bf16.xpose.msra.mxu0 0
    %6122 = vmatprep.subr.bf16.mxu0 0
    %6123 = vmatpush2.bf16.xpose.msra.mxu0 0
    %6124 = vmatprep.subr.bf16.mxu0 0
    %6125 = vmatpush2.bf16.xpose.msra.mxu0 0
    %6126 = vmatprep.subr.bf16.mxu0 0
    %6127 = vmatpush2.bf16.xpose.msra.mxu0 0
    %6128 = vmatprep.mubr.bf16.mxu0 0
    %6129 = vmatmul.mubr.bf16.gmra.mxu0 %v6085
    %v6130 = vpop.f32.mrf.mxu0
    %v6131 = vadd.f32 0.0, %v6130
    %v6132 = vpop.f32.mrf.mxu0
    %v6133 = vpop.f32.mrf.mxu0
    %v6134 = vadd.f32 0.0, %v6133
    %v6135 = vpop.f32.mrf.mxu0
    %6136 = vmatprep.mubr.bf16.mxu0 0
    %6137 = vmatmul.mubr.bf16.gmra.mxu0 %v6088
    %v6138 = vpop.f32.mrf.mxu0
    %v6139 = vadd.f32 0.0, %v6138
    %v6140 = vpop.f32.mrf.mxu0
    %v6141 = vpop.f32.mrf.mxu0
    %v6142 = vadd.f32 0.0, %v6141
    %v6143 = vpop.f32.mrf.mxu0
    %6144 = vdwg.mxu0
    %v6145 = vsel %vm2510, %v6131, -1e+30
    %v6146 = vsel %vm2511, %v6134, -1e+30
    %v6147 = vsel %vm2512, %v6139, -1e+30
    %v6148 = vsel %vm2513, %v6142, -1e+30
    %v6149 = vsel %vm2612, %v6145, -inf
    %6150 = vmax.xlane.f32.xlu0 %v6149
    %v6151 = vpop.xlane.xlu0 %6150
    %v6152 = vsel %vm2612, %v6146, -inf
    %6153 = vmax.xlane.f32.xlu0 %v6152
    %v6154 = vpop.xlane.xlu0 %6153
    %v6155 = vsel %vm2612, %v6147, -inf
    %6156 = vmax.xlane.f32.xlu0 %v6155
    %v6157 = vpop.xlane.xlu0 %6156
    %v6158 = vsel %vm2612, %v6148, -inf
    %6159 = vmax.xlane.f32.xlu0 %v6158
    %v6160 = vpop.xlane.xlu0 %6159
    %v6161 = vsub.f32 %v6145, %v6151
    %v6162 = vsub.f32 %v6146, %v6154
    %v6163 = vsub.f32 %v6147, %v6157
    %v6164 = vsub.f32 %v6148, %v6160
    %v6165 = vmul.f32 %v6161, 1.442695
    %v6166 = vpow.pop %v6165
    %v6167 = vmul.f32 %v6162, 1.442695
    %v6168 = vpow.pop %v6167
    %v6169 = vmul.f32 %v6163, 1.442695
    %v6170 = vpow.pop %v6169
    %v6171 = vmul.f32 %v6164, 1.442695
    %v6172 = vpow.pop %v6171
    %v6173 = vsel %vm2612, %v6166, 0.0
    %6174 = vadd.xlane.f32.xlu0 %v6173
    %v6175 = vpop.xlane.xlu0 %6174
    %v6176 = vsel %vm2612, %v6168, 0.0
    %6177 = vadd.xlane.f32.xlu0 %v6176
    %v6178 = vpop.xlane.xlu0 %6177
    %v6179 = vsel %vm2612, %v6170, 0.0
    %6180 = vadd.xlane.f32.xlu0 %v6179
    %v6181 = vpop.xlane.xlu0 %6180
    %v6182 = vsel %vm2612, %v6172, 0.0
    %6183 = vadd.xlane.f32.xlu0 %v6182
    %v6184 = vpop.xlane.xlu0 %6183
    %v6185 = vrcp.pop %v6175
    %v6186 = vmul.f32 %v6166, %v6185
    %v6187 = vrcp.pop %v6178
    %v6188 = vmul.f32 %v6168, %v6187
    %v6189 = vrcp.pop %v6181
    %v6190 = vmul.f32 %v6170, %v6189
    %v6191 = vrcp.pop %v6184
    %v6192 = vmul.f32 %v6172, %v6191
    %v6193 = vpack.c.bf16 %v6188, %v6186
    %v6194 = vpack.c.bf16 %v6192, %v6190
    %v6199 = vunpack.c.l.b16 %v6060
    %v6200 = vunpack.c.l.b16 %v6061
    %v6201 = vunpack.c.l.b16 %v6062
    %v6202 = vunpack.c.l.b16 %v6063
    %v6203 = vpack.c.b16 %v6200, %v6199
    %v6204 = vpack.c.b16 %v6202, %v6201
    %v6208 = vsel %vm2612, %v6193, 0
    %v6211 = vsel %vm2612, %v6194, 0
    %6213 = vmatprep.subr.bf16.mxu0 0
    %6214 = vmatpush1.bf16.msra.mxu0 0
    %6215 = vmatprep.subr.bf16.mxu0 0
    %6216 = vmatpush1.bf16.msra.mxu0 0
    %6217 = vmatprep.subr.bf16.mxu0 0
    %6218 = vmatpush1.bf16.msra.mxu0 0
    %6219 = vmatprep.subr.bf16.mxu0 0
    %6220 = vmatpush1.bf16.msra.mxu0 0
    %6221 = vmatprep.subr.bf16.mxu0 0
    %6222 = vmatpush1.bf16.msra.mxu0 0
    %6223 = vmatprep.subr.bf16.mxu0 0
    %6224 = vmatpush1.bf16.msra.mxu0 0
    %6225 = vmatprep.subr.bf16.mxu0 0
    %6226 = vmatpush1.bf16.msra.mxu0 %v6204
    %6227 = vmatprep.subr.bf16.mxu0 0
    %6228 = vmatpush1.bf16.msra.mxu0 %v6203
    %6229 = vmatprep.subr.bf16.mxu0 0
    %6230 = vmatpush2.bf16.msra.mxu0 0
    %6231 = vmatprep.subr.bf16.mxu0 0
    %6232 = vmatpush2.bf16.msra.mxu0 0
    %6233 = vmatprep.subr.bf16.mxu0 0
    %6234 = vmatpush2.bf16.msra.mxu0 0
    %6235 = vmatprep.subr.bf16.mxu0 0
    %6236 = vmatpush2.bf16.msra.mxu0 0
    %6237 = vmatprep.subr.bf16.mxu0 0
    %6238 = vmatpush2.bf16.msra.mxu0 0
    %6239 = vmatprep.subr.bf16.mxu0 0
    %6240 = vmatpush2.bf16.msra.mxu0 0
    %6241 = vmatprep.subr.bf16.mxu0 0
    %6242 = vmatpush2.bf16.msra.mxu0 0
    %6243 = vmatprep.subr.bf16.mxu0 0
    %6244 = vmatpush2.bf16.msra.mxu0 0
    %6245 = vmatprep.mubr.bf16.mxu0 0
    %6246 = vmatmul.mubr.bf16.gmra.mxu0 %v6208
    %v6247 = vpop.f32.mrf.mxu0
    %v6248 = vadd.f32 0.0, %v6247
    %v6249 = vpop.f32.mrf.mxu0
    %v6250 = vpop.f32.mrf.mxu0
    %v6251 = vadd.f32 0.0, %v6250
    %v6252 = vpop.f32.mrf.mxu0
    %6253 = vmatprep.mubr.bf16.mxu0 0
    %6254 = vmatmul.mubr.bf16.gmra.mxu0 %v6211
    %v6255 = vpop.f32.mrf.mxu0
    %v6256 = vadd.f32 0.0, %v6255
    %v6257 = vpop.f32.mrf.mxu0
    %v6258 = vpop.f32.mrf.mxu0
    %v6259 = vadd.f32 0.0, %v6258
    %v6260 = vpop.f32.mrf.mxu0
    %6261 = vdwg.mxu0
    %v6262 = vld [vmem:[#allocation9 + $0x60] sm:$0xff]
    %v6263 = vld [vmem:[#allocation9 + $0x68] sm:$0xff]
    %v6264 = vld [vmem:[#allocation9 + $0x70] sm:$0xff]
    %v6265 = vld [vmem:[#allocation9 + $0x78] sm:$0xff]
    %v6266 = vld [vmem:[#allocation9 + $0x80] sm:$0xff]
    %v6267 = vld [vmem:[#allocation9 + $0x88] sm:$0xff]
    %v6268 = vld [vmem:[#allocation9 + $0x90] sm:$0xff]
    %v6269 = vld [vmem:[#allocation9 + $0x98] sm:$0xff]
    %v6270 = vld [vmem:[#allocation9 + $0xa0] sm:$0xff]
    %v6271 = vld [vmem:[#allocation9 + $0xa8] sm:$0xff]
    %v6272 = vld [vmem:[#allocation9 + $0xb0] sm:$0xff]
    %v6273 = vld [vmem:[#allocation9 + $0xb8] sm:$0xff]
    %v6274 = vpack.c.bf16 %v6251, %v6248
    %v6275 = vpack.c.bf16 %v6259, %v6256
    %v6276 = vld [vmem:[#allocation8 + $0xc0] sm:$0xff]
    %v6277 = vld [vmem:[#allocation8 + $0xc8] sm:$0xf]
    %v6278 = vld [vmem:[#allocation8 + $0xcc] sm:$0xff]
    %v6279 = vld [vmem:[#allocation8 + $0xd4] sm:$0xf]
    %v6280 = vld [vmem:[#allocation8 + $0xd8] sm:$0xff]
    %v6281 = vld [vmem:[#allocation8 + $0xe0] sm:$0xf]
    %v6282 = vld [vmem:[#allocation8 + $0xe4] sm:$0xff]
    %v6283 = vld [vmem:[#allocation8 + $0xec] sm:$0xf]
    %v6284 = vld [vmem:[#allocation8 + $0xf0] sm:$0xff]
    %v6285 = vld [vmem:[#allocation8 + $0xf8] sm:$0xf]
    %v6286 = vld [vmem:[#allocation8 + $0xfc] sm:$0xff]
    %v6287 = vld [vmem:[#allocation8 + $0x104] sm:$0xf]
    %v6288 = vld [vmem:[#allocation8 + $0x108] sm:$0xff]
    %v6289 = vld [vmem:[#allocation8 + $0x110] sm:$0xf]
    %v6290 = vld [vmem:[#allocation8 + $0x114] sm:$0xff]
    %v6291 = vld [vmem:[#allocation8 + $0x11c] sm:$0xf]
    %v6308 = vunpack.c.l.b16 %v6276
    %v6309 = vunpack.c.h.b16 %v6276
    %v6310 = vunpack.c.l.b16 %v6277
    %v6311 = vunpack.c.l.b16 %v6278
    %v6312 = vunpack.c.h.b16 %v6278
    %v6313 = vunpack.c.l.b16 %v6279
    %v6314 = vunpack.c.l.b16 %v6280
    %v6315 = vunpack.c.h.b16 %v6280
    %v6316 = vunpack.c.l.b16 %v6281
    %v6317 = vunpack.c.l.b16 %v6282
    %v6318 = vunpack.c.h.b16 %v6282
    %v6319 = vunpack.c.l.b16 %v6283
    %v6320 = vunpack.c.l.b16 %v6284
    %v6321 = vunpack.c.h.b16 %v6284
    %v6322 = vunpack.c.l.b16 %v6285
    %v6323 = vunpack.c.l.b16 %v6286
    %v6324 = vunpack.c.h.b16 %v6286
    %v6325 = vunpack.c.l.b16 %v6287
    %v6326 = vunpack.c.l.b16 %v6288
    %v6327 = vunpack.c.h.b16 %v6288
    %v6328 = vunpack.c.l.b16 %v6289
    %v6329 = vunpack.c.l.b16 %v6290
    %v6330 = vunpack.c.h.b16 %v6290
    %v6331 = vunpack.c.l.b16 %v6291
    %v6332 = vpack.c.b16 %v6311, %v6308
    %v6333 = vpack.c.b16 %v6312, %v6309
    %v6334 = vpack.c.b16 %v6313, %v6310
    %v6335 = vpack.c.b16 %v6317, %v6314
    %v6336 = vpack.c.b16 %v6318, %v6315
    %v6337 = vpack.c.b16 %v6319, %v6316
    %v6338 = vpack.c.b16 %v6323, %v6320
    %v6339 = vpack.c.b16 %v6324, %v6321
    %v6340 = vpack.c.b16 %v6325, %v6322
    %v6341 = vpack.c.b16 %v6329, %v6326
    %v6342 = vpack.c.b16 %v6330, %v6327
    %v6343 = vpack.c.b16 %v6331, %v6328
    %v6357 = vsel %vm2546, %v6274, 0
    %v6360 = vsel %vm2546, %v6275, 0
    %6362 = vmatprep.subr.bf16.mxu0 0
    %6363 = vmatpush1.bf16.msra.mxu0 0
    %6364 = vmatprep.subr.bf16.mxu0 0
    %6365 = vmatpush1.bf16.msra.mxu0 0
    %6366 = vmatprep.subr.bf16.mxu0 0
    %6367 = vmatpush1.bf16.msra.mxu0 0
    %6368 = vmatprep.subr.bf16.mxu0 0
    %6369 = vmatpush1.bf16.msra.mxu0 0
    %6370 = vmatprep.subr.bf16.mxu0 %v6342
    %6371 = vmatpush1.bf16.msra.mxu0 %v6341
    %6372 = vmatprep.subr.bf16.mxu0 %v6339
    %6373 = vmatpush1.bf16.msra.mxu0 %v6338
    %6374 = vmatprep.subr.bf16.mxu0 %v6336
    %6375 = vmatpush1.bf16.msra.mxu0 %v6335
    %6376 = vmatprep.subr.bf16.mxu0 %v6333
    %6377 = vmatpush1.bf16.msra.mxu0 %v6332
    %6378 = vmatprep.subr.bf16.mxu0 0
    %6379 = vmatpush2.bf16.msra.mxu0 0
    %6380 = vmatprep.subr.bf16.mxu0 0
    %6381 = vmatpush2.bf16.msra.mxu0 0
    %6382 = vmatprep.subr.bf16.mxu0 0
    %6383 = vmatpush2.bf16.msra.mxu0 0
    %6384 = vmatprep.subr.bf16.mxu0 0
    %6385 = vmatpush2.bf16.msra.mxu0 0
    %6386 = vmatprep.subr.bf16.mxu0 0
    %6387 = vmatpush2.bf16.msra.mxu0 0
    %6388 = vmatprep.subr.bf16.mxu0 0
    %6389 = vmatpush2.bf16.msra.mxu0 0
    %6390 = vmatprep.subr.bf16.mxu0 0
    %6391 = vmatpush2.bf16.msra.mxu0 0
    %6392 = vmatprep.subr.bf16.mxu0 0
    %6393 = vmatpush2.bf16.msra.mxu0 0
    %6394 = vmatprep.mubr.bf16.mxu0 0
    %6395 = vmatmul.mubr.bf16.gmra.mxu0 %v6357
    %v6396 = vpop.f32.mrf.mxu0
    %v6397 = vadd.f32 0.0, %v6396
    %v6398 = vpop.f32.mrf.mxu0
    %v6399 = vadd.f32 0.0, %v6398
    %v6400 = vpop.f32.mrf.mxu0
    %v6401 = vadd.f32 0.0, %v6400
    %v6402 = vpop.f32.mrf.mxu0
    %v6403 = vadd.f32 0.0, %v6402
    %6404 = vmatprep.mubr.bf16.mxu0 0
    %6405 = vmatmul.mubr.bf16.gmra.mxu0 %v6360
    %v6406 = vpop.f32.mrf.mxu0
    %v6407 = vadd.f32 0.0, %v6406
    %v6408 = vpop.f32.mrf.mxu0
    %v6409 = vadd.f32 0.0, %v6408
    %v6410 = vpop.f32.mrf.mxu0
    %v6411 = vadd.f32 0.0, %v6410
    %v6412 = vpop.f32.mrf.mxu0
    %v6413 = vadd.f32 0.0, %v6412
    %6414 = vdwg.mxu0
    %6415 = vmatprep.subr.bf16.mxu0 0
    %6416 = vmatpush1.bf16.msra.mxu0 0
    %6417 = vmatprep.subr.bf16.mxu0 0
    %6418 = vmatpush1.bf16.msra.mxu0 0
    %6419 = vmatprep.subr.bf16.mxu0 0
    %6420 = vmatpush1.bf16.msra.mxu0 0
    %6421 = vmatprep.subr.bf16.mxu0 0
    %6422 = vmatpush1.bf16.msra.mxu0 0
    %6423 = vmatprep.subr.bf16.mxu0 0
    %6424 = vmatpush1.bf16.msra.mxu0 %v6343
    %6425 = vmatprep.subr.bf16.mxu0 0
    %6426 = vmatpush1.bf16.msra.mxu0 %v6340
    %6427 = vmatprep.subr.bf16.mxu0 0
    %6428 = vmatpush1.bf16.msra.mxu0 %v6337
    %6429 = vmatprep.subr.bf16.mxu0 0
    %6430 = vmatpush1.bf16.msra.mxu0 %v6334
    %6431 = vmatprep.subr.bf16.mxu0 0
    %6432 = vmatpush2.bf16.msra.mxu0 0
    %6433 = vmatprep.subr.bf16.mxu0 0
    %6434 = vmatpush2.bf16.msra.mxu0 0
    %6435 = vmatprep.subr.bf16.mxu0 0
    %6436 = vmatpush2.bf16.msra.mxu0 0
    %6437 = vmatprep.subr.bf16.mxu0 0
    %6438 = vmatpush2.bf16.msra.mxu0 0
    %6439 = vmatprep.subr.bf16.mxu0 0
    %6440 = vmatpush2.bf16.msra.mxu0 0
    %6441 = vmatprep.subr.bf16.mxu0 0
    %6442 = vmatpush2.bf16.msra.mxu0 0
    %6443 = vmatprep.subr.bf16.mxu0 0
    %6444 = vmatpush2.bf16.msra.mxu0 0
    %6445 = vmatprep.subr.bf16.mxu0 0
    %6446 = vmatpush2.bf16.msra.mxu0 0
    %6447 = vmatprep.mubr.bf16.mxu0 0
    %6448 = vmatmul.mubr.bf16.gmra.mxu0 %v6357
    %v6449 = vpop.f32.mrf.mxu0
    %v6450 = vadd.f32 0.0, %v6449
    %v6451 = vpop.f32.mrf.mxu0
    %v6452 = vpop.f32.mrf.mxu0
    %v6453 = vadd.f32 0.0, %v6452
    %v6454 = vpop.f32.mrf.mxu0
    %6455 = vmatprep.mubr.bf16.mxu0 0
    %6456 = vmatmul.mubr.bf16.gmra.mxu0 %v6360
    %v6457 = vpop.f32.mrf.mxu0
    %v6458 = vadd.f32 0.0, %v6457
    %v6459 = vpop.f32.mrf.mxu0
    %v6460 = vpop.f32.mrf.mxu0
    %v6461 = vadd.f32 0.0, %v6460
    %v6462 = vpop.f32.mrf.mxu0
    %6463 = vdwg.mxu0
    %v6464 = vadd.f32 %v6262, %v6397
    %v6465 = vadd.f32 %v6263, %v6399
    %v6466 = vadd.f32 %v6264, %v6450
    %v6467 = vadd.f32 %v6265, %v6401
    %v6468 = vadd.f32 %v6266, %v6403
    %v6469 = vadd.f32 %v6267, %v6453
    %v6470 = vadd.f32 %v6268, %v6407
    %v6471 = vadd.f32 %v6269, %v6409
    %v6472 = vadd.f32 %v6270, %v6458
    %v6473 = vadd.f32 %v6271, %v6411
    %v6474 = vadd.f32 %v6272, %v6413
    %v6475 = vadd.f32 %v6273, %v6461
    %6476 = vst [vmem:[#allocation9 + $0x60] sm:$0xff] %v6464
    %6477 = vst [vmem:[#allocation9 + $0x68] sm:$0xff] %v6465
    %6478 = vst [vmem:[#allocation9 + $0x70] sm:$0xff] %v6466
    %6479 = vst [vmem:[#allocation9 + $0x78] sm:$0xff] %v6467
    %6480 = vst [vmem:[#allocation9 + $0x80] sm:$0xff] %v6468
    %6481 = vst [vmem:[#allocation9 + $0x88] sm:$0xff] %v6469
    %6482 = vst [vmem:[#allocation9 + $0x90] sm:$0xff] %v6470
    %6483 = vst [vmem:[#allocation9 + $0x98] sm:$0xff] %v6471
    %6484 = vst [vmem:[#allocation9 + $0xa0] sm:$0xff] %v6472
    %6485 = vst [vmem:[#allocation9 + $0xa8] sm:$0xff] %v6473
    %6486 = vst [vmem:[#allocation9 + $0xb0] sm:$0xff] %v6474
    %6487 = vst [vmem:[#allocation9 + $0xb8] sm:$0xff] %v6475
    %v6488 = vld [vmem:[#allocation2 + $0x94] sm:$0xf]
    %v6489 = vld [vmem:[#allocation2 + $0xb8] sm:$0xf]
    %v6490 = vld [vmem:[#allocation2 + $0xdc] sm:$0xf]
    %v6491 = vld [vmem:[#allocation2 + $0x100] sm:$0xf]
    %v6492 = vld [vmem:[#allocation2 + $0xa0] sm:$0xf]
    %v6493 = vld [vmem:[#allocation2 + $0xc4] sm:$0xf]
    %v6494 = vld [vmem:[#allocation2 + $0xe8] sm:$0xf]
    %v6495 = vld [vmem:[#allocation2 + $0x10c] sm:$0xf]
    %v6496 = vld [vmem:[#allocation2 + $0xac] sm:$0xf]
    %v6497 = vld [vmem:[#allocation2 + $0xd0] sm:$0xf]
    %v6498 = vld [vmem:[#allocation2 + $0xf4] sm:$0xf]
    %v6499 = vld [vmem:[#allocation2 + $0x118] sm:$0xf]
    %v6504 = vunpack.c.l.b16 %v6488
    %v6505 = vunpack.c.l.b16 %v6489
    %v6506 = vunpack.c.l.b16 %v6490
    %v6507 = vunpack.c.l.b16 %v6491
    %v6508 = vpack.c.b16 %v6505, %v6504
    %v6509 = vpack.c.b16 %v6507, %v6506
    %6510 = vrot.lane.b32.xlu0 %v6508, 64
    %v6511 = vpop.permute.xlu0 %6510
    %6512 = vrot.lane.b32.xlu0 %v6509, 64
    %v6513 = vpop.permute.xlu0 %6512
    %v6518 = vunpack.c.l.b16 %v6492
    %v6519 = vunpack.c.l.b16 %v6493
    %v6520 = vunpack.c.l.b16 %v6494
    %v6521 = vunpack.c.l.b16 %v6495
    %v6522 = vpack.c.b16 %v6519, %v6518
    %v6523 = vpack.c.b16 %v6521, %v6520
    %6524 = vrot.lane.b32.xlu0 %v6522, 64
    %v6525 = vpop.permute.xlu0 %6524
    %6526 = vrot.lane.b32.xlu0 %v6523, 64
    %v6527 = vpop.permute.xlu0 %6526
    %v6529 = vsel %vm2546, %v6511, 0
    %v6532 = vsel %vm2546, %v6513, 0
    %v6535 = vsel %vm2546, %v6525, 0
    %v6538 = vsel %vm2546, %v6527, 0
    %6540 = vmatprep.subr.bf16.mxu0 0
    %6541 = vmatpush1.bf16.xpose.msra.mxu0 0
    %6542 = vmatprep.subr.bf16.mxu0 0
    %6543 = vmatpush1.bf16.xpose.msra.mxu0 0
    %6544 = vmatprep.subr.bf16.mxu0 0
    %6545 = vmatpush1.bf16.xpose.msra.mxu0 0
    %6546 = vmatprep.subr.bf16.mxu0 0
    %6547 = vmatpush1.bf16.xpose.msra.mxu0 0
    %6548 = vmatprep.subr.bf16.mxu0 0
    %6549 = vmatpush1.bf16.xpose.msra.mxu0 0
    %6550 = vmatprep.subr.bf16.mxu0 0
    %6551 = vmatpush1.bf16.xpose.msra.mxu0 0
    %6552 = vmatprep.subr.bf16.mxu0 0
    %6553 = vmatpush1.bf16.xpose.msra.mxu0 %v6538
    %6554 = vmatprep.subr.bf16.mxu0 0
    %6555 = vmatpush1.bf16.xpose.msra.mxu0 %v6535
    %6556 = vmatprep.subr.bf16.mxu0 0
    %6557 = vmatpush2.bf16.xpose.msra.mxu0 0
    %6558 = vmatprep.subr.bf16.mxu0 0
    %6559 = vmatpush2.bf16.xpose.msra.mxu0 0
    %6560 = vmatprep.subr.bf16.mxu0 0
    %6561 = vmatpush2.bf16.xpose.msra.mxu0 0
    %6562 = vmatprep.subr.bf16.mxu0 0
    %6563 = vmatpush2.bf16.xpose.msra.mxu0 0
    %6564 = vmatprep.subr.bf16.mxu0 0
    %6565 = vmatpush2.bf16.xpose.msra.mxu0 0
    %6566 = vmatprep.subr.bf16.mxu0 0
    %6567 = vmatpush2.bf16.xpose.msra.mxu0 0
    %6568 = vmatprep.subr.bf16.mxu0 0
    %6569 = vmatpush2.bf16.xpose.msra.mxu0 0
    %6570 = vmatprep.subr.bf16.mxu0 0
    %6571 = vmatpush2.bf16.xpose.msra.mxu0 0
    %6572 = vmatprep.mubr.bf16.mxu0 0
    %6573 = vmatmul.mubr.bf16.gmra.mxu0 %v6529
    %v6574 = vpop.f32.mrf.mxu0
    %v6575 = vadd.f32 0.0, %v6574
    %v6576 = vpop.f32.mrf.mxu0
    %v6577 = vpop.f32.mrf.mxu0
    %v6578 = vadd.f32 0.0, %v6577
    %v6579 = vpop.f32.mrf.mxu0
    %6580 = vmatprep.mubr.bf16.mxu0 0
    %6581 = vmatmul.mubr.bf16.gmra.mxu0 %v6532
    %v6582 = vpop.f32.mrf.mxu0
    %v6583 = vadd.f32 0.0, %v6582
    %v6584 = vpop.f32.mrf.mxu0
    %v6585 = vpop.f32.mrf.mxu0
    %v6586 = vadd.f32 0.0, %v6585
    %v6587 = vpop.f32.mrf.mxu0
    %6588 = vdwg.mxu0
    %v6589 = vsel %vm2510, %v6575, -1e+30
    %v6590 = vsel %vm2511, %v6578, -1e+30
    %v6591 = vsel %vm2512, %v6583, -1e+30
    %v6592 = vsel %vm2513, %v6586, -1e+30
    %v6593 = vsel %vm2612, %v6589, -inf
    %6594 = vmax.xlane.f32.xlu0 %v6593
    %v6595 = vpop.xlane.xlu0 %6594
    %v6596 = vsel %vm2612, %v6590, -inf
    %6597 = vmax.xlane.f32.xlu0 %v6596
    %v6598 = vpop.xlane.xlu0 %6597
    %v6599 = vsel %vm2612, %v6591, -inf
    %6600 = vmax.xlane.f32.xlu0 %v6599
    %v6601 = vpop.xlane.xlu0 %6600
    %v6602 = vsel %vm2612, %v6592, -inf
    %6603 = vmax.xlane.f32.xlu0 %v6602
    %v6604 = vpop.xlane.xlu0 %6603
    %v6605 = vsub.f32 %v6589, %v6595
    %v6606 = vsub.f32 %v6590, %v6598
    %v6607 = vsub.f32 %v6591, %v6601
    %v6608 = vsub.f32 %v6592, %v6604
    %v6609 = vmul.f32 %v6605, 1.442695
    %v6610 = vpow.pop %v6609
    %v6611 = vmul.f32 %v6606, 1.442695
    %v6612 = vpow.pop %v6611
    %v6613 = vmul.f32 %v6607, 1.442695
    %v6614 = vpow.pop %v6613
    %v6615 = vmul.f32 %v6608, 1.442695
    %v6616 = vpow.pop %v6615
    %v6617 = vsel %vm2612, %v6610, 0.0
    %6618 = vadd.xlane.f32.xlu0 %v6617
    %v6619 = vpop.xlane.xlu0 %6618
    %v6620 = vsel %vm2612, %v6612, 0.0
    %6621 = vadd.xlane.f32.xlu0 %v6620
    %v6622 = vpop.xlane.xlu0 %6621
    %v6623 = vsel %vm2612, %v6614, 0.0
    %6624 = vadd.xlane.f32.xlu0 %v6623
    %v6625 = vpop.xlane.xlu0 %6624
    %v6626 = vsel %vm2612, %v6616, 0.0
    %6627 = vadd.xlane.f32.xlu0 %v6626
    %v6628 = vpop.xlane.xlu0 %6627
    %v6629 = vrcp.pop %v6619
    %v6630 = vmul.f32 %v6610, %v6629
    %v6631 = vrcp.pop %v6622
    %v6632 = vmul.f32 %v6612, %v6631
    %v6633 = vrcp.pop %v6625
    %v6634 = vmul.f32 %v6614, %v6633
    %v6635 = vrcp.pop %v6628
    %v6636 = vmul.f32 %v6616, %v6635
    %v6637 = vpack.c.bf16 %v6632, %v6630
    %v6638 = vpack.c.bf16 %v6636, %v6634
    %v6643 = vunpack.c.l.b16 %v6496
    %v6644 = vunpack.c.l.b16 %v6497
    %v6645 = vunpack.c.l.b16 %v6498
    %v6646 = vunpack.c.l.b16 %v6499
    %v6647 = vpack.c.b16 %v6644, %v6643
    %v6648 = vpack.c.b16 %v6646, %v6645
    %6649 = vrot.lane.b32.xlu0 %v6647, 64
    %v6650 = vpop.permute.xlu0 %6649
    %6651 = vrot.lane.b32.xlu0 %v6648, 64
    %v6652 = vpop.permute.xlu0 %6651
    %v6656 = vsel %vm2612, %v6637, 0
    %v6659 = vsel %vm2612, %v6638, 0
    %6661 = vmatprep.subr.bf16.mxu0 0
    %6662 = vmatpush1.bf16.msra.mxu0 0
    %6663 = vmatprep.subr.bf16.mxu0 0
    %6664 = vmatpush1.bf16.msra.mxu0 0
    %6665 = vmatprep.subr.bf16.mxu0 0
    %6666 = vmatpush1.bf16.msra.mxu0 0
    %6667 = vmatprep.subr.bf16.mxu0 0
    %6668 = vmatpush1.bf16.msra.mxu0 0
    %6669 = vmatprep.subr.bf16.mxu0 0
    %6670 = vmatpush1.bf16.msra.mxu0 0
    %6671 = vmatprep.subr.bf16.mxu0 0
    %6672 = vmatpush1.bf16.msra.mxu0 0
    %6673 = vmatprep.subr.bf16.mxu0 0
    %6674 = vmatpush1.bf16.msra.mxu0 %v6652
    %6675 = vmatprep.subr.bf16.mxu0 0
    %6676 = vmatpush1.bf16.msra.mxu0 %v6650
    %6677 = vmatprep.subr.bf16.mxu0 0
    %6678 = vmatpush2.bf16.msra.mxu0 0
    %6679 = vmatprep.subr.bf16.mxu0 0
    %6680 = vmatpush2.bf16.msra.mxu0 0
    %6681 = vmatprep.subr.bf16.mxu0 0
    %6682 = vmatpush2.bf16.msra.mxu0 0
    %6683 = vmatprep.subr.bf16.mxu0 0
    %6684 = vmatpush2.bf16.msra.mxu0 0
    %6685 = vmatprep.subr.bf16.mxu0 0
    %6686 = vmatpush2.bf16.msra.mxu0 0
    %6687 = vmatprep.subr.bf16.mxu0 0
    %6688 = vmatpush2.bf16.msra.mxu0 0
    %6689 = vmatprep.subr.bf16.mxu0 0
    %6690 = vmatpush2.bf16.msra.mxu0 0
    %6691 = vmatprep.subr.bf16.mxu0 0
    %6692 = vmatpush2.bf16.msra.mxu0 0
    %6693 = vmatprep.mubr.bf16.mxu0 0
    %6694 = vmatmul.mubr.bf16.gmra.mxu0 %v6656
    %v6695 = vpop.f32.mrf.mxu0
    %v6696 = vadd.f32 0.0, %v6695
    %v6697 = vpop.f32.mrf.mxu0
    %v6698 = vpop.f32.mrf.mxu0
    %v6699 = vadd.f32 0.0, %v6698
    %v6700 = vpop.f32.mrf.mxu0
    %6701 = vmatprep.mubr.bf16.mxu0 0
    %6702 = vmatmul.mubr.bf16.gmra.mxu0 %v6659
    %v6703 = vpop.f32.mrf.mxu0
    %v6704 = vadd.f32 0.0, %v6703
    %v6705 = vpop.f32.mrf.mxu0
    %v6706 = vpop.f32.mrf.mxu0
    %v6707 = vadd.f32 0.0, %v6706
    %v6708 = vpop.f32.mrf.mxu0
    %6709 = vdwg.mxu0
    %v6710 = vld [vmem:[#allocation9 + $0x60] sm:$0xff]
    %v6711 = vld [vmem:[#allocation9 + $0x68] sm:$0xff]
    %v6712 = vld [vmem:[#allocation9 + $0x70] sm:$0xff]
    %v6713 = vld [vmem:[#allocation9 + $0x78] sm:$0xff]
    %v6714 = vld [vmem:[#allocation9 + $0x80] sm:$0xff]
    %v6715 = vld [vmem:[#allocation9 + $0x88] sm:$0xff]
    %v6716 = vld [vmem:[#allocation9 + $0x90] sm:$0xff]
    %v6717 = vld [vmem:[#allocation9 + $0x98] sm:$0xff]
    %v6718 = vld [vmem:[#allocation9 + $0xa0] sm:$0xff]
    %v6719 = vld [vmem:[#allocation9 + $0xa8] sm:$0xff]
    %v6720 = vld [vmem:[#allocation9 + $0xb0] sm:$0xff]
    %v6721 = vld [vmem:[#allocation9 + $0xb8] sm:$0xff]
    %v6722 = vpack.c.bf16 %v6699, %v6696
    %v6723 = vpack.c.bf16 %v6707, %v6704
    %v6724 = vld [vmem:[#allocation8 + $0x120] sm:$0xff]
    %v6725 = vld [vmem:[#allocation8 + $0x128] sm:$0xf]
    %v6726 = vld [vmem:[#allocation8 + $0x12c] sm:$0xff]
    %v6727 = vld [vmem:[#allocation8 + $0x134] sm:$0xf]
    %v6728 = vld [vmem:[#allocation8 + $0x138] sm:$0xff]
    %v6729 = vld [vmem:[#allocation8 + $0x140] sm:$0xf]
    %v6730 = vld [vmem:[#allocation8 + $0x144] sm:$0xff]
    %v6731 = vld [vmem:[#allocation8 + $0x14c] sm:$0xf]
    %v6732 = vld [vmem:[#allocation8 + $0x150] sm:$0xff]
    %v6733 = vld [vmem:[#allocation8 + $0x158] sm:$0xf]
    %v6734 = vld [vmem:[#allocation8 + $0x15c] sm:$0xff]
    %v6735 = vld [vmem:[#allocation8 + $0x164] sm:$0xf]
    %v6736 = vld [vmem:[#allocation8 + $0x168] sm:$0xff]
    %v6737 = vld [vmem:[#allocation8 + $0x170] sm:$0xf]
    %v6738 = vld [vmem:[#allocation8 + $0x174] sm:$0xff]
    %v6739 = vld [vmem:[#allocation8 + $0x17c] sm:$0xf]
    %v6756 = vunpack.c.l.b16 %v6724
    %v6757 = vunpack.c.h.b16 %v6724
    %v6758 = vunpack.c.l.b16 %v6725
    %v6759 = vunpack.c.l.b16 %v6726
    %v6760 = vunpack.c.h.b16 %v6726
    %v6761 = vunpack.c.l.b16 %v6727
    %v6762 = vunpack.c.l.b16 %v6728
    %v6763 = vunpack.c.h.b16 %v6728
    %v6764 = vunpack.c.l.b16 %v6729
    %v6765 = vunpack.c.l.b16 %v6730
    %v6766 = vunpack.c.h.b16 %v6730
    %v6767 = vunpack.c.l.b16 %v6731
    %v6768 = vunpack.c.l.b16 %v6732
    %v6769 = vunpack.c.h.b16 %v6732
    %v6770 = vunpack.c.l.b16 %v6733
    %v6771 = vunpack.c.l.b16 %v6734
    %v6772 = vunpack.c.h.b16 %v6734
    %v6773 = vunpack.c.l.b16 %v6735
    %v6774 = vunpack.c.l.b16 %v6736
    %v6775 = vunpack.c.h.b16 %v6736
    %v6776 = vunpack.c.l.b16 %v6737
    %v6777 = vunpack.c.l.b16 %v6738
    %v6778 = vunpack.c.h.b16 %v6738
    %v6779 = vunpack.c.l.b16 %v6739
    %v6780 = vpack.c.b16 %v6759, %v6756
    %v6781 = vpack.c.b16 %v6760, %v6757
    %v6782 = vpack.c.b16 %v6761, %v6758
    %v6783 = vpack.c.b16 %v6765, %v6762
    %v6784 = vpack.c.b16 %v6766, %v6763
    %v6785 = vpack.c.b16 %v6767, %v6764
    %v6786 = vpack.c.b16 %v6771, %v6768
    %v6787 = vpack.c.b16 %v6772, %v6769
    %v6788 = vpack.c.b16 %v6773, %v6770
    %v6789 = vpack.c.b16 %v6777, %v6774
    %v6790 = vpack.c.b16 %v6778, %v6775
    %v6791 = vpack.c.b16 %v6779, %v6776
    %v6805 = vsel %vm2546, %v6722, 0
    %v6808 = vsel %vm2546, %v6723, 0
    %6810 = vmatprep.subr.bf16.mxu0 0
    %6811 = vmatpush1.bf16.msra.mxu0 0
    %6812 = vmatprep.subr.bf16.mxu0 0
    %6813 = vmatpush1.bf16.msra.mxu0 0
    %6814 = vmatprep.subr.bf16.mxu0 0
    %6815 = vmatpush1.bf16.msra.mxu0 0
    %6816 = vmatprep.subr.bf16.mxu0 0
    %6817 = vmatpush1.bf16.msra.mxu0 0
    %6818 = vmatprep.subr.bf16.mxu0 %v6790
    %6819 = vmatpush1.bf16.msra.mxu0 %v6789
    %6820 = vmatprep.subr.bf16.mxu0 %v6787
    %6821 = vmatpush1.bf16.msra.mxu0 %v6786
    %6822 = vmatprep.subr.bf16.mxu0 %v6784
    %6823 = vmatpush1.bf16.msra.mxu0 %v6783
    %6824 = vmatprep.subr.bf16.mxu0 %v6781
    %6825 = vmatpush1.bf16.msra.mxu0 %v6780
    %6826 = vmatprep.subr.bf16.mxu0 0
    %6827 = vmatpush2.bf16.msra.mxu0 0
    %6828 = vmatprep.subr.bf16.mxu0 0
    %6829 = vmatpush2.bf16.msra.mxu0 0
    %6830 = vmatprep.subr.bf16.mxu0 0
    %6831 = vmatpush2.bf16.msra.mxu0 0
    %6832 = vmatprep.subr.bf16.mxu0 0
    %6833 = vmatpush2.bf16.msra.mxu0 0
    %6834 = vmatprep.subr.bf16.mxu0 0
    %6835 = vmatpush2.bf16.msra.mxu0 0
    %6836 = vmatprep.subr.bf16.mxu0 0
    %6837 = vmatpush2.bf16.msra.mxu0 0
    %6838 = vmatprep.subr.bf16.mxu0 0
    %6839 = vmatpush2.bf16.msra.mxu0 0
    %6840 = vmatprep.subr.bf16.mxu0 0
    %6841 = vmatpush2.bf16.msra.mxu0 0
    %6842 = vmatprep.mubr.bf16.mxu0 0
    %6843 = vmatmul.mubr.bf16.gmra.mxu0 %v6805
    %v6844 = vpop.f32.mrf.mxu0
    %v6845 = vadd.f32 0.0, %v6844
    %v6846 = vpop.f32.mrf.mxu0
    %v6847 = vadd.f32 0.0, %v6846
    %v6848 = vpop.f32.mrf.mxu0
    %v6849 = vadd.f32 0.0, %v6848
    %v6850 = vpop.f32.mrf.mxu0
    %v6851 = vadd.f32 0.0, %v6850
    %6852 = vmatprep.mubr.bf16.mxu0 0
    %6853 = vmatmul.mubr.bf16.gmra.mxu0 %v6808
    %v6854 = vpop.f32.mrf.mxu0
    %v6855 = vadd.f32 0.0, %v6854
    %v6856 = vpop.f32.mrf.mxu0
    %v6857 = vadd.f32 0.0, %v6856
    %v6858 = vpop.f32.mrf.mxu0
    %v6859 = vadd.f32 0.0, %v6858
    %v6860 = vpop.f32.mrf.mxu0
    %v6861 = vadd.f32 0.0, %v6860
    %6862 = vdwg.mxu0
    %6863 = vmatprep.subr.bf16.mxu0 0
    %6864 = vmatpush1.bf16.msra.mxu0 0
    %6865 = vmatprep.subr.bf16.mxu0 0
    %6866 = vmatpush1.bf16.msra.mxu0 0
    %6867 = vmatprep.subr.bf16.mxu0 0
    %6868 = vmatpush1.bf16.msra.mxu0 0
    %6869 = vmatprep.subr.bf16.mxu0 0
    %6870 = vmatpush1.bf16.msra.mxu0 0
    %6871 = vmatprep.subr.bf16.mxu0 0
    %6872 = vmatpush1.bf16.msra.mxu0 %v6791
    %6873 = vmatprep.subr.bf16.mxu0 0
    %6874 = vmatpush1.bf16.msra.mxu0 %v6788
    %6875 = vmatprep.subr.bf16.mxu0 0
    %6876 = vmatpush1.bf16.msra.mxu0 %v6785
    %6877 = vmatprep.subr.bf16.mxu0 0
    %6878 = vmatpush1.bf16.msra.mxu0 %v6782
    %6879 = vmatprep.subr.bf16.mxu0 0
    %6880 = vmatpush2.bf16.msra.mxu0 0
    %6881 = vmatprep.subr.bf16.mxu0 0
    %6882 = vmatpush2.bf16.msra.mxu0 0
    %6883 = vmatprep.subr.bf16.mxu0 0
    %6884 = vmatpush2.bf16.msra.mxu0 0
    %6885 = vmatprep.subr.bf16.mxu0 0
    %6886 = vmatpush2.bf16.msra.mxu0 0
    %6887 = vmatprep.subr.bf16.mxu0 0
    %6888 = vmatpush2.bf16.msra.mxu0 0
    %6889 = vmatprep.subr.bf16.mxu0 0
    %6890 = vmatpush2.bf16.msra.mxu0 0
    %6891 = vmatprep.subr.bf16.mxu0 0
    %6892 = vmatpush2.bf16.msra.mxu0 0
    %6893 = vmatprep.subr.bf16.mxu0 0
    %6894 = vmatpush2.bf16.msra.mxu0 0
    %6895 = vmatprep.mubr.bf16.mxu0 0
    %6896 = vmatmul.mubr.bf16.gmra.mxu0 %v6805
    %v6897 = vpop.f32.mrf.mxu0
    %v6898 = vadd.f32 0.0, %v6897
    %v6899 = vpop.f32.mrf.mxu0
    %v6900 = vpop.f32.mrf.mxu0
    %v6901 = vadd.f32 0.0, %v6900
    %v6902 = vpop.f32.mrf.mxu0
    %6903 = vmatprep.mubr.bf16.mxu0 0
    %6904 = vmatmul.mubr.bf16.gmra.mxu0 %v6808
    %v6905 = vpop.f32.mrf.mxu0
    %v6906 = vadd.f32 0.0, %v6905
    %v6907 = vpop.f32.mrf.mxu0
    %v6908 = vpop.f32.mrf.mxu0
    %v6909 = vadd.f32 0.0, %v6908
    %v6910 = vpop.f32.mrf.mxu0
    %6911 = vdwg.mxu0
    %v6912 = vadd.f32 %v6710, %v6845
    %v6913 = vadd.f32 %v6711, %v6847
    %v6914 = vadd.f32 %v6712, %v6898
    %v6915 = vadd.f32 %v6713, %v6849
    %v6916 = vadd.f32 %v6714, %v6851
    %v6917 = vadd.f32 %v6715, %v6901
    %v6918 = vadd.f32 %v6716, %v6855
    %v6919 = vadd.f32 %v6717, %v6857
    %v6920 = vadd.f32 %v6718, %v6906
    %v6921 = vadd.f32 %v6719, %v6859
    %v6922 = vadd.f32 %v6720, %v6861
    %v6923 = vadd.f32 %v6721, %v6909
    %6924 = vst [vmem:[#allocation9 + $0x60] sm:$0xff] %v6912
    %6925 = vst [vmem:[#allocation9 + $0x68] sm:$0xff] %v6913
    %6926 = vst [vmem:[#allocation9 + $0x70] sm:$0xff] %v6914
    %6927 = vst [vmem:[#allocation9 + $0x78] sm:$0xff] %v6915
    %6928 = vst [vmem:[#allocation9 + $0x80] sm:$0xff] %v6916
    %6929 = vst [vmem:[#allocation9 + $0x88] sm:$0xff] %v6917
    %6930 = vst [vmem:[#allocation9 + $0x90] sm:$0xff] %v6918
    %6931 = vst [vmem:[#allocation9 + $0x98] sm:$0xff] %v6919
    %6932 = vst [vmem:[#allocation9 + $0xa0] sm:$0xff] %v6920
    %6933 = vst [vmem:[#allocation9 + $0xa8] sm:$0xff] %v6921
    %6934 = vst [vmem:[#allocation9 + $0xb0] sm:$0xff] %v6922
    %6935 = vst [vmem:[#allocation9 + $0xb8] sm:$0xff] %v6923
    %v6936 = vld [vmem:[#allocation2 + $0x98] sm:$0xf]
    %v6937 = vld [vmem:[#allocation2 + $0xbc] sm:$0xf]
    %v6938 = vld [vmem:[#allocation2 + $0xe0] sm:$0xf]
    %v6939 = vld [vmem:[#allocation2 + $0x104] sm:$0xf]
    %v6940 = vld [vmem:[#allocation2 + $0xa4] sm:$0xf]
    %v6941 = vld [vmem:[#allocation2 + $0xc8] sm:$0xf]
    %v6942 = vld [vmem:[#allocation2 + $0xec] sm:$0xf]
    %v6943 = vld [vmem:[#allocation2 + $0x110] sm:$0xf]
    %v6944 = vld [vmem:[#allocation2 + $0xb0] sm:$0xf]
    %v6945 = vld [vmem:[#allocation2 + $0xd4] sm:$0xf]
    %v6946 = vld [vmem:[#allocation2 + $0xf8] sm:$0xf]
    %v6947 = vld [vmem:[#allocation2 + $0x11c] sm:$0xf]
    %v6952 = vunpack.c.l.b16 %v6936
    %v6953 = vunpack.c.l.b16 %v6937
    %v6954 = vunpack.c.l.b16 %v6938
    %v6955 = vunpack.c.l.b16 %v6939
    %v6956 = vpack.c.b16 %v6953, %v6952
    %v6957 = vpack.c.b16 %v6955, %v6954
    %v6962 = vunpack.c.l.b16 %v6940
    %v6963 = vunpack.c.l.b16 %v6941
    %v6964 = vunpack.c.l.b16 %v6942
    %v6965 = vunpack.c.l.b16 %v6943
    %v6966 = vpack.c.b16 %v6963, %v6962
    %v6967 = vpack.c.b16 %v6965, %v6964
    %v6969 = vsel %vm2546, %v6956, 0
    %v6972 = vsel %vm2546, %v6957, 0
    %v6975 = vsel %vm2546, %v6966, 0
    %v6978 = vsel %vm2546, %v6967, 0
    %6980 = vmatprep.subr.bf16.mxu0 0
    %6981 = vmatpush1.bf16.xpose.msra.mxu0 0
    %6982 = vmatprep.subr.bf16.mxu0 0
    %6983 = vmatpush1.bf16.xpose.msra.mxu0 0
    %6984 = vmatprep.subr.bf16.mxu0 0
    %6985 = vmatpush1.bf16.xpose.msra.mxu0 0
    %6986 = vmatprep.subr.bf16.mxu0 0
    %6987 = vmatpush1.bf16.xpose.msra.mxu0 0
    %6988 = vmatprep.subr.bf16.mxu0 0
    %6989 = vmatpush1.bf16.xpose.msra.mxu0 0
    %6990 = vmatprep.subr.bf16.mxu0 0
    %6991 = vmatpush1.bf16.xpose.msra.mxu0 0
    %6992 = vmatprep.subr.bf16.mxu0 0
    %6993 = vmatpush1.bf16.xpose.msra.mxu0 %v6978
    %6994 = vmatprep.subr.bf16.mxu0 0
    %6995 = vmatpush1.bf16.xpose.msra.mxu0 %v6975
    %6996 = vmatprep.subr.bf16.mxu0 0
    %6997 = vmatpush2.bf16.xpose.msra.mxu0 0
    %6998 = vmatprep.subr.bf16.mxu0 0
    %6999 = vmatpush2.bf16.xpose.msra.mxu0 0
    %7000 = vmatprep.subr.bf16.mxu0 0
    %7001 = vmatpush2.bf16.xpose.msra.mxu0 0
    %7002 = vmatprep.subr.bf16.mxu0 0
    %7003 = vmatpush2.bf16.xpose.msra.mxu0 0
    %7004 = vmatprep.subr.bf16.mxu0 0
    %7005 = vmatpush2.bf16.xpose.msra.mxu0 0
    %7006 = vmatprep.subr.bf16.mxu0 0
    %7007 = vmatpush2.bf16.xpose.msra.mxu0 0
    %7008 = vmatprep.subr.bf16.mxu0 0
    %7009 = vmatpush2.bf16.xpose.msra.mxu0 0
    %7010 = vmatprep.subr.bf16.mxu0 0
    %7011 = vmatpush2.bf16.xpose.msra.mxu0 0
    %7012 = vmatprep.mubr.bf16.mxu0 0
    %7013 = vmatmul.mubr.bf16.gmra.mxu0 %v6969
    %v7014 = vpop.f32.mrf.mxu0
    %v7015 = vadd.f32 0.0, %v7014
    %v7016 = vpop.f32.mrf.mxu0
    %v7017 = vpop.f32.mrf.mxu0
    %v7018 = vadd.f32 0.0, %v7017
    %v7019 = vpop.f32.mrf.mxu0
    %7020 = vmatprep.mubr.bf16.mxu0 0
    %7021 = vmatmul.mubr.bf16.gmra.mxu0 %v6972
    %v7022 = vpop.f32.mrf.mxu0
    %v7023 = vadd.f32 0.0, %v7022
    %v7024 = vpop.f32.mrf.mxu0
    %v7025 = vpop.f32.mrf.mxu0
    %v7026 = vadd.f32 0.0, %v7025
    %v7027 = vpop.f32.mrf.mxu0
    %7028 = vdwg.mxu0
    %v7029 = vsel %vm2510, %v7015, -1e+30
    %v7030 = vsel %vm2511, %v7018, -1e+30
    %v7031 = vsel %vm2512, %v7023, -1e+30
    %v7032 = vsel %vm2513, %v7026, -1e+30
    %v7033 = vsel %vm2612, %v7029, -inf
    %7034 = vmax.xlane.f32.xlu0 %v7033
    %v7035 = vpop.xlane.xlu0 %7034
    %v7036 = vsel %vm2612, %v7030, -inf
    %7037 = vmax.xlane.f32.xlu0 %v7036
    %v7038 = vpop.xlane.xlu0 %7037
    %v7039 = vsel %vm2612, %v7031, -inf
    %7040 = vmax.xlane.f32.xlu0 %v7039
    %v7041 = vpop.xlane.xlu0 %7040
    %v7042 = vsel %vm2612, %v7032, -inf
    %7043 = vmax.xlane.f32.xlu0 %v7042
    %v7044 = vpop.xlane.xlu0 %7043
    %v7045 = vsub.f32 %v7029, %v7035
    %v7046 = vsub.f32 %v7030, %v7038
    %v7047 = vsub.f32 %v7031, %v7041
    %v7048 = vsub.f32 %v7032, %v7044
    %v7049 = vmul.f32 %v7045, 1.442695
    %v7050 = vpow.pop %v7049
    %v7051 = vmul.f32 %v7046, 1.442695
    %v7052 = vpow.pop %v7051
    %v7053 = vmul.f32 %v7047, 1.442695
    %v7054 = vpow.pop %v7053
    %v7055 = vmul.f32 %v7048, 1.442695
    %v7056 = vpow.pop %v7055
    %v7057 = vsel %vm2612, %v7050, 0.0
    %7058 = vadd.xlane.f32.xlu0 %v7057
    %v7059 = vpop.xlane.xlu0 %7058
    %v7060 = vsel %vm2612, %v7052, 0.0
    %7061 = vadd.xlane.f32.xlu0 %v7060
    %v7062 = vpop.xlane.xlu0 %7061
    %v7063 = vsel %vm2612, %v7054, 0.0
    %7064 = vadd.xlane.f32.xlu0 %v7063
    %v7065 = vpop.xlane.xlu0 %7064
    %v7066 = vsel %vm2612, %v7056, 0.0
    %7067 = vadd.xlane.f32.xlu0 %v7066
    %v7068 = vpop.xlane.xlu0 %7067
    %v7069 = vrcp.pop %v7059
    %v7070 = vmul.f32 %v7050, %v7069
    %v7071 = vrcp.pop %v7062
    %v7072 = vmul.f32 %v7052, %v7071
    %v7073 = vrcp.pop %v7065
    %v7074 = vmul.f32 %v7054, %v7073
    %v7075 = vrcp.pop %v7068
    %v7076 = vmul.f32 %v7056, %v7075
    %v7077 = vpack.c.bf16 %v7072, %v7070
    %v7078 = vpack.c.bf16 %v7076, %v7074
    %v7083 = vunpack.c.l.b16 %v6944
    %v7084 = vunpack.c.l.b16 %v6945
    %v7085 = vunpack.c.l.b16 %v6946
    %v7086 = vunpack.c.l.b16 %v6947
    %v7087 = vpack.c.b16 %v7084, %v7083
    %v7088 = vpack.c.b16 %v7086, %v7085
    %v7092 = vsel %vm2612, %v7077, 0
    %v7095 = vsel %vm2612, %v7078, 0
    %7097 = vmatprep.subr.bf16.mxu0 0
    %7098 = vmatpush1.bf16.msra.mxu0 0
    %7099 = vmatprep.subr.bf16.mxu0 0
    %7100 = vmatpush1.bf16.msra.mxu0 0
    %7101 = vmatprep.subr.bf16.mxu0 0
    %7102 = vmatpush1.bf16.msra.mxu0 0
    %7103 = vmatprep.subr.bf16.mxu0 0
    %7104 = vmatpush1.bf16.msra.mxu0 0
    %7105 = vmatprep.subr.bf16.mxu0 0
    %7106 = vmatpush1.bf16.msra.mxu0 0
    %7107 = vmatprep.subr.bf16.mxu0 0
    %7108 = vmatpush1.bf16.msra.mxu0 0
    %7109 = vmatprep.subr.bf16.mxu0 0
    %7110 = vmatpush1.bf16.msra.mxu0 %v7088
    %7111 = vmatprep.subr.bf16.mxu0 0
    %7112 = vmatpush1.bf16.msra.mxu0 %v7087
    %7113 = vmatprep.subr.bf16.mxu0 0
    %7114 = vmatpush2.bf16.msra.mxu0 0
    %7115 = vmatprep.subr.bf16.mxu0 0
    %7116 = vmatpush2.bf16.msra.mxu0 0
    %7117 = vmatprep.subr.bf16.mxu0 0
    %7118 = vmatpush2.bf16.msra.mxu0 0
    %7119 = vmatprep.subr.bf16.mxu0 0
    %7120 = vmatpush2.bf16.msra.mxu0 0
    %7121 = vmatprep.subr.bf16.mxu0 0
    %7122 = vmatpush2.bf16.msra.mxu0 0
    %7123 = vmatprep.subr.bf16.mxu0 0
    %7124 = vmatpush2.bf16.msra.mxu0 0
    %7125 = vmatprep.subr.bf16.mxu0 0
    %7126 = vmatpush2.bf16.msra.mxu0 0
    %7127 = vmatprep.subr.bf16.mxu0 0
    %7128 = vmatpush2.bf16.msra.mxu0 0
    %7129 = vmatprep.mubr.bf16.mxu0 0
    %7130 = vmatmul.mubr.bf16.gmra.mxu0 %v7092
    %v7131 = vpop.f32.mrf.mxu0
    %v7132 = vadd.f32 0.0, %v7131
    %v7133 = vpop.f32.mrf.mxu0
    %v7134 = vpop.f32.mrf.mxu0
    %v7135 = vadd.f32 0.0, %v7134
    %v7136 = vpop.f32.mrf.mxu0
    %7137 = vmatprep.mubr.bf16.mxu0 0
    %7138 = vmatmul.mubr.bf16.gmra.mxu0 %v7095
    %v7139 = vpop.f32.mrf.mxu0
    %v7140 = vadd.f32 0.0, %v7139
    %v7141 = vpop.f32.mrf.mxu0
    %v7142 = vpop.f32.mrf.mxu0
    %v7143 = vadd.f32 0.0, %v7142
    %v7144 = vpop.f32.mrf.mxu0
    %7145 = vdwg.mxu0
    %v7146 = vld [vmem:[#allocation9 + $0x60] sm:$0xff]
    %v7147 = vld [vmem:[#allocation9 + $0x68] sm:$0xff]
    %v7148 = vld [vmem:[#allocation9 + $0x70] sm:$0xff]
    %v7149 = vld [vmem:[#allocation9 + $0x78] sm:$0xff]
    %v7150 = vld [vmem:[#allocation9 + $0x80] sm:$0xff]
    %v7151 = vld [vmem:[#allocation9 + $0x88] sm:$0xff]
    %v7152 = vld [vmem:[#allocation9 + $0x90] sm:$0xff]
    %v7153 = vld [vmem:[#allocation9 + $0x98] sm:$0xff]
    %v7154 = vld [vmem:[#allocation9 + $0xa0] sm:$0xff]
    %v7155 = vld [vmem:[#allocation9 + $0xa8] sm:$0xff]
    %v7156 = vld [vmem:[#allocation9 + $0xb0] sm:$0xff]
    %v7157 = vld [vmem:[#allocation9 + $0xb8] sm:$0xff]
    %v7158 = vpack.c.bf16 %v7135, %v7132
    %v7159 = vpack.c.bf16 %v7143, %v7140
    %v7160 = vld [vmem:[#allocation8 + $0x180] sm:$0xff]
    %v7161 = vld [vmem:[#allocation8 + $0x188] sm:$0xf]
    %v7162 = vld [vmem:[#allocation8 + $0x18c] sm:$0xff]
    %v7163 = vld [vmem:[#allocation8 + $0x194] sm:$0xf]
    %v7164 = vld [vmem:[#allocation8 + $0x198] sm:$0xff]
    %v7165 = vld [vmem:[#allocation8 + $0x1a0] sm:$0xf]
    %v7166 = vld [vmem:[#allocation8 + $0x1a4] sm:$0xff]
    %v7167 = vld [vmem:[#allocation8 + $0x1ac] sm:$0xf]
    %v7168 = vld [vmem:[#allocation8 + $0x1b0] sm:$0xff]
    %v7169 = vld [vmem:[#allocation8 + $0x1b8] sm:$0xf]
    %v7170 = vld [vmem:[#allocation8 + $0x1bc] sm:$0xff]
    %v7171 = vld [vmem:[#allocation8 + $0x1c4] sm:$0xf]
    %v7172 = vld [vmem:[#allocation8 + $0x1c8] sm:$0xff]
    %v7173 = vld [vmem:[#allocation8 + $0x1d0] sm:$0xf]
    %v7174 = vld [vmem:[#allocation8 + $0x1d4] sm:$0xff]
    %v7175 = vld [vmem:[#allocation8 + $0x1dc] sm:$0xf]
    %v7192 = vunpack.c.l.b16 %v7160
    %v7193 = vunpack.c.h.b16 %v7160
    %v7194 = vunpack.c.l.b16 %v7161
    %v7195 = vunpack.c.l.b16 %v7162
    %v7196 = vunpack.c.h.b16 %v7162
    %v7197 = vunpack.c.l.b16 %v7163
    %v7198 = vunpack.c.l.b16 %v7164
    %v7199 = vunpack.c.h.b16 %v7164
    %v7200 = vunpack.c.l.b16 %v7165
    %v7201 = vunpack.c.l.b16 %v7166
    %v7202 = vunpack.c.h.b16 %v7166
    %v7203 = vunpack.c.l.b16 %v7167
    %v7204 = vunpack.c.l.b16 %v7168
    %v7205 = vunpack.c.h.b16 %v7168
    %v7206 = vunpack.c.l.b16 %v7169
    %v7207 = vunpack.c.l.b16 %v7170
    %v7208 = vunpack.c.h.b16 %v7170
    %v7209 = vunpack.c.l.b16 %v7171
    %v7210 = vunpack.c.l.b16 %v7172
    %v7211 = vunpack.c.h.b16 %v7172
    %v7212 = vunpack.c.l.b16 %v7173
    %v7213 = vunpack.c.l.b16 %v7174
    %v7214 = vunpack.c.h.b16 %v7174
    %v7215 = vunpack.c.l.b16 %v7175
    %v7216 = vpack.c.b16 %v7195, %v7192
    %v7217 = vpack.c.b16 %v7196, %v7193
    %v7218 = vpack.c.b16 %v7197, %v7194
    %v7219 = vpack.c.b16 %v7201, %v7198
    %v7220 = vpack.c.b16 %v7202, %v7199
    %v7221 = vpack.c.b16 %v7203, %v7200
    %v7222 = vpack.c.b16 %v7207, %v7204
    %v7223 = vpack.c.b16 %v7208, %v7205
    %v7224 = vpack.c.b16 %v7209, %v7206
    %v7225 = vpack.c.b16 %v7213, %v7210
    %v7226 = vpack.c.b16 %v7214, %v7211
    %v7227 = vpack.c.b16 %v7215, %v7212
    %v7241 = vsel %vm2546, %v7158, 0
    %v7244 = vsel %vm2546, %v7159, 0
    %7246 = vmatprep.subr.bf16.mxu0 0
    %7247 = vmatpush1.bf16.msra.mxu0 0
    %7248 = vmatprep.subr.bf16.mxu0 0
    %7249 = vmatpush1.bf16.msra.mxu0 0
    %7250 = vmatprep.subr.bf16.mxu0 0
    %7251 = vmatpush1.bf16.msra.mxu0 0
    %7252 = vmatprep.subr.bf16.mxu0 0
    %7253 = vmatpush1.bf16.msra.mxu0 0
    %7254 = vmatprep.subr.bf16.mxu0 %v7226
    %7255 = vmatpush1.bf16.msra.mxu0 %v7225
    %7256 = vmatprep.subr.bf16.mxu0 %v7223
    %7257 = vmatpush1.bf16.msra.mxu0 %v7222
    %7258 = vmatprep.subr.bf16.mxu0 %v7220
    %7259 = vmatpush1.bf16.msra.mxu0 %v7219
    %7260 = vmatprep.subr.bf16.mxu0 %v7217
    %7261 = vmatpush1.bf16.msra.mxu0 %v7216
    %7262 = vmatprep.subr.bf16.mxu0 0
    %7263 = vmatpush2.bf16.msra.mxu0 0
    %7264 = vmatprep.subr.bf16.mxu0 0
    %7265 = vmatpush2.bf16.msra.mxu0 0
    %7266 = vmatprep.subr.bf16.mxu0 0
    %7267 = vmatpush2.bf16.msra.mxu0 0
    %7268 = vmatprep.subr.bf16.mxu0 0
    %7269 = vmatpush2.bf16.msra.mxu0 0
    %7270 = vmatprep.subr.bf16.mxu0 0
    %7271 = vmatpush2.bf16.msra.mxu0 0
    %7272 = vmatprep.subr.bf16.mxu0 0
    %7273 = vmatpush2.bf16.msra.mxu0 0
    %7274 = vmatprep.subr.bf16.mxu0 0
    %7275 = vmatpush2.bf16.msra.mxu0 0
    %7276 = vmatprep.subr.bf16.mxu0 0
    %7277 = vmatpush2.bf16.msra.mxu0 0
    %7278 = vmatprep.mubr.bf16.mxu0 0
    %7279 = vmatmul.mubr.bf16.gmra.mxu0 %v7241
    %v7280 = vpop.f32.mrf.mxu0
    %v7281 = vadd.f32 0.0, %v7280
    %v7282 = vpop.f32.mrf.mxu0
    %v7283 = vadd.f32 0.0, %v7282
    %v7284 = vpop.f32.mrf.mxu0
    %v7285 = vadd.f32 0.0, %v7284
    %v7286 = vpop.f32.mrf.mxu0
    %v7287 = vadd.f32 0.0, %v7286
    %7288 = vmatprep.mubr.bf16.mxu0 0
    %7289 = vmatmul.mubr.bf16.gmra.mxu0 %v7244
    %v7290 = vpop.f32.mrf.mxu0
    %v7291 = vadd.f32 0.0, %v7290
    %v7292 = vpop.f32.mrf.mxu0
    %v7293 = vadd.f32 0.0, %v7292
    %v7294 = vpop.f32.mrf.mxu0
    %v7295 = vadd.f32 0.0, %v7294
    %v7296 = vpop.f32.mrf.mxu0
    %v7297 = vadd.f32 0.0, %v7296
    %7298 = vdwg.mxu0
    %7299 = vmatprep.subr.bf16.mxu0 0
    %7300 = vmatpush1.bf16.msra.mxu0 0
    %7301 = vmatprep.subr.bf16.mxu0 0
    %7302 = vmatpush1.bf16.msra.mxu0 0
    %7303 = vmatprep.subr.bf16.mxu0 0
    %7304 = vmatpush1.bf16.msra.mxu0 0
    %7305 = vmatprep.subr.bf16.mxu0 0
    %7306 = vmatpush1.bf16.msra.mxu0 0
    %7307 = vmatprep.subr.bf16.mxu0 0
    %7308 = vmatpush1.bf16.msra.mxu0 %v7227
    %7309 = vmatprep.subr.bf16.mxu0 0
    %7310 = vmatpush1.bf16.msra.mxu0 %v7224
    %7311 = vmatprep.subr.bf16.mxu0 0
    %7312 = vmatpush1.bf16.msra.mxu0 %v7221
    %7313 = vmatprep.subr.bf16.mxu0 0
    %7314 = vmatpush1.bf16.msra.mxu0 %v7218
    %7315 = vmatprep.subr.bf16.mxu0 0
    %7316 = vmatpush2.bf16.msra.mxu0 0
    %7317 = vmatprep.subr.bf16.mxu0 0
    %7318 = vmatpush2.bf16.msra.mxu0 0
    %7319 = vmatprep.subr.bf16.mxu0 0
    %7320 = vmatpush2.bf16.msra.mxu0 0
    %7321 = vmatprep.subr.bf16.mxu0 0
    %7322 = vmatpush2.bf16.msra.mxu0 0
    %7323 = vmatprep.subr.bf16.mxu0 0
    %7324 = vmatpush2.bf16.msra.mxu0 0
    %7325 = vmatprep.subr.bf16.mxu0 0
    %7326 = vmatpush2.bf16.msra.mxu0 0
    %7327 = vmatprep.subr.bf16.mxu0 0
    %7328 = vmatpush2.bf16.msra.mxu0 0
    %7329 = vmatprep.subr.bf16.mxu0 0
    %7330 = vmatpush2.bf16.msra.mxu0 0
    %7331 = vmatprep.mubr.bf16.mxu0 0
    %7332 = vmatmul.mubr.bf16.gmra.mxu0 %v7241
    %v7333 = vpop.f32.mrf.mxu0
    %v7334 = vadd.f32 0.0, %v7333
    %v7335 = vpop.f32.mrf.mxu0
    %v7336 = vpop.f32.mrf.mxu0
    %v7337 = vadd.f32 0.0, %v7336
    %v7338 = vpop.f32.mrf.mxu0
    %7339 = vmatprep.mubr.bf16.mxu0 0
    %7340 = vmatmul.mubr.bf16.gmra.mxu0 %v7244
    %v7341 = vpop.f32.mrf.mxu0
    %v7342 = vadd.f32 0.0, %v7341
    %v7343 = vpop.f32.mrf.mxu0
    %v7344 = vpop.f32.mrf.mxu0
    %v7345 = vadd.f32 0.0, %v7344
    %v7346 = vpop.f32.mrf.mxu0
    %7347 = vdwg.mxu0
    %v7348 = vadd.f32 %v7146, %v7281
    %v7349 = vadd.f32 %v7147, %v7283
    %v7350 = vadd.f32 %v7148, %v7334
    %v7351 = vadd.f32 %v7149, %v7285
    %v7352 = vadd.f32 %v7150, %v7287
    %v7353 = vadd.f32 %v7151, %v7337
    %v7354 = vadd.f32 %v7152, %v7291
    %v7355 = vadd.f32 %v7153, %v7293
    %v7356 = vadd.f32 %v7154, %v7342
    %v7357 = vadd.f32 %v7155, %v7295
    %v7358 = vadd.f32 %v7156, %v7297
    %v7359 = vadd.f32 %v7157, %v7345
    %7360 = vst [vmem:[#allocation9 + $0x60] sm:$0xff] %v7348
    %7361 = vst [vmem:[#allocation9 + $0x68] sm:$0xff] %v7349
    %7362 = vst [vmem:[#allocation9 + $0x70] sm:$0xff] %v7350
    %7363 = vst [vmem:[#allocation9 + $0x78] sm:$0xff] %v7351
    %7364 = vst [vmem:[#allocation9 + $0x80] sm:$0xff] %v7352
    %7365 = vst [vmem:[#allocation9 + $0x88] sm:$0xff] %v7353
    %7366 = vst [vmem:[#allocation9 + $0x90] sm:$0xff] %v7354
    %7367 = vst [vmem:[#allocation9 + $0x98] sm:$0xff] %v7355
    %7368 = vst [vmem:[#allocation9 + $0xa0] sm:$0xff] %v7356
    %7369 = vst [vmem:[#allocation9 + $0xa8] sm:$0xff] %v7357
    %7370 = vst [vmem:[#allocation9 + $0xb0] sm:$0xff] %v7358
    %7371 = vst [vmem:[#allocation9 + $0xb8] sm:$0xff] %v7359
    %v7372 = vld [vmem:[#allocation2 + $0x98] sm:$0xf]
    %v7373 = vld [vmem:[#allocation2 + $0xbc] sm:$0xf]
    %v7374 = vld [vmem:[#allocation2 + $0xe0] sm:$0xf]
    %v7375 = vld [vmem:[#allocation2 + $0x104] sm:$0xf]
    %v7376 = vld [vmem:[#allocation2 + $0xa4] sm:$0xf]
    %v7377 = vld [vmem:[#allocation2 + $0xc8] sm:$0xf]
    %v7378 = vld [vmem:[#allocation2 + $0xec] sm:$0xf]
    %v7379 = vld [vmem:[#allocation2 + $0x110] sm:$0xf]
    %v7380 = vld [vmem:[#allocation2 + $0xb0] sm:$0xf]
    %v7381 = vld [vmem:[#allocation2 + $0xd4] sm:$0xf]
    %v7382 = vld [vmem:[#allocation2 + $0xf8] sm:$0xf]
    %v7383 = vld [vmem:[#allocation2 + $0x11c] sm:$0xf]
    %v7388 = vunpack.c.l.b16 %v7372
    %v7389 = vunpack.c.l.b16 %v7373
    %v7390 = vunpack.c.l.b16 %v7374
    %v7391 = vunpack.c.l.b16 %v7375
    %v7392 = vpack.c.b16 %v7389, %v7388
    %v7393 = vpack.c.b16 %v7391, %v7390
    %7394 = vrot.lane.b32.xlu0 %v7392, 64
    %v7395 = vpop.permute.xlu0 %7394
    %7396 = vrot.lane.b32.xlu0 %v7393, 64
    %v7397 = vpop.permute.xlu0 %7396
    %v7402 = vunpack.c.l.b16 %v7376
    %v7403 = vunpack.c.l.b16 %v7377
    %v7404 = vunpack.c.l.b16 %v7378
    %v7405 = vunpack.c.l.b16 %v7379
    %v7406 = vpack.c.b16 %v7403, %v7402
    %v7407 = vpack.c.b16 %v7405, %v7404
    %7408 = vrot.lane.b32.xlu0 %v7406, 64
    %v7409 = vpop.permute.xlu0 %7408
    %7410 = vrot.lane.b32.xlu0 %v7407, 64
    %v7411 = vpop.permute.xlu0 %7410
    %v7413 = vsel %vm2546, %v7395, 0
    %v7416 = vsel %vm2546, %v7397, 0
    %v7419 = vsel %vm2546, %v7409, 0
    %v7422 = vsel %vm2546, %v7411, 0
    %7424 = vmatprep.subr.bf16.mxu0 0
    %7425 = vmatpush1.bf16.xpose.msra.mxu0 0
    %7426 = vmatprep.subr.bf16.mxu0 0
    %7427 = vmatpush1.bf16.xpose.msra.mxu0 0
    %7428 = vmatprep.subr.bf16.mxu0 0
    %7429 = vmatpush1.bf16.xpose.msra.mxu0 0
    %7430 = vmatprep.subr.bf16.mxu0 0
    %7431 = vmatpush1.bf16.xpose.msra.mxu0 0
    %7432 = vmatprep.subr.bf16.mxu0 0
    %7433 = vmatpush1.bf16.xpose.msra.mxu0 0
    %7434 = vmatprep.subr.bf16.mxu0 0
    %7435 = vmatpush1.bf16.xpose.msra.mxu0 0
    %7436 = vmatprep.subr.bf16.mxu0 0
    %7437 = vmatpush1.bf16.xpose.msra.mxu0 %v7422
    %7438 = vmatprep.subr.bf16.mxu0 0
    %7439 = vmatpush1.bf16.xpose.msra.mxu0 %v7419
    %7440 = vmatprep.subr.bf16.mxu0 0
    %7441 = vmatpush2.bf16.xpose.msra.mxu0 0
    %7442 = vmatprep.subr.bf16.mxu0 0
    %7443 = vmatpush2.bf16.xpose.msra.mxu0 0
    %7444 = vmatprep.subr.bf16.mxu0 0
    %7445 = vmatpush2.bf16.xpose.msra.mxu0 0
    %7446 = vmatprep.subr.bf16.mxu0 0
    %7447 = vmatpush2.bf16.xpose.msra.mxu0 0
    %7448 = vmatprep.subr.bf16.mxu0 0
    %7449 = vmatpush2.bf16.xpose.msra.mxu0 0
    %7450 = vmatprep.subr.bf16.mxu0 0
    %7451 = vmatpush2.bf16.xpose.msra.mxu0 0
    %7452 = vmatprep.subr.bf16.mxu0 0
    %7453 = vmatpush2.bf16.xpose.msra.mxu0 0
    %7454 = vmatprep.subr.bf16.mxu0 0
    %7455 = vmatpush2.bf16.xpose.msra.mxu0 0
    %7456 = vmatprep.mubr.bf16.mxu0 0
    %7457 = vmatmul.mubr.bf16.gmra.mxu0 %v7413
    %v7458 = vpop.f32.mrf.mxu0
    %v7459 = vadd.f32 0.0, %v7458
    %v7460 = vpop.f32.mrf.mxu0
    %v7461 = vpop.f32.mrf.mxu0
    %v7462 = vadd.f32 0.0, %v7461
    %v7463 = vpop.f32.mrf.mxu0
    %7464 = vmatprep.mubr.bf16.mxu0 0
    %7465 = vmatmul.mubr.bf16.gmra.mxu0 %v7416
    %v7466 = vpop.f32.mrf.mxu0
    %v7467 = vadd.f32 0.0, %v7466
    %v7468 = vpop.f32.mrf.mxu0
    %v7469 = vpop.f32.mrf.mxu0
    %v7470 = vadd.f32 0.0, %v7469
    %v7471 = vpop.f32.mrf.mxu0
    %7472 = vdwg.mxu0
    %v7473 = vsel %vm2510, %v7459, -1e+30
    %v7474 = vsel %vm2511, %v7462, -1e+30
    %v7475 = vsel %vm2512, %v7467, -1e+30
    %v7476 = vsel %vm2513, %v7470, -1e+30
    %v7477 = vsel %vm2612, %v7473, -inf
    %7478 = vmax.xlane.f32.xlu0 %v7477
    %v7479 = vpop.xlane.xlu0 %7478
    %v7480 = vsel %vm2612, %v7474, -inf
    %7481 = vmax.xlane.f32.xlu0 %v7480
    %v7482 = vpop.xlane.xlu0 %7481
    %v7483 = vsel %vm2612, %v7475, -inf
    %7484 = vmax.xlane.f32.xlu0 %v7483
    %v7485 = vpop.xlane.xlu0 %7484
    %v7486 = vsel %vm2612, %v7476, -inf
    %7487 = vmax.xlane.f32.xlu0 %v7486
    %v7488 = vpop.xlane.xlu0 %7487
    %v7489 = vsub.f32 %v7473, %v7479
    %v7490 = vsub.f32 %v7474, %v7482
    %v7491 = vsub.f32 %v7475, %v7485
    %v7492 = vsub.f32 %v7476, %v7488
    %v7493 = vmul.f32 %v7489, 1.442695
    %v7494 = vpow.pop %v7493
    %v7495 = vmul.f32 %v7490, 1.442695
    %v7496 = vpow.pop %v7495
    %v7497 = vmul.f32 %v7491, 1.442695
    %v7498 = vpow.pop %v7497
    %v7499 = vmul.f32 %v7492, 1.442695
    %v7500 = vpow.pop %v7499
    %v7501 = vsel %vm2612, %v7494, 0.0
    %7502 = vadd.xlane.f32.xlu0 %v7501
    %v7503 = vpop.xlane.xlu0 %7502
    %v7504 = vsel %vm2612, %v7496, 0.0
    %7505 = vadd.xlane.f32.xlu0 %v7504
    %v7506 = vpop.xlane.xlu0 %7505
    %v7507 = vsel %vm2612, %v7498, 0.0
    %7508 = vadd.xlane.f32.xlu0 %v7507
    %v7509 = vpop.xlane.xlu0 %7508
    %v7510 = vsel %vm2612, %v7500, 0.0
    %7511 = vadd.xlane.f32.xlu0 %v7510
    %v7512 = vpop.xlane.xlu0 %7511
    %v7513 = vrcp.pop %v7503
    %v7514 = vmul.f32 %v7494, %v7513
    %v7515 = vrcp.pop %v7506
    %v7516 = vmul.f32 %v7496, %v7515
    %v7517 = vrcp.pop %v7509
    %v7518 = vmul.f32 %v7498, %v7517
    %v7519 = vrcp.pop %v7512
    %v7520 = vmul.f32 %v7500, %v7519
    %v7521 = vpack.c.bf16 %v7516, %v7514
    %v7522 = vpack.c.bf16 %v7520, %v7518
    %v7527 = vunpack.c.l.b16 %v7380
    %v7528 = vunpack.c.l.b16 %v7381
    %v7529 = vunpack.c.l.b16 %v7382
    %v7530 = vunpack.c.l.b16 %v7383
    %v7531 = vpack.c.b16 %v7528, %v7527
    %v7532 = vpack.c.b16 %v7530, %v7529
    %7533 = vrot.lane.b32.xlu0 %v7531, 64
    %v7534 = vpop.permute.xlu0 %7533
    %7535 = vrot.lane.b32.xlu0 %v7532, 64
    %v7536 = vpop.permute.xlu0 %7535
    %v7540 = vsel %vm2612, %v7521, 0
    %v7543 = vsel %vm2612, %v7522, 0
    %7545 = vmatprep.subr.bf16.mxu0 0
    %7546 = vmatpush1.bf16.msra.mxu0 0
    %7547 = vmatprep.subr.bf16.mxu0 0
    %7548 = vmatpush1.bf16.msra.mxu0 0
    %7549 = vmatprep.subr.bf16.mxu0 0
    %7550 = vmatpush1.bf16.msra.mxu0 0
    %7551 = vmatprep.subr.bf16.mxu0 0
    %7552 = vmatpush1.bf16.msra.mxu0 0
    %7553 = vmatprep.subr.bf16.mxu0 0
    %7554 = vmatpush1.bf16.msra.mxu0 0
    %7555 = vmatprep.subr.bf16.mxu0 0
    %7556 = vmatpush1.bf16.msra.mxu0 0
    %7557 = vmatprep.subr.bf16.mxu0 0
    %7558 = vmatpush1.bf16.msra.mxu0 %v7536
    %7559 = vmatprep.subr.bf16.mxu0 0
    %7560 = vmatpush1.bf16.msra.mxu0 %v7534
    %7561 = vmatprep.subr.bf16.mxu0 0
    %7562 = vmatpush2.bf16.msra.mxu0 0
    %7563 = vmatprep.subr.bf16.mxu0 0
    %7564 = vmatpush2.bf16.msra.mxu0 0
    %7565 = vmatprep.subr.bf16.mxu0 0
    %7566 = vmatpush2.bf16.msra.mxu0 0
    %7567 = vmatprep.subr.bf16.mxu0 0
    %7568 = vmatpush2.bf16.msra.mxu0 0
    %7569 = vmatprep.subr.bf16.mxu0 0
    %7570 = vmatpush2.bf16.msra.mxu0 0
    %7571 = vmatprep.subr.bf16.mxu0 0
    %7572 = vmatpush2.bf16.msra.mxu0 0
    %7573 = vmatprep.subr.bf16.mxu0 0
    %7574 = vmatpush2.bf16.msra.mxu0 0
    %7575 = vmatprep.subr.bf16.mxu0 0
    %7576 = vmatpush2.bf16.msra.mxu0 0
    %7577 = vmatprep.mubr.bf16.mxu0 0
    %7578 = vmatmul.mubr.bf16.gmra.mxu0 %v7540
    %v7579 = vpop.f32.mrf.mxu0
    %v7580 = vadd.f32 0.0, %v7579
    %v7581 = vpop.f32.mrf.mxu0
    %v7582 = vpop.f32.mrf.mxu0
    %v7583 = vadd.f32 0.0, %v7582
    %v7584 = vpop.f32.mrf.mxu0
    %7585 = vmatprep.mubr.bf16.mxu0 0
    %7586 = vmatmul.mubr.bf16.gmra.mxu0 %v7543
    %v7587 = vpop.f32.mrf.mxu0
    %v7588 = vadd.f32 0.0, %v7587
    %v7589 = vpop.f32.mrf.mxu0
    %v7590 = vpop.f32.mrf.mxu0
    %v7591 = vadd.f32 0.0, %v7590
    %v7592 = vpop.f32.mrf.mxu0
    %7593 = vdwg.mxu0
    %v7594 = vld [vmem:[#allocation9 + $0x60] sm:$0xff]
    %v7595 = vld [vmem:[#allocation9 + $0x68] sm:$0xff]
    %v7596 = vld [vmem:[#allocation9 + $0x70] sm:$0xff]
    %v7597 = vld [vmem:[#allocation9 + $0x78] sm:$0xff]
    %v7598 = vld [vmem:[#allocation9 + $0x80] sm:$0xff]
    %v7599 = vld [vmem:[#allocation9 + $0x88] sm:$0xff]
    %v7600 = vld [vmem:[#allocation9 + $0x90] sm:$0xff]
    %v7601 = vld [vmem:[#allocation9 + $0x98] sm:$0xff]
    %v7602 = vld [vmem:[#allocation9 + $0xa0] sm:$0xff]
    %v7603 = vld [vmem:[#allocation9 + $0xa8] sm:$0xff]
    %v7604 = vld [vmem:[#allocation9 + $0xb0] sm:$0xff]
    %v7605 = vld [vmem:[#allocation9 + $0xb8] sm:$0xff]
    %v7606 = vpack.c.bf16 %v7583, %v7580
    %v7607 = vpack.c.bf16 %v7591, %v7588
    %v7608 = vld [vmem:[#allocation8 + $0x1e0] sm:$0xff]
    %v7609 = vld [vmem:[#allocation8 + $0x1e8] sm:$0xf]
    %v7610 = vld [vmem:[#allocation8 + $0x1ec] sm:$0xff]
    %v7611 = vld [vmem:[#allocation8 + $0x1f4] sm:$0xf]
    %v7612 = vld [vmem:[#allocation8 + $0x1f8] sm:$0xff]
    %v7613 = vld [vmem:[#allocation8 + $0x200] sm:$0xf]
    %v7614 = vld [vmem:[#allocation8 + $0x204] sm:$0xff]
    %v7615 = vld [vmem:[#allocation8 + $0x20c] sm:$0xf]
    %v7616 = vld [vmem:[#allocation8 + $0x210] sm:$0xff]
    %v7617 = vld [vmem:[#allocation8 + $0x218] sm:$0xf]
    %v7618 = vld [vmem:[#allocation8 + $0x21c] sm:$0xff]
    %v7619 = vld [vmem:[#allocation8 + $0x224] sm:$0xf]
    %v7620 = vld [vmem:[#allocation8 + $0x228] sm:$0xff]
    %v7621 = vld [vmem:[#allocation8 + $0x230] sm:$0xf]
    %v7622 = vld [vmem:[#allocation8 + $0x234] sm:$0xff]
    %v7623 = vld [vmem:[#allocation8 + $0x23c] sm:$0xf]
    %v7640 = vunpack.c.l.b16 %v7608
    %v7641 = vunpack.c.h.b16 %v7608
    %v7642 = vunpack.c.l.b16 %v7609
    %v7643 = vunpack.c.l.b16 %v7610
    %v7644 = vunpack.c.h.b16 %v7610
    %v7645 = vunpack.c.l.b16 %v7611
    %v7646 = vunpack.c.l.b16 %v7612
    %v7647 = vunpack.c.h.b16 %v7612
    %v7648 = vunpack.c.l.b16 %v7613
    %v7649 = vunpack.c.l.b16 %v7614
    %v7650 = vunpack.c.h.b16 %v7614
    %v7651 = vunpack.c.l.b16 %v7615
    %v7652 = vunpack.c.l.b16 %v7616
    %v7653 = vunpack.c.h.b16 %v7616
    %v7654 = vunpack.c.l.b16 %v7617
    %v7655 = vunpack.c.l.b16 %v7618
    %v7656 = vunpack.c.h.b16 %v7618
    %v7657 = vunpack.c.l.b16 %v7619
    %v7658 = vunpack.c.l.b16 %v7620
    %v7659 = vunpack.c.h.b16 %v7620
    %v7660 = vunpack.c.l.b16 %v7621
    %v7661 = vunpack.c.l.b16 %v7622
    %v7662 = vunpack.c.h.b16 %v7622
    %v7663 = vunpack.c.l.b16 %v7623
    %v7664 = vpack.c.b16 %v7643, %v7640
    %v7665 = vpack.c.b16 %v7644, %v7641
    %v7666 = vpack.c.b16 %v7645, %v7642
    %v7667 = vpack.c.b16 %v7649, %v7646
    %v7668 = vpack.c.b16 %v7650, %v7647
    %v7669 = vpack.c.b16 %v7651, %v7648
    %v7670 = vpack.c.b16 %v7655, %v7652
    %v7671 = vpack.c.b16 %v7656, %v7653
    %v7672 = vpack.c.b16 %v7657, %v7654
    %v7673 = vpack.c.b16 %v7661, %v7658
    %v7674 = vpack.c.b16 %v7662, %v7659
    %v7675 = vpack.c.b16 %v7663, %v7660
    %v7689 = vsel %vm2546, %v7606, 0
    %v7692 = vsel %vm2546, %v7607, 0
    %7694 = vmatprep.subr.bf16.mxu0 0
    %7695 = vmatpush1.bf16.msra.mxu0 0
    %7696 = vmatprep.subr.bf16.mxu0 0
    %7697 = vmatpush1.bf16.msra.mxu0 0
    %7698 = vmatprep.subr.bf16.mxu0 0
    %7699 = vmatpush1.bf16.msra.mxu0 0
    %7700 = vmatprep.subr.bf16.mxu0 0
    %7701 = vmatpush1.bf16.msra.mxu0 0
    %7702 = vmatprep.subr.bf16.mxu0 %v7674
    %7703 = vmatpush1.bf16.msra.mxu0 %v7673
    %7704 = vmatprep.subr.bf16.mxu0 %v7671
    %7705 = vmatpush1.bf16.msra.mxu0 %v7670
    %7706 = vmatprep.subr.bf16.mxu0 %v7668
    %7707 = vmatpush1.bf16.msra.mxu0 %v7667
    %7708 = vmatprep.subr.bf16.mxu0 %v7665
    %7709 = vmatpush1.bf16.msra.mxu0 %v7664
    %7710 = vmatprep.subr.bf16.mxu0 0
    %7711 = vmatpush2.bf16.msra.mxu0 0
    %7712 = vmatprep.subr.bf16.mxu0 0
    %7713 = vmatpush2.bf16.msra.mxu0 0
    %7714 = vmatprep.subr.bf16.mxu0 0
    %7715 = vmatpush2.bf16.msra.mxu0 0
    %7716 = vmatprep.subr.bf16.mxu0 0
    %7717 = vmatpush2.bf16.msra.mxu0 0
    %7718 = vmatprep.subr.bf16.mxu0 0
    %7719 = vmatpush2.bf16.msra.mxu0 0
    %7720 = vmatprep.subr.bf16.mxu0 0
    %7721 = vmatpush2.bf16.msra.mxu0 0
    %7722 = vmatprep.subr.bf16.mxu0 0
    %7723 = vmatpush2.bf16.msra.mxu0 0
    %7724 = vmatprep.subr.bf16.mxu0 0
    %7725 = vmatpush2.bf16.msra.mxu0 0
    %7726 = vmatprep.mubr.bf16.mxu0 0
    %7727 = vmatmul.mubr.bf16.gmra.mxu0 %v7689
    %v7728 = vpop.f32.mrf.mxu0
    %v7729 = vadd.f32 0.0, %v7728
    %v7730 = vpop.f32.mrf.mxu0
    %v7731 = vadd.f32 0.0, %v7730
    %v7732 = vpop.f32.mrf.mxu0
    %v7733 = vadd.f32 0.0, %v7732
    %v7734 = vpop.f32.mrf.mxu0
    %v7735 = vadd.f32 0.0, %v7734
    %7736 = vmatprep.mubr.bf16.mxu0 0
    %7737 = vmatmul.mubr.bf16.gmra.mxu0 %v7692
    %v7738 = vpop.f32.mrf.mxu0
    %v7739 = vadd.f32 0.0, %v7738
    %v7740 = vpop.f32.mrf.mxu0
    %v7741 = vadd.f32 0.0, %v7740
    %v7742 = vpop.f32.mrf.mxu0
    %v7743 = vadd.f32 0.0, %v7742
    %v7744 = vpop.f32.mrf.mxu0
    %v7745 = vadd.f32 0.0, %v7744
    %7746 = vdwg.mxu0
    %7747 = vmatprep.subr.bf16.mxu0 0
    %7748 = vmatpush1.bf16.msra.mxu0 0
    %7749 = vmatprep.subr.bf16.mxu0 0
    %7750 = vmatpush1.bf16.msra.mxu0 0
    %7751 = vmatprep.subr.bf16.mxu0 0
    %7752 = vmatpush1.bf16.msra.mxu0 0
    %7753 = vmatprep.subr.bf16.mxu0 0
    %7754 = vmatpush1.bf16.msra.mxu0 0
    %7755 = vmatprep.subr.bf16.mxu0 0
    %7756 = vmatpush1.bf16.msra.mxu0 %v7675
    %7757 = vmatprep.subr.bf16.mxu0 0
    %7758 = vmatpush1.bf16.msra.mxu0 %v7672
    %7759 = vmatprep.subr.bf16.mxu0 0
    %7760 = vmatpush1.bf16.msra.mxu0 %v7669
    %7761 = vmatprep.subr.bf16.mxu0 0
    %7762 = vmatpush1.bf16.msra.mxu0 %v7666
    %7763 = vmatprep.subr.bf16.mxu0 0
    %7764 = vmatpush2.bf16.msra.mxu0 0
    %7765 = vmatprep.subr.bf16.mxu0 0
    %7766 = vmatpush2.bf16.msra.mxu0 0
    %7767 = vmatprep.subr.bf16.mxu0 0
    %7768 = vmatpush2.bf16.msra.mxu0 0
    %7769 = vmatprep.subr.bf16.mxu0 0
    %7770 = vmatpush2.bf16.msra.mxu0 0
    %7771 = vmatprep.subr.bf16.mxu0 0
    %7772 = vmatpush2.bf16.msra.mxu0 0
    %7773 = vmatprep.subr.bf16.mxu0 0
    %7774 = vmatpush2.bf16.msra.mxu0 0
    %7775 = vmatprep.subr.bf16.mxu0 0
    %7776 = vmatpush2.bf16.msra.mxu0 0
    %7777 = vmatprep.subr.bf16.mxu0 0
    %7778 = vmatpush2.bf16.msra.mxu0 0
    %7779 = vmatprep.mubr.bf16.mxu0 0
    %7780 = vmatmul.mubr.bf16.gmra.mxu0 %v7689
    %v7781 = vpop.f32.mrf.mxu0
    %v7782 = vadd.f32 0.0, %v7781
    %v7783 = vpop.f32.mrf.mxu0
    %v7784 = vpop.f32.mrf.mxu0
    %v7785 = vadd.f32 0.0, %v7784
    %v7786 = vpop.f32.mrf.mxu0
    %7787 = vmatprep.mubr.bf16.mxu0 0
    %7788 = vmatmul.mubr.bf16.gmra.mxu0 %v7692
    %v7789 = vpop.f32.mrf.mxu0
    %v7790 = vadd.f32 0.0, %v7789
    %v7791 = vpop.f32.mrf.mxu0
    %v7792 = vpop.f32.mrf.mxu0
    %v7793 = vadd.f32 0.0, %v7792
    %v7794 = vpop.f32.mrf.mxu0
    %7795 = vdwg.mxu0
    %v7796 = vadd.f32 %v7594, %v7729
    %v7797 = vadd.f32 %v7595, %v7731
    %v7798 = vadd.f32 %v7596, %v7782
    %v7799 = vadd.f32 %v7597, %v7733
    %v7800 = vadd.f32 %v7598, %v7735
    %v7801 = vadd.f32 %v7599, %v7785
    %v7802 = vadd.f32 %v7600, %v7739
    %v7803 = vadd.f32 %v7601, %v7741
    %v7804 = vadd.f32 %v7602, %v7790
    %v7805 = vadd.f32 %v7603, %v7743
    %v7806 = vadd.f32 %v7604, %v7745
    %v7807 = vadd.f32 %v7605, %v7793
    %7808 = vst [vmem:[#allocation9 + $0x60] sm:$0xff] %v7796
    %7809 = vst [vmem:[#allocation9 + $0x68] sm:$0xff] %v7797
    %7810 = vst [vmem:[#allocation9 + $0x70] sm:$0xff] %v7798
    %7811 = vst [vmem:[#allocation9 + $0x78] sm:$0xff] %v7799
    %7812 = vst [vmem:[#allocation9 + $0x80] sm:$0xff] %v7800
    %7813 = vst [vmem:[#allocation9 + $0x88] sm:$0xff] %v7801
    %7814 = vst [vmem:[#allocation9 + $0x90] sm:$0xff] %v7802
    %7815 = vst [vmem:[#allocation9 + $0x98] sm:$0xff] %v7803
    %7816 = vst [vmem:[#allocation9 + $0xa0] sm:$0xff] %v7804
    %7817 = vst [vmem:[#allocation9 + $0xa8] sm:$0xff] %v7805
    %7818 = vst [vmem:[#allocation9 + $0xb0] sm:$0xff] %v7806
    %7819 = vst [vmem:[#allocation9 + $0xb8] sm:$0xff] %v7807
    // Predicated region
    $region30: #{tpu_custom_call.1} parent=1 // pred_check
      _
    $region31: #{tpu_custom_call.1} parent=1 // pred_check_branch
      %7821 = sbr.rel (0) target = $region33
    $region32: #{tpu_custom_call.1} parent=1 // pred_region
      %s7823 = ssub.s32 3072, 3072
      %7824 = vsyncadd [#allocation5], %s7823
      %s7825 = sshll.u32 [#allocation9], 4
      %s7826 = int_to_ptr.vmem [resolvable:$true] %s7825
      %7831 = dma.vmem_to_hbm [thread:$0]  %s7826, 3072, %s4, [#allocation5], 384, 384, 24
    $region33: #{tpu_custom_call.1} parent=1 // pred_fallthru
      _
    // Predicated region
    $region34: #{tpu_custom_call.1} parent=1 // pred_check
      _
    $region35: #{tpu_custom_call.1} parent=1 // pred_check_branch
      %7833 = sbr.rel (0) target = $region37
    $region36: #{tpu_custom_call.1} parent=1 // pred_region
      %7834 = dma.done [#allocation5], 3072
    $region37: #{tpu_custom_call.1} parent=1 // pred_fallthru
      _
    %7835 = vsyncpa [#allocation4], 1
    %7836 = vsyncpa [#allocation7], 1
    %7837 = vsyncpa [#allocation5], 1

</llo_original>
